<compile_context>
chip_gen: v7x
topology: tpu7x:2x2x1
jax: 0.10.0
libtpu: 0.0.40
codegen_flags: <defaults>
</compile_context>

<pallas_src>
import functools

import jax
import jax.numpy as jnp
from jax.experimental import pallas as pl
from jax.experimental.pallas import tpu as pltpu

COMPUTE_DTYPE = jnp.bfloat16          # MXU operand dtype (accumulation is f32)
_VMEM_LIMIT_BYTES = 48 * 1024 * 1024  # explicit scoped-VMEM cap, safe on v5e/v6e/v7x


# ----------------------------------------------------------------------------
# Pallas kernel: tiled matmul + bias + optional ReLU (the hot path)
# ----------------------------------------------------------------------------
def _matmul_bias_kernel(x_ref, w_ref, b_ref, o_ref, acc_ref, *, apply_relu):
    """Computes one (tm, tn) output tile; K is reduced over grid axis 2."""
    @pl.when(pl.program_id(2) == 0)
    def _():
        acc_ref[...] = jnp.zeros_like(acc_ref)

    acc_ref[...] += jnp.dot(x_ref[...], w_ref[...],
                            preferred_element_type=jnp.float32)

    @pl.when(pl.program_id(2) == pl.num_programs(2) - 1)
    def _():
        out = acc_ref[...] + b_ref[...].astype(jnp.float32)   # f32 epilogue
        if apply_relu:
            out = jnp.maximum(out, 0.0)
        o_ref[...] = out.astype(o_ref.dtype)


def _pick_tiles(M, K, N):
    """Tile sizes satisfying the (8,128) constraint for this network's shapes."""
    # M: partial last block is fine (OOB rows only write to dropped output rows).
    tm = M if M <= 256 else 256                      # 256 is a multiple of 8
    # N: tn must divide N (or equal N) and be lane-friendly when tiled.
    if N <= 256:
        tn = N
    elif N % 256 == 0:
        tn = 256
    elif N % 128 == 0:
        tn = 128
    else:
        tn = N
    # K: reduction axis -> tk must divide K exactly; multiple of 128 when tiled.
    if K <= 1024 or K % 128 != 0:
        tk = K
    else:
        tk = 128
        d = 128
        while d <= 1024:
            if K % d == 0:
                tk = d
            d += 128
    return tm, tn, tk


def pallas_linear(x, w, b, *, relu, out_dtype):
    """Fused y = act(x @ w + b). x: [M, K], w: [K, N], b: [1, N] f32 -> [M, N]."""
    M, K = x.shape
    K2, N = w.shape
    assert K == K2 and b.shape == (1, N), (x.shape, w.shape, b.shape)

    tm, tn, tk = _pick_tiles(M, K, N)
    grid = (pl.cdiv(M, tm), N // tn, K // tk)

    kernel = functools.partial(_matmul_bias_kernel, apply_relu=relu)
    out_itemsize = jnp.dtype(out_dtype).itemsize
    cost = pl.CostEstimate(
        flops=2 * M * N * K,
        transcendentals=0,
        bytes_accessed=(M * K * x.dtype.itemsize + K * N * w.dtype.itemsize
                        + N * 4 + M * N * out_itemsize),
    )
    return pl.pallas_call(
        kernel,
        out_shape=jax.ShapeDtypeStruct((M, N), out_dtype),
        grid=grid,
        in_specs=[
            pl.BlockSpec((tm, tk), lambda i, j, k: (i, k)),
            pl.BlockSpec((tk, tn), lambda i, j, k: (k, j)),
            pl.BlockSpec((1, tn), lambda i, j, k: (0, j)),
        ],
        out_specs=pl.BlockSpec((tm, tn), lambda i, j, k: (i, j)),
        scratch_shapes=[pltpu.VMEM((tm, tn), jnp.float32)],
        compiler_params=pltpu.CompilerParams(
            dimension_semantics=("parallel", "parallel", "arbitrary"),
            vmem_limit_bytes=_VMEM_LIMIT_BYTES,
        ),
        cost_estimate=cost,
    )(x, w, b)


# ----------------------------------------------------------------------------
# Conv2d (no padding, stride S), NHWC activations, via im2col + Pallas matmul
# ----------------------------------------------------------------------------
def conv2d_relu(x, w_mat, b, *, ksize, stride, relu=True):
    """x: [B,H,W,C] (NHWC), w_mat: [ksize*ksize*C, O], b: [1,O] -> [B,Ho,Wo,O]."""
    B, H, W, C = x.shape
    KKC, O = w_mat.shape
    assert KKC == ksize * ksize * C
    Ho = (H - ksize) // stride + 1
    Wo = (W - ksize) // stride + 1
    cols = []
    for ki in range(ksize):
        for kj in range(ksize):
            cols.append(x[:, ki:ki + stride * (Ho - 1) + 1:stride,
                           kj:kj + stride * (Wo - 1) + 1:stride, :])   # [B,Ho,Wo,C]
    # [B, Ho, Wo, k*k, C] -> pure reshape (no transpose): column = (ki*k+kj)*C + c
    patches = jnp.stack(cols, axis=3).reshape(B * Ho * Wo, ksize * ksize * C)
    out = pallas_linear(patches, w_mat, b, relu=relu, out_dtype=x.dtype)
    return out.reshape(B, Ho, Wo, O)


# ----------------------------------------------------------------------------
# Qnet parameters (PyTorch layout) + one-time conversion to kernel layout
# ----------------------------------------------------------------------------
def init_qnet_params(key, c, output_dim):
    """Parameters in PyTorch layout (as a loaded state_dict would be)."""
    ks = jax.random.split(key, 5)

    def w(k, shape, fan_in):
        return jax.random.normal(k, shape, jnp.float32) / jnp.sqrt(fan_in)

    return {
        "conv1_w": w(ks[0], (32, c, 8, 8), c * 8 * 8),
        "conv1_b": jnp.zeros((32,), jnp.float32),
        "conv2_w": w(ks[1], (64, 32, 4, 4), 32 * 4 * 4),
        "conv2_b": jnp.zeros((64,), jnp.float32),
        "conv3_w": w(ks[2], (64, 64, 3, 3), 64 * 3 * 3),
        "conv3_b": jnp.zeros((64,), jnp.float32),
        "fc1_w":   w(ks[3], (512, 3136), 3136),          # [out, in], CHW flatten
        "fc1_b":   jnp.zeros((512,), jnp.float32),
        "fc2_w":   w(ks[4], (output_dim, 512), 512),
        "fc2_b":   jnp.zeros((output_dim,), jnp.float32),
    }


def prepare_params(p, output_dim, dtype=COMPUTE_DTYPE):
    """One-time (outside jit) conversion to matmul-ready, MXU-friendly layout."""
    def conv_w(w):                       # [O, C, kh, kw] -> [kh*kw*C, O]
        O, C, kh, kw = w.shape
        return w.transpose(2, 3, 1, 0).reshape(kh * kw * C, O).astype(dtype)

    # fc1: torch columns index a (C,H,W) flatten of conv3's [B,64,7,7] output;
    # our NHWC activations flatten as (H,W,C) -> permute rows accordingly.
    assert p["fc1_w"].shape == (512, 3136)
    fc1 = (p["fc1_w"].reshape(512, 64, 7, 7)
                     .transpose(0, 2, 3, 1)        # [512, 7, 7, 64]
                     .reshape(512, 3136).T)        # [3136 (H,W,C), 512]

    # fc2: zero-pad N from output_dim (e.g. 6) to a lane-dense multiple of 128.
    n_pad = max(128, ((output_dim + 127) // 128) * 128)
    fc2_w = jnp.zeros((512, n_pad), dtype).at[:, :output_dim].set(
        p["fc2_w"].T.astype(dtype))
    fc2_b = jnp.zeros((1, n_pad), jnp.float32).at[0, :output_dim].set(p["fc2_b"])

    return {
        "conv1_w": conv_w(p["conv1_w"]), "conv1_b": p["conv1_b"].reshape(1, -1),
        "conv2_w": conv_w(p["conv2_w"]), "conv2_b": p["conv2_b"].reshape(1, -1),
        "conv3_w": conv_w(p["conv3_w"]), "conv3_b": p["conv3_b"].reshape(1, -1),
        "fc1_w": fc1.astype(dtype),      "fc1_b": p["fc1_b"].reshape(1, -1),
        "fc2_w": fc2_w,                  "fc2_b": fc2_b,
    }


# ----------------------------------------------------------------------------
# Forward pass
# ----------------------------------------------------------------------------
def qnet_forward(params, x, *, output_dim):
    """x: [B, c, 84, 84] NCHW f32 (PyTorch convention) -> [B, output_dim] f32."""
    x = x.transpose(0, 2, 3, 1).astype(COMPUTE_DTYPE)                       # NHWC bf16
    h = conv2d_relu(x, params["conv1_w"], params["conv1_b"], ksize=8, stride=4)  # [B,20,20,32]
    h = conv2d_relu(h, params["conv2_w"], params["conv2_b"], ksize=4, stride=2)  # [B, 9, 9,64]
    h = conv2d_relu(h, params["conv3_w"], params["conv3_b"], ksize=3, stride=1)  # [B, 7, 7,64]
    B = h.shape[0]
    h = h.reshape(B, -1)                                                    # [B,3136] (H,W,C)
    h = pallas_linear(h, params["fc1_w"], params["fc1_b"], relu=True,
                      out_dtype=COMPUTE_DTYPE)                              # [B, 512]
    out = pallas_linear(h, params["fc2_w"], params["fc2_b"], relu=False,
                        out_dtype=jnp.float32)                              # [B, 128]
    return out[:, :output_dim]


if __name__ == "__main__":
    # Linear(3136, 512) in the module pins the spatial size to 84x84.
    B, C, H, W = 2, 4, 84, 84
    OUTPUT_DIM = 6

    key = jax.random.PRNGKey(0)
    k_x, k_p = jax.random.split(key)
    x = jax.random.normal(k_x, (B, C, H, W), jnp.float32)

    torch_layout_params = init_qnet_params(k_p, C, OUTPUT_DIM)
    params = prepare_params(torch_layout_params, OUTPUT_DIM)   # once, outside jit

    fwd = jax.jit(functools.partial(qnet_forward, output_dim=OUTPUT_DIM))
    out = fwd(params, x)
    out = jax.block_until_ready(out)
    assert out.shape == (B, OUTPUT_DIM), out.shape
    print("KERNEL_OK")
</pallas_src>

<mosaic_0001>
module attributes {stable_mosaic.version = 11 : i64} {
  func.func @_matmul_bias_kernel(%arg0: i32, %arg1: i32, %arg2: i32, %arg3: memref<256x256xbf16, #tpu.memory_space<vmem>>, %arg4: memref<256x32xbf16, #tpu.memory_space<vmem>>, %arg5: memref<1x32xf32, #tpu.memory_space<vmem>>, %arg6: memref<256x32xbf16, #tpu.memory_space<vmem>>, %arg7: memref<256x32xf32, #tpu.memory_space<vmem>>) attributes {dimension_semantics = [#tpu.dimension_semantics<parallel>, #tpu.dimension_semantics<parallel>, #tpu.dimension_semantics<arbitrary>], iteration_bounds = array<i64: 4, 1, 1>, scalar_prefetch = 0 : i64, scratch_operands = 1 : i64, tpu.core_type = #tpu.core_type<tc>, window_params = [{transform_indices = @transform_0, window_bounds = array<i64: 256, 256>}, {transform_indices = @transform_1, window_bounds = array<i64: 256, 32>}, {transform_indices = @transform_2, window_bounds = array<i64: 1, 32>}, {transform_indices = @transform_3, window_bounds = array<i64: 256, 32>}]} {
    %c0_i32 = arith.constant 0 : i32
    %0 = arith.cmpi eq, %arg2, %c0_i32 : i32
    %1 = arith.extui %0 : i1 to i32
    %c0_i32_0 = arith.constant 0 : i32
    %2 = arith.cmpi ne, %1, %c0_i32_0 : i32
    scf.if %2 {
      %cst_10 = arith.constant 0.000000e+00 : f32
      %12 = vector.broadcast %cst_10 : f32 to vector<256x32xf32>
      %c0_11 = arith.constant 0 : index
      %c0_12 = arith.constant 0 : index
      %13 = vector.load %arg7[%c0_11, %c0_12] : memref<256x32xf32, #tpu.memory_space<vmem>>, vector<256x32xf32>
      tpu.vector_store %arg7[%c0_11, %c0_12], %12 {strides = array<i32>} : memref<256x32xf32, #tpu.memory_space<vmem>>, vector<256x32xf32>,
    } else {
    }
    %c0 = arith.constant 0 : index
    %c0_1 = arith.constant 0 : index
    %3 = vector.load %arg7[%c0, %c0_1] : memref<256x32xf32, #tpu.memory_space<vmem>>, vector<256x32xf32>
    %c0_2 = arith.constant 0 : index
    %c0_3 = arith.constant 0 : index
    %4 = vector.load %arg3[%c0_2, %c0_3] : memref<256x256xbf16, #tpu.memory_space<vmem>>, vector<256x256xbf16>
    %c0_4 = arith.constant 0 : index
    %c0_5 = arith.constant 0 : index
    %5 = vector.load %arg4[%c0_4, %c0_5] : memref<256x32xbf16, #tpu.memory_space<vmem>>, vector<256x32xbf16>
    %cst = arith.constant dense<0.000000e+00> : vector<256x32xf32>
    %6 = tpu.matmul %4, %5, %cst {dimension_numbers = #tpu.dot_dimension_numbers<[1], [0], [0], [1], [0, 0, 1, 1], [], []>} : vector<256x256xbf16>, vector<256x32xbf16>, vector<256x32xf32> -> vector<256x32xf32>
    %7 = arith.addf %3, %6 : vector<256x32xf32>
    %c0_6 = arith.constant 0 : index
    %c0_7 = arith.constant 0 : index
    %8 = vector.load %arg7[%c0_6, %c0_7] : memref<256x32xf32, #tpu.memory_space<vmem>>, vector<256x32xf32>
    tpu.vector_store %arg7[%c0_6, %c0_7], %7 {strides = array<i32>} : memref<256x32xf32, #tpu.memory_space<vmem>>, vector<256x32xf32>,
    %c0_i32_8 = arith.constant 0 : i32
    %9 = arith.cmpi eq, %arg2, %c0_i32_8 : i32
    %10 = arith.extui %9 : i1 to i32
    %c0_i32_9 = arith.constant 0 : i32
    %11 = arith.cmpi ne, %10, %c0_i32_9 : i32
    scf.if %11 {
      %c0_10 = arith.constant 0 : index
      %c0_11 = arith.constant 0 : index
      %12 = vector.load %arg7[%c0_10, %c0_11] : memref<256x32xf32, #tpu.memory_space<vmem>>, vector<256x32xf32>
      %c0_12 = arith.constant 0 : index
      %c0_13 = arith.constant 0 : index
      %13 = vector.load %arg5[%c0_12, %c0_13] : memref<1x32xf32, #tpu.memory_space<vmem>>, vector<1x32xf32>
      %14 = vector.broadcast %13 : vector<1x32xf32> to vector<256x32xf32>
      %15 = arith.addf %12, %14 : vector<256x32xf32>
      %cst_14 = arith.constant 0.000000e+00 : f32
      %16 = vector.broadcast %cst_14 : f32 to vector<256x32xf32>
      %17 = arith.maximumf %15, %16 : vector<256x32xf32>
      %18 = arith.truncf %17 : vector<256x32xf32> to vector<256x32xbf16>
      %c0_15 = arith.constant 0 : index
      %c0_16 = arith.constant 0 : index
      %19 = vector.load %arg6[%c0_15, %c0_16] : memref<256x32xbf16, #tpu.memory_space<vmem>>, vector<256x32xbf16>
      tpu.vector_store %arg6[%c0_15, %c0_16], %18 {strides = array<i32>} : memref<256x32xbf16, #tpu.memory_space<vmem>>, vector<256x32xbf16>,
    } else {
    }
    return
  }
  func.func @transform_0(%arg0: i32, %arg1: i32, %arg2: i32) -> (i32, i32) {
    %c0_i32 = arith.constant 0 : i32
    return %arg0, %arg2 : i32, i32
  }
  func.func @transform_1(%arg0: i32, %arg1: i32, %arg2: i32) -> (i32, i32) {
    %c0_i32 = arith.constant 0 : i32
    return %arg2, %arg1 : i32, i32
  }
  func.func @transform_2(%arg0: i32, %arg1: i32, %arg2: i32) -> (i32, i32) {
    %c0_i32 = arith.constant 0 : i32
    %c0_i32_0 = arith.constant 0 : i32
    return %c0_i32, %arg1 : i32, i32
  }
  func.func @transform_3(%arg0: i32, %arg1: i32, %arg2: i32) -> (i32, i32) {
    %c0_i32 = arith.constant 0 : i32
    return %arg0, %arg1 : i32, i32
  }
}

module attributes {stable_mosaic.version = 11 : i64} {
  func.func @_matmul_bias_kernel(%arg0: i32, %arg1: i32, %arg2: i32, %arg3: memref<162x512xbf16, #tpu.memory_space<vmem>>, %arg4: memref<512x64xbf16, #tpu.memory_space<vmem>>, %arg5: memref<1x64xf32, #tpu.memory_space<vmem>>, %arg6: memref<162x64xbf16, #tpu.memory_space<vmem>>, %arg7: memref<162x64xf32, #tpu.memory_space<vmem>>) attributes {dimension_semantics = [#tpu.dimension_semantics<parallel>, #tpu.dimension_semantics<parallel>, #tpu.dimension_semantics<arbitrary>], iteration_bounds = array<i64: 1, 1, 1>, scalar_prefetch = 0 : i64, scratch_operands = 1 : i64, tpu.core_type = #tpu.core_type<tc>, window_params = [{transform_indices = @transform_0, window_bounds = array<i64: 162, 512>}, {transform_indices = @transform_1, window_bounds = array<i64: 512, 64>}, {transform_indices = @transform_2, window_bounds = array<i64: 1, 64>}, {transform_indices = @transform_3, window_bounds = array<i64: 162, 64>}]} {
    %c0_i32 = arith.constant 0 : i32
    %0 = arith.cmpi eq, %arg2, %c0_i32 : i32
    %1 = arith.extui %0 : i1 to i32
    %c0_i32_0 = arith.constant 0 : i32
    %2 = arith.cmpi ne, %1, %c0_i32_0 : i32
    scf.if %2 {
      %cst_10 = arith.constant 0.000000e+00 : f32
      %12 = vector.broadcast %cst_10 : f32 to vector<162x64xf32>
      %c0_11 = arith.constant 0 : index
      %c0_12 = arith.constant 0 : index
      %13 = vector.load %arg7[%c0_11, %c0_12] : memref<162x64xf32, #tpu.memory_space<vmem>>, vector<162x64xf32>
      tpu.vector_store %arg7[%c0_11, %c0_12], %12 {strides = array<i32>} : memref<162x64xf32, #tpu.memory_space<vmem>>, vector<162x64xf32>,
    } else {
    }
    %c0 = arith.constant 0 : index
    %c0_1 = arith.constant 0 : index
    %3 = vector.load %arg7[%c0, %c0_1] : memref<162x64xf32, #tpu.memory_space<vmem>>, vector<162x64xf32>
    %c0_2 = arith.constant 0 : index
    %c0_3 = arith.constant 0 : index
    %4 = vector.load %arg3[%c0_2, %c0_3] : memref<162x512xbf16, #tpu.memory_space<vmem>>, vector<162x512xbf16>
    %c0_4 = arith.constant 0 : index
    %c0_5 = arith.constant 0 : index
    %5 = vector.load %arg4[%c0_4, %c0_5] : memref<512x64xbf16, #tpu.memory_space<vmem>>, vector<512x64xbf16>
    %cst = arith.constant dense<0.000000e+00> : vector<162x64xf32>
    %6 = tpu.matmul %4, %5, %cst {dimension_numbers = #tpu.dot_dimension_numbers<[1], [0], [0], [1], [0, 0, 1, 1], [], []>} : vector<162x512xbf16>, vector<512x64xbf16>, vector<162x64xf32> -> vector<162x64xf32>
    %7 = arith.addf %3, %6 : vector<162x64xf32>
    %c0_6 = arith.constant 0 : index
    %c0_7 = arith.constant 0 : index
    %8 = vector.load %arg7[%c0_6, %c0_7] : memref<162x64xf32, #tpu.memory_space<vmem>>, vector<162x64xf32>
    tpu.vector_store %arg7[%c0_6, %c0_7], %7 {strides = array<i32>} : memref<162x64xf32, #tpu.memory_space<vmem>>, vector<162x64xf32>,
    %c0_i32_8 = arith.constant 0 : i32
    %9 = arith.cmpi eq, %arg2, %c0_i32_8 : i32
    %10 = arith.extui %9 : i1 to i32
    %c0_i32_9 = arith.constant 0 : i32
    %11 = arith.cmpi ne, %10, %c0_i32_9 : i32
    scf.if %11 {
      %c0_10 = arith.constant 0 : index
      %c0_11 = arith.constant 0 : index
      %12 = vector.load %arg7[%c0_10, %c0_11] : memref<162x64xf32, #tpu.memory_space<vmem>>, vector<162x64xf32>
      %c0_12 = arith.constant 0 : index
      %c0_13 = arith.constant 0 : index
      %13 = vector.load %arg5[%c0_12, %c0_13] : memref<1x64xf32, #tpu.memory_space<vmem>>, vector<1x64xf32>
      %14 = vector.broadcast %13 : vector<1x64xf32> to vector<162x64xf32>
      %15 = arith.addf %12, %14 : vector<162x64xf32>
      %cst_14 = arith.constant 0.000000e+00 : f32
      %16 = vector.broadcast %cst_14 : f32 to vector<162x64xf32>
      %17 = arith.maximumf %15, %16 : vector<162x64xf32>
      %18 = arith.truncf %17 : vector<162x64xf32> to vector<162x64xbf16>
      %c0_15 = arith.constant 0 : index
      %c0_16 = arith.constant 0 : index
      %19 = vector.load %arg6[%c0_15, %c0_16] : memref<162x64xbf16, #tpu.memory_space<vmem>>, vector<162x64xbf16>
      tpu.vector_store %arg6[%c0_15, %c0_16], %18 {strides = array<i32>} : memref<162x64xbf16, #tpu.memory_space<vmem>>, vector<162x64xbf16>,
    } else {
    }
    return
  }
  func.func @transform_0(%arg0: i32, %arg1: i32, %arg2: i32) -> (i32, i32) {
    %c0_i32 = arith.constant 0 : i32
    return %arg0, %arg2 : i32, i32
  }
  func.func @transform_1(%arg0: i32, %arg1: i32, %arg2: i32) -> (i32, i32) {
    %c0_i32 = arith.constant 0 : i32
    return %arg2, %arg1 : i32, i32
  }
  func.func @transform_2(%arg0: i32, %arg1: i32, %arg2: i32) -> (i32, i32) {
    %c0_i32 = arith.constant 0 : i32
    %c0_i32_0 = arith.constant 0 : i32
    return %c0_i32, %arg1 : i32, i32
  }
  func.func @transform_3(%arg0: i32, %arg1: i32, %arg2: i32) -> (i32, i32) {
    %c0_i32 = arith.constant 0 : i32
    return %arg0, %arg1 : i32, i32
  }
}

module attributes {stable_mosaic.version = 11 : i64} {
  func.func @_matmul_bias_kernel(%arg0: i32, %arg1: i32, %arg2: i32, %arg3: memref<98x576xbf16, #tpu.memory_space<vmem>>, %arg4: memref<576x64xbf16, #tpu.memory_space<vmem>>, %arg5: memref<1x64xf32, #tpu.memory_space<vmem>>, %arg6: memref<98x64xbf16, #tpu.memory_space<vmem>>, %arg7: memref<98x64xf32, #tpu.memory_space<vmem>>) attributes {dimension_semantics = [#tpu.dimension_semantics<parallel>, #tpu.dimension_semantics<parallel>, #tpu.dimension_semantics<arbitrary>], iteration_bounds = array<i64: 1, 1, 1>, scalar_prefetch = 0 : i64, scratch_operands = 1 : i64, tpu.core_type = #tpu.core_type<tc>, window_params = [{transform_indices = @transform_0, window_bounds = array<i64: 98, 576>}, {transform_indices = @transform_1, window_bounds = array<i64: 576, 64>}, {transform_indices = @transform_2, window_bounds = array<i64: 1, 64>}, {transform_indices = @transform_3, window_bounds = array<i64: 98, 64>}]} {
    %c0_i32 = arith.constant 0 : i32
    %0 = arith.cmpi eq, %arg2, %c0_i32 : i32
    %1 = arith.extui %0 : i1 to i32
    %c0_i32_0 = arith.constant 0 : i32
    %2 = arith.cmpi ne, %1, %c0_i32_0 : i32
    scf.if %2 {
      %cst_10 = arith.constant 0.000000e+00 : f32
      %12 = vector.broadcast %cst_10 : f32 to vector<98x64xf32>
      %c0_11 = arith.constant 0 : index
      %c0_12 = arith.constant 0 : index
      %13 = vector.load %arg7[%c0_11, %c0_12] : memref<98x64xf32, #tpu.memory_space<vmem>>, vector<98x64xf32>
      tpu.vector_store %arg7[%c0_11, %c0_12], %12 {strides = array<i32>} : memref<98x64xf32, #tpu.memory_space<vmem>>, vector<98x64xf32>,
    } else {
    }
    %c0 = arith.constant 0 : index
    %c0_1 = arith.constant 0 : index
    %3 = vector.load %arg7[%c0, %c0_1] : memref<98x64xf32, #tpu.memory_space<vmem>>, vector<98x64xf32>
    %c0_2 = arith.constant 0 : index
    %c0_3 = arith.constant 0 : index
    %4 = vector.load %arg3[%c0_2, %c0_3] : memref<98x576xbf16, #tpu.memory_space<vmem>>, vector<98x576xbf16>
    %c0_4 = arith.constant 0 : index
    %c0_5 = arith.constant 0 : index
    %5 = vector.load %arg4[%c0_4, %c0_5] : memref<576x64xbf16, #tpu.memory_space<vmem>>, vector<576x64xbf16>
    %cst = arith.constant dense<0.000000e+00> : vector<98x64xf32>
    %6 = tpu.matmul %4, %5, %cst {dimension_numbers = #tpu.dot_dimension_numbers<[1], [0], [0], [1], [0, 0, 1, 1], [], []>} : vector<98x576xbf16>, vector<576x64xbf16>, vector<98x64xf32> -> vector<98x64xf32>
    %7 = arith.addf %3, %6 : vector<98x64xf32>
    %c0_6 = arith.constant 0 : index
    %c0_7 = arith.constant 0 : index
    %8 = vector.load %arg7[%c0_6, %c0_7] : memref<98x64xf32, #tpu.memory_space<vmem>>, vector<98x64xf32>
    tpu.vector_store %arg7[%c0_6, %c0_7], %7 {strides = array<i32>} : memref<98x64xf32, #tpu.memory_space<vmem>>, vector<98x64xf32>,
    %c0_i32_8 = arith.constant 0 : i32
    %9 = arith.cmpi eq, %arg2, %c0_i32_8 : i32
    %10 = arith.extui %9 : i1 to i32
    %c0_i32_9 = arith.constant 0 : i32
    %11 = arith.cmpi ne, %10, %c0_i32_9 : i32
    scf.if %11 {
      %c0_10 = arith.constant 0 : index
      %c0_11 = arith.constant 0 : index
      %12 = vector.load %arg7[%c0_10, %c0_11] : memref<98x64xf32, #tpu.memory_space<vmem>>, vector<98x64xf32>
      %c0_12 = arith.constant 0 : index
      %c0_13 = arith.constant 0 : index
      %13 = vector.load %arg5[%c0_12, %c0_13] : memref<1x64xf32, #tpu.memory_space<vmem>>, vector<1x64xf32>
      %14 = vector.broadcast %13 : vector<1x64xf32> to vector<98x64xf32>
      %15 = arith.addf %12, %14 : vector<98x64xf32>
      %cst_14 = arith.constant 0.000000e+00 : f32
      %16 = vector.broadcast %cst_14 : f32 to vector<98x64xf32>
      %17 = arith.maximumf %15, %16 : vector<98x64xf32>
      %18 = arith.truncf %17 : vector<98x64xf32> to vector<98x64xbf16>
      %c0_15 = arith.constant 0 : index
      %c0_16 = arith.constant 0 : index
      %19 = vector.load %arg6[%c0_15, %c0_16] : memref<98x64xbf16, #tpu.memory_space<vmem>>, vector<98x64xbf16>
      tpu.vector_store %arg6[%c0_15, %c0_16], %18 {strides = array<i32>} : memref<98x64xbf16, #tpu.memory_space<vmem>>, vector<98x64xbf16>,
    } else {
    }
    return
  }
  func.func @transform_0(%arg0: i32, %arg1: i32, %arg2: i32) -> (i32, i32) {
    %c0_i32 = arith.constant 0 : i32
    return %arg0, %arg2 : i32, i32
  }
  func.func @transform_1(%arg0: i32, %arg1: i32, %arg2: i32) -> (i32, i32) {
    %c0_i32 = arith.constant 0 : i32
    return %arg2, %arg1 : i32, i32
  }
  func.func @transform_2(%arg0: i32, %arg1: i32, %arg2: i32) -> (i32, i32) {
    %c0_i32 = arith.constant 0 : i32
    %c0_i32_0 = arith.constant 0 : i32
    return %c0_i32, %arg1 : i32, i32
  }
  func.func @transform_3(%arg0: i32, %arg1: i32, %arg2: i32) -> (i32, i32) {
    %c0_i32 = arith.constant 0 : i32
    return %arg0, %arg1 : i32, i32
  }
}

module attributes {stable_mosaic.version = 11 : i64} {
  func.func @_matmul_bias_kernel(%arg0: i32, %arg1: i32, %arg2: i32, %arg3: memref<2x3136xbf16, #tpu.memory_space<vmem>>, %arg4: memref<3136x256xbf16, #tpu.memory_space<vmem>>, %arg5: memref<1x256xf32, #tpu.memory_space<vmem>>, %arg6: memref<2x256xbf16, #tpu.memory_space<vmem>>, %arg7: memref<2x256xf32, #tpu.memory_space<vmem>>) attributes {dimension_semantics = [#tpu.dimension_semantics<parallel>, #tpu.dimension_semantics<parallel>, #tpu.dimension_semantics<arbitrary>], iteration_bounds = array<i64: 1, 2, 1>, scalar_prefetch = 0 : i64, scratch_operands = 1 : i64, tpu.core_type = #tpu.core_type<tc>, window_params = [{transform_indices = @transform_0, window_bounds = array<i64: 2, 3136>}, {transform_indices = @transform_1, window_bounds = array<i64: 3136, 256>}, {transform_indices = @transform_2, window_bounds = array<i64: 1, 256>}, {transform_indices = @transform_3, window_bounds = array<i64: 2, 256>}]} {
    %c0_i32 = arith.constant 0 : i32
    %0 = arith.cmpi eq, %arg2, %c0_i32 : i32
    %1 = arith.extui %0 : i1 to i32
    %c0_i32_0 = arith.constant 0 : i32
    %2 = arith.cmpi ne, %1, %c0_i32_0 : i32
    scf.if %2 {
      %cst_10 = arith.constant 0.000000e+00 : f32
      %12 = vector.broadcast %cst_10 : f32 to vector<2x256xf32>
      %c0_11 = arith.constant 0 : index
      %c0_12 = arith.constant 0 : index
      %13 = vector.load %arg7[%c0_11, %c0_12] : memref<2x256xf32, #tpu.memory_space<vmem>>, vector<2x256xf32>
      tpu.vector_store %arg7[%c0_11, %c0_12], %12 {strides = array<i32>} : memref<2x256xf32, #tpu.memory_space<vmem>>, vector<2x256xf32>,
    } else {
    }
    %c0 = arith.constant 0 : index
    %c0_1 = arith.constant 0 : index
    %3 = vector.load %arg7[%c0, %c0_1] : memref<2x256xf32, #tpu.memory_space<vmem>>, vector<2x256xf32>
    %c0_2 = arith.constant 0 : index
    %c0_3 = arith.constant 0 : index
    %4 = vector.load %arg3[%c0_2, %c0_3] : memref<2x3136xbf16, #tpu.memory_space<vmem>>, vector<2x3136xbf16>
    %c0_4 = arith.constant 0 : index
    %c0_5 = arith.constant 0 : index
    %5 = vector.load %arg4[%c0_4, %c0_5] : memref<3136x256xbf16, #tpu.memory_space<vmem>>, vector<3136x256xbf16>
    %cst = arith.constant dense<0.000000e+00> : vector<2x256xf32>
    %6 = tpu.matmul %4, %5, %cst {dimension_numbers = #tpu.dot_dimension_numbers<[1], [0], [0], [1], [0, 0, 1, 1], [], []>} : vector<2x3136xbf16>, vector<3136x256xbf16>, vector<2x256xf32> -> vector<2x256xf32>
    %7 = arith.addf %3, %6 : vector<2x256xf32>
    %c0_6 = arith.constant 0 : index
    %c0_7 = arith.constant 0 : index
    %8 = vector.load %arg7[%c0_6, %c0_7] : memref<2x256xf32, #tpu.memory_space<vmem>>, vector<2x256xf32>
    tpu.vector_store %arg7[%c0_6, %c0_7], %7 {strides = array<i32>} : memref<2x256xf32, #tpu.memory_space<vmem>>, vector<2x256xf32>,
    %c0_i32_8 = arith.constant 0 : i32
    %9 = arith.cmpi eq, %arg2, %c0_i32_8 : i32
    %10 = arith.extui %9 : i1 to i32
    %c0_i32_9 = arith.constant 0 : i32
    %11 = arith.cmpi ne, %10, %c0_i32_9 : i32
    scf.if %11 {
      %c0_10 = arith.constant 0 : index
      %c0_11 = arith.constant 0 : index
      %12 = vector.load %arg7[%c0_10, %c0_11] : memref<2x256xf32, #tpu.memory_space<vmem>>, vector<2x256xf32>
      %c0_12 = arith.constant 0 : index
      %c0_13 = arith.constant 0 : index
      %13 = vector.load %arg5[%c0_12, %c0_13] : memref<1x256xf32, #tpu.memory_space<vmem>>, vector<1x256xf32>
      %14 = vector.broadcast %13 : vector<1x256xf32> to vector<2x256xf32>
      %15 = arith.addf %12, %14 : vector<2x256xf32>
      %cst_14 = arith.constant 0.000000e+00 : f32
      %16 = vector.broadcast %cst_14 : f32 to vector<2x256xf32>
      %17 = arith.maximumf %15, %16 : vector<2x256xf32>
      %18 = arith.truncf %17 : vector<2x256xf32> to vector<2x256xbf16>
      %c0_15 = arith.constant 0 : index
      %c0_16 = arith.constant 0 : index
      %19 = vector.load %arg6[%c0_15, %c0_16] : memref<2x256xbf16, #tpu.memory_space<vmem>>, vector<2x256xbf16>
      tpu.vector_store %arg6[%c0_15, %c0_16], %18 {strides = array<i32>} : memref<2x256xbf16, #tpu.memory_space<vmem>>, vector<2x256xbf16>,
    } else {
    }
    return
  }
  func.func @transform_0(%arg0: i32, %arg1: i32, %arg2: i32) -> (i32, i32) {
    %c0_i32 = arith.constant 0 : i32
    return %arg0, %arg2 : i32, i32
  }
  func.func @transform_1(%arg0: i32, %arg1: i32, %arg2: i32) -> (i32, i32) {
    %c0_i32 = arith.constant 0 : i32
    return %arg2, %arg1 : i32, i32
  }
  func.func @transform_2(%arg0: i32, %arg1: i32, %arg2: i32) -> (i32, i32) {
    %c0_i32 = arith.constant 0 : i32
    %c0_i32_0 = arith.constant 0 : i32
    return %c0_i32, %arg1 : i32, i32
  }
  func.func @transform_3(%arg0: i32, %arg1: i32, %arg2: i32) -> (i32, i32) {
    %c0_i32 = arith.constant 0 : i32
    return %arg0, %arg1 : i32, i32
  }
}

module attributes {stable_mosaic.version = 11 : i64} {
  func.func @_matmul_bias_kernel(%arg0: i32, %arg1: i32, %arg2: i32, %arg3: memref<2x512xbf16, #tpu.memory_space<vmem>>, %arg4: memref<512x128xbf16, #tpu.memory_space<vmem>>, %arg5: memref<1x128xf32, #tpu.memory_space<vmem>>, %arg6: memref<2x128xf32, #tpu.memory_space<vmem>>, %arg7: memref<2x128xf32, #tpu.memory_space<vmem>>) attributes {dimension_semantics = [#tpu.dimension_semantics<parallel>, #tpu.dimension_semantics<parallel>, #tpu.dimension_semantics<arbitrary>], iteration_bounds = array<i64: 1, 1, 1>, scalar_prefetch = 0 : i64, scratch_operands = 1 : i64, tpu.core_type = #tpu.core_type<tc>, window_params = [{transform_indices = @transform_0, window_bounds = array<i64: 2, 512>}, {transform_indices = @transform_1, window_bounds = array<i64: 512, 128>}, {transform_indices = @transform_2, window_bounds = array<i64: 1, 128>}, {transform_indices = @transform_3, window_bounds = array<i64: 2, 128>}]} {
    %c0_i32 = arith.constant 0 : i32
    %0 = arith.cmpi eq, %arg2, %c0_i32 : i32
    %1 = arith.extui %0 : i1 to i32
    %c0_i32_0 = arith.constant 0 : i32
    %2 = arith.cmpi ne, %1, %c0_i32_0 : i32
    scf.if %2 {
      %cst_10 = arith.constant 0.000000e+00 : f32
      %12 = vector.broadcast %cst_10 : f32 to vector<2x128xf32>
      %c0_11 = arith.constant 0 : index
      %c0_12 = arith.constant 0 : index
      %13 = vector.load %arg7[%c0_11, %c0_12] : memref<2x128xf32, #tpu.memory_space<vmem>>, vector<2x128xf32>
      tpu.vector_store %arg7[%c0_11, %c0_12], %12 {strides = array<i32>} : memref<2x128xf32, #tpu.memory_space<vmem>>, vector<2x128xf32>,
    } else {
    }
    %c0 = arith.constant 0 : index
    %c0_1 = arith.constant 0 : index
    %3 = vector.load %arg7[%c0, %c0_1] : memref<2x128xf32, #tpu.memory_space<vmem>>, vector<2x128xf32>
    %c0_2 = arith.constant 0 : index
    %c0_3 = arith.constant 0 : index
    %4 = vector.load %arg3[%c0_2, %c0_3] : memref<2x512xbf16, #tpu.memory_space<vmem>>, vector<2x512xbf16>
    %c0_4 = arith.constant 0 : index
    %c0_5 = arith.constant 0 : index
    %5 = vector.load %arg4[%c0_4, %c0_5] : memref<512x128xbf16, #tpu.memory_space<vmem>>, vector<512x128xbf16>
    %cst = arith.constant dense<0.000000e+00> : vector<2x128xf32>
    %6 = tpu.matmul %4, %5, %cst {dimension_numbers = #tpu.dot_dimension_numbers<[1], [0], [0], [1], [0, 0, 1, 1], [], []>} : vector<2x512xbf16>, vector<512x128xbf16>, vector<2x128xf32> -> vector<2x128xf32>
    %7 = arith.addf %3, %6 : vector<2x128xf32>
    %c0_6 = arith.constant 0 : index
    %c0_7 = arith.constant 0 : index
    %8 = vector.load %arg7[%c0_6, %c0_7] : memref<2x128xf32, #tpu.memory_space<vmem>>, vector<2x128xf32>
    tpu.vector_store %arg7[%c0_6, %c0_7], %7 {strides = array<i32>} : memref<2x128xf32, #tpu.memory_space<vmem>>, vector<2x128xf32>,
    %c0_i32_8 = arith.constant 0 : i32
    %9 = arith.cmpi eq, %arg2, %c0_i32_8 : i32
    %10 = arith.extui %9 : i1 to i32
    %c0_i32_9 = arith.constant 0 : i32
    %11 = arith.cmpi ne, %10, %c0_i32_9 : i32
    scf.if %11 {
      %c0_10 = arith.constant 0 : index
      %c0_11 = arith.constant 0 : index
      %12 = vector.load %arg7[%c0_10, %c0_11] : memref<2x128xf32, #tpu.memory_space<vmem>>, vector<2x128xf32>
      %c0_12 = arith.constant 0 : index
      %c0_13 = arith.constant 0 : index
      %13 = vector.load %arg5[%c0_12, %c0_13] : memref<1x128xf32, #tpu.memory_space<vmem>>, vector<1x128xf32>
      %14 = vector.broadcast %13 : vector<1x128xf32> to vector<2x128xf32>
      %15 = arith.addf %12, %14 : vector<2x128xf32>
      %c0_14 = arith.constant 0 : index
      %c0_15 = arith.constant 0 : index
      %16 = vector.load %arg6[%c0_14, %c0_15] : memref<2x128xf32, #tpu.memory_space<vmem>>, vector<2x128xf32>
      tpu.vector_store %arg6[%c0_14, %c0_15], %15 {strides = array<i32>} : memref<2x128xf32, #tpu.memory_space<vmem>>, vector<2x128xf32>,
    } else {
    }
    return
  }
  func.func @transform_0(%arg0: i32, %arg1: i32, %arg2: i32) -> (i32, i32) {
    %c0_i32 = arith.constant 0 : i32
    return %arg0, %arg2 : i32, i32
  }
  func.func @transform_1(%arg0: i32, %arg1: i32, %arg2: i32) -> (i32, i32) {
    %c0_i32 = arith.constant 0 : i32
    return %arg2, %arg1 : i32, i32
  }
  func.func @transform_2(%arg0: i32, %arg1: i32, %arg2: i32) -> (i32, i32) {
    %c0_i32 = arith.constant 0 : i32
    %c0_i32_0 = arith.constant 0 : i32
    return %c0_i32, %arg1 : i32, i32
  }
  func.func @transform_3(%arg0: i32, %arg1: i32, %arg2: i32) -> (i32, i32) {
    %c0_i32 = arith.constant 0 : i32
    return %arg0, %arg1 : i32, i32
  }
}

</mosaic_0001>

<llo_original>
// kernel: qnet_forward.5
$region0: #{qnet_forward.5}
  #allocation0 [shape = 'u32[]', space=smem, size = 0x4, offset = 0x4, fixed_abs, tag = 'smem constant byte address 0x4 - core index']
  #allocation1 [shape = 'u32[144,128]{1,0:T(1,128)}', space=vmem, size = 0x12000, scoped, tag = 'internal scratch']
  #allocation2 [shape = 'f32[256,32]{1,0:T(8,128)}', space=vmem, size = 0x20000, scoped, tag = 'scratch operand']
  %s0 = inlined_call_operand.vmem [shape: bf16[800,256], index: 0, kind: input, shape index: {}]
  %s1 = inlined_call_operand.vmem [shape: bf16[256,32], index: 1, kind: input, shape index: {}]
  %s2 = inlined_call_operand.vmem [shape: f32[1,32], index: 2, kind: input, shape index: {}]
  %s3 = inlined_call_operand.vmem [shape: bf16[800,32], index: 3, kind: output, shape index: {}]
  %s4 = sld [smem:[#allocation0]]
  $region97: #{qnet_forward.5} parent=0
    _
  %s6 = ssub.s32 1, %s4
  %s7 = scalar_select 0, %s6, %s4
  $region1: #{qnet_forward.5} parent=0
    #allocation3 [shape = 'u8[131072]{0}', space=vmem, size = 0x20000, scoped, tag = 'output window, operand 0']
    loop: start=0, step=1, limit=6
    $region2: #{qnet_forward.5} parent=1 // loop_pre_header
      _
    $region3: #{qnet_forward.5} parent=1 // loop_header
      %s9 = sphi 0, %s13
      %p10 = scmp.ge.s32.totalorder %s9, 6
      %s16 = sphi 0, %s35
      %s17 = sphi 0, %s31
      %s18 = sphi 0, %s27
      %s19 = sphi 0, %s16
      %s20 = sphi 0, %s17
      %s21 = sphi 0, %s18
      %s22 = sphi 0, %s19
      %s23 = sphi 0, %s20
      %s24 = sphi 0, %s21
      %s40 = sphi 0, %s42
      %s43 = sphi 0, %s40
      %s44 = sphi 0, %s43
      %s60 = sphi 0, %s44
      %s68 = sphi 0, %s70
      %s71 = sphi 0, %s68
      %s72 = sphi 0, %s71
      %s88 = sphi 0, %s72
      %s94 = sphi 0, %s96
      %s97 = sphi 0, %s94
      %s98 = sphi 0, %s97
      %s114 = sphi 0, %s98
      %s122 = sphi 0, %s124
      %s125 = sphi 0, %s122
      %s126 = sphi 0, %s125
      %s142 = sphi 0, %s126
    $region4: #{qnet_forward.5} parent=1 // loop_header_branch
      %12 = sbr.rel (%p10) target = $region8
    $region5: #{qnet_forward.5} parent=1 // loop_body
      %s14 = ssub.s32 %s9, 1
      %s15 = ssub.s32 %s9, 2
      %s25 = sadd.s32 1, %s18
      %p26 = scmp.ge.s32.totalorder %s25, 1
      %s27 = scalar_select %p26, 0, %s25
      %s28 = sadd.s32 1, %s17
      %s29 = scalar_select %p26, %s28, %s17
      %p30 = scmp.ge.s32.totalorder %s29, 1
      %s31 = scalar_select %p30, 0, %s29
      %s32 = sadd.s32 1, %s16
      %s33 = scalar_select %p30, %s32, %s16
      %p34 = scmp.ge.s32.totalorder %s33, 4
      %s35 = scalar_select %p34, 0, %s33
      %s36 = ssub.s32 %s16, %s35
      %s37 = ssub.s32 %s18, %s27
      %s38 = sor.u32 %s36, %s37
      %p39 = scmp.eq.s32.totalorder %s38, 0
      %s41 = sadd.s32 %s40, 1
      %s42 = scalar_select %p39, %s40, %s41
      %p45 = pneg %p39
      %p46 = scmp.eq.s32.totalorder %s9, 3
      %p47 = por %p45, %p46
      %p48 = scmp.ne.s32.totalorder %s40, %s43
      %p49 = scmp.eq.s32.totalorder %s9, 0
      %p50 = por %p48, %p49
      %p51 = scmp.ne.s32.totalorder %s40, %s43
      %p52 = scmp.eq.s32.totalorder %s14, 3
      %p53 = por %p51, %p52
      %p54 = scmp.ne.s32.totalorder %s43, %s44
      %p55 = scmp.eq.s32.totalorder %s14, 0
      %p56 = por %p54, %p55
      %p57 = scmp.ne.s32.totalorder %s43, %s44
      %p58 = scmp.eq.s32.totalorder %s15, 3
      %p59 = por %p57, %p58
      %p61 = scmp.ne.s32.totalorder %s44, %s60
      %p62 = scmp.eq.s32.totalorder %s15, 0
      %p63 = por %p61, %p62
      %s64 = ssub.s32 %s18, %s27
      %s65 = ssub.s32 %s17, %s31
      %s66 = sor.u32 %s64, %s65
      %p67 = scmp.eq.s32.totalorder %s66, 0
      %s69 = sadd.s32 %s68, 1
      %s70 = scalar_select %p67, %s68, %s69
      %p73 = pneg %p67
      %p74 = scmp.eq.s32.totalorder %s9, 3
      %p75 = por %p73, %p74
      %p76 = scmp.ne.s32.totalorder %s68, %s71
      %p77 = scmp.eq.s32.totalorder %s9, 0
      %p78 = por %p76, %p77
      %p79 = scmp.ne.s32.totalorder %s68, %s71
      %p80 = scmp.eq.s32.totalorder %s14, 3
      %p81 = por %p79, %p80
      %p82 = scmp.ne.s32.totalorder %s71, %s72
      %p83 = scmp.eq.s32.totalorder %s14, 0
      %p84 = por %p82, %p83
      %p85 = scmp.ne.s32.totalorder %s71, %s72
      %p86 = scmp.eq.s32.totalorder %s15, 3
      %p87 = por %p85, %p86
      %p89 = scmp.ne.s32.totalorder %s72, %s88
      %p90 = scmp.eq.s32.totalorder %s15, 0
      %p91 = por %p89, %p90
      %s92 = ssub.s32 %s17, %s31
      %p93 = scmp.eq.s32.totalorder %s92, 0
      %s95 = sadd.s32 %s94, 1
      %s96 = scalar_select %p93, %s94, %s95
      %p99 = pneg %p93
      %p100 = scmp.eq.s32.totalorder %s9, 3
      %p101 = por %p99, %p100
      %p102 = scmp.ne.s32.totalorder %s94, %s97
      %p103 = scmp.eq.s32.totalorder %s9, 0
      %p104 = por %p102, %p103
      %p105 = scmp.ne.s32.totalorder %s94, %s97
      %p106 = scmp.eq.s32.totalorder %s14, 3
      %p107 = por %p105, %p106
      %p108 = scmp.ne.s32.totalorder %s97, %s98
      %p109 = scmp.eq.s32.totalorder %s14, 0
      %p110 = por %p108, %p109
      %p111 = scmp.ne.s32.totalorder %s97, %s98
      %p112 = scmp.eq.s32.totalorder %s15, 3
      %p113 = por %p111, %p112
      %p115 = scmp.ne.s32.totalorder %s98, %s114
      %p116 = scmp.eq.s32.totalorder %s15, 0
      %p117 = por %p115, %p116
      %s118 = ssub.s32 %s16, %s35
      %s119 = ssub.s32 %s17, %s31
      %s120 = sor.u32 %s118, %s119
      %p121 = scmp.eq.s32.totalorder %s120, 0
      %s123 = sadd.s32 %s122, 1
      %s124 = scalar_select %p121, %s122, %s123
      %p127 = pneg %p121
      %p128 = scmp.eq.s32.totalorder %s9, 3
      %p129 = por %p127, %p128
      %p130 = scmp.ne.s32.totalorder %s122, %s125
      %p131 = scmp.eq.s32.totalorder %s9, 0
      %p132 = por %p130, %p131
      %p133 = scmp.ne.s32.totalorder %s122, %s125
      %p134 = scmp.eq.s32.totalorder %s14, 3
      %p135 = por %p133, %p134
      %p136 = scmp.ne.s32.totalorder %s125, %s126
      %p137 = scmp.eq.s32.totalorder %s14, 0
      %p138 = por %p136, %p137
      %p139 = scmp.ne.s32.totalorder %s125, %s126
      %p140 = scmp.eq.s32.totalorder %s15, 3
      %p141 = por %p139, %p140
      %p143 = scmp.ne.s32.totalorder %s126, %s142
      %p144 = scmp.eq.s32.totalorder %s15, 0
      %p145 = por %p143, %p144
      %p146 = scmp.le.s32.totalorder 1, %s9
      %p147 = scmp.lt.s32.totalorder %s9, 5
      %p148 = pnand %p146, %p147
      %p149 = pneg %p148
      // Predicated region
      $region9: #{qnet_forward.5} parent=5 // pred_check
        _
      $region10: #{qnet_forward.5} parent=5 // pred_check_branch
        %151 = sbr.rel (%p148) target = $region12
      $region11: #{qnet_forward.5} parent=5 // pred_region
        %s152 = ssub.s32 %s9, 1
        // Predicated region
        $region13: #{qnet_forward.5} parent=11 // pred_check
          %p153 = pneg %p84
        $region14: #{qnet_forward.5} parent=11 // pred_check_branch
          %155 = sbr.rel (%p153) target = $region16
        $region15: #{qnet_forward.5} parent=11 // pred_region
          %s156 = smul.u32 32, %s21
          %p157 = scmp.lt.s32.totalorder %s156, 31
          %s158 = scalar_select %p157, %s156, 31
          %p159 = scmp.lt.s32.totalorder %s20, 0
          %s160 = scalar_select %p159, %s20, 0
          %s161 = sadd.s32 %s160, %s158
          %s162 = smul.addr %s161, 4
          %s163 = scalar_lea.vmem %s1, %s162
          %s164 = smul.u32 32, %s21
        $region16: #{qnet_forward.5} parent=11 // pred_fallthru
          _
        // Predicated region
        $region17: #{qnet_forward.5} parent=11 // pred_check
          %p165 = pneg %p110
        $region18: #{qnet_forward.5} parent=11 // pred_check_branch
          %167 = sbr.rel (%p165) target = $region20
        $region19: #{qnet_forward.5} parent=11 // pred_region
          %p168 = scmp.lt.s32.totalorder %s20, 0
          %s169 = scalar_select %p168, %s20, 0
          %s170 = scalar_lea.vmem %s2, %s169
        $region20: #{qnet_forward.5} parent=11 // pred_fallthru
          _
      $region12: #{qnet_forward.5} parent=5 // pred_fallthru
        _
      %p171 = scmp.lt.s32.totalorder %s9, 4
      // Predicated region
      $region21: #{qnet_forward.5} parent=5 // pred_check
        %p172 = pneg %p171
      $region22: #{qnet_forward.5} parent=5 // pred_check_branch
        %174 = sbr.rel (%p172) target = $region24
      $region23: #{qnet_forward.5} parent=5 // pred_region
        // Predicated region
        $region25: #{qnet_forward.5} parent=23 // pred_check
          %p175 = pneg %p50
        $region26: #{qnet_forward.5} parent=23 // pred_check_branch
          %177 = sbr.rel (%p175) target = $region28
        $region27: #{qnet_forward.5} parent=23 // pred_region
          %s178 = smul.u32 32, %s16
          %s179 = smul.u32 2, %s18
          %s180 = ssub.s32 100, %s178
          %p181 = scmp.lt.s32.totalorder %s180, 32
          %s182 = scalar_select %p181, %s180, 32
          %s183 = smul.u32 64, %s182
          %s184 = smul.u32 %s183, 2
          %p185 = scmp.lt.s32.totalorder %s178, 99
          %s186 = scalar_select %p185, %s178, 99
          %p187 = scmp.lt.s32.totalorder %s179, 1
          %s188 = scalar_select %p187, %s179, 1
          %s189 = smul.addr %s186, 2
          %s190 = sadd.s32 %s188, %s189
          %s191 = smul.addr %s190, 4
          %s192 = scalar_lea.vmem %s0, %s191
          %s193 = smul.u32 32, %s16
          %s194 = smul.u32 2, %s18
          %s195 = ssub.s32 100, %s193
          %p196 = scmp.lt.s32.totalorder %s195, 32
          %s197 = scalar_select %p196, %s195, 32
          %s198 = smul.u32 64, %s197
          %s199 = smul.u32 %s198, 2
        $region28: #{qnet_forward.5} parent=23 // pred_fallthru
          _
      $region24: #{qnet_forward.5} parent=5 // pred_fallthru
        _
      %p200 = scmp.le.s32.totalorder 1, %s9
      %p201 = scmp.lt.s32.totalorder %s9, 5
      %p202 = pnand %p200, %p201
      %p203 = pneg %p202
      // Predicated region
      $region29: #{qnet_forward.5} parent=5 // pred_check
        _
      $region30: #{qnet_forward.5} parent=5 // pred_check_branch
        %205 = sbr.rel (%p202) target = $region32
      $region31: #{qnet_forward.5} parent=5 // pred_region
        %s206 = ssub.s32 %s9, 1
        %s207 = smul.u32 32, %s19
        %s208 = smul.u32 2, %s21
        %s209 = ssub.s32 100, %s207
        %p210 = scmp.lt.s32.totalorder %s209, 32
        %s211 = scalar_select %p210, %s209, 32
        %s212 = smul.u32 64, %s211
        %s213 = smul.u32 %s212, 2
        %p214 = scmp.lt.s32.totalorder %s207, 99
        %s215 = scalar_select %p214, %s207, 99
        %p216 = scmp.lt.s32.totalorder %s208, 1
        %s217 = scalar_select %p216, %s208, 1
        %s218 = smul.addr %s215, 2
        %s219 = sadd.s32 %s217, %s218
        %s220 = smul.addr %s219, 4
        %s221 = scalar_lea.vmem %s0, %s220
        %p222 = pneg %p56
        %p223 = pneg %p53
        %s224 = smul.u32 32, %s21
        %p225 = scmp.lt.s32.totalorder %s224, 31
        %s226 = scalar_select %p225, %s224, 31
        %p227 = scmp.lt.s32.totalorder %s20, 0
        %s228 = scalar_select %p227, %s20, 0
        %s229 = sadd.s32 %s228, %s226
        %s230 = smul.addr %s229, 4
        %s231 = scalar_lea.vmem %s1, %s230
        %p232 = pneg %p84
        %p233 = pneg %p81
        %p234 = scmp.lt.s32.totalorder %s20, 0
        %s235 = scalar_select %p234, %s20, 0
        %s236 = scalar_lea.vmem %s2, %s235
        %p237 = pneg %p110
        %p238 = pneg %p107
        %p239 = pneg %p138
        %p240 = pneg %p135
        %s241 = sand.u32 %s125, 1
        %s242 = sand.u32 %s125, 1
        %s243 = smul.addr %s242, 128
        %s244 = scalar_lea.vmem [#allocation3], %s243
        %s245 = smul.u32 32, %s19
        %s246 = smul.u32 2, %s21
        %s247 = ssub.s32 100, %s245
        %p248 = scmp.lt.s32.totalorder %s247, 32
        %s249 = scalar_select %p248, %s247, 32
        %s250 = smul.u32 64, %s249
        %s251 = smul.u32 %s250, 2
        %p252 = scmp.lt.s32.totalorder %s245, 99
        %s253 = scalar_select %p252, %s245, 99
        %p254 = scmp.lt.s32.totalorder %s246, 1
        %s255 = scalar_select %p254, %s246, 1
        %s256 = smul.addr %s253, 2
        %s257 = sadd.s32 %s255, %s256
        %s258 = smul.addr %s257, 4
        %s259 = scalar_lea.vmem %s0, %s258
        %s260 = smul.u32 32, %s19
        %s261 = smul.u32 2, %s21
        %s262 = ssub.s32 100, %s260
        %p263 = scmp.lt.s32.totalorder %s262, 32
        %s264 = scalar_select %p263, %s262, 32
        %s265 = smul.u32 64, %s264
        %s266 = smul.u32 %s265, 2
        %s267 = smul.u32 32, %s21
        %p268 = scmp.lt.s32.totalorder %s267, 31
        %s269 = scalar_select %p268, %s267, 31
        %p270 = scmp.lt.s32.totalorder %s20, 0
        %s271 = scalar_select %p270, %s20, 0
        %s272 = sadd.s32 %s271, %s269
        %s273 = smul.addr %s272, 4
        %s274 = scalar_lea.vmem %s1, %s273
        %s275 = smul.u32 32, %s21
        %p276 = scmp.lt.s32.totalorder %s20, 0
        %s277 = scalar_select %p276, %s20, 0
        %s278 = scalar_lea.vmem %s2, %s277
        %s279 = smul.u32 32, %s19
        %s280 = ssub.s32 100, %s279
        %p281 = scmp.lt.s32.totalorder %s280, 32
        %s282 = scalar_select %p281, %s280, 32
        %s283 = smul.u32 64, %s282
        %p285 = scmp.eq.s32.totalorder %s21, 0
        // Predicated region
        $region33: #{qnet_forward.5} parent=31 // pred_check
          %p286 = pneg %p285
        $region34: #{qnet_forward.5} parent=31 // pred_check_branch
          %288 = sbr.rel (%p286) target = $region36
        $region35: #{qnet_forward.5} parent=31 // pred_region
          %vm289 = vcmask 261120
          %290 = vst.msk [vmem:[#allocation2] sm:$0xff] %vm289, 0.0
          %291 = vst.msk [vmem:[#allocation2 + $0x8] sm:$0xff] %vm289, 0.0
          %292 = vst.msk [vmem:[#allocation2 + $0x10] sm:$0xff] %vm289, 0.0
          %293 = vst.msk [vmem:[#allocation2 + $0x18] sm:$0xff] %vm289, 0.0
          %294 = vst.msk [vmem:[#allocation2 + $0x20] sm:$0xff] %vm289, 0.0
          %295 = vst.msk [vmem:[#allocation2 + $0x28] sm:$0xff] %vm289, 0.0
          %296 = vst.msk [vmem:[#allocation2 + $0x30] sm:$0xff] %vm289, 0.0
          %297 = vst.msk [vmem:[#allocation2 + $0x38] sm:$0xff] %vm289, 0.0
          %298 = vst.msk [vmem:[#allocation2 + $0x40] sm:$0xff] %vm289, 0.0
          %299 = vst.msk [vmem:[#allocation2 + $0x48] sm:$0xff] %vm289, 0.0
          %300 = vst.msk [vmem:[#allocation2 + $0x50] sm:$0xff] %vm289, 0.0
          %301 = vst.msk [vmem:[#allocation2 + $0x58] sm:$0xff] %vm289, 0.0
          %302 = vst.msk [vmem:[#allocation2 + $0x60] sm:$0xff] %vm289, 0.0
          %303 = vst.msk [vmem:[#allocation2 + $0x68] sm:$0xff] %vm289, 0.0
          %304 = vst.msk [vmem:[#allocation2 + $0x70] sm:$0xff] %vm289, 0.0
          %305 = vst.msk [vmem:[#allocation2 + $0x78] sm:$0xff] %vm289, 0.0
          %306 = vst.msk [vmem:[#allocation2 + $0x80] sm:$0xff] %vm289, 0.0
          %307 = vst.msk [vmem:[#allocation2 + $0x88] sm:$0xff] %vm289, 0.0
          %308 = vst.msk [vmem:[#allocation2 + $0x90] sm:$0xff] %vm289, 0.0
          %309 = vst.msk [vmem:[#allocation2 + $0x98] sm:$0xff] %vm289, 0.0
          %310 = vst.msk [vmem:[#allocation2 + $0xa0] sm:$0xff] %vm289, 0.0
          %311 = vst.msk [vmem:[#allocation2 + $0xa8] sm:$0xff] %vm289, 0.0
          %312 = vst.msk [vmem:[#allocation2 + $0xb0] sm:$0xff] %vm289, 0.0
          %313 = vst.msk [vmem:[#allocation2 + $0xb8] sm:$0xff] %vm289, 0.0
          %314 = vst.msk [vmem:[#allocation2 + $0xc0] sm:$0xff] %vm289, 0.0
          %315 = vst.msk [vmem:[#allocation2 + $0xc8] sm:$0xff] %vm289, 0.0
          %316 = vst.msk [vmem:[#allocation2 + $0xd0] sm:$0xff] %vm289, 0.0
          %317 = vst.msk [vmem:[#allocation2 + $0xd8] sm:$0xff] %vm289, 0.0
          %318 = vst.msk [vmem:[#allocation2 + $0xe0] sm:$0xff] %vm289, 0.0
          %319 = vst.msk [vmem:[#allocation2 + $0xe8] sm:$0xff] %vm289, 0.0
          %320 = vst.msk [vmem:[#allocation2 + $0xf0] sm:$0xff] %vm289, 0.0
          %321 = vst.msk [vmem:[#allocation2 + $0xf8] sm:$0xff] %vm289, 0.0
        $region36: #{qnet_forward.5} parent=31 // pred_fallthru
          _
        %v322 = vld [vmem:[#allocation2] sm:$0xff]
        %v323 = vld [vmem:[#allocation2 + $0x8] sm:$0xff]
        %v324 = vld [vmem:[#allocation2 + $0x10] sm:$0xff]
        %v325 = vld [vmem:[#allocation2 + $0x18] sm:$0xff]
        %v326 = vld [vmem:[#allocation2 + $0x20] sm:$0xff]
        %v327 = vld [vmem:[#allocation2 + $0x28] sm:$0xff]
        %v328 = vld [vmem:[#allocation2 + $0x30] sm:$0xff]
        %v329 = vld [vmem:[#allocation2 + $0x38] sm:$0xff]
        %v330 = vld [vmem:[#allocation2 + $0x40] sm:$0xff]
        %v331 = vld [vmem:[#allocation2 + $0x48] sm:$0xff]
        %v332 = vld [vmem:[#allocation2 + $0x50] sm:$0xff]
        %v333 = vld [vmem:[#allocation2 + $0x58] sm:$0xff]
        %v334 = vld [vmem:[#allocation2 + $0x60] sm:$0xff]
        %v335 = vld [vmem:[#allocation2 + $0x68] sm:$0xff]
        %v336 = vld [vmem:[#allocation2 + $0x70] sm:$0xff]
        %v337 = vld [vmem:[#allocation2 + $0x78] sm:$0xff]
        %v338 = vld [vmem:[#allocation2 + $0x80] sm:$0xff]
        %v339 = vld [vmem:[#allocation2 + $0x88] sm:$0xff]
        %v340 = vld [vmem:[#allocation2 + $0x90] sm:$0xff]
        %v341 = vld [vmem:[#allocation2 + $0x98] sm:$0xff]
        %v342 = vld [vmem:[#allocation2 + $0xa0] sm:$0xff]
        %v343 = vld [vmem:[#allocation2 + $0xa8] sm:$0xff]
        %v344 = vld [vmem:[#allocation2 + $0xb0] sm:$0xff]
        %v345 = vld [vmem:[#allocation2 + $0xb8] sm:$0xff]
        %v346 = vld [vmem:[#allocation2 + $0xc0] sm:$0xff]
        %v347 = vld [vmem:[#allocation2 + $0xc8] sm:$0xff]
        %v348 = vld [vmem:[#allocation2 + $0xd0] sm:$0xff]
        %v349 = vld [vmem:[#allocation2 + $0xd8] sm:$0xff]
        %v350 = vld [vmem:[#allocation2 + $0xe0] sm:$0xff]
        %v351 = vld [vmem:[#allocation2 + $0xe8] sm:$0xff]
        %v352 = vld [vmem:[#allocation2 + $0xf0] sm:$0xff]
        %v353 = vld [vmem:[#allocation2 + $0xf8] sm:$0xff]
        %v354 = vld [vmem:[%s259] sm:$0xff]
        %v355 = vld [vmem:[%s259 + $0x8] sm:$0xff]
        %v356 = vld [vmem:[%s259 + $0x10] sm:$0xff]
        %v357 = vld [vmem:[%s259 + $0x18] sm:$0xff]
        %v358 = vld [vmem:[%s259 + $0x20] sm:$0xff]
        %v359 = vld [vmem:[%s259 + $0x28] sm:$0xff]
        %v360 = vld [vmem:[%s259 + $0x30] sm:$0xff]
        %v361 = vld [vmem:[%s259 + $0x38] sm:$0xff]
        %v362 = vld [vmem:[%s259 + $0x40] sm:$0xff]
        %v363 = vld [vmem:[%s259 + $0x48] sm:$0xff]
        %v364 = vld [vmem:[%s259 + $0x50] sm:$0xff]
        %v365 = vld [vmem:[%s259 + $0x58] sm:$0xff]
        %v366 = vld [vmem:[%s259 + $0x60] sm:$0xff]
        %v367 = vld [vmem:[%s259 + $0x68] sm:$0xff]
        %v368 = vld [vmem:[%s259 + $0x70] sm:$0xff]
        %v369 = vld [vmem:[%s259 + $0x78] sm:$0xff]
        %v370 = vld [vmem:[%s259 + $0x80] sm:$0xff]
        %v371 = vld [vmem:[%s259 + $0x88] sm:$0xff]
        %v372 = vld [vmem:[%s259 + $0x90] sm:$0xff]
        %v373 = vld [vmem:[%s259 + $0x98] sm:$0xff]
        %v374 = vld [vmem:[%s259 + $0xa0] sm:$0xff]
        %v375 = vld [vmem:[%s259 + $0xa8] sm:$0xff]
        %v376 = vld [vmem:[%s259 + $0xb0] sm:$0xff]
        %v377 = vld [vmem:[%s259 + $0xb8] sm:$0xff]
        %v378 = vld [vmem:[%s259 + $0xc0] sm:$0xff]
        %v379 = vld [vmem:[%s259 + $0xc8] sm:$0xff]
        %v380 = vld [vmem:[%s259 + $0xd0] sm:$0xff]
        %v381 = vld [vmem:[%s259 + $0xd8] sm:$0xff]
        %v382 = vld [vmem:[%s259 + $0xe0] sm:$0xff]
        %v383 = vld [vmem:[%s259 + $0xe8] sm:$0xff]
        %v384 = vld [vmem:[%s259 + $0xf0] sm:$0xff]
        %v385 = vld [vmem:[%s259 + $0xf8] sm:$0xff]
        %v386 = vld [vmem:[%s274] sm:$0xf]
        %v387 = vld [vmem:[%s274 + $0x4] sm:$0xf]
        %v388 = vld [vmem:[%s274 + $0x8] sm:$0xf]
        %v389 = vld [vmem:[%s274 + $0xc] sm:$0xf]
        %v390 = vld [vmem:[%s274 + $0x10] sm:$0xf]
        %v391 = vld [vmem:[%s274 + $0x14] sm:$0xf]
        %v392 = vld [vmem:[%s274 + $0x18] sm:$0xf]
        %v393 = vld [vmem:[%s274 + $0x1c] sm:$0xf]
        %v394 = vld [vmem:[%s274 + $0x20] sm:$0xf]
        %v395 = vld [vmem:[%s274 + $0x24] sm:$0xf]
        %v396 = vld [vmem:[%s274 + $0x28] sm:$0xf]
        %v397 = vld [vmem:[%s274 + $0x2c] sm:$0xf]
        %v398 = vld [vmem:[%s274 + $0x30] sm:$0xf]
        %v399 = vld [vmem:[%s274 + $0x34] sm:$0xf]
        %v400 = vld [vmem:[%s274 + $0x38] sm:$0xf]
        %v401 = vld [vmem:[%s274 + $0x3c] sm:$0xf]
        %v402 = vld [vmem:[%s274 + $0x40] sm:$0xf]
        %v403 = vld [vmem:[%s274 + $0x44] sm:$0xf]
        %v404 = vld [vmem:[%s274 + $0x48] sm:$0xf]
        %v405 = vld [vmem:[%s274 + $0x4c] sm:$0xf]
        %v406 = vld [vmem:[%s274 + $0x50] sm:$0xf]
        %v407 = vld [vmem:[%s274 + $0x54] sm:$0xf]
        %v408 = vld [vmem:[%s274 + $0x58] sm:$0xf]
        %v409 = vld [vmem:[%s274 + $0x5c] sm:$0xf]
        %v410 = vld [vmem:[%s274 + $0x60] sm:$0xf]
        %v411 = vld [vmem:[%s274 + $0x64] sm:$0xf]
        %v412 = vld [vmem:[%s274 + $0x68] sm:$0xf]
        %v413 = vld [vmem:[%s274 + $0x6c] sm:$0xf]
        %v414 = vld [vmem:[%s274 + $0x70] sm:$0xf]
        %v415 = vld [vmem:[%s274 + $0x74] sm:$0xf]
        %v416 = vld [vmem:[%s274 + $0x78] sm:$0xf]
        %v417 = vld [vmem:[%s274 + $0x7c] sm:$0xf]
        %v450 = vunpack.c.l.b16 %v354
        %v451 = vunpack.c.h.b16 %v354
        %v452 = vunpack.c.l.b16 %v355
        %v453 = vunpack.c.h.b16 %v355
        %v454 = vunpack.c.l.b16 %v356
        %v455 = vunpack.c.h.b16 %v356
        %v456 = vunpack.c.l.b16 %v357
        %v457 = vunpack.c.h.b16 %v357
        %v458 = vunpack.c.l.b16 %v358
        %v459 = vunpack.c.h.b16 %v358
        %v460 = vunpack.c.l.b16 %v359
        %v461 = vunpack.c.h.b16 %v359
        %v462 = vunpack.c.l.b16 %v360
        %v463 = vunpack.c.h.b16 %v360
        %v464 = vunpack.c.l.b16 %v361
        %v465 = vunpack.c.h.b16 %v361
        %v466 = vunpack.c.l.b16 %v362
        %v467 = vunpack.c.h.b16 %v362
        %v468 = vunpack.c.l.b16 %v363
        %v469 = vunpack.c.h.b16 %v363
        %v470 = vunpack.c.l.b16 %v364
        %v471 = vunpack.c.h.b16 %v364
        %v472 = vunpack.c.l.b16 %v365
        %v473 = vunpack.c.h.b16 %v365
        %v474 = vunpack.c.l.b16 %v366
        %v475 = vunpack.c.h.b16 %v366
        %v476 = vunpack.c.l.b16 %v367
        %v477 = vunpack.c.h.b16 %v367
        %v478 = vunpack.c.l.b16 %v368
        %v479 = vunpack.c.h.b16 %v368
        %v480 = vunpack.c.l.b16 %v369
        %v481 = vunpack.c.h.b16 %v369
        %v482 = vunpack.c.l.b16 %v370
        %v483 = vunpack.c.h.b16 %v370
        %v484 = vunpack.c.l.b16 %v371
        %v485 = vunpack.c.h.b16 %v371
        %v486 = vunpack.c.l.b16 %v372
        %v487 = vunpack.c.h.b16 %v372
        %v488 = vunpack.c.l.b16 %v373
        %v489 = vunpack.c.h.b16 %v373
        %v490 = vunpack.c.l.b16 %v374
        %v491 = vunpack.c.h.b16 %v374
        %v492 = vunpack.c.l.b16 %v375
        %v493 = vunpack.c.h.b16 %v375
        %v494 = vunpack.c.l.b16 %v376
        %v495 = vunpack.c.h.b16 %v376
        %v496 = vunpack.c.l.b16 %v377
        %v497 = vunpack.c.h.b16 %v377
        %v498 = vunpack.c.l.b16 %v378
        %v499 = vunpack.c.h.b16 %v378
        %v500 = vunpack.c.l.b16 %v379
        %v501 = vunpack.c.h.b16 %v379
        %v502 = vunpack.c.l.b16 %v380
        %v503 = vunpack.c.h.b16 %v380
        %v504 = vunpack.c.l.b16 %v381
        %v505 = vunpack.c.h.b16 %v381
        %v506 = vunpack.c.l.b16 %v382
        %v507 = vunpack.c.h.b16 %v382
        %v508 = vunpack.c.l.b16 %v383
        %v509 = vunpack.c.h.b16 %v383
        %v510 = vunpack.c.l.b16 %v384
        %v511 = vunpack.c.h.b16 %v384
        %v512 = vunpack.c.l.b16 %v385
        %v513 = vunpack.c.h.b16 %v385
        %v514 = vpack.c.b16 %v452, %v450
        %v515 = vpack.c.b16 %v453, %v451
        %v516 = vpack.c.b16 %v456, %v454
        %v517 = vpack.c.b16 %v457, %v455
        %v518 = vpack.c.b16 %v460, %v458
        %v519 = vpack.c.b16 %v461, %v459
        %v520 = vpack.c.b16 %v464, %v462
        %v521 = vpack.c.b16 %v465, %v463
        %v522 = vpack.c.b16 %v468, %v466
        %v523 = vpack.c.b16 %v469, %v467
        %v524 = vpack.c.b16 %v472, %v470
        %v525 = vpack.c.b16 %v473, %v471
        %v526 = vpack.c.b16 %v476, %v474
        %v527 = vpack.c.b16 %v477, %v475
        %v528 = vpack.c.b16 %v480, %v478
        %v529 = vpack.c.b16 %v481, %v479
        %v530 = vpack.c.b16 %v484, %v482
        %v531 = vpack.c.b16 %v485, %v483
        %v532 = vpack.c.b16 %v488, %v486
        %v533 = vpack.c.b16 %v489, %v487
        %v534 = vpack.c.b16 %v492, %v490
        %v535 = vpack.c.b16 %v493, %v491
        %v536 = vpack.c.b16 %v496, %v494
        %v537 = vpack.c.b16 %v497, %v495
        %v538 = vpack.c.b16 %v500, %v498
        %v539 = vpack.c.b16 %v501, %v499
        %v540 = vpack.c.b16 %v504, %v502
        %v541 = vpack.c.b16 %v505, %v503
        %v542 = vpack.c.b16 %v508, %v506
        %v543 = vpack.c.b16 %v509, %v507
        %v544 = vpack.c.b16 %v512, %v510
        %v545 = vpack.c.b16 %v513, %v511
        %v610 = vunpack.c.l.b16 %v386
        %v611 = vunpack.c.l.b16 %v387
        %v612 = vunpack.c.l.b16 %v388
        %v613 = vunpack.c.l.b16 %v389
        %v614 = vunpack.c.l.b16 %v390
        %v615 = vunpack.c.l.b16 %v391
        %v616 = vunpack.c.l.b16 %v392
        %v617 = vunpack.c.l.b16 %v393
        %v618 = vunpack.c.l.b16 %v394
        %v619 = vunpack.c.l.b16 %v395
        %v620 = vunpack.c.l.b16 %v396
        %v621 = vunpack.c.l.b16 %v397
        %v622 = vunpack.c.l.b16 %v398
        %v623 = vunpack.c.l.b16 %v399
        %v624 = vunpack.c.l.b16 %v400
        %v625 = vunpack.c.l.b16 %v401
        %v626 = vunpack.c.l.b16 %v402
        %v627 = vunpack.c.l.b16 %v403
        %v628 = vunpack.c.l.b16 %v404
        %v629 = vunpack.c.l.b16 %v405
        %v630 = vunpack.c.l.b16 %v406
        %v631 = vunpack.c.l.b16 %v407
        %v632 = vunpack.c.l.b16 %v408
        %v633 = vunpack.c.l.b16 %v409
        %v634 = vunpack.c.l.b16 %v410
        %v635 = vunpack.c.l.b16 %v411
        %v636 = vunpack.c.l.b16 %v412
        %v637 = vunpack.c.l.b16 %v413
        %v638 = vunpack.c.l.b16 %v414
        %v639 = vunpack.c.l.b16 %v415
        %v640 = vunpack.c.l.b16 %v416
        %v641 = vunpack.c.l.b16 %v417
        %v642 = vpack.c.b16 %v611, %v610
        %v643 = vpack.c.b16 %v613, %v612
        %v644 = vpack.c.b16 %v615, %v614
        %v645 = vpack.c.b16 %v617, %v616
        %v646 = vpack.c.b16 %v619, %v618
        %v647 = vpack.c.b16 %v621, %v620
        %v648 = vpack.c.b16 %v623, %v622
        %v649 = vpack.c.b16 %v625, %v624
        %v650 = vpack.c.b16 %v627, %v626
        %v651 = vpack.c.b16 %v629, %v628
        %v652 = vpack.c.b16 %v631, %v630
        %v653 = vpack.c.b16 %v633, %v632
        %v654 = vpack.c.b16 %v635, %v634
        %v655 = vpack.c.b16 %v637, %v636
        %v656 = vpack.c.b16 %v639, %v638
        %v657 = vpack.c.b16 %v641, %v640
        %674 = vmatprep.subr.bf16.mxu0 0
        %675 = vmatpush1.bf16.msra.mxu0 %v642
        %676 = vmatprep.subr.bf16.mxu0 0
        %677 = vmatpush1.bf16.msra.mxu0 %v643
        %678 = vmatprep.subr.bf16.mxu0 0
        %679 = vmatpush1.bf16.msra.mxu0 %v644
        %680 = vmatprep.subr.bf16.mxu0 0
        %681 = vmatpush1.bf16.msra.mxu0 %v645
        %682 = vmatprep.subr.bf16.mxu0 0
        %683 = vmatpush1.bf16.msra.mxu0 %v646
        %684 = vmatprep.subr.bf16.mxu0 0
        %685 = vmatpush1.bf16.msra.mxu0 %v647
        %686 = vmatprep.subr.bf16.mxu0 0
        %687 = vmatpush1.bf16.msra.mxu0 %v648
        %688 = vmatprep.subr.bf16.mxu0 0
        %689 = vmatpush1.bf16.msra.mxu0 %v649
        %690 = vmatprep.subr.bf16.mxu0 0
        %691 = vmatpush1.bf16.msra.mxu0 %v650
        %692 = vmatprep.subr.bf16.mxu0 0
        %693 = vmatpush1.bf16.msra.mxu0 %v651
        %694 = vmatprep.subr.bf16.mxu0 0
        %695 = vmatpush1.bf16.msra.mxu0 %v652
        %696 = vmatprep.subr.bf16.mxu0 0
        %697 = vmatpush1.bf16.msra.mxu0 %v653
        %698 = vmatprep.subr.bf16.mxu0 0
        %699 = vmatpush1.bf16.msra.mxu0 %v654
        %700 = vmatprep.subr.bf16.mxu0 0
        %701 = vmatpush1.bf16.msra.mxu0 %v655
        %702 = vmatprep.subr.bf16.mxu0 0
        %703 = vmatpush1.bf16.msra.mxu0 %v656
        %704 = vmatprep.subr.bf16.mxu0 0
        %705 = vmatpush1.bf16.msra.mxu0 %v657
        %706 = vmatprep.mubr.bf16.mxu0 %v515
        %707 = vmatmul.mubr.bf16.gmra.mrb[0].mxu0 %v514
        %v708 = vpop.f32.mrb[0].mxu0
        %v709 = vadd.f32 0.0, %v708
        %v710 = vpop.f32.mrb[0].mxu0
        %v711 = vpop.f32.mrb[0].mxu0
        %v712 = vadd.f32 0.0, %v711
        %v713 = vpop.f32.mrb[0].mxu0
        %714 = vmatprep.mubr.bf16.mxu0 %v517
        %715 = vmatmul.mubr.bf16.gmra.mrb[0].mxu0 %v516
        %v716 = vpop.f32.mrb[0].mxu0
        %v717 = vadd.f32 0.0, %v716
        %v718 = vpop.f32.mrb[0].mxu0
        %v719 = vpop.f32.mrb[0].mxu0
        %v720 = vadd.f32 0.0, %v719
        %v721 = vpop.f32.mrb[0].mxu0
        %722 = vmatprep.mubr.bf16.mxu0 %v519
        %723 = vmatmul.mubr.bf16.gmra.mrb[0].mxu0 %v518
        %v724 = vpop.f32.mrb[0].mxu0
        %v725 = vadd.f32 0.0, %v724
        %v726 = vpop.f32.mrb[0].mxu0
        %v727 = vpop.f32.mrb[0].mxu0
        %v728 = vadd.f32 0.0, %v727
        %v729 = vpop.f32.mrb[0].mxu0
        %730 = vmatprep.mubr.bf16.mxu0 %v521
        %731 = vmatmul.mubr.bf16.gmra.mrb[0].mxu0 %v520
        %v732 = vpop.f32.mrb[0].mxu0
        %v733 = vadd.f32 0.0, %v732
        %v734 = vpop.f32.mrb[0].mxu0
        %v735 = vpop.f32.mrb[0].mxu0
        %v736 = vadd.f32 0.0, %v735
        %v737 = vpop.f32.mrb[0].mxu0
        %738 = vmatprep.mubr.bf16.mxu0 %v523
        %739 = vmatmul.mubr.bf16.gmra.mrb[0].mxu0 %v522
        %v740 = vpop.f32.mrb[0].mxu0
        %v741 = vadd.f32 0.0, %v740
        %v742 = vpop.f32.mrb[0].mxu0
        %v743 = vpop.f32.mrb[0].mxu0
        %v744 = vadd.f32 0.0, %v743
        %v745 = vpop.f32.mrb[0].mxu0
        %746 = vmatprep.mubr.bf16.mxu0 %v525
        %747 = vmatmul.mubr.bf16.gmra.mrb[0].mxu0 %v524
        %v748 = vpop.f32.mrb[0].mxu0
        %v749 = vadd.f32 0.0, %v748
        %v750 = vpop.f32.mrb[0].mxu0
        %v751 = vpop.f32.mrb[0].mxu0
        %v752 = vadd.f32 0.0, %v751
        %v753 = vpop.f32.mrb[0].mxu0
        %754 = vmatprep.mubr.bf16.mxu0 %v527
        %755 = vmatmul.mubr.bf16.gmra.mrb[0].mxu0 %v526
        %v756 = vpop.f32.mrb[0].mxu0
        %v757 = vadd.f32 0.0, %v756
        %v758 = vpop.f32.mrb[0].mxu0
        %v759 = vpop.f32.mrb[0].mxu0
        %v760 = vadd.f32 0.0, %v759
        %v761 = vpop.f32.mrb[0].mxu0
        %762 = vmatprep.mubr.bf16.mxu0 %v529
        %763 = vmatmul.mubr.bf16.gmra.mrb[0].mxu0 %v528
        %v764 = vpop.f32.mrb[0].mxu0
        %v765 = vadd.f32 0.0, %v764
        %v766 = vpop.f32.mrb[0].mxu0
        %v767 = vpop.f32.mrb[0].mxu0
        %v768 = vadd.f32 0.0, %v767
        %v769 = vpop.f32.mrb[0].mxu0
        %770 = vmatprep.mubr.bf16.mxu0 %v531
        %771 = vmatmul.mubr.bf16.gmra.mrb[0].mxu0 %v530
        %v772 = vpop.f32.mrb[0].mxu0
        %v773 = vadd.f32 0.0, %v772
        %v774 = vpop.f32.mrb[0].mxu0
        %v775 = vpop.f32.mrb[0].mxu0
        %v776 = vadd.f32 0.0, %v775
        %v777 = vpop.f32.mrb[0].mxu0
        %778 = vmatprep.mubr.bf16.mxu0 %v533
        %779 = vmatmul.mubr.bf16.gmra.mrb[0].mxu0 %v532
        %v780 = vpop.f32.mrb[0].mxu0
        %v781 = vadd.f32 0.0, %v780
        %v782 = vpop.f32.mrb[0].mxu0
        %v783 = vpop.f32.mrb[0].mxu0
        %v784 = vadd.f32 0.0, %v783
        %v785 = vpop.f32.mrb[0].mxu0
        %786 = vmatprep.mubr.bf16.mxu0 %v535
        %787 = vmatmul.mubr.bf16.gmra.mrb[0].mxu0 %v534
        %v788 = vpop.f32.mrb[0].mxu0
        %v789 = vadd.f32 0.0, %v788
        %v790 = vpop.f32.mrb[0].mxu0
        %v791 = vpop.f32.mrb[0].mxu0
        %v792 = vadd.f32 0.0, %v791
        %v793 = vpop.f32.mrb[0].mxu0
        %794 = vmatprep.mubr.bf16.mxu0 %v537
        %795 = vmatmul.mubr.bf16.gmra.mrb[0].mxu0 %v536
        %v796 = vpop.f32.mrb[0].mxu0
        %v797 = vadd.f32 0.0, %v796
        %v798 = vpop.f32.mrb[0].mxu0
        %v799 = vpop.f32.mrb[0].mxu0
        %v800 = vadd.f32 0.0, %v799
        %v801 = vpop.f32.mrb[0].mxu0
        %802 = vmatprep.mubr.bf16.mxu0 %v539
        %803 = vmatmul.mubr.bf16.gmra.mrb[0].mxu0 %v538
        %v804 = vpop.f32.mrb[0].mxu0
        %v805 = vadd.f32 0.0, %v804
        %v806 = vpop.f32.mrb[0].mxu0
        %v807 = vpop.f32.mrb[0].mxu0
        %v808 = vadd.f32 0.0, %v807
        %v809 = vpop.f32.mrb[0].mxu0
        %810 = vmatprep.mubr.bf16.mxu0 %v541
        %811 = vmatmul.mubr.bf16.gmra.mrb[0].mxu0 %v540
        %v812 = vpop.f32.mrb[0].mxu0
        %v813 = vadd.f32 0.0, %v812
        %v814 = vpop.f32.mrb[0].mxu0
        %v815 = vpop.f32.mrb[0].mxu0
        %v816 = vadd.f32 0.0, %v815
        %v817 = vpop.f32.mrb[0].mxu0
        %818 = vmatprep.mubr.bf16.mxu0 %v543
        %819 = vmatmul.mubr.bf16.gmra.mrb[0].mxu0 %v542
        %v820 = vpop.f32.mrb[0].mxu0
        %v821 = vadd.f32 0.0, %v820
        %v822 = vpop.f32.mrb[0].mxu0
        %v823 = vpop.f32.mrb[0].mxu0
        %v824 = vadd.f32 0.0, %v823
        %v825 = vpop.f32.mrb[0].mxu0
        %826 = vmatprep.mubr.bf16.mxu0 %v545
        %827 = vmatmul.mubr.bf16.gmra.mrb[0].mxu0 %v544
        %v828 = vpop.f32.mrb[0].mxu0
        %v829 = vadd.f32 0.0, %v828
        %v830 = vpop.f32.mrb[0].mxu0
        %v831 = vpop.f32.mrb[0].mxu0
        %v832 = vadd.f32 0.0, %v831
        %v833 = vpop.f32.mrb[0].mxu0
        %834 = vdwg.mxu0
        %v835 = vadd.f32 %v322, %v709
        %v836 = vadd.f32 %v323, %v712
        %v837 = vadd.f32 %v324, %v717
        %v838 = vadd.f32 %v325, %v720
        %v839 = vadd.f32 %v326, %v725
        %v840 = vadd.f32 %v327, %v728
        %v841 = vadd.f32 %v328, %v733
        %v842 = vadd.f32 %v329, %v736
        %v843 = vadd.f32 %v330, %v741
        %v844 = vadd.f32 %v331, %v744
        %v845 = vadd.f32 %v332, %v749
        %v846 = vadd.f32 %v333, %v752
        %v847 = vadd.f32 %v334, %v757
        %v848 = vadd.f32 %v335, %v760
        %v849 = vadd.f32 %v336, %v765
        %v850 = vadd.f32 %v337, %v768
        %v851 = vadd.f32 %v338, %v773
        %v852 = vadd.f32 %v339, %v776
        %v853 = vadd.f32 %v340, %v781
        %v854 = vadd.f32 %v341, %v784
        %v855 = vadd.f32 %v342, %v789
        %v856 = vadd.f32 %v343, %v792
        %v857 = vadd.f32 %v344, %v797
        %v858 = vadd.f32 %v345, %v800
        %v859 = vadd.f32 %v346, %v805
        %v860 = vadd.f32 %v347, %v808
        %v861 = vadd.f32 %v348, %v813
        %v862 = vadd.f32 %v349, %v816
        %v863 = vadd.f32 %v350, %v821
        %v864 = vadd.f32 %v351, %v824
        %v865 = vadd.f32 %v352, %v829
        %v866 = vadd.f32 %v353, %v832
        %vm867 = vcmask 261120
        %868 = vst.msk [vmem:[#allocation2] sm:$0xff] %vm867, %v835
        %869 = vst.msk [vmem:[#allocation2 + $0x8] sm:$0xff] %vm867, %v836
        %870 = vst.msk [vmem:[#allocation2 + $0x10] sm:$0xff] %vm867, %v837
        %871 = vst.msk [vmem:[#allocation2 + $0x18] sm:$0xff] %vm867, %v838
        %872 = vst.msk [vmem:[#allocation2 + $0x20] sm:$0xff] %vm867, %v839
        %873 = vst.msk [vmem:[#allocation2 + $0x28] sm:$0xff] %vm867, %v840
        %874 = vst.msk [vmem:[#allocation2 + $0x30] sm:$0xff] %vm867, %v841
        %875 = vst.msk [vmem:[#allocation2 + $0x38] sm:$0xff] %vm867, %v842
        %876 = vst.msk [vmem:[#allocation2 + $0x40] sm:$0xff] %vm867, %v843
        %877 = vst.msk [vmem:[#allocation2 + $0x48] sm:$0xff] %vm867, %v844
        %878 = vst.msk [vmem:[#allocation2 + $0x50] sm:$0xff] %vm867, %v845
        %879 = vst.msk [vmem:[#allocation2 + $0x58] sm:$0xff] %vm867, %v846
        %880 = vst.msk [vmem:[#allocation2 + $0x60] sm:$0xff] %vm867, %v847
        %881 = vst.msk [vmem:[#allocation2 + $0x68] sm:$0xff] %vm867, %v848
        %882 = vst.msk [vmem:[#allocation2 + $0x70] sm:$0xff] %vm867, %v849
        %883 = vst.msk [vmem:[#allocation2 + $0x78] sm:$0xff] %vm867, %v850
        %884 = vst.msk [vmem:[#allocation2 + $0x80] sm:$0xff] %vm867, %v851
        %885 = vst.msk [vmem:[#allocation2 + $0x88] sm:$0xff] %vm867, %v852
        %886 = vst.msk [vmem:[#allocation2 + $0x90] sm:$0xff] %vm867, %v853
        %887 = vst.msk [vmem:[#allocation2 + $0x98] sm:$0xff] %vm867, %v854
        %888 = vst.msk [vmem:[#allocation2 + $0xa0] sm:$0xff] %vm867, %v855
        %889 = vst.msk [vmem:[#allocation2 + $0xa8] sm:$0xff] %vm867, %v856
        %890 = vst.msk [vmem:[#allocation2 + $0xb0] sm:$0xff] %vm867, %v857
        %891 = vst.msk [vmem:[#allocation2 + $0xb8] sm:$0xff] %vm867, %v858
        %892 = vst.msk [vmem:[#allocation2 + $0xc0] sm:$0xff] %vm867, %v859
        %893 = vst.msk [vmem:[#allocation2 + $0xc8] sm:$0xff] %vm867, %v860
        %894 = vst.msk [vmem:[#allocation2 + $0xd0] sm:$0xff] %vm867, %v861
        %895 = vst.msk [vmem:[#allocation2 + $0xd8] sm:$0xff] %vm867, %v862
        %896 = vst.msk [vmem:[#allocation2 + $0xe0] sm:$0xff] %vm867, %v863
        %897 = vst.msk [vmem:[#allocation2 + $0xe8] sm:$0xff] %vm867, %v864
        %898 = vst.msk [vmem:[#allocation2 + $0xf0] sm:$0xff] %vm867, %v865
        %899 = vst.msk [vmem:[#allocation2 + $0xf8] sm:$0xff] %vm867, %v866
        // Predicated region
        $region37: #{qnet_forward.5} parent=31 // pred_check
          %p900 = pneg %p285
        $region38: #{qnet_forward.5} parent=31 // pred_check_branch
          %902 = sbr.rel (%p900) target = $region40
        $region39: #{qnet_forward.5} parent=31 // pred_region
          %v903 = vld [vmem:[#allocation2] sm:$0xff]
          %v904 = vld [vmem:[#allocation2 + $0x8] sm:$0xff]
          %v905 = vld [vmem:[#allocation2 + $0x10] sm:$0xff]
          %v906 = vld [vmem:[#allocation2 + $0x18] sm:$0xff]
          %v907 = vld [vmem:[#allocation2 + $0x20] sm:$0xff]
          %v908 = vld [vmem:[#allocation2 + $0x28] sm:$0xff]
          %v909 = vld [vmem:[#allocation2 + $0x30] sm:$0xff]
          %v910 = vld [vmem:[#allocation2 + $0x38] sm:$0xff]
          %v911 = vld [vmem:[#allocation2 + $0x40] sm:$0xff]
          %v912 = vld [vmem:[#allocation2 + $0x48] sm:$0xff]
          %v913 = vld [vmem:[#allocation2 + $0x50] sm:$0xff]
          %v914 = vld [vmem:[#allocation2 + $0x58] sm:$0xff]
          %v915 = vld [vmem:[#allocation2 + $0x60] sm:$0xff]
          %v916 = vld [vmem:[#allocation2 + $0x68] sm:$0xff]
          %v917 = vld [vmem:[#allocation2 + $0x70] sm:$0xff]
          %v918 = vld [vmem:[#allocation2 + $0x78] sm:$0xff]
          %v919 = vld [vmem:[#allocation2 + $0x80] sm:$0xff]
          %v920 = vld [vmem:[#allocation2 + $0x88] sm:$0xff]
          %v921 = vld [vmem:[#allocation2 + $0x90] sm:$0xff]
          %v922 = vld [vmem:[#allocation2 + $0x98] sm:$0xff]
          %v923 = vld [vmem:[#allocation2 + $0xa0] sm:$0xff]
          %v924 = vld [vmem:[#allocation2 + $0xa8] sm:$0xff]
          %v925 = vld [vmem:[#allocation2 + $0xb0] sm:$0xff]
          %v926 = vld [vmem:[#allocation2 + $0xb8] sm:$0xff]
          %v927 = vld [vmem:[#allocation2 + $0xc0] sm:$0xff]
          %v928 = vld [vmem:[#allocation2 + $0xc8] sm:$0xff]
          %v929 = vld [vmem:[#allocation2 + $0xd0] sm:$0xff]
          %v930 = vld [vmem:[#allocation2 + $0xd8] sm:$0xff]
          %v931 = vld [vmem:[#allocation2 + $0xe0] sm:$0xff]
          %v932 = vld [vmem:[#allocation2 + $0xe8] sm:$0xff]
          %v933 = vld [vmem:[#allocation2 + $0xf0] sm:$0xff]
          %v934 = vld [vmem:[#allocation2 + $0xf8] sm:$0xff]
          %v935 = vld [vmem:[%s278] sm:$0x1]
          %v937 = vlaneseq
          %v938 = vshrl.u32 %v937, 7
          %v939 = vsub.s32 0, %v938
          %v940 = vrot.slane %v935, %v939
          %v942 = vadd.f32 %v903, %v940
          %v943 = vadd.f32 %v904, %v940
          %v944 = vadd.f32 %v905, %v940
          %v945 = vadd.f32 %v906, %v940
          %v946 = vadd.f32 %v907, %v940
          %v947 = vadd.f32 %v908, %v940
          %v948 = vadd.f32 %v909, %v940
          %v949 = vadd.f32 %v910, %v940
          %v950 = vadd.f32 %v911, %v940
          %v951 = vadd.f32 %v912, %v940
          %v952 = vadd.f32 %v913, %v940
          %v953 = vadd.f32 %v914, %v940
          %v954 = vadd.f32 %v915, %v940
          %v955 = vadd.f32 %v916, %v940
          %v956 = vadd.f32 %v917, %v940
          %v957 = vadd.f32 %v918, %v940
          %v958 = vadd.f32 %v919, %v940
          %v959 = vadd.f32 %v920, %v940
          %v960 = vadd.f32 %v921, %v940
          %v961 = vadd.f32 %v922, %v940
          %v962 = vadd.f32 %v923, %v940
          %v963 = vadd.f32 %v924, %v940
          %v964 = vadd.f32 %v925, %v940
          %v965 = vadd.f32 %v926, %v940
          %v966 = vadd.f32 %v927, %v940
          %v967 = vadd.f32 %v928, %v940
          %v968 = vadd.f32 %v929, %v940
          %v969 = vadd.f32 %v930, %v940
          %v970 = vadd.f32 %v931, %v940
          %v971 = vadd.f32 %v932, %v940
          %v972 = vadd.f32 %v933, %v940
          %v973 = vadd.f32 %v934, %v940
          %v974 = vmax.f32 %v942, 0.0
          %v975 = vmax.f32 %v943, 0.0
          %v976 = vmax.f32 %v944, 0.0
          %v977 = vmax.f32 %v945, 0.0
          %v978 = vmax.f32 %v946, 0.0
          %v979 = vmax.f32 %v947, 0.0
          %v980 = vmax.f32 %v948, 0.0
          %v981 = vmax.f32 %v949, 0.0
          %v982 = vmax.f32 %v950, 0.0
          %v983 = vmax.f32 %v951, 0.0
          %v984 = vmax.f32 %v952, 0.0
          %v985 = vmax.f32 %v953, 0.0
          %v986 = vmax.f32 %v954, 0.0
          %v987 = vmax.f32 %v955, 0.0
          %v988 = vmax.f32 %v956, 0.0
          %v989 = vmax.f32 %v957, 0.0
          %v990 = vmax.f32 %v958, 0.0
          %v991 = vmax.f32 %v959, 0.0
          %v992 = vmax.f32 %v960, 0.0
          %v993 = vmax.f32 %v961, 0.0
          %v994 = vmax.f32 %v962, 0.0
          %v995 = vmax.f32 %v963, 0.0
          %v996 = vmax.f32 %v964, 0.0
          %v997 = vmax.f32 %v965, 0.0
          %v998 = vmax.f32 %v966, 0.0
          %v999 = vmax.f32 %v967, 0.0
          %v1000 = vmax.f32 %v968, 0.0
          %v1001 = vmax.f32 %v969, 0.0
          %v1002 = vmax.f32 %v970, 0.0
          %v1003 = vmax.f32 %v971, 0.0
          %v1004 = vmax.f32 %v972, 0.0
          %v1005 = vmax.f32 %v973, 0.0
          %v1006 = vpack.c.bf16 %v975, %v974
          %v1007 = vpack.c.bf16 %v977, %v976
          %v1008 = vpack.c.bf16 %v979, %v978
          %v1009 = vpack.c.bf16 %v981, %v980
          %v1010 = vpack.c.bf16 %v983, %v982
          %v1011 = vpack.c.bf16 %v985, %v984
          %v1012 = vpack.c.bf16 %v987, %v986
          %v1013 = vpack.c.bf16 %v989, %v988
          %v1014 = vpack.c.bf16 %v991, %v990
          %v1015 = vpack.c.bf16 %v993, %v992
          %v1016 = vpack.c.bf16 %v995, %v994
          %v1017 = vpack.c.bf16 %v997, %v996
          %v1018 = vpack.c.bf16 %v999, %v998
          %v1019 = vpack.c.bf16 %v1001, %v1000
          %v1020 = vpack.c.bf16 %v1003, %v1002
          %v1021 = vpack.c.bf16 %v1005, %v1004
          %v1038 = vunpack.c.l.b16 %v1006
          %v1039 = vunpack.c.h.b16 %v1006
          %v1040 = vunpack.c.l.b16 %v1007
          %v1041 = vunpack.c.h.b16 %v1007
          %v1042 = vunpack.c.l.b16 %v1008
          %v1043 = vunpack.c.h.b16 %v1008
          %v1044 = vunpack.c.l.b16 %v1009
          %v1045 = vunpack.c.h.b16 %v1009
          %v1046 = vunpack.c.l.b16 %v1010
          %v1047 = vunpack.c.h.b16 %v1010
          %v1048 = vunpack.c.l.b16 %v1011
          %v1049 = vunpack.c.h.b16 %v1011
          %v1050 = vunpack.c.l.b16 %v1012
          %v1051 = vunpack.c.h.b16 %v1012
          %v1052 = vunpack.c.l.b16 %v1013
          %v1053 = vunpack.c.h.b16 %v1013
          %v1054 = vunpack.c.l.b16 %v1014
          %v1055 = vunpack.c.h.b16 %v1014
          %v1056 = vunpack.c.l.b16 %v1015
          %v1057 = vunpack.c.h.b16 %v1015
          %v1058 = vunpack.c.l.b16 %v1016
          %v1059 = vunpack.c.h.b16 %v1016
          %v1060 = vunpack.c.l.b16 %v1017
          %v1061 = vunpack.c.h.b16 %v1017
          %v1062 = vunpack.c.l.b16 %v1018
          %v1063 = vunpack.c.h.b16 %v1018
          %v1064 = vunpack.c.l.b16 %v1019
          %v1065 = vunpack.c.h.b16 %v1019
          %v1066 = vunpack.c.l.b16 %v1020
          %v1067 = vunpack.c.h.b16 %v1020
          %v1068 = vunpack.c.l.b16 %v1021
          %v1069 = vunpack.c.h.b16 %v1021
          %v1070 = vpack.c.b16 %v1038, %v1038
          %v1071 = vpack.c.b16 %v1039, %v1039
          %v1072 = vpack.c.b16 %v1040, %v1040
          %v1073 = vpack.c.b16 %v1041, %v1041
          %v1074 = vpack.c.b16 %v1042, %v1042
          %v1075 = vpack.c.b16 %v1043, %v1043
          %v1076 = vpack.c.b16 %v1044, %v1044
          %v1077 = vpack.c.b16 %v1045, %v1045
          %v1078 = vpack.c.b16 %v1046, %v1046
          %v1079 = vpack.c.b16 %v1047, %v1047
          %v1080 = vpack.c.b16 %v1048, %v1048
          %v1081 = vpack.c.b16 %v1049, %v1049
          %v1082 = vpack.c.b16 %v1050, %v1050
          %v1083 = vpack.c.b16 %v1051, %v1051
          %v1084 = vpack.c.b16 %v1052, %v1052
          %v1085 = vpack.c.b16 %v1053, %v1053
          %v1086 = vpack.c.b16 %v1054, %v1054
          %v1087 = vpack.c.b16 %v1055, %v1055
          %v1088 = vpack.c.b16 %v1056, %v1056
          %v1089 = vpack.c.b16 %v1057, %v1057
          %v1090 = vpack.c.b16 %v1058, %v1058
          %v1091 = vpack.c.b16 %v1059, %v1059
          %v1092 = vpack.c.b16 %v1060, %v1060
          %v1093 = vpack.c.b16 %v1061, %v1061
          %v1094 = vpack.c.b16 %v1062, %v1062
          %v1095 = vpack.c.b16 %v1063, %v1063
          %v1096 = vpack.c.b16 %v1064, %v1064
          %v1097 = vpack.c.b16 %v1065, %v1065
          %v1098 = vpack.c.b16 %v1066, %v1066
          %v1099 = vpack.c.b16 %v1067, %v1067
          %v1100 = vpack.c.b16 %v1068, %v1068
          %v1101 = vpack.c.b16 %v1069, %v1069
          %vm1134 = vcmask 257024
          %1135 = vst.msk [vmem:[%s244] sm:$0xf] %vm1134, %v1070
          %1136 = vst.msk [vmem:[%s244 + $0x4] sm:$0xf] %vm1134, %v1071
          %1137 = vst.msk [vmem:[%s244 + $0x8] sm:$0xf] %vm1134, %v1072
          %1138 = vst.msk [vmem:[%s244 + $0xc] sm:$0xf] %vm1134, %v1073
          %1139 = vst.msk [vmem:[%s244 + $0x10] sm:$0xf] %vm1134, %v1074
          %1140 = vst.msk [vmem:[%s244 + $0x14] sm:$0xf] %vm1134, %v1075
          %1141 = vst.msk [vmem:[%s244 + $0x18] sm:$0xf] %vm1134, %v1076
          %1142 = vst.msk [vmem:[%s244 + $0x1c] sm:$0xf] %vm1134, %v1077
          %1143 = vst.msk [vmem:[%s244 + $0x20] sm:$0xf] %vm1134, %v1078
          %1144 = vst.msk [vmem:[%s244 + $0x24] sm:$0xf] %vm1134, %v1079
          %1145 = vst.msk [vmem:[%s244 + $0x28] sm:$0xf] %vm1134, %v1080
          %1146 = vst.msk [vmem:[%s244 + $0x2c] sm:$0xf] %vm1134, %v1081
          %1147 = vst.msk [vmem:[%s244 + $0x30] sm:$0xf] %vm1134, %v1082
          %1148 = vst.msk [vmem:[%s244 + $0x34] sm:$0xf] %vm1134, %v1083
          %1149 = vst.msk [vmem:[%s244 + $0x38] sm:$0xf] %vm1134, %v1084
          %1150 = vst.msk [vmem:[%s244 + $0x3c] sm:$0xf] %vm1134, %v1085
          %1151 = vst.msk [vmem:[%s244 + $0x40] sm:$0xf] %vm1134, %v1086
          %1152 = vst.msk [vmem:[%s244 + $0x44] sm:$0xf] %vm1134, %v1087
          %1153 = vst.msk [vmem:[%s244 + $0x48] sm:$0xf] %vm1134, %v1088
          %1154 = vst.msk [vmem:[%s244 + $0x4c] sm:$0xf] %vm1134, %v1089
          %1155 = vst.msk [vmem:[%s244 + $0x50] sm:$0xf] %vm1134, %v1090
          %1156 = vst.msk [vmem:[%s244 + $0x54] sm:$0xf] %vm1134, %v1091
          %1157 = vst.msk [vmem:[%s244 + $0x58] sm:$0xf] %vm1134, %v1092
          %1158 = vst.msk [vmem:[%s244 + $0x5c] sm:$0xf] %vm1134, %v1093
          %1159 = vst.msk [vmem:[%s244 + $0x60] sm:$0xf] %vm1134, %v1094
          %1160 = vst.msk [vmem:[%s244 + $0x64] sm:$0xf] %vm1134, %v1095
          %1161 = vst.msk [vmem:[%s244 + $0x68] sm:$0xf] %vm1134, %v1096
          %1162 = vst.msk [vmem:[%s244 + $0x6c] sm:$0xf] %vm1134, %v1097
          %1163 = vst.msk [vmem:[%s244 + $0x70] sm:$0xf] %vm1134, %v1098
          %1164 = vst.msk [vmem:[%s244 + $0x74] sm:$0xf] %vm1134, %v1099
          %1165 = vst.msk [vmem:[%s244 + $0x78] sm:$0xf] %vm1134, %v1100
          %1166 = vst.msk [vmem:[%s244 + $0x7c] sm:$0xf] %vm1134, %v1101
        $region40: #{qnet_forward.5} parent=31 // pred_fallthru
          _
        %s1167 = sand.u32 %s125, 1
        %s1168 = sand.u32 %s125, 1
        %s1169 = smul.addr %s1168, 128
        %s1170 = scalar_lea.vmem [#allocation3], %s1169
        // Predicated region
        $region41: #{qnet_forward.5} parent=31 // pred_check
          %p1171 = pneg %p135
        $region42: #{qnet_forward.5} parent=31 // pred_check_branch
          %1173 = sbr.rel (%p1171) target = $region44
        $region43: #{qnet_forward.5} parent=31 // pred_region
          %s1174 = smul.u32 32, %s19
          %s1175 = ssub.s32 100, %s1174
          %p1176 = scmp.lt.s32.totalorder %s1175, 32
          %s1177 = scalar_select %p1176, %s1175, 32
          %s1178 = smul.u32 64, %s1177
          %p1179 = scmp.ne.s32.totalorder 0, %s1178
          %s1180 = sadd.s32 %s20, %s1174
          %s1181 = smul.addr %s1180, 4
          %s1182 = scalar_lea.vmem %s3, %s1181
          // Predicated region
          $region45: #{qnet_forward.5} parent=43 // pred_check
            %p1183 = pneg %p1179
          $region46: #{qnet_forward.5} parent=43 // pred_check_branch
            %1185 = sbr.rel (%p1183) target = $region48
          $region47: #{qnet_forward.5} parent=43 // pred_region
            // Predicated region
            $region49: #{qnet_forward.5} parent=47 // pred_check
              _
            $region50: #{qnet_forward.5} parent=47 // pred_check_branch
              %1187 = sbr.rel target = $region52
            $region51: #{qnet_forward.5} parent=47 // pred_region
              // Predicated region
              $region71: #{qnet_forward.5} parent=51 // pred_check
                _
              $region72: #{qnet_forward.5} parent=51 // pred_check_branch
                %1298 = sbr.rel (0) target = $region74
              $region73: #{qnet_forward.5} parent=51 // pred_region
                %s1300 = sshrl.u32 %s1177, 5
                // While loop
                $region75: #{qnet_forward.5} parent=73 // loop_pre_header
                  _
                $region76: #{qnet_forward.5} parent=73 // loop_header
                  %s1302 = sphi 0, %s1304
                  %p1303 = scmp.ge.s32.totalorder %s1302, %s1300
                  %s1307 = sphi 0, %s1376
                  %s1308 = sphi %s1170, %s1379
                  %s1309 = sphi %s1182, %s1380
                $region77: #{qnet_forward.5} parent=73 // loop_header_branch
                  %1306 = sbr.rel (%p1303) target = $region81
                $region78: #{qnet_forward.5} parent=73 // loop_body
                  %v1310 = vld [vmem:[%s1308] sm:$0xf]
                  %1311 = vst [vmem:[%s1309] sm:$0xf] %v1310
                  %v1312 = vld [vmem:[%s1308 + $0x4] sm:$0xf]
                  %1313 = vst [vmem:[%s1309 + $0x4] sm:$0xf] %v1312
                  %v1314 = vld [vmem:[%s1308 + $0x8] sm:$0xf]
                  %1315 = vst [vmem:[%s1309 + $0x8] sm:$0xf] %v1314
                  %v1316 = vld [vmem:[%s1308 + $0xc] sm:$0xf]
                  %1317 = vst [vmem:[%s1309 + $0xc] sm:$0xf] %v1316
                  %v1318 = vld [vmem:[%s1308 + $0x10] sm:$0xf]
                  %1319 = vst [vmem:[%s1309 + $0x10] sm:$0xf] %v1318
                  %v1320 = vld [vmem:[%s1308 + $0x14] sm:$0xf]
                  %1321 = vst [vmem:[%s1309 + $0x14] sm:$0xf] %v1320
                  %v1322 = vld [vmem:[%s1308 + $0x18] sm:$0xf]
                  %1323 = vst [vmem:[%s1309 + $0x18] sm:$0xf] %v1322
                  %v1324 = vld [vmem:[%s1308 + $0x1c] sm:$0xf]
                  %1325 = vst [vmem:[%s1309 + $0x1c] sm:$0xf] %v1324
                  %v1326 = vld [vmem:[%s1308 + $0x20] sm:$0xf]
                  %1327 = vst [vmem:[%s1309 + $0x20] sm:$0xf] %v1326
                  %v1328 = vld [vmem:[%s1308 + $0x24] sm:$0xf]
                  %1329 = vst [vmem:[%s1309 + $0x24] sm:$0xf] %v1328
                  %v1330 = vld [vmem:[%s1308 + $0x28] sm:$0xf]
                  %1331 = vst [vmem:[%s1309 + $0x28] sm:$0xf] %v1330
                  %v1332 = vld [vmem:[%s1308 + $0x2c] sm:$0xf]
                  %1333 = vst [vmem:[%s1309 + $0x2c] sm:$0xf] %v1332
                  %v1334 = vld [vmem:[%s1308 + $0x30] sm:$0xf]
                  %1335 = vst [vmem:[%s1309 + $0x30] sm:$0xf] %v1334
                  %v1336 = vld [vmem:[%s1308 + $0x34] sm:$0xf]
                  %1337 = vst [vmem:[%s1309 + $0x34] sm:$0xf] %v1336
                  %v1338 = vld [vmem:[%s1308 + $0x38] sm:$0xf]
                  %1339 = vst [vmem:[%s1309 + $0x38] sm:$0xf] %v1338
                  %v1340 = vld [vmem:[%s1308 + $0x3c] sm:$0xf]
                  %1341 = vst [vmem:[%s1309 + $0x3c] sm:$0xf] %v1340
                  %v1342 = vld [vmem:[%s1308 + $0x40] sm:$0xf]
                  %1343 = vst [vmem:[%s1309 + $0x40] sm:$0xf] %v1342
                  %v1344 = vld [vmem:[%s1308 + $0x44] sm:$0xf]
                  %1345 = vst [vmem:[%s1309 + $0x44] sm:$0xf] %v1344
                  %v1346 = vld [vmem:[%s1308 + $0x48] sm:$0xf]
                  %1347 = vst [vmem:[%s1309 + $0x48] sm:$0xf] %v1346
                  %v1348 = vld [vmem:[%s1308 + $0x4c] sm:$0xf]
                  %1349 = vst [vmem:[%s1309 + $0x4c] sm:$0xf] %v1348
                  %v1350 = vld [vmem:[%s1308 + $0x50] sm:$0xf]
                  %1351 = vst [vmem:[%s1309 + $0x50] sm:$0xf] %v1350
                  %v1352 = vld [vmem:[%s1308 + $0x54] sm:$0xf]
                  %1353 = vst [vmem:[%s1309 + $0x54] sm:$0xf] %v1352
                  %v1354 = vld [vmem:[%s1308 + $0x58] sm:$0xf]
                  %1355 = vst [vmem:[%s1309 + $0x58] sm:$0xf] %v1354
                  %v1356 = vld [vmem:[%s1308 + $0x5c] sm:$0xf]
                  %1357 = vst [vmem:[%s1309 + $0x5c] sm:$0xf] %v1356
                  %v1358 = vld [vmem:[%s1308 + $0x60] sm:$0xf]
                  %1359 = vst [vmem:[%s1309 + $0x60] sm:$0xf] %v1358
                  %v1360 = vld [vmem:[%s1308 + $0x64] sm:$0xf]
                  %1361 = vst [vmem:[%s1309 + $0x64] sm:$0xf] %v1360
                  %v1362 = vld [vmem:[%s1308 + $0x68] sm:$0xf]
                  %1363 = vst [vmem:[%s1309 + $0x68] sm:$0xf] %v1362
                  %v1364 = vld [vmem:[%s1308 + $0x6c] sm:$0xf]
                  %1365 = vst [vmem:[%s1309 + $0x6c] sm:$0xf] %v1364
                  %v1366 = vld [vmem:[%s1308 + $0x70] sm:$0xf]
                  %1367 = vst [vmem:[%s1309 + $0x70] sm:$0xf] %v1366
                  %v1368 = vld [vmem:[%s1308 + $0x74] sm:$0xf]
                  %1369 = vst [vmem:[%s1309 + $0x74] sm:$0xf] %v1368
                  %v1370 = vld [vmem:[%s1308 + $0x78] sm:$0xf]
                  %1371 = vst [vmem:[%s1309 + $0x78] sm:$0xf] %v1370
                  %v1372 = vld [vmem:[%s1308 + $0x7c] sm:$0xf]
                  %1373 = vst [vmem:[%s1309 + $0x7c] sm:$0xf] %v1372
                  %s1374 = sadd.s32 1, %s1307
                  %p1375 = scmp.ge.s32.totalorder %s1374, %s1300
                  %s1376 = scalar_select %p1375, 0, %s1374
                  %s1377 = smul.u32 %s1376, 128
                  %s1378 = smul.u32 %s1376, 128
                  %s1379 = scalar_lea.vmem %s1170, %s1377 [#allocation3]
                  %s1380 = scalar_lea.vmem %s1182, %s1378
                $region79: #{qnet_forward.5} parent=73 // loop_footer
                  %s1304 = sadd.s32 %s1302, 1
                $region80: #{qnet_forward.5} parent=73 // loop_footer_branch
                  %1301 = sbr.rel target = $region76
                $region81: #{qnet_forward.5} parent=73 // loop_exit
                  _
                %s1381 = sshrl.u32 %s1177, 5
                %s1382 = sand.u32 %s1177, 31
                %s1383 = smul.u32 %s1381, 32
                %s1384 = smul.u32 4, %s1383
                %s1385 = scalar_lea.vmem %s1170, %s1384 [#allocation3]
                %s1386 = smul.u32 4, %s1383
                %s1387 = scalar_lea.vmem %s1182, %s1386
                // While loop
                $region82: #{qnet_forward.5} parent=73 // loop_pre_header
                  _
                $region83: #{qnet_forward.5} parent=73 // loop_header
                  %s1389 = sphi 0, %s1391
                  %p1390 = scmp.ge.s32.totalorder %s1389, %s1382
                  %s1394 = sphi 0, %s1401
                  %s1395 = sphi %s1385, %s1404
                  %s1396 = sphi %s1387, %s1405
                $region84: #{qnet_forward.5} parent=73 // loop_header_branch
                  %1393 = sbr.rel (%p1390) target = $region88
                $region85: #{qnet_forward.5} parent=73 // loop_body
                  %v1397 = vld [vmem:[%s1395] sm:$0xf]
                  %1398 = vst [vmem:[%s1396] sm:$0xf] %v1397
                  %s1399 = sadd.s32 1, %s1394
                  %p1400 = scmp.ge.s32.totalorder %s1399, %s1382
                  %s1401 = scalar_select %p1400, 0, %s1399
                  %s1402 = smul.u32 %s1401, 4
                  %s1403 = smul.u32 %s1401, 4
                  %s1404 = scalar_lea.vmem %s1385, %s1402 [#allocation3]
                  %s1405 = scalar_lea.vmem %s1387, %s1403
                $region86: #{qnet_forward.5} parent=73 // loop_footer
                  %s1391 = sadd.s32 %s1389, 1
                $region87: #{qnet_forward.5} parent=73 // loop_footer_branch
                  %1388 = sbr.rel target = $region83
                $region88: #{qnet_forward.5} parent=73 // loop_exit
                  _
              $region74: #{qnet_forward.5} parent=51 // pred_fallthru
                _
            $region52: #{qnet_forward.5} parent=47 // pred_fallthru
              _
            // Predicated region
            $region53: #{qnet_forward.5} parent=47 // pred_check
              _
            $region54: #{qnet_forward.5} parent=47 // pred_check_branch
              %1189 = sbr.rel (0) target = $region56
            $region55: #{qnet_forward.5} parent=47 // pred_region
              %s1191 = sshrl.u32 %s1177, 5
              // While loop
              $region57: #{qnet_forward.5} parent=55 // loop_pre_header
                _
              $region58: #{qnet_forward.5} parent=55 // loop_header
                %s1193 = sphi 0, %s1195
                %p1194 = scmp.ge.s32.totalorder %s1193, %s1191
                %s1198 = sphi 0, %s1267
                %s1199 = sphi %s1170, %s1270
                %s1200 = sphi %s1182, %s1271
              $region59: #{qnet_forward.5} parent=55 // loop_header_branch
                %1197 = sbr.rel (%p1194) target = $region63
              $region60: #{qnet_forward.5} parent=55 // loop_body
                %v1201 = vld [vmem:[%s1199] sm:$0xf]
                %1202 = vst [vmem:[%s1200] sm:$0xf] %v1201
                %v1203 = vld [vmem:[%s1199 + $0x4] sm:$0xf]
                %1204 = vst [vmem:[%s1200 + $0x4] sm:$0xf] %v1203
                %v1205 = vld [vmem:[%s1199 + $0x8] sm:$0xf]
                %1206 = vst [vmem:[%s1200 + $0x8] sm:$0xf] %v1205
                %v1207 = vld [vmem:[%s1199 + $0xc] sm:$0xf]
                %1208 = vst [vmem:[%s1200 + $0xc] sm:$0xf] %v1207
                %v1209 = vld [vmem:[%s1199 + $0x10] sm:$0xf]
                %1210 = vst [vmem:[%s1200 + $0x10] sm:$0xf] %v1209
                %v1211 = vld [vmem:[%s1199 + $0x14] sm:$0xf]
                %1212 = vst [vmem:[%s1200 + $0x14] sm:$0xf] %v1211
                %v1213 = vld [vmem:[%s1199 + $0x18] sm:$0xf]
                %1214 = vst [vmem:[%s1200 + $0x18] sm:$0xf] %v1213
                %v1215 = vld [vmem:[%s1199 + $0x1c] sm:$0xf]
                %1216 = vst [vmem:[%s1200 + $0x1c] sm:$0xf] %v1215
                %v1217 = vld [vmem:[%s1199 + $0x20] sm:$0xf]
                %1218 = vst [vmem:[%s1200 + $0x20] sm:$0xf] %v1217
                %v1219 = vld [vmem:[%s1199 + $0x24] sm:$0xf]
                %1220 = vst [vmem:[%s1200 + $0x24] sm:$0xf] %v1219
                %v1221 = vld [vmem:[%s1199 + $0x28] sm:$0xf]
                %1222 = vst [vmem:[%s1200 + $0x28] sm:$0xf] %v1221
                %v1223 = vld [vmem:[%s1199 + $0x2c] sm:$0xf]
                %1224 = vst [vmem:[%s1200 + $0x2c] sm:$0xf] %v1223
                %v1225 = vld [vmem:[%s1199 + $0x30] sm:$0xf]
                %1226 = vst [vmem:[%s1200 + $0x30] sm:$0xf] %v1225
                %v1227 = vld [vmem:[%s1199 + $0x34] sm:$0xf]
                %1228 = vst [vmem:[%s1200 + $0x34] sm:$0xf] %v1227
                %v1229 = vld [vmem:[%s1199 + $0x38] sm:$0xf]
                %1230 = vst [vmem:[%s1200 + $0x38] sm:$0xf] %v1229
                %v1231 = vld [vmem:[%s1199 + $0x3c] sm:$0xf]
                %1232 = vst [vmem:[%s1200 + $0x3c] sm:$0xf] %v1231
                %v1233 = vld [vmem:[%s1199 + $0x40] sm:$0xf]
                %1234 = vst [vmem:[%s1200 + $0x40] sm:$0xf] %v1233
                %v1235 = vld [vmem:[%s1199 + $0x44] sm:$0xf]
                %1236 = vst [vmem:[%s1200 + $0x44] sm:$0xf] %v1235
                %v1237 = vld [vmem:[%s1199 + $0x48] sm:$0xf]
                %1238 = vst [vmem:[%s1200 + $0x48] sm:$0xf] %v1237
                %v1239 = vld [vmem:[%s1199 + $0x4c] sm:$0xf]
                %1240 = vst [vmem:[%s1200 + $0x4c] sm:$0xf] %v1239
                %v1241 = vld [vmem:[%s1199 + $0x50] sm:$0xf]
                %1242 = vst [vmem:[%s1200 + $0x50] sm:$0xf] %v1241
                %v1243 = vld [vmem:[%s1199 + $0x54] sm:$0xf]
                %1244 = vst [vmem:[%s1200 + $0x54] sm:$0xf] %v1243
                %v1245 = vld [vmem:[%s1199 + $0x58] sm:$0xf]
                %1246 = vst [vmem:[%s1200 + $0x58] sm:$0xf] %v1245
                %v1247 = vld [vmem:[%s1199 + $0x5c] sm:$0xf]
                %1248 = vst [vmem:[%s1200 + $0x5c] sm:$0xf] %v1247
                %v1249 = vld [vmem:[%s1199 + $0x60] sm:$0xf]
                %1250 = vst [vmem:[%s1200 + $0x60] sm:$0xf] %v1249
                %v1251 = vld [vmem:[%s1199 + $0x64] sm:$0xf]
                %1252 = vst [vmem:[%s1200 + $0x64] sm:$0xf] %v1251
                %v1253 = vld [vmem:[%s1199 + $0x68] sm:$0xf]
                %1254 = vst [vmem:[%s1200 + $0x68] sm:$0xf] %v1253
                %v1255 = vld [vmem:[%s1199 + $0x6c] sm:$0xf]
                %1256 = vst [vmem:[%s1200 + $0x6c] sm:$0xf] %v1255
                %v1257 = vld [vmem:[%s1199 + $0x70] sm:$0xf]
                %1258 = vst [vmem:[%s1200 + $0x70] sm:$0xf] %v1257
                %v1259 = vld [vmem:[%s1199 + $0x74] sm:$0xf]
                %1260 = vst [vmem:[%s1200 + $0x74] sm:$0xf] %v1259
                %v1261 = vld [vmem:[%s1199 + $0x78] sm:$0xf]
                %1262 = vst [vmem:[%s1200 + $0x78] sm:$0xf] %v1261
                %v1263 = vld [vmem:[%s1199 + $0x7c] sm:$0xf]
                %1264 = vst [vmem:[%s1200 + $0x7c] sm:$0xf] %v1263
                %s1265 = sadd.s32 1, %s1198
                %p1266 = scmp.ge.s32.totalorder %s1265, %s1191
                %s1267 = scalar_select %p1266, 0, %s1265
                %s1268 = smul.u32 %s1267, 128
                %s1269 = smul.u32 %s1267, 128
                %s1270 = scalar_lea.vmem %s1170, %s1268 [#allocation3]
                %s1271 = scalar_lea.vmem %s1182, %s1269
              $region61: #{qnet_forward.5} parent=55 // loop_footer
                %s1195 = sadd.s32 %s1193, 1
              $region62: #{qnet_forward.5} parent=55 // loop_footer_branch
                %1192 = sbr.rel target = $region58
              $region63: #{qnet_forward.5} parent=55 // loop_exit
                _
              %s1272 = sshrl.u32 %s1177, 5
              %s1273 = sand.u32 %s1177, 31
              %s1274 = smul.u32 %s1272, 32
              %s1275 = smul.u32 4, %s1274
              %s1276 = scalar_lea.vmem %s1170, %s1275 [#allocation3]
              %s1277 = smul.u32 4, %s1274
              %s1278 = scalar_lea.vmem %s1182, %s1277
              // While loop
              $region64: #{qnet_forward.5} parent=55 // loop_pre_header
                _
              $region65: #{qnet_forward.5} parent=55 // loop_header
                %s1280 = sphi 0, %s1282
                %p1281 = scmp.ge.s32.totalorder %s1280, %s1273
                %s1285 = sphi 0, %s1292
                %s1286 = sphi %s1276, %s1295
                %s1287 = sphi %s1278, %s1296
              $region66: #{qnet_forward.5} parent=55 // loop_header_branch
                %1284 = sbr.rel (%p1281) target = $region70
              $region67: #{qnet_forward.5} parent=55 // loop_body
                %v1288 = vld [vmem:[%s1286] sm:$0xf]
                %1289 = vst [vmem:[%s1287] sm:$0xf] %v1288
                %s1290 = sadd.s32 1, %s1285
                %p1291 = scmp.ge.s32.totalorder %s1290, %s1273
                %s1292 = scalar_select %p1291, 0, %s1290
                %s1293 = smul.u32 %s1292, 4
                %s1294 = smul.u32 %s1292, 4
                %s1295 = scalar_lea.vmem %s1276, %s1293 [#allocation3]
                %s1296 = scalar_lea.vmem %s1278, %s1294
              $region68: #{qnet_forward.5} parent=55 // loop_footer
                %s1282 = sadd.s32 %s1280, 1
              $region69: #{qnet_forward.5} parent=55 // loop_footer_branch
                %1279 = sbr.rel target = $region65
              $region70: #{qnet_forward.5} parent=55 // loop_exit
                _
            $region56: #{qnet_forward.5} parent=47 // pred_fallthru
              _
          $region48: #{qnet_forward.5} parent=43 // pred_fallthru
            _
          %1406 = vnop
        $region44: #{qnet_forward.5} parent=31 // pred_fallthru
          _
      $region32: #{qnet_forward.5} parent=5 // pred_fallthru
        _
      %p1407 = scmp.le.s32.totalorder 2, %s9
      // Predicated region
      $region89: #{qnet_forward.5} parent=5 // pred_check
        %p1408 = pneg %p1407
      $region90: #{qnet_forward.5} parent=5 // pred_check_branch
        %1410 = sbr.rel (%p1408) target = $region92
      $region91: #{qnet_forward.5} parent=5 // pred_region
        %s1411 = ssub.s32 %s9, 2
        // Predicated region
        $region93: #{qnet_forward.5} parent=91 // pred_check
          %p1412 = pneg %p141
        $region94: #{qnet_forward.5} parent=91 // pred_check_branch
          %1414 = sbr.rel (%p1412) target = $region96
        $region95: #{qnet_forward.5} parent=91 // pred_region
          %s1415 = sand.u32 %s126, 1
          %s1416 = sand.u32 %s126, 1
          %s1417 = smul.addr %s1416, 128
          %s1418 = scalar_lea.vmem [#allocation3], %s1417
        $region96: #{qnet_forward.5} parent=91 // pred_fallthru
          _
      $region92: #{qnet_forward.5} parent=5 // pred_fallthru
        _
    $region6: #{qnet_forward.5} parent=1 // loop_footer
      %s13 = sadd.s32 1, %s9
    $region7: #{qnet_forward.5} parent=1 // loop_footer_branch
      %8 = sbr.rel target = $region3
    $region8: #{qnet_forward.5} parent=1 // loop_exit
      _

// kernel: qnet_forward.6
$region0: #{qnet_forward.6}
  #allocation0 [shape = 'u32[]', space=smem, size = 0x4, offset = 0x4, fixed_abs, tag = 'smem constant byte address 0x4 - core index']
  #allocation1 [shape = 'u32[144,128]{1,0:T(1,128)}', space=vmem, size = 0x12000, scoped, tag = 'internal scratch']
  #allocation2 [shape = 'f32[162,64]{1,0:T(8,128)}', space=vmem, size = 0x15000, scoped, tag = 'scratch operand']
  %s0 = inlined_call_operand.vmem [shape: bf16[162,512], index: 0, kind: input, shape index: {}]
  %s1 = inlined_call_operand.vmem [shape: bf16[512,64], index: 1, kind: input, shape index: {}]
  %s2 = inlined_call_operand.vmem [shape: f32[1,64], index: 2, kind: input, shape index: {}]
  %s3 = inlined_call_operand.vmem [shape: bf16[162,64], index: 3, kind: output, shape index: {}]
  %s4 = sld [smem:[#allocation0]]
  $region30: #{qnet_forward.6} parent=0
    _
  %s6 = ssub.s32 1, %s4
  %s7 = scalar_select 0, %s6, %s4
  // Predicated region
  $region2: #{qnet_forward.6} parent=0 // pred_check
    _
  $region3: #{qnet_forward.6} parent=0 // pred_check_branch
    %9 = sbr.rel (0) target = $region5
  $region4: #{qnet_forward.6} parent=0 // pred_region
    _
  $region5: #{qnet_forward.6} parent=0 // pred_fallthru
    _
  // Predicated region
  $region6: #{qnet_forward.6} parent=0 // pred_check
    _
  $region7: #{qnet_forward.6} parent=0 // pred_check_branch
    %11 = sbr.rel (0) target = $region9
  $region8: #{qnet_forward.6} parent=0 // pred_region
    _
  $region9: #{qnet_forward.6} parent=0 // pred_fallthru
    _
  // Predicated region
  $region10: #{qnet_forward.6} parent=0 // pred_check
    _
  $region11: #{qnet_forward.6} parent=0 // pred_check_branch
    %13 = sbr.rel (0) target = $region13
  $region12: #{qnet_forward.6} parent=0 // pred_region
    _
  $region13: #{qnet_forward.6} parent=0 // pred_fallthru
    _
  %p15 = scmp.eq.s32.totalorder 0, 0
  // Predicated region
  $region14: #{qnet_forward.6} parent=0 // pred_check
    %p16 = pneg %p15
  $region15: #{qnet_forward.6} parent=0 // pred_check_branch
    %18 = sbr.rel (%p16) target = $region17
  $region16: #{qnet_forward.6} parent=0 // pred_region
    %vm19 = vcmask 523264
    %20 = vst.msk [vmem:[#allocation2] sm:$0xff] %vm19, 0.0
    %21 = vst.msk [vmem:[#allocation2 + $0x8] sm:$0xff] %vm19, 0.0
    %22 = vst.msk [vmem:[#allocation2 + $0x10] sm:$0xff] %vm19, 0.0
    %23 = vst.msk [vmem:[#allocation2 + $0x18] sm:$0xff] %vm19, 0.0
    %24 = vst.msk [vmem:[#allocation2 + $0x20] sm:$0xff] %vm19, 0.0
    %25 = vst.msk [vmem:[#allocation2 + $0x28] sm:$0xff] %vm19, 0.0
    %26 = vst.msk [vmem:[#allocation2 + $0x30] sm:$0xff] %vm19, 0.0
    %27 = vst.msk [vmem:[#allocation2 + $0x38] sm:$0xff] %vm19, 0.0
    %28 = vst.msk [vmem:[#allocation2 + $0x40] sm:$0xff] %vm19, 0.0
    %29 = vst.msk [vmem:[#allocation2 + $0x48] sm:$0xff] %vm19, 0.0
    %30 = vst.msk [vmem:[#allocation2 + $0x50] sm:$0xff] %vm19, 0.0
    %31 = vst.msk [vmem:[#allocation2 + $0x58] sm:$0xff] %vm19, 0.0
    %32 = vst.msk [vmem:[#allocation2 + $0x60] sm:$0xff] %vm19, 0.0
    %33 = vst.msk [vmem:[#allocation2 + $0x68] sm:$0xff] %vm19, 0.0
    %34 = vst.msk [vmem:[#allocation2 + $0x70] sm:$0xff] %vm19, 0.0
    %35 = vst.msk [vmem:[#allocation2 + $0x78] sm:$0xff] %vm19, 0.0
    %36 = vst.msk [vmem:[#allocation2 + $0x80] sm:$0xff] %vm19, 0.0
    %37 = vst.msk [vmem:[#allocation2 + $0x88] sm:$0xff] %vm19, 0.0
    %38 = vst.msk [vmem:[#allocation2 + $0x90] sm:$0xff] %vm19, 0.0
    %39 = vst.msk [vmem:[#allocation2 + $0x98] sm:$0xff] %vm19, 0.0
    %vm40 = vcmask 517120
    %41 = vst.msk [vmem:[#allocation2 + $0xa0] sm:$0x3] %vm40, 0.0
  $region17: #{qnet_forward.6} parent=0 // pred_fallthru
    _
  %v42 = vld [vmem:[#allocation2] sm:$0xff]
  %v43 = vld [vmem:[#allocation2 + $0x8] sm:$0xff]
  %v44 = vld [vmem:[#allocation2 + $0x10] sm:$0xff]
  %v45 = vld [vmem:[#allocation2 + $0x18] sm:$0xff]
  %v46 = vld [vmem:[#allocation2 + $0x20] sm:$0xff]
  %v47 = vld [vmem:[#allocation2 + $0x28] sm:$0xff]
  %v48 = vld [vmem:[#allocation2 + $0x30] sm:$0xff]
  %v49 = vld [vmem:[#allocation2 + $0x38] sm:$0xff]
  %v50 = vld [vmem:[#allocation2 + $0x40] sm:$0xff]
  %v51 = vld [vmem:[#allocation2 + $0x48] sm:$0xff]
  %v52 = vld [vmem:[#allocation2 + $0x50] sm:$0xff]
  %v53 = vld [vmem:[#allocation2 + $0x58] sm:$0xff]
  %v54 = vld [vmem:[#allocation2 + $0x60] sm:$0xff]
  %v55 = vld [vmem:[#allocation2 + $0x68] sm:$0xff]
  %v56 = vld [vmem:[#allocation2 + $0x70] sm:$0xff]
  %v57 = vld [vmem:[#allocation2 + $0x78] sm:$0xff]
  %v58 = vld [vmem:[#allocation2 + $0x80] sm:$0xff]
  %v59 = vld [vmem:[#allocation2 + $0x88] sm:$0xff]
  %v60 = vld [vmem:[#allocation2 + $0x90] sm:$0xff]
  %v61 = vld [vmem:[#allocation2 + $0x98] sm:$0xff]
  %v62 = vld [vmem:[#allocation2 + $0xa0] sm:$0x3]
  %v63 = vld [vmem:[%s0] sm:$0xff]
  %v64 = vld [vmem:[%s0 + $0x8] sm:$0xff]
  %v65 = vld [vmem:[%s0 + $0x10] sm:$0xff]
  %v66 = vld [vmem:[%s0 + $0x18] sm:$0xff]
  %v67 = vld [vmem:[%s0 + $0x20] sm:$0xff]
  %v68 = vld [vmem:[%s0 + $0x28] sm:$0xff]
  %v69 = vld [vmem:[%s0 + $0x30] sm:$0xff]
  %v70 = vld [vmem:[%s0 + $0x38] sm:$0xff]
  %v71 = vld [vmem:[%s0 + $0x40] sm:$0xff]
  %v72 = vld [vmem:[%s0 + $0x48] sm:$0xff]
  %v73 = vld [vmem:[%s0 + $0x50] sm:$0xff]
  %v74 = vld [vmem:[%s0 + $0x58] sm:$0xff]
  %v75 = vld [vmem:[%s0 + $0x60] sm:$0xff]
  %v76 = vld [vmem:[%s0 + $0x68] sm:$0xff]
  %v77 = vld [vmem:[%s0 + $0x70] sm:$0xff]
  %v78 = vld [vmem:[%s0 + $0x78] sm:$0xff]
  %v79 = vld [vmem:[%s0 + $0x80] sm:$0xff]
  %v80 = vld [vmem:[%s0 + $0x88] sm:$0xff]
  %v81 = vld [vmem:[%s0 + $0x90] sm:$0xff]
  %v82 = vld [vmem:[%s0 + $0x98] sm:$0xff]
  %v83 = vld [vmem:[%s0 + $0xa0] sm:$0xff]
  %v84 = vld [vmem:[%s0 + $0xa8] sm:$0xff]
  %v85 = vld [vmem:[%s0 + $0xb0] sm:$0xff]
  %v86 = vld [vmem:[%s0 + $0xb8] sm:$0xff]
  %v87 = vld [vmem:[%s0 + $0xc0] sm:$0xff]
  %v88 = vld [vmem:[%s0 + $0xc8] sm:$0xff]
  %v89 = vld [vmem:[%s0 + $0xd0] sm:$0xff]
  %v90 = vld [vmem:[%s0 + $0xd8] sm:$0xff]
  %v91 = vld [vmem:[%s0 + $0xe0] sm:$0xff]
  %v92 = vld [vmem:[%s0 + $0xe8] sm:$0xff]
  %v93 = vld [vmem:[%s0 + $0xf0] sm:$0xff]
  %v94 = vld [vmem:[%s0 + $0xf8] sm:$0xff]
  %v95 = vld [vmem:[%s0 + $0x100] sm:$0xff]
  %v96 = vld [vmem:[%s0 + $0x108] sm:$0xff]
  %v97 = vld [vmem:[%s0 + $0x110] sm:$0xff]
  %v98 = vld [vmem:[%s0 + $0x118] sm:$0xff]
  %v99 = vld [vmem:[%s0 + $0x120] sm:$0xff]
  %v100 = vld [vmem:[%s0 + $0x128] sm:$0xff]
  %v101 = vld [vmem:[%s0 + $0x130] sm:$0xff]
  %v102 = vld [vmem:[%s0 + $0x138] sm:$0xff]
  %v103 = vld [vmem:[%s0 + $0x140] sm:$0x11]
  %v104 = vld [vmem:[%s0 + $0x148] sm:$0x11]
  %v105 = vld [vmem:[%s1] sm:$0xf]
  %v106 = vld [vmem:[%s1 + $0x4] sm:$0xf]
  %v107 = vld [vmem:[%s1 + $0x8] sm:$0xf]
  %v108 = vld [vmem:[%s1 + $0xc] sm:$0xf]
  %v109 = vld [vmem:[%s1 + $0x10] sm:$0xf]
  %v110 = vld [vmem:[%s1 + $0x14] sm:$0xf]
  %v111 = vld [vmem:[%s1 + $0x18] sm:$0xf]
  %v112 = vld [vmem:[%s1 + $0x1c] sm:$0xf]
  %v113 = vld [vmem:[%s1 + $0x20] sm:$0xf]
  %v114 = vld [vmem:[%s1 + $0x24] sm:$0xf]
  %v115 = vld [vmem:[%s1 + $0x28] sm:$0xf]
  %v116 = vld [vmem:[%s1 + $0x2c] sm:$0xf]
  %v117 = vld [vmem:[%s1 + $0x30] sm:$0xf]
  %v118 = vld [vmem:[%s1 + $0x34] sm:$0xf]
  %v119 = vld [vmem:[%s1 + $0x38] sm:$0xf]
  %v120 = vld [vmem:[%s1 + $0x3c] sm:$0xf]
  %v121 = vld [vmem:[%s1 + $0x40] sm:$0xf]
  %v122 = vld [vmem:[%s1 + $0x44] sm:$0xf]
  %v123 = vld [vmem:[%s1 + $0x48] sm:$0xf]
  %v124 = vld [vmem:[%s1 + $0x4c] sm:$0xf]
  %v125 = vld [vmem:[%s1 + $0x50] sm:$0xf]
  %v126 = vld [vmem:[%s1 + $0x54] sm:$0xf]
  %v127 = vld [vmem:[%s1 + $0x58] sm:$0xf]
  %v128 = vld [vmem:[%s1 + $0x5c] sm:$0xf]
  %v129 = vld [vmem:[%s1 + $0x60] sm:$0xf]
  %v130 = vld [vmem:[%s1 + $0x64] sm:$0xf]
  %v131 = vld [vmem:[%s1 + $0x68] sm:$0xf]
  %v132 = vld [vmem:[%s1 + $0x6c] sm:$0xf]
  %v133 = vld [vmem:[%s1 + $0x70] sm:$0xf]
  %v134 = vld [vmem:[%s1 + $0x74] sm:$0xf]
  %v135 = vld [vmem:[%s1 + $0x78] sm:$0xf]
  %v136 = vld [vmem:[%s1 + $0x7c] sm:$0xf]
  %v137 = vld [vmem:[%s1 + $0x80] sm:$0xf]
  %v138 = vld [vmem:[%s1 + $0x84] sm:$0xf]
  %v139 = vld [vmem:[%s1 + $0x88] sm:$0xf]
  %v140 = vld [vmem:[%s1 + $0x8c] sm:$0xf]
  %v141 = vld [vmem:[%s1 + $0x90] sm:$0xf]
  %v142 = vld [vmem:[%s1 + $0x94] sm:$0xf]
  %v143 = vld [vmem:[%s1 + $0x98] sm:$0xf]
  %v144 = vld [vmem:[%s1 + $0x9c] sm:$0xf]
  %v145 = vld [vmem:[%s1 + $0xa0] sm:$0xf]
  %v146 = vld [vmem:[%s1 + $0xa4] sm:$0xf]
  %v147 = vld [vmem:[%s1 + $0xa8] sm:$0xf]
  %v148 = vld [vmem:[%s1 + $0xac] sm:$0xf]
  %v149 = vld [vmem:[%s1 + $0xb0] sm:$0xf]
  %v150 = vld [vmem:[%s1 + $0xb4] sm:$0xf]
  %v151 = vld [vmem:[%s1 + $0xb8] sm:$0xf]
  %v152 = vld [vmem:[%s1 + $0xbc] sm:$0xf]
  %v153 = vld [vmem:[%s1 + $0xc0] sm:$0xf]
  %v154 = vld [vmem:[%s1 + $0xc4] sm:$0xf]
  %v155 = vld [vmem:[%s1 + $0xc8] sm:$0xf]
  %v156 = vld [vmem:[%s1 + $0xcc] sm:$0xf]
  %v157 = vld [vmem:[%s1 + $0xd0] sm:$0xf]
  %v158 = vld [vmem:[%s1 + $0xd4] sm:$0xf]
  %v159 = vld [vmem:[%s1 + $0xd8] sm:$0xf]
  %v160 = vld [vmem:[%s1 + $0xdc] sm:$0xf]
  %v161 = vld [vmem:[%s1 + $0xe0] sm:$0xf]
  %v162 = vld [vmem:[%s1 + $0xe4] sm:$0xf]
  %v163 = vld [vmem:[%s1 + $0xe8] sm:$0xf]
  %v164 = vld [vmem:[%s1 + $0xec] sm:$0xf]
  %v165 = vld [vmem:[%s1 + $0xf0] sm:$0xf]
  %v166 = vld [vmem:[%s1 + $0xf4] sm:$0xf]
  %v167 = vld [vmem:[%s1 + $0xf8] sm:$0xf]
  %v168 = vld [vmem:[%s1 + $0xfc] sm:$0xf]
  %v211 = vunpack.c.l.b16 %v63
  %v212 = vunpack.c.h.b16 %v63
  %v213 = vunpack.c.l.b16 %v64
  %v214 = vunpack.c.h.b16 %v64
  %v215 = vunpack.c.l.b16 %v65
  %v216 = vunpack.c.h.b16 %v65
  %v217 = vunpack.c.l.b16 %v66
  %v218 = vunpack.c.h.b16 %v66
  %v219 = vunpack.c.l.b16 %v67
  %v220 = vunpack.c.h.b16 %v67
  %v221 = vunpack.c.l.b16 %v68
  %v222 = vunpack.c.h.b16 %v68
  %v223 = vunpack.c.l.b16 %v69
  %v224 = vunpack.c.h.b16 %v69
  %v225 = vunpack.c.l.b16 %v70
  %v226 = vunpack.c.h.b16 %v70
  %v227 = vunpack.c.l.b16 %v71
  %v228 = vunpack.c.h.b16 %v71
  %v229 = vunpack.c.l.b16 %v72
  %v230 = vunpack.c.h.b16 %v72
  %v231 = vunpack.c.l.b16 %v73
  %v232 = vunpack.c.h.b16 %v73
  %v233 = vunpack.c.l.b16 %v74
  %v234 = vunpack.c.h.b16 %v74
  %v235 = vunpack.c.l.b16 %v75
  %v236 = vunpack.c.h.b16 %v75
  %v237 = vunpack.c.l.b16 %v76
  %v238 = vunpack.c.h.b16 %v76
  %v239 = vunpack.c.l.b16 %v77
  %v240 = vunpack.c.h.b16 %v77
  %v241 = vunpack.c.l.b16 %v78
  %v242 = vunpack.c.h.b16 %v78
  %v243 = vunpack.c.l.b16 %v79
  %v244 = vunpack.c.h.b16 %v79
  %v245 = vunpack.c.l.b16 %v80
  %v246 = vunpack.c.h.b16 %v80
  %v247 = vunpack.c.l.b16 %v81
  %v248 = vunpack.c.h.b16 %v81
  %v249 = vunpack.c.l.b16 %v82
  %v250 = vunpack.c.h.b16 %v82
  %v251 = vunpack.c.l.b16 %v83
  %v252 = vunpack.c.h.b16 %v83
  %v253 = vunpack.c.l.b16 %v84
  %v254 = vunpack.c.h.b16 %v84
  %v255 = vunpack.c.l.b16 %v85
  %v256 = vunpack.c.h.b16 %v85
  %v257 = vunpack.c.l.b16 %v86
  %v258 = vunpack.c.h.b16 %v86
  %v259 = vunpack.c.l.b16 %v87
  %v260 = vunpack.c.h.b16 %v87
  %v261 = vunpack.c.l.b16 %v88
  %v262 = vunpack.c.h.b16 %v88
  %v263 = vunpack.c.l.b16 %v89
  %v264 = vunpack.c.h.b16 %v89
  %v265 = vunpack.c.l.b16 %v90
  %v266 = vunpack.c.h.b16 %v90
  %v267 = vunpack.c.l.b16 %v91
  %v268 = vunpack.c.h.b16 %v91
  %v269 = vunpack.c.l.b16 %v92
  %v270 = vunpack.c.h.b16 %v92
  %v271 = vunpack.c.l.b16 %v93
  %v272 = vunpack.c.h.b16 %v93
  %v273 = vunpack.c.l.b16 %v94
  %v274 = vunpack.c.h.b16 %v94
  %v275 = vunpack.c.l.b16 %v95
  %v276 = vunpack.c.h.b16 %v95
  %v277 = vunpack.c.l.b16 %v96
  %v278 = vunpack.c.h.b16 %v96
  %v279 = vunpack.c.l.b16 %v97
  %v280 = vunpack.c.h.b16 %v97
  %v281 = vunpack.c.l.b16 %v98
  %v282 = vunpack.c.h.b16 %v98
  %v283 = vunpack.c.l.b16 %v99
  %v284 = vunpack.c.h.b16 %v99
  %v285 = vunpack.c.l.b16 %v100
  %v286 = vunpack.c.h.b16 %v100
  %v287 = vunpack.c.l.b16 %v101
  %v288 = vunpack.c.h.b16 %v101
  %v289 = vunpack.c.l.b16 %v102
  %v290 = vunpack.c.h.b16 %v102
  %v291 = vunpack.c.l.b16 %v103
  %v292 = vunpack.c.h.b16 %v103
  %v293 = vunpack.c.l.b16 %v104
  %v294 = vunpack.c.h.b16 %v104
  %v295 = vpack.c.b16 %v215, %v211
  %v296 = vpack.c.b16 %v216, %v212
  %v297 = vpack.c.b16 %v217, %v213
  %v298 = vpack.c.b16 %v218, %v214
  %v299 = vpack.c.b16 %v223, %v219
  %v300 = vpack.c.b16 %v224, %v220
  %v301 = vpack.c.b16 %v225, %v221
  %v302 = vpack.c.b16 %v226, %v222
  %v303 = vpack.c.b16 %v231, %v227
  %v304 = vpack.c.b16 %v232, %v228
  %v305 = vpack.c.b16 %v233, %v229
  %v306 = vpack.c.b16 %v234, %v230
  %v307 = vpack.c.b16 %v239, %v235
  %v308 = vpack.c.b16 %v240, %v236
  %v309 = vpack.c.b16 %v241, %v237
  %v310 = vpack.c.b16 %v242, %v238
  %v311 = vpack.c.b16 %v247, %v243
  %v312 = vpack.c.b16 %v248, %v244
  %v313 = vpack.c.b16 %v249, %v245
  %v314 = vpack.c.b16 %v250, %v246
  %v315 = vpack.c.b16 %v255, %v251
  %v316 = vpack.c.b16 %v256, %v252
  %v317 = vpack.c.b16 %v257, %v253
  %v318 = vpack.c.b16 %v258, %v254
  %v319 = vpack.c.b16 %v263, %v259
  %v320 = vpack.c.b16 %v264, %v260
  %v321 = vpack.c.b16 %v265, %v261
  %v322 = vpack.c.b16 %v266, %v262
  %v323 = vpack.c.b16 %v271, %v267
  %v324 = vpack.c.b16 %v272, %v268
  %v325 = vpack.c.b16 %v273, %v269
  %v326 = vpack.c.b16 %v274, %v270
  %v327 = vpack.c.b16 %v279, %v275
  %v328 = vpack.c.b16 %v280, %v276
  %v329 = vpack.c.b16 %v281, %v277
  %v330 = vpack.c.b16 %v282, %v278
  %v331 = vpack.c.b16 %v287, %v283
  %v332 = vpack.c.b16 %v288, %v284
  %v333 = vpack.c.b16 %v289, %v285
  %v334 = vpack.c.b16 %v290, %v286
  %v335 = vpack.c.b16 %v291, %v291
  %v336 = vpack.c.b16 %v292, %v292
  %v337 = vpack.c.b16 %v293, %v293
  %v338 = vpack.c.b16 %v294, %v294
  %v447 = vunpack.c.l.b16 %v105
  %v448 = vunpack.c.l.b16 %v106
  %v449 = vunpack.c.l.b16 %v107
  %v450 = vunpack.c.l.b16 %v108
  %v451 = vunpack.c.l.b16 %v109
  %v452 = vunpack.c.l.b16 %v110
  %v453 = vunpack.c.l.b16 %v111
  %v454 = vunpack.c.l.b16 %v112
  %v455 = vunpack.c.l.b16 %v113
  %v456 = vunpack.c.l.b16 %v114
  %v457 = vunpack.c.l.b16 %v115
  %v458 = vunpack.c.l.b16 %v116
  %v459 = vunpack.c.l.b16 %v117
  %v460 = vunpack.c.l.b16 %v118
  %v461 = vunpack.c.l.b16 %v119
  %v462 = vunpack.c.l.b16 %v120
  %v463 = vunpack.c.l.b16 %v121
  %v464 = vunpack.c.l.b16 %v122
  %v465 = vunpack.c.l.b16 %v123
  %v466 = vunpack.c.l.b16 %v124
  %v467 = vunpack.c.l.b16 %v125
  %v468 = vunpack.c.l.b16 %v126
  %v469 = vunpack.c.l.b16 %v127
  %v470 = vunpack.c.l.b16 %v128
  %v471 = vunpack.c.l.b16 %v129
  %v472 = vunpack.c.l.b16 %v130
  %v473 = vunpack.c.l.b16 %v131
  %v474 = vunpack.c.l.b16 %v132
  %v475 = vunpack.c.l.b16 %v133
  %v476 = vunpack.c.l.b16 %v134
  %v477 = vunpack.c.l.b16 %v135
  %v478 = vunpack.c.l.b16 %v136
  %v479 = vunpack.c.l.b16 %v137
  %v480 = vunpack.c.l.b16 %v138
  %v481 = vunpack.c.l.b16 %v139
  %v482 = vunpack.c.l.b16 %v140
  %v483 = vunpack.c.l.b16 %v141
  %v484 = vunpack.c.l.b16 %v142
  %v485 = vunpack.c.l.b16 %v143
  %v486 = vunpack.c.l.b16 %v144
  %v487 = vunpack.c.l.b16 %v145
  %v488 = vunpack.c.l.b16 %v146
  %v489 = vunpack.c.l.b16 %v147
  %v490 = vunpack.c.l.b16 %v148
  %v491 = vunpack.c.l.b16 %v149
  %v492 = vunpack.c.l.b16 %v150
  %v493 = vunpack.c.l.b16 %v151
  %v494 = vunpack.c.l.b16 %v152
  %v495 = vunpack.c.l.b16 %v153
  %v496 = vunpack.c.l.b16 %v154
  %v497 = vunpack.c.l.b16 %v155
  %v498 = vunpack.c.l.b16 %v156
  %v499 = vunpack.c.l.b16 %v157
  %v500 = vunpack.c.l.b16 %v158
  %v501 = vunpack.c.l.b16 %v159
  %v502 = vunpack.c.l.b16 %v160
  %v503 = vunpack.c.l.b16 %v161
  %v504 = vunpack.c.l.b16 %v162
  %v505 = vunpack.c.l.b16 %v163
  %v506 = vunpack.c.l.b16 %v164
  %v507 = vunpack.c.l.b16 %v165
  %v508 = vunpack.c.l.b16 %v166
  %v509 = vunpack.c.l.b16 %v167
  %v510 = vunpack.c.l.b16 %v168
  %v511 = vpack.c.b16 %v448, %v447
  %v512 = vpack.c.b16 %v450, %v449
  %v513 = vpack.c.b16 %v452, %v451
  %v514 = vpack.c.b16 %v454, %v453
  %v515 = vpack.c.b16 %v456, %v455
  %v516 = vpack.c.b16 %v458, %v457
  %v517 = vpack.c.b16 %v460, %v459
  %v518 = vpack.c.b16 %v462, %v461
  %v519 = vpack.c.b16 %v464, %v463
  %v520 = vpack.c.b16 %v466, %v465
  %v521 = vpack.c.b16 %v468, %v467
  %v522 = vpack.c.b16 %v470, %v469
  %v523 = vpack.c.b16 %v472, %v471
  %v524 = vpack.c.b16 %v474, %v473
  %v525 = vpack.c.b16 %v476, %v475
  %v526 = vpack.c.b16 %v478, %v477
  %v527 = vpack.c.b16 %v480, %v479
  %v528 = vpack.c.b16 %v482, %v481
  %v529 = vpack.c.b16 %v484, %v483
  %v530 = vpack.c.b16 %v486, %v485
  %v531 = vpack.c.b16 %v488, %v487
  %v532 = vpack.c.b16 %v490, %v489
  %v533 = vpack.c.b16 %v492, %v491
  %v534 = vpack.c.b16 %v494, %v493
  %v535 = vpack.c.b16 %v496, %v495
  %v536 = vpack.c.b16 %v498, %v497
  %v537 = vpack.c.b16 %v500, %v499
  %v538 = vpack.c.b16 %v502, %v501
  %v539 = vpack.c.b16 %v504, %v503
  %v540 = vpack.c.b16 %v506, %v505
  %v541 = vpack.c.b16 %v508, %v507
  %v542 = vpack.c.b16 %v510, %v509
  %575 = vmatprep.subr.bf16.mxu0 0
  %576 = vmatpush1.bf16.msra.mxu0 %v511
  %577 = vmatprep.subr.bf16.mxu0 0
  %578 = vmatpush1.bf16.msra.mxu0 %v512
  %579 = vmatprep.subr.bf16.mxu0 0
  %580 = vmatpush1.bf16.msra.mxu0 %v513
  %581 = vmatprep.subr.bf16.mxu0 0
  %582 = vmatpush1.bf16.msra.mxu0 %v514
  %583 = vmatprep.subr.bf16.mxu0 0
  %584 = vmatpush1.bf16.msra.mxu0 %v515
  %585 = vmatprep.subr.bf16.mxu0 0
  %586 = vmatpush1.bf16.msra.mxu0 %v516
  %587 = vmatprep.subr.bf16.mxu0 0
  %588 = vmatpush1.bf16.msra.mxu0 %v517
  %589 = vmatprep.subr.bf16.mxu0 0
  %590 = vmatpush1.bf16.msra.mxu0 %v518
  %591 = vmatprep.subr.bf16.mxu0 0
  %592 = vmatpush1.bf16.msra.mxu0 %v519
  %593 = vmatprep.subr.bf16.mxu0 0
  %594 = vmatpush1.bf16.msra.mxu0 %v520
  %595 = vmatprep.subr.bf16.mxu0 0
  %596 = vmatpush1.bf16.msra.mxu0 %v521
  %597 = vmatprep.subr.bf16.mxu0 0
  %598 = vmatpush1.bf16.msra.mxu0 %v522
  %599 = vmatprep.subr.bf16.mxu0 0
  %600 = vmatpush1.bf16.msra.mxu0 %v523
  %601 = vmatprep.subr.bf16.mxu0 0
  %602 = vmatpush1.bf16.msra.mxu0 %v524
  %603 = vmatprep.subr.bf16.mxu0 0
  %604 = vmatpush1.bf16.msra.mxu0 %v525
  %605 = vmatprep.subr.bf16.mxu0 0
  %606 = vmatpush1.bf16.msra.mxu0 %v526
  %607 = vmatprep.mubr.bf16.mxu0 %v296
  %608 = vmatmul.mubr.bf16.gmra.mrb[0].mxu0 %v295
  %v609 = vpop.f32.mrb[0].mxu0
  %v610 = vadd.f32 0.0, %v609
  %v611 = vpop.f32.mrb[0].mxu0
  %v612 = vpop.f32.mrb[0].mxu0
  %v613 = vadd.f32 0.0, %v612
  %v614 = vpop.f32.mrb[0].mxu0
  %615 = vmatprep.mubr.bf16.mxu0 %v300
  %616 = vmatmul.mubr.bf16.gmra.mrb[0].mxu0 %v299
  %v617 = vpop.f32.mrb[0].mxu0
  %v618 = vadd.f32 0.0, %v617
  %v619 = vpop.f32.mrb[0].mxu0
  %v620 = vpop.f32.mrb[0].mxu0
  %v621 = vadd.f32 0.0, %v620
  %v622 = vpop.f32.mrb[0].mxu0
  %623 = vmatprep.mubr.bf16.mxu0 %v304
  %624 = vmatmul.mubr.bf16.gmra.mrb[0].mxu0 %v303
  %v625 = vpop.f32.mrb[0].mxu0
  %v626 = vadd.f32 0.0, %v625
  %v627 = vpop.f32.mrb[0].mxu0
  %v628 = vpop.f32.mrb[0].mxu0
  %v629 = vadd.f32 0.0, %v628
  %v630 = vpop.f32.mrb[0].mxu0
  %631 = vmatprep.mubr.bf16.mxu0 %v308
  %632 = vmatmul.mubr.bf16.gmra.mrb[0].mxu0 %v307
  %v633 = vpop.f32.mrb[0].mxu0
  %v634 = vadd.f32 0.0, %v633
  %v635 = vpop.f32.mrb[0].mxu0
  %v636 = vpop.f32.mrb[0].mxu0
  %v637 = vadd.f32 0.0, %v636
  %v638 = vpop.f32.mrb[0].mxu0
  %639 = vmatprep.mubr.bf16.mxu0 %v312
  %640 = vmatmul.mubr.bf16.gmra.mrb[0].mxu0 %v311
  %v641 = vpop.f32.mrb[0].mxu0
  %v642 = vadd.f32 0.0, %v641
  %v643 = vpop.f32.mrb[0].mxu0
  %v644 = vpop.f32.mrb[0].mxu0
  %v645 = vadd.f32 0.0, %v644
  %v646 = vpop.f32.mrb[0].mxu0
  %647 = vmatprep.mubr.bf16.mxu0 %v316
  %648 = vmatmul.mubr.bf16.gmra.mrb[0].mxu0 %v315
  %v649 = vpop.f32.mrb[0].mxu0
  %v650 = vadd.f32 0.0, %v649
  %v651 = vpop.f32.mrb[0].mxu0
  %v652 = vpop.f32.mrb[0].mxu0
  %v653 = vadd.f32 0.0, %v652
  %v654 = vpop.f32.mrb[0].mxu0
  %655 = vmatprep.mubr.bf16.mxu0 %v320
  %656 = vmatmul.mubr.bf16.gmra.mrb[0].mxu0 %v319
  %v657 = vpop.f32.mrb[0].mxu0
  %v658 = vadd.f32 0.0, %v657
  %v659 = vpop.f32.mrb[0].mxu0
  %v660 = vpop.f32.mrb[0].mxu0
  %v661 = vadd.f32 0.0, %v660
  %v662 = vpop.f32.mrb[0].mxu0
  %663 = vmatprep.mubr.bf16.mxu0 %v324
  %664 = vmatmul.mubr.bf16.gmra.mrb[0].mxu0 %v323
  %v665 = vpop.f32.mrb[0].mxu0
  %v666 = vadd.f32 0.0, %v665
  %v667 = vpop.f32.mrb[0].mxu0
  %v668 = vpop.f32.mrb[0].mxu0
  %v669 = vadd.f32 0.0, %v668
  %v670 = vpop.f32.mrb[0].mxu0
  %671 = vmatprep.mubr.bf16.mxu0 %v328
  %672 = vmatmul.mubr.bf16.gmra.mrb[0].mxu0 %v327
  %v673 = vpop.f32.mrb[0].mxu0
  %v674 = vadd.f32 0.0, %v673
  %v675 = vpop.f32.mrb[0].mxu0
  %v676 = vpop.f32.mrb[0].mxu0
  %v677 = vadd.f32 0.0, %v676
  %v678 = vpop.f32.mrb[0].mxu0
  %679 = vmatprep.mubr.bf16.mxu0 %v332
  %680 = vmatmul.mubr.bf16.gmra.mrb[0].mxu0 %v331
  %v681 = vpop.f32.mrb[0].mxu0
  %v682 = vadd.f32 0.0, %v681
  %v683 = vpop.f32.mrb[0].mxu0
  %v684 = vpop.f32.mrb[0].mxu0
  %v685 = vadd.f32 0.0, %v684
  %v686 = vpop.f32.mrb[0].mxu0
  %687 = vmatprep.mubr.bf16.mxu0 %v336
  %688 = vmatmul.mubr.bf16.gmra.mrb[0].mxu0 %v335
  %v689 = vpop.f32.mrb[0].mxu0
  %v690 = vadd.f32 0.0, %v689
  %v691 = vpop.f32.mrb[0].mxu0
  %v692 = vpop.f32.mrb[0].mxu0
  %v693 = vpop.f32.mrb[0].mxu0
  %694 = vdwg.mxu0
  %695 = vmatprep.subr.bf16.mxu0 0
  %696 = vmatpush1.bf16.msra.mxu0 %v527
  %697 = vmatprep.subr.bf16.mxu0 0
  %698 = vmatpush1.bf16.msra.mxu0 %v528
  %699 = vmatprep.subr.bf16.mxu0 0
  %700 = vmatpush1.bf16.msra.mxu0 %v529
  %701 = vmatprep.subr.bf16.mxu0 0
  %702 = vmatpush1.bf16.msra.mxu0 %v530
  %703 = vmatprep.subr.bf16.mxu0 0
  %704 = vmatpush1.bf16.msra.mxu0 %v531
  %705 = vmatprep.subr.bf16.mxu0 0
  %706 = vmatpush1.bf16.msra.mxu0 %v532
  %707 = vmatprep.subr.bf16.mxu0 0
  %708 = vmatpush1.bf16.msra.mxu0 %v533
  %709 = vmatprep.subr.bf16.mxu0 0
  %710 = vmatpush1.bf16.msra.mxu0 %v534
  %711 = vmatprep.subr.bf16.mxu0 0
  %712 = vmatpush1.bf16.msra.mxu0 %v535
  %713 = vmatprep.subr.bf16.mxu0 0
  %714 = vmatpush1.bf16.msra.mxu0 %v536
  %715 = vmatprep.subr.bf16.mxu0 0
  %716 = vmatpush1.bf16.msra.mxu0 %v537
  %717 = vmatprep.subr.bf16.mxu0 0
  %718 = vmatpush1.bf16.msra.mxu0 %v538
  %719 = vmatprep.subr.bf16.mxu0 0
  %720 = vmatpush1.bf16.msra.mxu0 %v539
  %721 = vmatprep.subr.bf16.mxu0 0
  %722 = vmatpush1.bf16.msra.mxu0 %v540
  %723 = vmatprep.subr.bf16.mxu0 0
  %724 = vmatpush1.bf16.msra.mxu0 %v541
  %725 = vmatprep.subr.bf16.mxu0 0
  %726 = vmatpush1.bf16.msra.mxu0 %v542
  %727 = vmatprep.mubr.bf16.mxu0 %v298
  %728 = vmatmul.mubr.bf16.gmra.mrb[0].mxu0 %v297
  %v729 = vpop.f32.mrb[0].mxu0
  %v730 = vadd.f32 %v610, %v729
  %v731 = vpop.f32.mrb[0].mxu0
  %v732 = vpop.f32.mrb[0].mxu0
  %v733 = vadd.f32 %v613, %v732
  %v734 = vpop.f32.mrb[0].mxu0
  %735 = vmatprep.mubr.bf16.mxu0 %v302
  %736 = vmatmul.mubr.bf16.gmra.mrb[0].mxu0 %v301
  %v737 = vpop.f32.mrb[0].mxu0
  %v738 = vadd.f32 %v618, %v737
  %v739 = vpop.f32.mrb[0].mxu0
  %v740 = vpop.f32.mrb[0].mxu0
  %v741 = vadd.f32 %v621, %v740
  %v742 = vpop.f32.mrb[0].mxu0
  %743 = vmatprep.mubr.bf16.mxu0 %v306
  %744 = vmatmul.mubr.bf16.gmra.mrb[0].mxu0 %v305
  %v745 = vpop.f32.mrb[0].mxu0
  %v746 = vadd.f32 %v626, %v745
  %v747 = vpop.f32.mrb[0].mxu0
  %v748 = vpop.f32.mrb[0].mxu0
  %v749 = vadd.f32 %v629, %v748
  %v750 = vpop.f32.mrb[0].mxu0
  %751 = vmatprep.mubr.bf16.mxu0 %v310
  %752 = vmatmul.mubr.bf16.gmra.mrb[0].mxu0 %v309
  %v753 = vpop.f32.mrb[0].mxu0
  %v754 = vadd.f32 %v634, %v753
  %v755 = vpop.f32.mrb[0].mxu0
  %v756 = vpop.f32.mrb[0].mxu0
  %v757 = vadd.f32 %v637, %v756
  %v758 = vpop.f32.mrb[0].mxu0
  %759 = vmatprep.mubr.bf16.mxu0 %v314
  %760 = vmatmul.mubr.bf16.gmra.mrb[0].mxu0 %v313
  %v761 = vpop.f32.mrb[0].mxu0
  %v762 = vadd.f32 %v642, %v761
  %v763 = vpop.f32.mrb[0].mxu0
  %v764 = vpop.f32.mrb[0].mxu0
  %v765 = vadd.f32 %v645, %v764
  %v766 = vpop.f32.mrb[0].mxu0
  %767 = vmatprep.mubr.bf16.mxu0 %v318
  %768 = vmatmul.mubr.bf16.gmra.mrb[0].mxu0 %v317
  %v769 = vpop.f32.mrb[0].mxu0
  %v770 = vadd.f32 %v650, %v769
  %v771 = vpop.f32.mrb[0].mxu0
  %v772 = vpop.f32.mrb[0].mxu0
  %v773 = vadd.f32 %v653, %v772
  %v774 = vpop.f32.mrb[0].mxu0
  %775 = vmatprep.mubr.bf16.mxu0 %v322
  %776 = vmatmul.mubr.bf16.gmra.mrb[0].mxu0 %v321
  %v777 = vpop.f32.mrb[0].mxu0
  %v778 = vadd.f32 %v658, %v777
  %v779 = vpop.f32.mrb[0].mxu0
  %v780 = vpop.f32.mrb[0].mxu0
  %v781 = vadd.f32 %v661, %v780
  %v782 = vpop.f32.mrb[0].mxu0
  %783 = vmatprep.mubr.bf16.mxu0 %v326
  %784 = vmatmul.mubr.bf16.gmra.mrb[0].mxu0 %v325
  %v785 = vpop.f32.mrb[0].mxu0
  %v786 = vadd.f32 %v666, %v785
  %v787 = vpop.f32.mrb[0].mxu0
  %v788 = vpop.f32.mrb[0].mxu0
  %v789 = vadd.f32 %v669, %v788
  %v790 = vpop.f32.mrb[0].mxu0
  %791 = vmatprep.mubr.bf16.mxu0 %v330
  %792 = vmatmul.mubr.bf16.gmra.mrb[0].mxu0 %v329
  %v793 = vpop.f32.mrb[0].mxu0
  %v794 = vadd.f32 %v674, %v793
  %v795 = vpop.f32.mrb[0].mxu0
  %v796 = vpop.f32.mrb[0].mxu0
  %v797 = vadd.f32 %v677, %v796
  %v798 = vpop.f32.mrb[0].mxu0
  %799 = vmatprep.mubr.bf16.mxu0 %v334
  %800 = vmatmul.mubr.bf16.gmra.mrb[0].mxu0 %v333
  %v801 = vpop.f32.mrb[0].mxu0
  %v802 = vadd.f32 %v682, %v801
  %v803 = vpop.f32.mrb[0].mxu0
  %v804 = vpop.f32.mrb[0].mxu0
  %v805 = vadd.f32 %v685, %v804
  %v806 = vpop.f32.mrb[0].mxu0
  %807 = vmatprep.mubr.bf16.mxu0 %v338
  %808 = vmatmul.mubr.bf16.gmra.mrb[0].mxu0 %v337
  %v809 = vpop.f32.mrb[0].mxu0
  %v810 = vadd.f32 %v690, %v809
  %v811 = vpop.f32.mrb[0].mxu0
  %v812 = vpop.f32.mrb[0].mxu0
  %v813 = vpop.f32.mrb[0].mxu0
  %814 = vdwg.mxu0
  %v815 = vadd.f32 %v42, %v730
  %v816 = vadd.f32 %v43, %v733
  %v817 = vadd.f32 %v44, %v738
  %v818 = vadd.f32 %v45, %v741
  %v819 = vadd.f32 %v46, %v746
  %v820 = vadd.f32 %v47, %v749
  %v821 = vadd.f32 %v48, %v754
  %v822 = vadd.f32 %v49, %v757
  %v823 = vadd.f32 %v50, %v762
  %v824 = vadd.f32 %v51, %v765
  %v825 = vadd.f32 %v52, %v770
  %v826 = vadd.f32 %v53, %v773
  %v827 = vadd.f32 %v54, %v778
  %v828 = vadd.f32 %v55, %v781
  %v829 = vadd.f32 %v56, %v786
  %v830 = vadd.f32 %v57, %v789
  %v831 = vadd.f32 %v58, %v794
  %v832 = vadd.f32 %v59, %v797
  %v833 = vadd.f32 %v60, %v802
  %v834 = vadd.f32 %v61, %v805
  %v835 = vadd.f32 %v62, %v810
  %vm836 = vcmask 523264
  %837 = vst.msk [vmem:[#allocation2] sm:$0xff] %vm836, %v815
  %838 = vst.msk [vmem:[#allocation2 + $0x8] sm:$0xff] %vm836, %v816
  %839 = vst.msk [vmem:[#allocation2 + $0x10] sm:$0xff] %vm836, %v817
  %840 = vst.msk [vmem:[#allocation2 + $0x18] sm:$0xff] %vm836, %v818
  %841 = vst.msk [vmem:[#allocation2 + $0x20] sm:$0xff] %vm836, %v819
  %842 = vst.msk [vmem:[#allocation2 + $0x28] sm:$0xff] %vm836, %v820
  %843 = vst.msk [vmem:[#allocation2 + $0x30] sm:$0xff] %vm836, %v821
  %844 = vst.msk [vmem:[#allocation2 + $0x38] sm:$0xff] %vm836, %v822
  %845 = vst.msk [vmem:[#allocation2 + $0x40] sm:$0xff] %vm836, %v823
  %846 = vst.msk [vmem:[#allocation2 + $0x48] sm:$0xff] %vm836, %v824
  %847 = vst.msk [vmem:[#allocation2 + $0x50] sm:$0xff] %vm836, %v825
  %848 = vst.msk [vmem:[#allocation2 + $0x58] sm:$0xff] %vm836, %v826
  %849 = vst.msk [vmem:[#allocation2 + $0x60] sm:$0xff] %vm836, %v827
  %850 = vst.msk [vmem:[#allocation2 + $0x68] sm:$0xff] %vm836, %v828
  %851 = vst.msk [vmem:[#allocation2 + $0x70] sm:$0xff] %vm836, %v829
  %852 = vst.msk [vmem:[#allocation2 + $0x78] sm:$0xff] %vm836, %v830
  %853 = vst.msk [vmem:[#allocation2 + $0x80] sm:$0xff] %vm836, %v831
  %854 = vst.msk [vmem:[#allocation2 + $0x88] sm:$0xff] %vm836, %v832
  %855 = vst.msk [vmem:[#allocation2 + $0x90] sm:$0xff] %vm836, %v833
  %856 = vst.msk [vmem:[#allocation2 + $0x98] sm:$0xff] %vm836, %v834
  %vm857 = vcmask 517120
  %858 = vst.msk [vmem:[#allocation2 + $0xa0] sm:$0x3] %vm857, %v835
  // Predicated region
  $region18: #{qnet_forward.6} parent=0 // pred_check
    %p859 = pneg %p15
  $region19: #{qnet_forward.6} parent=0 // pred_check_branch
    %861 = sbr.rel (%p859) target = $region21
  $region20: #{qnet_forward.6} parent=0 // pred_region
    %v862 = vld [vmem:[#allocation2] sm:$0xff]
    %v863 = vld [vmem:[#allocation2 + $0x8] sm:$0xff]
    %v864 = vld [vmem:[#allocation2 + $0x10] sm:$0xff]
    %v865 = vld [vmem:[#allocation2 + $0x18] sm:$0xff]
    %v866 = vld [vmem:[#allocation2 + $0x20] sm:$0xff]
    %v867 = vld [vmem:[#allocation2 + $0x28] sm:$0xff]
    %v868 = vld [vmem:[#allocation2 + $0x30] sm:$0xff]
    %v869 = vld [vmem:[#allocation2 + $0x38] sm:$0xff]
    %v870 = vld [vmem:[#allocation2 + $0x40] sm:$0xff]
    %v871 = vld [vmem:[#allocation2 + $0x48] sm:$0xff]
    %v872 = vld [vmem:[#allocation2 + $0x50] sm:$0xff]
    %v873 = vld [vmem:[#allocation2 + $0x58] sm:$0xff]
    %v874 = vld [vmem:[#allocation2 + $0x60] sm:$0xff]
    %v875 = vld [vmem:[#allocation2 + $0x68] sm:$0xff]
    %v876 = vld [vmem:[#allocation2 + $0x70] sm:$0xff]
    %v877 = vld [vmem:[#allocation2 + $0x78] sm:$0xff]
    %v878 = vld [vmem:[#allocation2 + $0x80] sm:$0xff]
    %v879 = vld [vmem:[#allocation2 + $0x88] sm:$0xff]
    %v880 = vld [vmem:[#allocation2 + $0x90] sm:$0xff]
    %v881 = vld [vmem:[#allocation2 + $0x98] sm:$0xff]
    %v882 = vld [vmem:[#allocation2 + $0xa0] sm:$0x3]
    %v883 = vld [vmem:[%s2] sm:$0x1]
    %v885 = vlaneseq
    %v886 = vshrl.u32 %v885, 7
    %v887 = vsub.s32 0, %v886
    %v888 = vrot.slane %v883, %v887
    %v890 = vadd.f32 %v862, %v888
    %v891 = vadd.f32 %v863, %v888
    %v892 = vadd.f32 %v864, %v888
    %v893 = vadd.f32 %v865, %v888
    %v894 = vadd.f32 %v866, %v888
    %v895 = vadd.f32 %v867, %v888
    %v896 = vadd.f32 %v868, %v888
    %v897 = vadd.f32 %v869, %v888
    %v898 = vadd.f32 %v870, %v888
    %v899 = vadd.f32 %v871, %v888
    %v900 = vadd.f32 %v872, %v888
    %v901 = vadd.f32 %v873, %v888
    %v902 = vadd.f32 %v874, %v888
    %v903 = vadd.f32 %v875, %v888
    %v904 = vadd.f32 %v876, %v888
    %v905 = vadd.f32 %v877, %v888
    %v906 = vadd.f32 %v878, %v888
    %v907 = vadd.f32 %v879, %v888
    %v908 = vadd.f32 %v880, %v888
    %v909 = vadd.f32 %v881, %v888
    %v910 = vadd.f32 %v882, %v888
    %v911 = vmax.f32 %v890, 0.0
    %v912 = vmax.f32 %v891, 0.0
    %v913 = vmax.f32 %v892, 0.0
    %v914 = vmax.f32 %v893, 0.0
    %v915 = vmax.f32 %v894, 0.0
    %v916 = vmax.f32 %v895, 0.0
    %v917 = vmax.f32 %v896, 0.0
    %v918 = vmax.f32 %v897, 0.0
    %v919 = vmax.f32 %v898, 0.0
    %v920 = vmax.f32 %v899, 0.0
    %v921 = vmax.f32 %v900, 0.0
    %v922 = vmax.f32 %v901, 0.0
    %v923 = vmax.f32 %v902, 0.0
    %v924 = vmax.f32 %v903, 0.0
    %v925 = vmax.f32 %v904, 0.0
    %v926 = vmax.f32 %v905, 0.0
    %v927 = vmax.f32 %v906, 0.0
    %v928 = vmax.f32 %v907, 0.0
    %v929 = vmax.f32 %v908, 0.0
    %v930 = vmax.f32 %v909, 0.0
    %v931 = vmax.f32 %v910, 0.0
    %v932 = vpack.c.bf16 %v912, %v911
    %v933 = vpack.c.bf16 %v914, %v913
    %v934 = vpack.c.bf16 %v916, %v915
    %v935 = vpack.c.bf16 %v918, %v917
    %v936 = vpack.c.bf16 %v920, %v919
    %v937 = vpack.c.bf16 %v922, %v921
    %v938 = vpack.c.bf16 %v924, %v923
    %v939 = vpack.c.bf16 %v926, %v925
    %v940 = vpack.c.bf16 %v928, %v927
    %v941 = vpack.c.bf16 %v930, %v929
    %v942 = vpack.c.bf16 %v931, %v931
    %v954 = vunpack.c.l.b16 %v932
    %v955 = vunpack.c.h.b16 %v932
    %v956 = vunpack.c.l.b16 %v933
    %v957 = vunpack.c.h.b16 %v933
    %v958 = vunpack.c.l.b16 %v934
    %v959 = vunpack.c.h.b16 %v934
    %v960 = vunpack.c.l.b16 %v935
    %v961 = vunpack.c.h.b16 %v935
    %v962 = vunpack.c.l.b16 %v936
    %v963 = vunpack.c.h.b16 %v936
    %v964 = vunpack.c.l.b16 %v937
    %v965 = vunpack.c.h.b16 %v937
    %v966 = vunpack.c.l.b16 %v938
    %v967 = vunpack.c.h.b16 %v938
    %v968 = vunpack.c.l.b16 %v939
    %v969 = vunpack.c.h.b16 %v939
    %v970 = vunpack.c.l.b16 %v940
    %v971 = vunpack.c.h.b16 %v940
    %v972 = vunpack.c.l.b16 %v941
    %v973 = vunpack.c.h.b16 %v941
    %v974 = vunpack.c.l.b16 %v942
    %v975 = vpack.c.b16 %v954, %v954
    %v976 = vpack.c.b16 %v955, %v955
    %v977 = vpack.c.b16 %v956, %v956
    %v978 = vpack.c.b16 %v957, %v957
    %v979 = vpack.c.b16 %v958, %v958
    %v980 = vpack.c.b16 %v959, %v959
    %v981 = vpack.c.b16 %v960, %v960
    %v982 = vpack.c.b16 %v961, %v961
    %v983 = vpack.c.b16 %v962, %v962
    %v984 = vpack.c.b16 %v963, %v963
    %v985 = vpack.c.b16 %v964, %v964
    %v986 = vpack.c.b16 %v965, %v965
    %v987 = vpack.c.b16 %v966, %v966
    %v988 = vpack.c.b16 %v967, %v967
    %v989 = vpack.c.b16 %v968, %v968
    %v990 = vpack.c.b16 %v969, %v969
    %v991 = vpack.c.b16 %v970, %v970
    %v992 = vpack.c.b16 %v971, %v971
    %v993 = vpack.c.b16 %v972, %v972
    %v994 = vpack.c.b16 %v973, %v973
    %v995 = vpack.c.b16 %v974, %v974
    %vm1017 = vcmask 519168
    %1018 = vst.msk [vmem:[%s3] sm:$0xf] %vm1017, %v975
    %1019 = vst.msk [vmem:[%s3 + $0x4] sm:$0xf] %vm1017, %v976
    %1020 = vst.msk [vmem:[%s3 + $0x8] sm:$0xf] %vm1017, %v977
    %1021 = vst.msk [vmem:[%s3 + $0xc] sm:$0xf] %vm1017, %v978
    %1022 = vst.msk [vmem:[%s3 + $0x10] sm:$0xf] %vm1017, %v979
    %1023 = vst.msk [vmem:[%s3 + $0x14] sm:$0xf] %vm1017, %v980
    %1024 = vst.msk [vmem:[%s3 + $0x18] sm:$0xf] %vm1017, %v981
    %1025 = vst.msk [vmem:[%s3 + $0x1c] sm:$0xf] %vm1017, %v982
    %1026 = vst.msk [vmem:[%s3 + $0x20] sm:$0xf] %vm1017, %v983
    %1027 = vst.msk [vmem:[%s3 + $0x24] sm:$0xf] %vm1017, %v984
    %1028 = vst.msk [vmem:[%s3 + $0x28] sm:$0xf] %vm1017, %v985
    %1029 = vst.msk [vmem:[%s3 + $0x2c] sm:$0xf] %vm1017, %v986
    %1030 = vst.msk [vmem:[%s3 + $0x30] sm:$0xf] %vm1017, %v987
    %1031 = vst.msk [vmem:[%s3 + $0x34] sm:$0xf] %vm1017, %v988
    %1032 = vst.msk [vmem:[%s3 + $0x38] sm:$0xf] %vm1017, %v989
    %1033 = vst.msk [vmem:[%s3 + $0x3c] sm:$0xf] %vm1017, %v990
    %1034 = vst.msk [vmem:[%s3 + $0x40] sm:$0xf] %vm1017, %v991
    %1035 = vst.msk [vmem:[%s3 + $0x44] sm:$0xf] %vm1017, %v992
    %1036 = vst.msk [vmem:[%s3 + $0x48] sm:$0xf] %vm1017, %v993
    %1037 = vst.msk [vmem:[%s3 + $0x4c] sm:$0xf] %vm1017, %v994
    %vm1038 = vcmask 516096
    %1039 = vst.msk [vmem:[%s3 + $0x50] sm:$0x1] %vm1038, %v995
  $region21: #{qnet_forward.6} parent=0 // pred_fallthru
    _
  // Predicated region
  $region22: #{qnet_forward.6} parent=0 // pred_check
    _
  $region23: #{qnet_forward.6} parent=0 // pred_check_branch
    %1041 = sbr.rel (0) target = $region25
  $region24: #{qnet_forward.6} parent=0 // pred_region
    _
  $region25: #{qnet_forward.6} parent=0 // pred_fallthru
    _
  // Predicated region
  $region26: #{qnet_forward.6} parent=0 // pred_check
    _
  $region27: #{qnet_forward.6} parent=0 // pred_check_branch
    %1043 = sbr.rel (0) target = $region29
  $region28: #{qnet_forward.6} parent=0 // pred_region
    _
  $region29: #{qnet_forward.6} parent=0 // pred_fallthru
    _

// kernel: qnet_forward.7
$region0: #{qnet_forward.7}
  #allocation0 [shape = 'u32[]', space=smem, size = 0x4, offset = 0x4, fixed_abs, tag = 'smem constant byte address 0x4 - core index']
  #allocation1 [shape = 'u32[144,128]{1,0:T(1,128)}', space=vmem, size = 0x12000, scoped, tag = 'internal scratch']
  #allocation2 [shape = 'f32[98,64]{1,0:T(8,128)}', space=vmem, size = 0xd000, scoped, tag = 'scratch operand']
  %s0 = inlined_call_operand.vmem [shape: bf16[98,576], index: 0, kind: input, shape index: {}]
  %s1 = inlined_call_operand.vmem [shape: bf16[576,64], index: 1, kind: input, shape index: {}]
  %s2 = inlined_call_operand.vmem [shape: f32[1,64], index: 2, kind: input, shape index: {}]
  %s3 = inlined_call_operand.vmem [shape: bf16[98,64], index: 3, kind: output, shape index: {}]
  %s4 = sld [smem:[#allocation0]]
  $region30: #{qnet_forward.7} parent=0
    _
  %s6 = ssub.s32 1, %s4
  %s7 = scalar_select 0, %s6, %s4
  // Predicated region
  $region2: #{qnet_forward.7} parent=0 // pred_check
    _
  $region3: #{qnet_forward.7} parent=0 // pred_check_branch
    %9 = sbr.rel (0) target = $region5
  $region4: #{qnet_forward.7} parent=0 // pred_region
    _
  $region5: #{qnet_forward.7} parent=0 // pred_fallthru
    _
  // Predicated region
  $region6: #{qnet_forward.7} parent=0 // pred_check
    _
  $region7: #{qnet_forward.7} parent=0 // pred_check_branch
    %11 = sbr.rel (0) target = $region9
  $region8: #{qnet_forward.7} parent=0 // pred_region
    _
  $region9: #{qnet_forward.7} parent=0 // pred_fallthru
    _
  // Predicated region
  $region10: #{qnet_forward.7} parent=0 // pred_check
    _
  $region11: #{qnet_forward.7} parent=0 // pred_check_branch
    %13 = sbr.rel (0) target = $region13
  $region12: #{qnet_forward.7} parent=0 // pred_region
    _
  $region13: #{qnet_forward.7} parent=0 // pred_fallthru
    _
  %p15 = scmp.eq.s32.totalorder 0, 0
  // Predicated region
  $region14: #{qnet_forward.7} parent=0 // pred_check
    %p16 = pneg %p15
  $region15: #{qnet_forward.7} parent=0 // pred_check_branch
    %18 = sbr.rel (%p16) target = $region17
  $region16: #{qnet_forward.7} parent=0 // pred_region
    %vm19 = vcmask 523264
    %20 = vst.msk [vmem:[#allocation2] sm:$0xff] %vm19, 0.0
    %21 = vst.msk [vmem:[#allocation2 + $0x8] sm:$0xff] %vm19, 0.0
    %22 = vst.msk [vmem:[#allocation2 + $0x10] sm:$0xff] %vm19, 0.0
    %23 = vst.msk [vmem:[#allocation2 + $0x18] sm:$0xff] %vm19, 0.0
    %24 = vst.msk [vmem:[#allocation2 + $0x20] sm:$0xff] %vm19, 0.0
    %25 = vst.msk [vmem:[#allocation2 + $0x28] sm:$0xff] %vm19, 0.0
    %26 = vst.msk [vmem:[#allocation2 + $0x30] sm:$0xff] %vm19, 0.0
    %27 = vst.msk [vmem:[#allocation2 + $0x38] sm:$0xff] %vm19, 0.0
    %28 = vst.msk [vmem:[#allocation2 + $0x40] sm:$0xff] %vm19, 0.0
    %29 = vst.msk [vmem:[#allocation2 + $0x48] sm:$0xff] %vm19, 0.0
    %30 = vst.msk [vmem:[#allocation2 + $0x50] sm:$0xff] %vm19, 0.0
    %31 = vst.msk [vmem:[#allocation2 + $0x58] sm:$0xff] %vm19, 0.0
    %vm32 = vcmask 517120
    %33 = vst.msk [vmem:[#allocation2 + $0x60] sm:$0x3] %vm32, 0.0
  $region17: #{qnet_forward.7} parent=0 // pred_fallthru
    _
  %v34 = vld [vmem:[#allocation2] sm:$0xff]
  %v35 = vld [vmem:[#allocation2 + $0x8] sm:$0xff]
  %v36 = vld [vmem:[#allocation2 + $0x10] sm:$0xff]
  %v37 = vld [vmem:[#allocation2 + $0x18] sm:$0xff]
  %v38 = vld [vmem:[#allocation2 + $0x20] sm:$0xff]
  %v39 = vld [vmem:[#allocation2 + $0x28] sm:$0xff]
  %v40 = vld [vmem:[#allocation2 + $0x30] sm:$0xff]
  %v41 = vld [vmem:[#allocation2 + $0x38] sm:$0xff]
  %v42 = vld [vmem:[#allocation2 + $0x40] sm:$0xff]
  %v43 = vld [vmem:[#allocation2 + $0x48] sm:$0xff]
  %v44 = vld [vmem:[#allocation2 + $0x50] sm:$0xff]
  %v45 = vld [vmem:[#allocation2 + $0x58] sm:$0xff]
  %v46 = vld [vmem:[#allocation2 + $0x60] sm:$0x3]
  %v47 = vld [vmem:[%s0] sm:$0xff]
  %v48 = vld [vmem:[%s0 + $0x8] sm:$0xff]
  %v49 = vld [vmem:[%s0 + $0x10] sm:$0xf]
  %v50 = vld [vmem:[%s0 + $0x14] sm:$0xff]
  %v51 = vld [vmem:[%s0 + $0x1c] sm:$0xff]
  %v52 = vld [vmem:[%s0 + $0x24] sm:$0xf]
  %v53 = vld [vmem:[%s0 + $0x28] sm:$0xff]
  %v54 = vld [vmem:[%s0 + $0x30] sm:$0xff]
  %v55 = vld [vmem:[%s0 + $0x38] sm:$0xf]
  %v56 = vld [vmem:[%s0 + $0x3c] sm:$0xff]
  %v57 = vld [vmem:[%s0 + $0x44] sm:$0xff]
  %v58 = vld [vmem:[%s0 + $0x4c] sm:$0xf]
  %v59 = vld [vmem:[%s0 + $0x50] sm:$0xff]
  %v60 = vld [vmem:[%s0 + $0x58] sm:$0xff]
  %v61 = vld [vmem:[%s0 + $0x60] sm:$0xf]
  %v62 = vld [vmem:[%s0 + $0x64] sm:$0xff]
  %v63 = vld [vmem:[%s0 + $0x6c] sm:$0xff]
  %v64 = vld [vmem:[%s0 + $0x74] sm:$0xf]
  %v65 = vld [vmem:[%s0 + $0x78] sm:$0xff]
  %v66 = vld [vmem:[%s0 + $0x80] sm:$0xff]
  %v67 = vld [vmem:[%s0 + $0x88] sm:$0xf]
  %v68 = vld [vmem:[%s0 + $0x8c] sm:$0xff]
  %v69 = vld [vmem:[%s0 + $0x94] sm:$0xff]
  %v70 = vld [vmem:[%s0 + $0x9c] sm:$0xf]
  %v71 = vld [vmem:[%s0 + $0xa0] sm:$0xff]
  %v72 = vld [vmem:[%s0 + $0xa8] sm:$0xff]
  %v73 = vld [vmem:[%s0 + $0xb0] sm:$0xf]
  %v74 = vld [vmem:[%s0 + $0xb4] sm:$0xff]
  %v75 = vld [vmem:[%s0 + $0xbc] sm:$0xff]
  %v76 = vld [vmem:[%s0 + $0xc4] sm:$0xf]
  %v77 = vld [vmem:[%s0 + $0xc8] sm:$0xff]
  %v78 = vld [vmem:[%s0 + $0xd0] sm:$0xff]
  %v79 = vld [vmem:[%s0 + $0xd8] sm:$0xf]
  %v80 = vld [vmem:[%s0 + $0xdc] sm:$0xff]
  %v81 = vld [vmem:[%s0 + $0xe4] sm:$0xff]
  %v82 = vld [vmem:[%s0 + $0xec] sm:$0xf]
  %v83 = vld [vmem:[%s0 + $0xf0] sm:$0x11]
  %v84 = vld [vmem:[%s0 + $0xf8] sm:$0x11]
  %v85 = vld [vmem:[%s0 + $0x100] sm:$0x1]
  %v86 = vld [vmem:[%s1] sm:$0xf]
  %v87 = vld [vmem:[%s1 + $0x4] sm:$0xf]
  %v88 = vld [vmem:[%s1 + $0x8] sm:$0xf]
  %v89 = vld [vmem:[%s1 + $0xc] sm:$0xf]
  %v90 = vld [vmem:[%s1 + $0x10] sm:$0xf]
  %v91 = vld [vmem:[%s1 + $0x14] sm:$0xf]
  %v92 = vld [vmem:[%s1 + $0x18] sm:$0xf]
  %v93 = vld [vmem:[%s1 + $0x1c] sm:$0xf]
  %v94 = vld [vmem:[%s1 + $0x20] sm:$0xf]
  %v95 = vld [vmem:[%s1 + $0x24] sm:$0xf]
  %v96 = vld [vmem:[%s1 + $0x28] sm:$0xf]
  %v97 = vld [vmem:[%s1 + $0x2c] sm:$0xf]
  %v98 = vld [vmem:[%s1 + $0x30] sm:$0xf]
  %v99 = vld [vmem:[%s1 + $0x34] sm:$0xf]
  %v100 = vld [vmem:[%s1 + $0x38] sm:$0xf]
  %v101 = vld [vmem:[%s1 + $0x3c] sm:$0xf]
  %v102 = vld [vmem:[%s1 + $0x40] sm:$0xf]
  %v103 = vld [vmem:[%s1 + $0x44] sm:$0xf]
  %v104 = vld [vmem:[%s1 + $0x48] sm:$0xf]
  %v105 = vld [vmem:[%s1 + $0x4c] sm:$0xf]
  %v106 = vld [vmem:[%s1 + $0x50] sm:$0xf]
  %v107 = vld [vmem:[%s1 + $0x54] sm:$0xf]
  %v108 = vld [vmem:[%s1 + $0x58] sm:$0xf]
  %v109 = vld [vmem:[%s1 + $0x5c] sm:$0xf]
  %v110 = vld [vmem:[%s1 + $0x60] sm:$0xf]
  %v111 = vld [vmem:[%s1 + $0x64] sm:$0xf]
  %v112 = vld [vmem:[%s1 + $0x68] sm:$0xf]
  %v113 = vld [vmem:[%s1 + $0x6c] sm:$0xf]
  %v114 = vld [vmem:[%s1 + $0x70] sm:$0xf]
  %v115 = vld [vmem:[%s1 + $0x74] sm:$0xf]
  %v116 = vld [vmem:[%s1 + $0x78] sm:$0xf]
  %v117 = vld [vmem:[%s1 + $0x7c] sm:$0xf]
  %v118 = vld [vmem:[%s1 + $0x80] sm:$0xf]
  %v119 = vld [vmem:[%s1 + $0x84] sm:$0xf]
  %v120 = vld [vmem:[%s1 + $0x88] sm:$0xf]
  %v121 = vld [vmem:[%s1 + $0x8c] sm:$0xf]
  %v122 = vld [vmem:[%s1 + $0x90] sm:$0xf]
  %v123 = vld [vmem:[%s1 + $0x94] sm:$0xf]
  %v124 = vld [vmem:[%s1 + $0x98] sm:$0xf]
  %v125 = vld [vmem:[%s1 + $0x9c] sm:$0xf]
  %v126 = vld [vmem:[%s1 + $0xa0] sm:$0xf]
  %v127 = vld [vmem:[%s1 + $0xa4] sm:$0xf]
  %v128 = vld [vmem:[%s1 + $0xa8] sm:$0xf]
  %v129 = vld [vmem:[%s1 + $0xac] sm:$0xf]
  %v130 = vld [vmem:[%s1 + $0xb0] sm:$0xf]
  %v131 = vld [vmem:[%s1 + $0xb4] sm:$0xf]
  %v132 = vld [vmem:[%s1 + $0xb8] sm:$0xf]
  %v133 = vld [vmem:[%s1 + $0xbc] sm:$0xf]
  %v134 = vld [vmem:[%s1 + $0xc0] sm:$0xf]
  %v135 = vld [vmem:[%s1 + $0xc4] sm:$0xf]
  %v136 = vld [vmem:[%s1 + $0xc8] sm:$0xf]
  %v137 = vld [vmem:[%s1 + $0xcc] sm:$0xf]
  %v138 = vld [vmem:[%s1 + $0xd0] sm:$0xf]
  %v139 = vld [vmem:[%s1 + $0xd4] sm:$0xf]
  %v140 = vld [vmem:[%s1 + $0xd8] sm:$0xf]
  %v141 = vld [vmem:[%s1 + $0xdc] sm:$0xf]
  %v142 = vld [vmem:[%s1 + $0xe0] sm:$0xf]
  %v143 = vld [vmem:[%s1 + $0xe4] sm:$0xf]
  %v144 = vld [vmem:[%s1 + $0xe8] sm:$0xf]
  %v145 = vld [vmem:[%s1 + $0xec] sm:$0xf]
  %v146 = vld [vmem:[%s1 + $0xf0] sm:$0xf]
  %v147 = vld [vmem:[%s1 + $0xf4] sm:$0xf]
  %v148 = vld [vmem:[%s1 + $0xf8] sm:$0xf]
  %v149 = vld [vmem:[%s1 + $0xfc] sm:$0xf]
  %v150 = vld [vmem:[%s1 + $0x100] sm:$0xf]
  %v151 = vld [vmem:[%s1 + $0x104] sm:$0xf]
  %v152 = vld [vmem:[%s1 + $0x108] sm:$0xf]
  %v153 = vld [vmem:[%s1 + $0x10c] sm:$0xf]
  %v154 = vld [vmem:[%s1 + $0x110] sm:$0xf]
  %v155 = vld [vmem:[%s1 + $0x114] sm:$0xf]
  %v156 = vld [vmem:[%s1 + $0x118] sm:$0xf]
  %v157 = vld [vmem:[%s1 + $0x11c] sm:$0xf]
  %v197 = vunpack.c.l.b16 %v47
  %v198 = vunpack.c.h.b16 %v47
  %v199 = vunpack.c.l.b16 %v48
  %v200 = vunpack.c.h.b16 %v48
  %v201 = vunpack.c.l.b16 %v49
  %v202 = vunpack.c.l.b16 %v50
  %v203 = vunpack.c.h.b16 %v50
  %v204 = vunpack.c.l.b16 %v51
  %v205 = vunpack.c.h.b16 %v51
  %v206 = vunpack.c.l.b16 %v52
  %v207 = vunpack.c.l.b16 %v53
  %v208 = vunpack.c.h.b16 %v53
  %v209 = vunpack.c.l.b16 %v54
  %v210 = vunpack.c.h.b16 %v54
  %v211 = vunpack.c.l.b16 %v55
  %v212 = vunpack.c.l.b16 %v56
  %v213 = vunpack.c.h.b16 %v56
  %v214 = vunpack.c.l.b16 %v57
  %v215 = vunpack.c.h.b16 %v57
  %v216 = vunpack.c.l.b16 %v58
  %v217 = vunpack.c.l.b16 %v59
  %v218 = vunpack.c.h.b16 %v59
  %v219 = vunpack.c.l.b16 %v60
  %v220 = vunpack.c.h.b16 %v60
  %v221 = vunpack.c.l.b16 %v61
  %v222 = vunpack.c.l.b16 %v62
  %v223 = vunpack.c.h.b16 %v62
  %v224 = vunpack.c.l.b16 %v63
  %v225 = vunpack.c.h.b16 %v63
  %v226 = vunpack.c.l.b16 %v64
  %v227 = vunpack.c.l.b16 %v65
  %v228 = vunpack.c.h.b16 %v65
  %v229 = vunpack.c.l.b16 %v66
  %v230 = vunpack.c.h.b16 %v66
  %v231 = vunpack.c.l.b16 %v67
  %v232 = vunpack.c.l.b16 %v68
  %v233 = vunpack.c.h.b16 %v68
  %v234 = vunpack.c.l.b16 %v69
  %v235 = vunpack.c.h.b16 %v69
  %v236 = vunpack.c.l.b16 %v70
  %v237 = vunpack.c.l.b16 %v71
  %v238 = vunpack.c.h.b16 %v71
  %v239 = vunpack.c.l.b16 %v72
  %v240 = vunpack.c.h.b16 %v72
  %v241 = vunpack.c.l.b16 %v73
  %v242 = vunpack.c.l.b16 %v74
  %v243 = vunpack.c.h.b16 %v74
  %v244 = vunpack.c.l.b16 %v75
  %v245 = vunpack.c.h.b16 %v75
  %v246 = vunpack.c.l.b16 %v76
  %v247 = vunpack.c.l.b16 %v77
  %v248 = vunpack.c.h.b16 %v77
  %v249 = vunpack.c.l.b16 %v78
  %v250 = vunpack.c.h.b16 %v78
  %v251 = vunpack.c.l.b16 %v79
  %v252 = vunpack.c.l.b16 %v80
  %v253 = vunpack.c.h.b16 %v80
  %v254 = vunpack.c.l.b16 %v81
  %v255 = vunpack.c.h.b16 %v81
  %v256 = vunpack.c.l.b16 %v82
  %v257 = vunpack.c.l.b16 %v83
  %v258 = vunpack.c.h.b16 %v83
  %v259 = vunpack.c.l.b16 %v84
  %v260 = vunpack.c.h.b16 %v84
  %v261 = vunpack.c.l.b16 %v85
  %v262 = vpack.c.b16 %v202, %v197
  %v263 = vpack.c.b16 %v203, %v198
  %v264 = vpack.c.b16 %v204, %v199
  %v265 = vpack.c.b16 %v205, %v200
  %v266 = vpack.c.b16 %v206, %v201
  %v267 = vpack.c.b16 %v212, %v207
  %v268 = vpack.c.b16 %v213, %v208
  %v269 = vpack.c.b16 %v214, %v209
  %v270 = vpack.c.b16 %v215, %v210
  %v271 = vpack.c.b16 %v216, %v211
  %v272 = vpack.c.b16 %v222, %v217
  %v273 = vpack.c.b16 %v223, %v218
  %v274 = vpack.c.b16 %v224, %v219
  %v275 = vpack.c.b16 %v225, %v220
  %v276 = vpack.c.b16 %v226, %v221
  %v277 = vpack.c.b16 %v232, %v227
  %v278 = vpack.c.b16 %v233, %v228
  %v279 = vpack.c.b16 %v234, %v229
  %v280 = vpack.c.b16 %v235, %v230
  %v281 = vpack.c.b16 %v236, %v231
  %v282 = vpack.c.b16 %v242, %v237
  %v283 = vpack.c.b16 %v243, %v238
  %v284 = vpack.c.b16 %v244, %v239
  %v285 = vpack.c.b16 %v245, %v240
  %v286 = vpack.c.b16 %v246, %v241
  %v287 = vpack.c.b16 %v252, %v247
  %v288 = vpack.c.b16 %v253, %v248
  %v289 = vpack.c.b16 %v254, %v249
  %v290 = vpack.c.b16 %v255, %v250
  %v291 = vpack.c.b16 %v256, %v251
  %v292 = vpack.c.b16 %v257, %v257
  %v293 = vpack.c.b16 %v258, %v258
  %v294 = vpack.c.b16 %v259, %v259
  %v295 = vpack.c.b16 %v260, %v260
  %v296 = vpack.c.b16 %v261, %v261
  %v397 = vunpack.c.l.b16 %v86
  %v398 = vunpack.c.l.b16 %v87
  %v399 = vunpack.c.l.b16 %v88
  %v400 = vunpack.c.l.b16 %v89
  %v401 = vunpack.c.l.b16 %v90
  %v402 = vunpack.c.l.b16 %v91
  %v403 = vunpack.c.l.b16 %v92
  %v404 = vunpack.c.l.b16 %v93
  %v405 = vunpack.c.l.b16 %v94
  %v406 = vunpack.c.l.b16 %v95
  %v407 = vunpack.c.l.b16 %v96
  %v408 = vunpack.c.l.b16 %v97
  %v409 = vunpack.c.l.b16 %v98
  %v410 = vunpack.c.l.b16 %v99
  %v411 = vunpack.c.l.b16 %v100
  %v412 = vunpack.c.l.b16 %v101
  %v413 = vunpack.c.l.b16 %v102
  %v414 = vunpack.c.l.b16 %v103
  %v415 = vunpack.c.l.b16 %v104
  %v416 = vunpack.c.l.b16 %v105
  %v417 = vunpack.c.l.b16 %v106
  %v418 = vunpack.c.l.b16 %v107
  %v419 = vunpack.c.l.b16 %v108
  %v420 = vunpack.c.l.b16 %v109
  %v421 = vunpack.c.l.b16 %v110
  %v422 = vunpack.c.l.b16 %v111
  %v423 = vunpack.c.l.b16 %v112
  %v424 = vunpack.c.l.b16 %v113
  %v425 = vunpack.c.l.b16 %v114
  %v426 = vunpack.c.l.b16 %v115
  %v427 = vunpack.c.l.b16 %v116
  %v428 = vunpack.c.l.b16 %v117
  %v429 = vunpack.c.l.b16 %v118
  %v430 = vunpack.c.l.b16 %v119
  %v431 = vunpack.c.l.b16 %v120
  %v432 = vunpack.c.l.b16 %v121
  %v433 = vunpack.c.l.b16 %v122
  %v434 = vunpack.c.l.b16 %v123
  %v435 = vunpack.c.l.b16 %v124
  %v436 = vunpack.c.l.b16 %v125
  %v437 = vunpack.c.l.b16 %v126
  %v438 = vunpack.c.l.b16 %v127
  %v439 = vunpack.c.l.b16 %v128
  %v440 = vunpack.c.l.b16 %v129
  %v441 = vunpack.c.l.b16 %v130
  %v442 = vunpack.c.l.b16 %v131
  %v443 = vunpack.c.l.b16 %v132
  %v444 = vunpack.c.l.b16 %v133
  %v445 = vunpack.c.l.b16 %v134
  %v446 = vunpack.c.l.b16 %v135
  %v447 = vunpack.c.l.b16 %v136
  %v448 = vunpack.c.l.b16 %v137
  %v449 = vunpack.c.l.b16 %v138
  %v450 = vunpack.c.l.b16 %v139
  %v451 = vunpack.c.l.b16 %v140
  %v452 = vunpack.c.l.b16 %v141
  %v453 = vunpack.c.l.b16 %v142
  %v454 = vunpack.c.l.b16 %v143
  %v455 = vunpack.c.l.b16 %v144
  %v456 = vunpack.c.l.b16 %v145
  %v457 = vunpack.c.l.b16 %v146
  %v458 = vunpack.c.l.b16 %v147
  %v459 = vunpack.c.l.b16 %v148
  %v460 = vunpack.c.l.b16 %v149
  %v461 = vunpack.c.l.b16 %v150
  %v462 = vunpack.c.l.b16 %v151
  %v463 = vunpack.c.l.b16 %v152
  %v464 = vunpack.c.l.b16 %v153
  %v465 = vunpack.c.l.b16 %v154
  %v466 = vunpack.c.l.b16 %v155
  %v467 = vunpack.c.l.b16 %v156
  %v468 = vunpack.c.l.b16 %v157
  %v469 = vpack.c.b16 %v398, %v397
  %v470 = vpack.c.b16 %v400, %v399
  %v471 = vpack.c.b16 %v402, %v401
  %v472 = vpack.c.b16 %v404, %v403
  %v473 = vpack.c.b16 %v406, %v405
  %v474 = vpack.c.b16 %v408, %v407
  %v475 = vpack.c.b16 %v410, %v409
  %v476 = vpack.c.b16 %v412, %v411
  %v477 = vpack.c.b16 %v414, %v413
  %v478 = vpack.c.b16 %v416, %v415
  %v479 = vpack.c.b16 %v418, %v417
  %v480 = vpack.c.b16 %v420, %v419
  %v481 = vpack.c.b16 %v422, %v421
  %v482 = vpack.c.b16 %v424, %v423
  %v483 = vpack.c.b16 %v426, %v425
  %v484 = vpack.c.b16 %v428, %v427
  %v485 = vpack.c.b16 %v430, %v429
  %v486 = vpack.c.b16 %v432, %v431
  %v487 = vpack.c.b16 %v434, %v433
  %v488 = vpack.c.b16 %v436, %v435
  %v489 = vpack.c.b16 %v438, %v437
  %v490 = vpack.c.b16 %v440, %v439
  %v491 = vpack.c.b16 %v442, %v441
  %v492 = vpack.c.b16 %v444, %v443
  %v493 = vpack.c.b16 %v446, %v445
  %v494 = vpack.c.b16 %v448, %v447
  %v495 = vpack.c.b16 %v450, %v449
  %v496 = vpack.c.b16 %v452, %v451
  %v497 = vpack.c.b16 %v454, %v453
  %v498 = vpack.c.b16 %v456, %v455
  %v499 = vpack.c.b16 %v458, %v457
  %v500 = vpack.c.b16 %v460, %v459
  %v501 = vpack.c.b16 %v462, %v461
  %v502 = vpack.c.b16 %v464, %v463
  %v503 = vpack.c.b16 %v466, %v465
  %v504 = vpack.c.b16 %v468, %v467
  %vm541 = vcmask 523264
  %v543 = vsel %vm541, %v266, 0
  %v546 = vsel %vm541, %v271, 0
  %v549 = vsel %vm541, %v276, 0
  %v552 = vsel %vm541, %v281, 0
  %v555 = vsel %vm541, %v286, 0
  %v558 = vsel %vm541, %v291, 0
  %v561 = vsel %vm541, %v296, 0
  %563 = vmatprep.subr.bf16.mxu0 0
  %564 = vmatpush1.bf16.msra.mxu0 %v469
  %565 = vmatprep.subr.bf16.mxu0 0
  %566 = vmatpush1.bf16.msra.mxu0 %v470
  %567 = vmatprep.subr.bf16.mxu0 0
  %568 = vmatpush1.bf16.msra.mxu0 %v471
  %569 = vmatprep.subr.bf16.mxu0 0
  %570 = vmatpush1.bf16.msra.mxu0 %v472
  %571 = vmatprep.subr.bf16.mxu0 0
  %572 = vmatpush1.bf16.msra.mxu0 %v473
  %573 = vmatprep.subr.bf16.mxu0 0
  %574 = vmatpush1.bf16.msra.mxu0 %v474
  %575 = vmatprep.subr.bf16.mxu0 0
  %576 = vmatpush1.bf16.msra.mxu0 %v475
  %577 = vmatprep.subr.bf16.mxu0 0
  %578 = vmatpush1.bf16.msra.mxu0 %v476
  %579 = vmatprep.subr.bf16.mxu0 0
  %580 = vmatpush1.bf16.msra.mxu0 %v477
  %581 = vmatprep.subr.bf16.mxu0 0
  %582 = vmatpush1.bf16.msra.mxu0 %v478
  %583 = vmatprep.subr.bf16.mxu0 0
  %584 = vmatpush1.bf16.msra.mxu0 %v479
  %585 = vmatprep.subr.bf16.mxu0 0
  %586 = vmatpush1.bf16.msra.mxu0 %v480
  %587 = vmatprep.subr.bf16.mxu0 0
  %588 = vmatpush1.bf16.msra.mxu0 %v481
  %589 = vmatprep.subr.bf16.mxu0 0
  %590 = vmatpush1.bf16.msra.mxu0 %v482
  %591 = vmatprep.subr.bf16.mxu0 0
  %592 = vmatpush1.bf16.msra.mxu0 %v483
  %593 = vmatprep.subr.bf16.mxu0 0
  %594 = vmatpush1.bf16.msra.mxu0 %v484
  %595 = vmatprep.mubr.bf16.mxu0 %v263
  %596 = vmatmul.mubr.bf16.gmra.mrb[0].mxu0 %v262
  %v597 = vpop.f32.mrb[0].mxu0
  %v598 = vadd.f32 0.0, %v597
  %v599 = vpop.f32.mrb[0].mxu0
  %v600 = vpop.f32.mrb[0].mxu0
  %v601 = vadd.f32 0.0, %v600
  %v602 = vpop.f32.mrb[0].mxu0
  %603 = vmatprep.mubr.bf16.mxu0 %v268
  %604 = vmatmul.mubr.bf16.gmra.mrb[0].mxu0 %v267
  %v605 = vpop.f32.mrb[0].mxu0
  %v606 = vadd.f32 0.0, %v605
  %v607 = vpop.f32.mrb[0].mxu0
  %v608 = vpop.f32.mrb[0].mxu0
  %v609 = vadd.f32 0.0, %v608
  %v610 = vpop.f32.mrb[0].mxu0
  %611 = vmatprep.mubr.bf16.mxu0 %v273
  %612 = vmatmul.mubr.bf16.gmra.mrb[0].mxu0 %v272
  %v613 = vpop.f32.mrb[0].mxu0
  %v614 = vadd.f32 0.0, %v613
  %v615 = vpop.f32.mrb[0].mxu0
  %v616 = vpop.f32.mrb[0].mxu0
  %v617 = vadd.f32 0.0, %v616
  %v618 = vpop.f32.mrb[0].mxu0
  %619 = vmatprep.mubr.bf16.mxu0 %v278
  %620 = vmatmul.mubr.bf16.gmra.mrb[0].mxu0 %v277
  %v621 = vpop.f32.mrb[0].mxu0
  %v622 = vadd.f32 0.0, %v621
  %v623 = vpop.f32.mrb[0].mxu0
  %v624 = vpop.f32.mrb[0].mxu0
  %v625 = vadd.f32 0.0, %v624
  %v626 = vpop.f32.mrb[0].mxu0
  %627 = vmatprep.mubr.bf16.mxu0 %v283
  %628 = vmatmul.mubr.bf16.gmra.mrb[0].mxu0 %v282
  %v629 = vpop.f32.mrb[0].mxu0
  %v630 = vadd.f32 0.0, %v629
  %v631 = vpop.f32.mrb[0].mxu0
  %v632 = vpop.f32.mrb[0].mxu0
  %v633 = vadd.f32 0.0, %v632
  %v634 = vpop.f32.mrb[0].mxu0
  %635 = vmatprep.mubr.bf16.mxu0 %v288
  %636 = vmatmul.mubr.bf16.gmra.mrb[0].mxu0 %v287
  %v637 = vpop.f32.mrb[0].mxu0
  %v638 = vadd.f32 0.0, %v637
  %v639 = vpop.f32.mrb[0].mxu0
  %v640 = vpop.f32.mrb[0].mxu0
  %v641 = vadd.f32 0.0, %v640
  %v642 = vpop.f32.mrb[0].mxu0
  %643 = vmatprep.mubr.bf16.mxu0 %v293
  %644 = vmatmul.mubr.bf16.gmra.mrb[0].mxu0 %v292
  %v645 = vpop.f32.mrb[0].mxu0
  %v646 = vadd.f32 0.0, %v645
  %v647 = vpop.f32.mrb[0].mxu0
  %v648 = vpop.f32.mrb[0].mxu0
  %v649 = vpop.f32.mrb[0].mxu0
  %650 = vdwg.mxu0
  %651 = vmatprep.subr.bf16.mxu0 0
  %652 = vmatpush1.bf16.msra.mxu0 %v485
  %653 = vmatprep.subr.bf16.mxu0 0
  %654 = vmatpush1.bf16.msra.mxu0 %v486
  %655 = vmatprep.subr.bf16.mxu0 0
  %656 = vmatpush1.bf16.msra.mxu0 %v487
  %657 = vmatprep.subr.bf16.mxu0 0
  %658 = vmatpush1.bf16.msra.mxu0 %v488
  %659 = vmatprep.subr.bf16.mxu0 0
  %660 = vmatpush1.bf16.msra.mxu0 %v489
  %661 = vmatprep.subr.bf16.mxu0 0
  %662 = vmatpush1.bf16.msra.mxu0 %v490
  %663 = vmatprep.subr.bf16.mxu0 0
  %664 = vmatpush1.bf16.msra.mxu0 %v491
  %665 = vmatprep.subr.bf16.mxu0 0
  %666 = vmatpush1.bf16.msra.mxu0 %v492
  %667 = vmatprep.subr.bf16.mxu0 0
  %668 = vmatpush1.bf16.msra.mxu0 %v493
  %669 = vmatprep.subr.bf16.mxu0 0
  %670 = vmatpush1.bf16.msra.mxu0 %v494
  %671 = vmatprep.subr.bf16.mxu0 0
  %672 = vmatpush1.bf16.msra.mxu0 %v495
  %673 = vmatprep.subr.bf16.mxu0 0
  %674 = vmatpush1.bf16.msra.mxu0 %v496
  %675 = vmatprep.subr.bf16.mxu0 0
  %676 = vmatpush1.bf16.msra.mxu0 %v497
  %677 = vmatprep.subr.bf16.mxu0 0
  %678 = vmatpush1.bf16.msra.mxu0 %v498
  %679 = vmatprep.subr.bf16.mxu0 0
  %680 = vmatpush1.bf16.msra.mxu0 %v499
  %681 = vmatprep.subr.bf16.mxu0 0
  %682 = vmatpush1.bf16.msra.mxu0 %v500
  %683 = vmatprep.mubr.bf16.mxu0 %v265
  %684 = vmatmul.mubr.bf16.gmra.mrb[0].mxu0 %v264
  %v685 = vpop.f32.mrb[0].mxu0
  %v686 = vadd.f32 %v598, %v685
  %v687 = vpop.f32.mrb[0].mxu0
  %v688 = vpop.f32.mrb[0].mxu0
  %v689 = vadd.f32 %v601, %v688
  %v690 = vpop.f32.mrb[0].mxu0
  %691 = vmatprep.mubr.bf16.mxu0 %v270
  %692 = vmatmul.mubr.bf16.gmra.mrb[0].mxu0 %v269
  %v693 = vpop.f32.mrb[0].mxu0
  %v694 = vadd.f32 %v606, %v693
  %v695 = vpop.f32.mrb[0].mxu0
  %v696 = vpop.f32.mrb[0].mxu0
  %v697 = vadd.f32 %v609, %v696
  %v698 = vpop.f32.mrb[0].mxu0
  %699 = vmatprep.mubr.bf16.mxu0 %v275
  %700 = vmatmul.mubr.bf16.gmra.mrb[0].mxu0 %v274
  %v701 = vpop.f32.mrb[0].mxu0
  %v702 = vadd.f32 %v614, %v701
  %v703 = vpop.f32.mrb[0].mxu0
  %v704 = vpop.f32.mrb[0].mxu0
  %v705 = vadd.f32 %v617, %v704
  %v706 = vpop.f32.mrb[0].mxu0
  %707 = vmatprep.mubr.bf16.mxu0 %v280
  %708 = vmatmul.mubr.bf16.gmra.mrb[0].mxu0 %v279
  %v709 = vpop.f32.mrb[0].mxu0
  %v710 = vadd.f32 %v622, %v709
  %v711 = vpop.f32.mrb[0].mxu0
  %v712 = vpop.f32.mrb[0].mxu0
  %v713 = vadd.f32 %v625, %v712
  %v714 = vpop.f32.mrb[0].mxu0
  %715 = vmatprep.mubr.bf16.mxu0 %v285
  %716 = vmatmul.mubr.bf16.gmra.mrb[0].mxu0 %v284
  %v717 = vpop.f32.mrb[0].mxu0
  %v718 = vadd.f32 %v630, %v717
  %v719 = vpop.f32.mrb[0].mxu0
  %v720 = vpop.f32.mrb[0].mxu0
  %v721 = vadd.f32 %v633, %v720
  %v722 = vpop.f32.mrb[0].mxu0
  %723 = vmatprep.mubr.bf16.mxu0 %v290
  %724 = vmatmul.mubr.bf16.gmra.mrb[0].mxu0 %v289
  %v725 = vpop.f32.mrb[0].mxu0
  %v726 = vadd.f32 %v638, %v725
  %v727 = vpop.f32.mrb[0].mxu0
  %v728 = vpop.f32.mrb[0].mxu0
  %v729 = vadd.f32 %v641, %v728
  %v730 = vpop.f32.mrb[0].mxu0
  %731 = vmatprep.mubr.bf16.mxu0 %v295
  %732 = vmatmul.mubr.bf16.gmra.mrb[0].mxu0 %v294
  %v733 = vpop.f32.mrb[0].mxu0
  %v734 = vadd.f32 %v646, %v733
  %v735 = vpop.f32.mrb[0].mxu0
  %v736 = vpop.f32.mrb[0].mxu0
  %v737 = vpop.f32.mrb[0].mxu0
  %738 = vdwg.mxu0
  %739 = vmatprep.subr.bf16.mxu0 0
  %740 = vmatpush1.bf16.msra.mxu0 %v501
  %741 = vmatprep.subr.bf16.mxu0 0
  %742 = vmatpush1.bf16.msra.mxu0 %v502
  %743 = vmatprep.subr.bf16.mxu0 0
  %744 = vmatpush1.bf16.msra.mxu0 %v503
  %745 = vmatprep.subr.bf16.mxu0 0
  %746 = vmatpush1.bf16.msra.mxu0 %v504
  %747 = vmatprep.subr.bf16.mxu0 0
  %748 = vmatpush1.bf16.msra.mxu0 0
  %749 = vmatprep.subr.bf16.mxu0 0
  %750 = vmatpush1.bf16.msra.mxu0 0
  %751 = vmatprep.subr.bf16.mxu0 0
  %752 = vmatpush1.bf16.msra.mxu0 0
  %753 = vmatprep.subr.bf16.mxu0 0
  %754 = vmatpush1.bf16.msra.mxu0 0
  %755 = vmatprep.subr.bf16.mxu0 0
  %756 = vmatpush1.bf16.msra.mxu0 0
  %757 = vmatprep.subr.bf16.mxu0 0
  %758 = vmatpush1.bf16.msra.mxu0 0
  %759 = vmatprep.subr.bf16.mxu0 0
  %760 = vmatpush1.bf16.msra.mxu0 0
  %761 = vmatprep.subr.bf16.mxu0 0
  %762 = vmatpush1.bf16.msra.mxu0 0
  %763 = vmatprep.subr.bf16.mxu0 0
  %764 = vmatpush1.bf16.msra.mxu0 0
  %765 = vmatprep.subr.bf16.mxu0 0
  %766 = vmatpush1.bf16.msra.mxu0 0
  %767 = vmatprep.subr.bf16.mxu0 0
  %768 = vmatpush1.bf16.msra.mxu0 0
  %769 = vmatprep.subr.bf16.mxu0 0
  %770 = vmatpush1.bf16.msra.mxu0 0
  %771 = vmatprep.mubr.bf16.mxu0 0
  %772 = vmatmul.mubr.bf16.gmra.mrb[0].mxu0 %v543
  %v773 = vpop.f32.mrb[0].mxu0
  %v774 = vadd.f32 %v686, %v773
  %v775 = vpop.f32.mrb[0].mxu0
  %v776 = vpop.f32.mrb[0].mxu0
  %v777 = vadd.f32 %v689, %v776
  %v778 = vpop.f32.mrb[0].mxu0
  %779 = vmatprep.mubr.bf16.mxu0 0
  %780 = vmatmul.mubr.bf16.gmra.mrb[0].mxu0 %v546
  %v781 = vpop.f32.mrb[0].mxu0
  %v782 = vadd.f32 %v694, %v781
  %v783 = vpop.f32.mrb[0].mxu0
  %v784 = vpop.f32.mrb[0].mxu0
  %v785 = vadd.f32 %v697, %v784
  %v786 = vpop.f32.mrb[0].mxu0
  %787 = vmatprep.mubr.bf16.mxu0 0
  %788 = vmatmul.mubr.bf16.gmra.mrb[0].mxu0 %v549
  %v789 = vpop.f32.mrb[0].mxu0
  %v790 = vadd.f32 %v702, %v789
  %v791 = vpop.f32.mrb[0].mxu0
  %v792 = vpop.f32.mrb[0].mxu0
  %v793 = vadd.f32 %v705, %v792
  %v794 = vpop.f32.mrb[0].mxu0
  %795 = vmatprep.mubr.bf16.mxu0 0
  %796 = vmatmul.mubr.bf16.gmra.mrb[0].mxu0 %v552
  %v797 = vpop.f32.mrb[0].mxu0
  %v798 = vadd.f32 %v710, %v797
  %v799 = vpop.f32.mrb[0].mxu0
  %v800 = vpop.f32.mrb[0].mxu0
  %v801 = vadd.f32 %v713, %v800
  %v802 = vpop.f32.mrb[0].mxu0
  %803 = vmatprep.mubr.bf16.mxu0 0
  %804 = vmatmul.mubr.bf16.gmra.mrb[0].mxu0 %v555
  %v805 = vpop.f32.mrb[0].mxu0
  %v806 = vadd.f32 %v718, %v805
  %v807 = vpop.f32.mrb[0].mxu0
  %v808 = vpop.f32.mrb[0].mxu0
  %v809 = vadd.f32 %v721, %v808
  %v810 = vpop.f32.mrb[0].mxu0
  %811 = vmatprep.mubr.bf16.mxu0 0
  %812 = vmatmul.mubr.bf16.gmra.mrb[0].mxu0 %v558
  %v813 = vpop.f32.mrb[0].mxu0
  %v814 = vadd.f32 %v726, %v813
  %v815 = vpop.f32.mrb[0].mxu0
  %v816 = vpop.f32.mrb[0].mxu0
  %v817 = vadd.f32 %v729, %v816
  %v818 = vpop.f32.mrb[0].mxu0
  %819 = vmatprep.mubr.bf16.mxu0 0
  %820 = vmatmul.mubr.bf16.gmra.mrb[0].mxu0 %v561
  %v821 = vpop.f32.mrb[0].mxu0
  %v822 = vadd.f32 %v734, %v821
  %v823 = vpop.f32.mrb[0].mxu0
  %v824 = vpop.f32.mrb[0].mxu0
  %v825 = vpop.f32.mrb[0].mxu0
  %826 = vdwg.mxu0
  %v827 = vadd.f32 %v34, %v774
  %v828 = vadd.f32 %v35, %v777
  %v829 = vadd.f32 %v36, %v782
  %v830 = vadd.f32 %v37, %v785
  %v831 = vadd.f32 %v38, %v790
  %v832 = vadd.f32 %v39, %v793
  %v833 = vadd.f32 %v40, %v798
  %v834 = vadd.f32 %v41, %v801
  %v835 = vadd.f32 %v42, %v806
  %v836 = vadd.f32 %v43, %v809
  %v837 = vadd.f32 %v44, %v814
  %v838 = vadd.f32 %v45, %v817
  %v839 = vadd.f32 %v46, %v822
  %840 = vst.msk [vmem:[#allocation2] sm:$0xff] %vm541, %v827
  %841 = vst.msk [vmem:[#allocation2 + $0x8] sm:$0xff] %vm541, %v828
  %842 = vst.msk [vmem:[#allocation2 + $0x10] sm:$0xff] %vm541, %v829
  %843 = vst.msk [vmem:[#allocation2 + $0x18] sm:$0xff] %vm541, %v830
  %844 = vst.msk [vmem:[#allocation2 + $0x20] sm:$0xff] %vm541, %v831
  %845 = vst.msk [vmem:[#allocation2 + $0x28] sm:$0xff] %vm541, %v832
  %846 = vst.msk [vmem:[#allocation2 + $0x30] sm:$0xff] %vm541, %v833
  %847 = vst.msk [vmem:[#allocation2 + $0x38] sm:$0xff] %vm541, %v834
  %848 = vst.msk [vmem:[#allocation2 + $0x40] sm:$0xff] %vm541, %v835
  %849 = vst.msk [vmem:[#allocation2 + $0x48] sm:$0xff] %vm541, %v836
  %850 = vst.msk [vmem:[#allocation2 + $0x50] sm:$0xff] %vm541, %v837
  %851 = vst.msk [vmem:[#allocation2 + $0x58] sm:$0xff] %vm541, %v838
  %vm852 = vcmask 517120
  %853 = vst.msk [vmem:[#allocation2 + $0x60] sm:$0x3] %vm852, %v839
  // Predicated region
  $region18: #{qnet_forward.7} parent=0 // pred_check
    %p854 = pneg %p15
  $region19: #{qnet_forward.7} parent=0 // pred_check_branch
    %856 = sbr.rel (%p854) target = $region21
  $region20: #{qnet_forward.7} parent=0 // pred_region
    %v857 = vld [vmem:[#allocation2] sm:$0xff]
    %v858 = vld [vmem:[#allocation2 + $0x8] sm:$0xff]
    %v859 = vld [vmem:[#allocation2 + $0x10] sm:$0xff]
    %v860 = vld [vmem:[#allocation2 + $0x18] sm:$0xff]
    %v861 = vld [vmem:[#allocation2 + $0x20] sm:$0xff]
    %v862 = vld [vmem:[#allocation2 + $0x28] sm:$0xff]
    %v863 = vld [vmem:[#allocation2 + $0x30] sm:$0xff]
    %v864 = vld [vmem:[#allocation2 + $0x38] sm:$0xff]
    %v865 = vld [vmem:[#allocation2 + $0x40] sm:$0xff]
    %v866 = vld [vmem:[#allocation2 + $0x48] sm:$0xff]
    %v867 = vld [vmem:[#allocation2 + $0x50] sm:$0xff]
    %v868 = vld [vmem:[#allocation2 + $0x58] sm:$0xff]
    %v869 = vld [vmem:[#allocation2 + $0x60] sm:$0x3]
    %v870 = vld [vmem:[%s2] sm:$0x1]
    %v872 = vlaneseq
    %v873 = vshrl.u32 %v872, 7
    %v874 = vsub.s32 0, %v873
    %v875 = vrot.slane %v870, %v874
    %v877 = vadd.f32 %v857, %v875
    %v878 = vadd.f32 %v858, %v875
    %v879 = vadd.f32 %v859, %v875
    %v880 = vadd.f32 %v860, %v875
    %v881 = vadd.f32 %v861, %v875
    %v882 = vadd.f32 %v862, %v875
    %v883 = vadd.f32 %v863, %v875
    %v884 = vadd.f32 %v864, %v875
    %v885 = vadd.f32 %v865, %v875
    %v886 = vadd.f32 %v866, %v875
    %v887 = vadd.f32 %v867, %v875
    %v888 = vadd.f32 %v868, %v875
    %v889 = vadd.f32 %v869, %v875
    %v890 = vmax.f32 %v877, 0.0
    %v891 = vmax.f32 %v878, 0.0
    %v892 = vmax.f32 %v879, 0.0
    %v893 = vmax.f32 %v880, 0.0
    %v894 = vmax.f32 %v881, 0.0
    %v895 = vmax.f32 %v882, 0.0
    %v896 = vmax.f32 %v883, 0.0
    %v897 = vmax.f32 %v884, 0.0
    %v898 = vmax.f32 %v885, 0.0
    %v899 = vmax.f32 %v886, 0.0
    %v900 = vmax.f32 %v887, 0.0
    %v901 = vmax.f32 %v888, 0.0
    %v902 = vmax.f32 %v889, 0.0
    %v903 = vpack.c.bf16 %v891, %v890
    %v904 = vpack.c.bf16 %v893, %v892
    %v905 = vpack.c.bf16 %v895, %v894
    %v906 = vpack.c.bf16 %v897, %v896
    %v907 = vpack.c.bf16 %v899, %v898
    %v908 = vpack.c.bf16 %v901, %v900
    %v909 = vpack.c.bf16 %v902, %v902
    %v917 = vunpack.c.l.b16 %v903
    %v918 = vunpack.c.h.b16 %v903
    %v919 = vunpack.c.l.b16 %v904
    %v920 = vunpack.c.h.b16 %v904
    %v921 = vunpack.c.l.b16 %v905
    %v922 = vunpack.c.h.b16 %v905
    %v923 = vunpack.c.l.b16 %v906
    %v924 = vunpack.c.h.b16 %v906
    %v925 = vunpack.c.l.b16 %v907
    %v926 = vunpack.c.h.b16 %v907
    %v927 = vunpack.c.l.b16 %v908
    %v928 = vunpack.c.h.b16 %v908
    %v929 = vunpack.c.l.b16 %v909
    %v930 = vpack.c.b16 %v917, %v917
    %v931 = vpack.c.b16 %v918, %v918
    %v932 = vpack.c.b16 %v919, %v919
    %v933 = vpack.c.b16 %v920, %v920
    %v934 = vpack.c.b16 %v921, %v921
    %v935 = vpack.c.b16 %v922, %v922
    %v936 = vpack.c.b16 %v923, %v923
    %v937 = vpack.c.b16 %v924, %v924
    %v938 = vpack.c.b16 %v925, %v925
    %v939 = vpack.c.b16 %v926, %v926
    %v940 = vpack.c.b16 %v927, %v927
    %v941 = vpack.c.b16 %v928, %v928
    %v942 = vpack.c.b16 %v929, %v929
    %vm956 = vcmask 519168
    %957 = vst.msk [vmem:[%s3] sm:$0xf] %vm956, %v930
    %958 = vst.msk [vmem:[%s3 + $0x4] sm:$0xf] %vm956, %v931
    %959 = vst.msk [vmem:[%s3 + $0x8] sm:$0xf] %vm956, %v932
    %960 = vst.msk [vmem:[%s3 + $0xc] sm:$0xf] %vm956, %v933
    %961 = vst.msk [vmem:[%s3 + $0x10] sm:$0xf] %vm956, %v934
    %962 = vst.msk [vmem:[%s3 + $0x14] sm:$0xf] %vm956, %v935
    %963 = vst.msk [vmem:[%s3 + $0x18] sm:$0xf] %vm956, %v936
    %964 = vst.msk [vmem:[%s3 + $0x1c] sm:$0xf] %vm956, %v937
    %965 = vst.msk [vmem:[%s3 + $0x20] sm:$0xf] %vm956, %v938
    %966 = vst.msk [vmem:[%s3 + $0x24] sm:$0xf] %vm956, %v939
    %967 = vst.msk [vmem:[%s3 + $0x28] sm:$0xf] %vm956, %v940
    %968 = vst.msk [vmem:[%s3 + $0x2c] sm:$0xf] %vm956, %v941
    %vm969 = vcmask 516096
    %970 = vst.msk [vmem:[%s3 + $0x30] sm:$0x1] %vm969, %v942
  $region21: #{qnet_forward.7} parent=0 // pred_fallthru
    _
  // Predicated region
  $region22: #{qnet_forward.7} parent=0 // pred_check
    _
  $region23: #{qnet_forward.7} parent=0 // pred_check_branch
    %972 = sbr.rel (0) target = $region25
  $region24: #{qnet_forward.7} parent=0 // pred_region
    _
  $region25: #{qnet_forward.7} parent=0 // pred_fallthru
    _
  // Predicated region
  $region26: #{qnet_forward.7} parent=0 // pred_check
    _
  $region27: #{qnet_forward.7} parent=0 // pred_check_branch
    %974 = sbr.rel (0) target = $region29
  $region28: #{qnet_forward.7} parent=0 // pred_region
    _
  $region29: #{qnet_forward.7} parent=0 // pred_fallthru
    _

// kernel: qnet_forward.9
$region0: #{qnet_forward.9}
  #allocation0 [shape = 'u32[]', space=smem, size = 0x4, offset = 0x4, fixed_abs, tag = 'smem constant byte address 0x4 - core index']
  #allocation1 [shape = 'u32[144,128]{1,0:T(1,128)}', space=vmem, size = 0x12000, scoped, tag = 'internal scratch']
  #allocation2 [shape = 'f32[2,128]{1,0:T(2,128)}', space=vmem, size = 0x400, scoped, tag = 'scratch operand']
  %s0 = inlined_call_operand.vmem [shape: bf16[2,512], index: 0, kind: input, shape index: {}]
  %s1 = inlined_call_operand.vmem [shape: bf16[512,128], index: 1, kind: input, shape index: {}]
  %s2 = inlined_call_operand.vmem [shape: f32[1,128], index: 2, kind: input, shape index: {}]
  %s3 = inlined_call_operand.hbm [shape: f32[2,128], index: 3, kind: output, shape index: {}]
  %s4 = sld [smem:[#allocation0]]
  $region30: #{qnet_forward.9} parent=0
    _
  %s6 = ssub.s32 1, %s4
  %s7 = scalar_select 0, %s6, %s4
  $region1: #{qnet_forward.9} parent=0
    #allocation3 [shape = 'u8[1024]{0}', space=vmem, size = 0x400, scoped, tag = 'output window, operand 0, single buffered']
    #allocation4 [shape = 's32[1]{0}', space=sflag, size = 0x4, scoped, tag = 'scoped memory for qnet_forward.9']
    %8 = vsyncpa [#allocation4], 0
    // Predicated region
    $region2: #{qnet_forward.9} parent=1 // pred_check
      _
    $region3: #{qnet_forward.9} parent=1 // pred_check_branch
      %10 = sbr.rel (0) target = $region5
    $region4: #{qnet_forward.9} parent=1 // pred_region
      _
    $region5: #{qnet_forward.9} parent=1 // pred_fallthru
      _
    // Predicated region
    $region6: #{qnet_forward.9} parent=1 // pred_check
      _
    $region7: #{qnet_forward.9} parent=1 // pred_check_branch
      %12 = sbr.rel (0) target = $region9
    $region8: #{qnet_forward.9} parent=1 // pred_region
      _
    $region9: #{qnet_forward.9} parent=1 // pred_fallthru
      _
    // Predicated region
    $region10: #{qnet_forward.9} parent=1 // pred_check
      _
    $region11: #{qnet_forward.9} parent=1 // pred_check_branch
      %14 = sbr.rel (0) target = $region13
    $region12: #{qnet_forward.9} parent=1 // pred_region
      _
    $region13: #{qnet_forward.9} parent=1 // pred_fallthru
      _
    %p16 = scmp.eq.s32.totalorder 0, 0
    // Predicated region
    $region14: #{qnet_forward.9} parent=1 // pred_check
      %p17 = pneg %p16
    $region15: #{qnet_forward.9} parent=1 // pred_check_branch
      %19 = sbr.rel (%p17) target = $region17
    $region16: #{qnet_forward.9} parent=1 // pred_region
      %20 = vst [vmem:[#allocation2] sm:$0x3] 0.0
    $region17: #{qnet_forward.9} parent=1 // pred_fallthru
      _
    %v21 = vld [vmem:[#allocation2] sm:$0x3]
    %v22 = vld [vmem:[%s0] sm:$0xf]
    %v23 = vld [vmem:[%s1] sm:$0xf]
    %v24 = vld [vmem:[%s1 + $0x4] sm:$0xf]
    %v25 = vld [vmem:[%s1 + $0x8] sm:$0xf]
    %v26 = vld [vmem:[%s1 + $0xc] sm:$0xf]
    %v27 = vld [vmem:[%s1 + $0x10] sm:$0xf]
    %v28 = vld [vmem:[%s1 + $0x14] sm:$0xf]
    %v29 = vld [vmem:[%s1 + $0x18] sm:$0xf]
    %v30 = vld [vmem:[%s1 + $0x1c] sm:$0xf]
    %v31 = vld [vmem:[%s1 + $0x20] sm:$0xf]
    %v32 = vld [vmem:[%s1 + $0x24] sm:$0xf]
    %v33 = vld [vmem:[%s1 + $0x28] sm:$0xf]
    %v34 = vld [vmem:[%s1 + $0x2c] sm:$0xf]
    %v35 = vld [vmem:[%s1 + $0x30] sm:$0xf]
    %v36 = vld [vmem:[%s1 + $0x34] sm:$0xf]
    %v37 = vld [vmem:[%s1 + $0x38] sm:$0xf]
    %v38 = vld [vmem:[%s1 + $0x3c] sm:$0xf]
    %v39 = vld [vmem:[%s1 + $0x40] sm:$0xf]
    %v40 = vld [vmem:[%s1 + $0x44] sm:$0xf]
    %v41 = vld [vmem:[%s1 + $0x48] sm:$0xf]
    %v42 = vld [vmem:[%s1 + $0x4c] sm:$0xf]
    %v43 = vld [vmem:[%s1 + $0x50] sm:$0xf]
    %v44 = vld [vmem:[%s1 + $0x54] sm:$0xf]
    %v45 = vld [vmem:[%s1 + $0x58] sm:$0xf]
    %v46 = vld [vmem:[%s1 + $0x5c] sm:$0xf]
    %v47 = vld [vmem:[%s1 + $0x60] sm:$0xf]
    %v48 = vld [vmem:[%s1 + $0x64] sm:$0xf]
    %v49 = vld [vmem:[%s1 + $0x68] sm:$0xf]
    %v50 = vld [vmem:[%s1 + $0x6c] sm:$0xf]
    %v51 = vld [vmem:[%s1 + $0x70] sm:$0xf]
    %v52 = vld [vmem:[%s1 + $0x74] sm:$0xf]
    %v53 = vld [vmem:[%s1 + $0x78] sm:$0xf]
    %v54 = vld [vmem:[%s1 + $0x7c] sm:$0xf]
    %v55 = vld [vmem:[%s1 + $0x80] sm:$0xf]
    %v56 = vld [vmem:[%s1 + $0x84] sm:$0xf]
    %v57 = vld [vmem:[%s1 + $0x88] sm:$0xf]
    %v58 = vld [vmem:[%s1 + $0x8c] sm:$0xf]
    %v59 = vld [vmem:[%s1 + $0x90] sm:$0xf]
    %v60 = vld [vmem:[%s1 + $0x94] sm:$0xf]
    %v61 = vld [vmem:[%s1 + $0x98] sm:$0xf]
    %v62 = vld [vmem:[%s1 + $0x9c] sm:$0xf]
    %v63 = vld [vmem:[%s1 + $0xa0] sm:$0xf]
    %v64 = vld [vmem:[%s1 + $0xa4] sm:$0xf]
    %v65 = vld [vmem:[%s1 + $0xa8] sm:$0xf]
    %v66 = vld [vmem:[%s1 + $0xac] sm:$0xf]
    %v67 = vld [vmem:[%s1 + $0xb0] sm:$0xf]
    %v68 = vld [vmem:[%s1 + $0xb4] sm:$0xf]
    %v69 = vld [vmem:[%s1 + $0xb8] sm:$0xf]
    %v70 = vld [vmem:[%s1 + $0xbc] sm:$0xf]
    %v71 = vld [vmem:[%s1 + $0xc0] sm:$0xf]
    %v72 = vld [vmem:[%s1 + $0xc4] sm:$0xf]
    %v73 = vld [vmem:[%s1 + $0xc8] sm:$0xf]
    %v74 = vld [vmem:[%s1 + $0xcc] sm:$0xf]
    %v75 = vld [vmem:[%s1 + $0xd0] sm:$0xf]
    %v76 = vld [vmem:[%s1 + $0xd4] sm:$0xf]
    %v77 = vld [vmem:[%s1 + $0xd8] sm:$0xf]
    %v78 = vld [vmem:[%s1 + $0xdc] sm:$0xf]
    %v79 = vld [vmem:[%s1 + $0xe0] sm:$0xf]
    %v80 = vld [vmem:[%s1 + $0xe4] sm:$0xf]
    %v81 = vld [vmem:[%s1 + $0xe8] sm:$0xf]
    %v82 = vld [vmem:[%s1 + $0xec] sm:$0xf]
    %v83 = vld [vmem:[%s1 + $0xf0] sm:$0xf]
    %v84 = vld [vmem:[%s1 + $0xf4] sm:$0xf]
    %v85 = vld [vmem:[%s1 + $0xf8] sm:$0xf]
    %v86 = vld [vmem:[%s1 + $0xfc] sm:$0xf]
    %v89 = vunpack.c.l.s4 1966171168
    %v90 = vunpack.c.0.s8 %v89
    %v91 = vlaneseq
    %v92 = vshrl.u32 %v91, 7
    %v93 = vsub.s32 %v90, %v92
    %v94 = vrot.slane %v22, %v93
    %v95 = vcombine.high %v94, %v94
    %v97 = vunpack.c.l.s4 1966171168
    %v98 = vunpack.c.0.s8 %v97
    %v99 = vlaneseq
    %v100 = vshrl.u32 %v99, 7
    %v101 = vsub.s32 %v98, %v100
    %v102 = vrot.slane %v94, %v101
    %v104 = vunpack.c.l.s4 1966171168
    %v105 = vunpack.c.0.s8 %v104
    %v106 = vlaneseq
    %v107 = vshrl.u32 %v106, 7
    %v108 = vsub.s32 %v105, %v107
    %v109 = vrot.slane %v95, %v108
    %v110 = vcombine.high %v102, %v102
    %v111 = vcombine.high %v109, %v109
    %v180 = vunpack.c.l.b16 %v23
    %v181 = vunpack.c.l.b16 %v24
    %v182 = vunpack.c.l.b16 %v25
    %v183 = vunpack.c.l.b16 %v26
    %v184 = vunpack.c.l.b16 %v27
    %v185 = vunpack.c.l.b16 %v28
    %v186 = vunpack.c.l.b16 %v29
    %v187 = vunpack.c.l.b16 %v30
    %v188 = vunpack.c.l.b16 %v31
    %v189 = vunpack.c.l.b16 %v32
    %v190 = vunpack.c.l.b16 %v33
    %v191 = vunpack.c.l.b16 %v34
    %v192 = vunpack.c.l.b16 %v35
    %v193 = vunpack.c.l.b16 %v36
    %v194 = vunpack.c.l.b16 %v37
    %v195 = vunpack.c.l.b16 %v38
    %v196 = vunpack.c.l.b16 %v39
    %v197 = vunpack.c.l.b16 %v40
    %v198 = vunpack.c.l.b16 %v41
    %v199 = vunpack.c.l.b16 %v42
    %v200 = vunpack.c.l.b16 %v43
    %v201 = vunpack.c.l.b16 %v44
    %v202 = vunpack.c.l.b16 %v45
    %v203 = vunpack.c.l.b16 %v46
    %v204 = vunpack.c.l.b16 %v47
    %v205 = vunpack.c.l.b16 %v48
    %v206 = vunpack.c.l.b16 %v49
    %v207 = vunpack.c.l.b16 %v50
    %v208 = vunpack.c.l.b16 %v51
    %v209 = vunpack.c.l.b16 %v52
    %v210 = vunpack.c.l.b16 %v53
    %v211 = vunpack.c.l.b16 %v54
    %v212 = vunpack.c.l.b16 %v55
    %v213 = vunpack.c.l.b16 %v56
    %v214 = vunpack.c.l.b16 %v57
    %v215 = vunpack.c.l.b16 %v58
    %v216 = vunpack.c.l.b16 %v59
    %v217 = vunpack.c.l.b16 %v60
    %v218 = vunpack.c.l.b16 %v61
    %v219 = vunpack.c.l.b16 %v62
    %v220 = vunpack.c.l.b16 %v63
    %v221 = vunpack.c.l.b16 %v64
    %v222 = vunpack.c.l.b16 %v65
    %v223 = vunpack.c.l.b16 %v66
    %v224 = vunpack.c.l.b16 %v67
    %v225 = vunpack.c.l.b16 %v68
    %v226 = vunpack.c.l.b16 %v69
    %v227 = vunpack.c.l.b16 %v70
    %v228 = vunpack.c.l.b16 %v71
    %v229 = vunpack.c.l.b16 %v72
    %v230 = vunpack.c.l.b16 %v73
    %v231 = vunpack.c.l.b16 %v74
    %v232 = vunpack.c.l.b16 %v75
    %v233 = vunpack.c.l.b16 %v76
    %v234 = vunpack.c.l.b16 %v77
    %v235 = vunpack.c.l.b16 %v78
    %v236 = vunpack.c.l.b16 %v79
    %v237 = vunpack.c.l.b16 %v80
    %v238 = vunpack.c.l.b16 %v81
    %v239 = vunpack.c.l.b16 %v82
    %v240 = vunpack.c.l.b16 %v83
    %v241 = vunpack.c.l.b16 %v84
    %v242 = vunpack.c.l.b16 %v85
    %v243 = vunpack.c.l.b16 %v86
    %v244 = vpack.c.b16 %v181, %v180
    %v245 = vpack.c.b16 %v183, %v182
    %v246 = vpack.c.b16 %v185, %v184
    %v247 = vpack.c.b16 %v187, %v186
    %v248 = vpack.c.b16 %v189, %v188
    %v249 = vpack.c.b16 %v191, %v190
    %v250 = vpack.c.b16 %v193, %v192
    %v251 = vpack.c.b16 %v195, %v194
    %v252 = vpack.c.b16 %v197, %v196
    %v253 = vpack.c.b16 %v199, %v198
    %v254 = vpack.c.b16 %v201, %v200
    %v255 = vpack.c.b16 %v203, %v202
    %v256 = vpack.c.b16 %v205, %v204
    %v257 = vpack.c.b16 %v207, %v206
    %v258 = vpack.c.b16 %v209, %v208
    %v259 = vpack.c.b16 %v211, %v210
    %v260 = vpack.c.b16 %v213, %v212
    %v261 = vpack.c.b16 %v215, %v214
    %v262 = vpack.c.b16 %v217, %v216
    %v263 = vpack.c.b16 %v219, %v218
    %v264 = vpack.c.b16 %v221, %v220
    %v265 = vpack.c.b16 %v223, %v222
    %v266 = vpack.c.b16 %v225, %v224
    %v267 = vpack.c.b16 %v227, %v226
    %v268 = vpack.c.b16 %v229, %v228
    %v269 = vpack.c.b16 %v231, %v230
    %v270 = vpack.c.b16 %v233, %v232
    %v271 = vpack.c.b16 %v235, %v234
    %v272 = vpack.c.b16 %v237, %v236
    %v273 = vpack.c.b16 %v239, %v238
    %v274 = vpack.c.b16 %v241, %v240
    %v275 = vpack.c.b16 %v243, %v242
    %308 = vmatprep.subr.bf16.mxu0 0
    %309 = vmatpush1.bf16.msra.mxu0 %v244
    %310 = vmatprep.subr.bf16.mxu0 0
    %311 = vmatpush1.bf16.msra.mxu0 %v245
    %312 = vmatprep.subr.bf16.mxu0 0
    %313 = vmatpush1.bf16.msra.mxu0 %v246
    %314 = vmatprep.subr.bf16.mxu0 0
    %315 = vmatpush1.bf16.msra.mxu0 %v247
    %316 = vmatprep.subr.bf16.mxu0 0
    %317 = vmatpush1.bf16.msra.mxu0 %v248
    %318 = vmatprep.subr.bf16.mxu0 0
    %319 = vmatpush1.bf16.msra.mxu0 %v249
    %320 = vmatprep.subr.bf16.mxu0 0
    %321 = vmatpush1.bf16.msra.mxu0 %v250
    %322 = vmatprep.subr.bf16.mxu0 0
    %323 = vmatpush1.bf16.msra.mxu0 %v251
    %324 = vmatprep.subr.bf16.mxu0 0
    %325 = vmatpush1.bf16.msra.mxu0 %v252
    %326 = vmatprep.subr.bf16.mxu0 0
    %327 = vmatpush1.bf16.msra.mxu0 %v253
    %328 = vmatprep.subr.bf16.mxu0 0
    %329 = vmatpush1.bf16.msra.mxu0 %v254
    %330 = vmatprep.subr.bf16.mxu0 0
    %331 = vmatpush1.bf16.msra.mxu0 %v255
    %332 = vmatprep.subr.bf16.mxu0 0
    %333 = vmatpush1.bf16.msra.mxu0 %v256
    %334 = vmatprep.subr.bf16.mxu0 0
    %335 = vmatpush1.bf16.msra.mxu0 %v257
    %336 = vmatprep.subr.bf16.mxu0 0
    %337 = vmatpush1.bf16.msra.mxu0 %v258
    %338 = vmatprep.subr.bf16.mxu0 0
    %339 = vmatpush1.bf16.msra.mxu0 %v259
    %340 = vmatprep.mubr.bf16.mxu0 %v109
    %341 = vmatmul.mubr.bf16.gmra.mrb[0].mxu0 %v102
    %v342 = vpop.f32.mrb[0].mxu0
    %v343 = vadd.f32 0.0, %v342
    %v344 = vpop.f32.mrb[0].mxu0
    %v345 = vpop.f32.mrb[0].mxu0
    %v346 = vpop.f32.mrb[0].mxu0
    %347 = vdwg.mxu0
    %348 = vmatprep.subr.bf16.mxu0 0
    %349 = vmatpush1.bf16.msra.mxu0 %v260
    %350 = vmatprep.subr.bf16.mxu0 0
    %351 = vmatpush1.bf16.msra.mxu0 %v261
    %352 = vmatprep.subr.bf16.mxu0 0
    %353 = vmatpush1.bf16.msra.mxu0 %v262
    %354 = vmatprep.subr.bf16.mxu0 0
    %355 = vmatpush1.bf16.msra.mxu0 %v263
    %356 = vmatprep.subr.bf16.mxu0 0
    %357 = vmatpush1.bf16.msra.mxu0 %v264
    %358 = vmatprep.subr.bf16.mxu0 0
    %359 = vmatpush1.bf16.msra.mxu0 %v265
    %360 = vmatprep.subr.bf16.mxu0 0
    %361 = vmatpush1.bf16.msra.mxu0 %v266
    %362 = vmatprep.subr.bf16.mxu0 0
    %363 = vmatpush1.bf16.msra.mxu0 %v267
    %364 = vmatprep.subr.bf16.mxu0 0
    %365 = vmatpush1.bf16.msra.mxu0 %v268
    %366 = vmatprep.subr.bf16.mxu0 0
    %367 = vmatpush1.bf16.msra.mxu0 %v269
    %368 = vmatprep.subr.bf16.mxu0 0
    %369 = vmatpush1.bf16.msra.mxu0 %v270
    %370 = vmatprep.subr.bf16.mxu0 0
    %371 = vmatpush1.bf16.msra.mxu0 %v271
    %372 = vmatprep.subr.bf16.mxu0 0
    %373 = vmatpush1.bf16.msra.mxu0 %v272
    %374 = vmatprep.subr.bf16.mxu0 0
    %375 = vmatpush1.bf16.msra.mxu0 %v273
    %376 = vmatprep.subr.bf16.mxu0 0
    %377 = vmatpush1.bf16.msra.mxu0 %v274
    %378 = vmatprep.subr.bf16.mxu0 0
    %379 = vmatpush1.bf16.msra.mxu0 %v275
    %380 = vmatprep.mubr.bf16.mxu0 %v111
    %381 = vmatmul.mubr.bf16.gmra.mrb[0].mxu0 %v110
    %v382 = vpop.f32.mrb[0].mxu0
    %v383 = vadd.f32 %v343, %v382
    %v384 = vpop.f32.mrb[0].mxu0
    %v385 = vpop.f32.mrb[0].mxu0
    %v386 = vpop.f32.mrb[0].mxu0
    %387 = vdwg.mxu0
    %v388 = vadd.f32 %v21, %v383
    %389 = vst [vmem:[#allocation2] sm:$0x3] %v388
    // Predicated region
    $region18: #{qnet_forward.9} parent=1 // pred_check
      %p390 = pneg %p16
    $region19: #{qnet_forward.9} parent=1 // pred_check_branch
      %392 = sbr.rel (%p390) target = $region21
    $region20: #{qnet_forward.9} parent=1 // pred_region
      %v393 = vld [vmem:[#allocation2] sm:$0x3]
      %v394 = vld [vmem:[%s2] sm:$0x1]
      %v396 = vlaneseq
      %v397 = vshrl.u32 %v396, 7
      %v398 = vsub.s32 0, %v397
      %v399 = vrot.slane %v394, %v398
      %v401 = vadd.f32 %v393, %v399
      %402 = vst [vmem:[#allocation3] sm:$0x3] %v401
    $region21: #{qnet_forward.9} parent=1 // pred_fallthru
      _
    // Predicated region
    $region22: #{qnet_forward.9} parent=1 // pred_check
      _
    $region23: #{qnet_forward.9} parent=1 // pred_check_branch
      %404 = sbr.rel (0) target = $region25
    $region24: #{qnet_forward.9} parent=1 // pred_region
      %s406 = ssub.s32 32, 32
      %407 = vsyncadd [#allocation4], %s406
      %s409 = sshll.u32 [#allocation3], 4
      %s410 = int_to_ptr.vmem [resolvable:$true] %s409
      %412 = dma.vmem_to_hbm [thread:$0]  %s410, 32, %s3, [#allocation4]
    $region25: #{qnet_forward.9} parent=1 // pred_fallthru
      _
    // Predicated region
    $region26: #{qnet_forward.9} parent=1 // pred_check
      _
    $region27: #{qnet_forward.9} parent=1 // pred_check_branch
      %414 = sbr.rel (0) target = $region29
    $region28: #{qnet_forward.9} parent=1 // pred_region
      %415 = dma.done [#allocation4], 32
    $region29: #{qnet_forward.9} parent=1 // pred_fallthru
      _
    %416 = vsyncpa [#allocation4], 1

// kernel: qnet_forward.8
$region0: #{qnet_forward.8}
  #allocation0 [shape = 'u32[]', space=smem, size = 0x4, offset = 0x4, fixed_abs, tag = 'smem constant byte address 0x4 - core index']
  #allocation1 [shape = 'u32[144,128]{1,0:T(1,128)}', space=vmem, size = 0x12000, scoped, tag = 'internal scratch']
  #allocation2 [shape = 'f32[2,256]{1,0:T(2,128)}', space=vmem, size = 0x800, scoped, tag = 'scratch operand']
  %s0 = inlined_call_operand.vmem [shape: bf16[2,3136], index: 0, kind: input, shape index: {}]
  %s1 = inlined_call_operand.vmem [shape: bf16[3136,512], index: 1, kind: input, shape index: {}]
  %s2 = inlined_call_operand.vmem [shape: f32[1,512], index: 2, kind: input, shape index: {}]
  %s3 = inlined_call_operand.vmem [shape: bf16[2,512], index: 3, kind: output, shape index: {}]
  %s4 = sld [smem:[#allocation0]]
  $region91: #{qnet_forward.8} parent=0
    _
  %s6 = ssub.s32 1, %s4
  %s7 = scalar_select 0, %s6, %s4
  $region1: #{qnet_forward.8} parent=0
    #allocation3 [shape = 'u8[3211264]{0}', space=vmem, size = 0x310000, scoped, tag = 'input window, operand 1']
    loop: start=0, step=1, limit=4
    $region2: #{qnet_forward.8} parent=1 // loop_pre_header
      _
    $region3: #{qnet_forward.8} parent=1 // loop_header
      %s9 = sphi 0, %s13
      %p10 = scmp.ge.s32.totalorder %s9, 4
      %s16 = sphi 0, %s35
      %s17 = sphi 0, %s31
      %s18 = sphi 0, %s27
      %s19 = sphi 0, %s16
      %s20 = sphi 0, %s17
      %s21 = sphi 0, %s18
      %s22 = sphi 0, %s19
      %s23 = sphi 0, %s20
      %s24 = sphi 0, %s21
      %s40 = sphi 0, %s42
      %s43 = sphi 0, %s40
      %s44 = sphi 0, %s43
      %s60 = sphi 0, %s44
      %s68 = sphi 0, %s70
      %s71 = sphi 0, %s68
      %s72 = sphi 0, %s71
      %s88 = sphi 0, %s72
      %s94 = sphi 0, %s96
      %s97 = sphi 0, %s94
      %s98 = sphi 0, %s97
      %s114 = sphi 0, %s98
      %s122 = sphi 0, %s124
      %s125 = sphi 0, %s122
      %s126 = sphi 0, %s125
      %s142 = sphi 0, %s126
    $region4: #{qnet_forward.8} parent=1 // loop_header_branch
      %12 = sbr.rel (%p10) target = $region8
    $region5: #{qnet_forward.8} parent=1 // loop_body
      %s14 = ssub.s32 %s9, 1
      %s15 = ssub.s32 %s9, 2
      %s25 = sadd.s32 1, %s18
      %p26 = scmp.ge.s32.totalorder %s25, 1
      %s27 = scalar_select %p26, 0, %s25
      %s28 = sadd.s32 1, %s17
      %s29 = scalar_select %p26, %s28, %s17
      %p30 = scmp.ge.s32.totalorder %s29, 2
      %s31 = scalar_select %p30, 0, %s29
      %s32 = sadd.s32 1, %s16
      %s33 = scalar_select %p30, %s32, %s16
      %p34 = scmp.ge.s32.totalorder %s33, 1
      %s35 = scalar_select %p34, 0, %s33
      %s36 = ssub.s32 %s16, %s35
      %s37 = ssub.s32 %s18, %s27
      %s38 = sor.u32 %s36, %s37
      %p39 = scmp.eq.s32.totalorder %s38, 0
      %s41 = sadd.s32 %s40, 1
      %s42 = scalar_select %p39, %s40, %s41
      %p45 = pneg %p39
      %p46 = scmp.eq.s32.totalorder %s9, 1
      %p47 = por %p45, %p46
      %p48 = scmp.ne.s32.totalorder %s40, %s43
      %p49 = scmp.eq.s32.totalorder %s9, 0
      %p50 = por %p48, %p49
      %p51 = scmp.ne.s32.totalorder %s40, %s43
      %p52 = scmp.eq.s32.totalorder %s14, 1
      %p53 = por %p51, %p52
      %p54 = scmp.ne.s32.totalorder %s43, %s44
      %p55 = scmp.eq.s32.totalorder %s14, 0
      %p56 = por %p54, %p55
      %p57 = scmp.ne.s32.totalorder %s43, %s44
      %p58 = scmp.eq.s32.totalorder %s15, 1
      %p59 = por %p57, %p58
      %p61 = scmp.ne.s32.totalorder %s44, %s60
      %p62 = scmp.eq.s32.totalorder %s15, 0
      %p63 = por %p61, %p62
      %s64 = ssub.s32 %s18, %s27
      %s65 = ssub.s32 %s17, %s31
      %s66 = sor.u32 %s64, %s65
      %p67 = scmp.eq.s32.totalorder %s66, 0
      %s69 = sadd.s32 %s68, 1
      %s70 = scalar_select %p67, %s68, %s69
      %p73 = pneg %p67
      %p74 = scmp.eq.s32.totalorder %s9, 1
      %p75 = por %p73, %p74
      %p76 = scmp.ne.s32.totalorder %s68, %s71
      %p77 = scmp.eq.s32.totalorder %s9, 0
      %p78 = por %p76, %p77
      %p79 = scmp.ne.s32.totalorder %s68, %s71
      %p80 = scmp.eq.s32.totalorder %s14, 1
      %p81 = por %p79, %p80
      %p82 = scmp.ne.s32.totalorder %s71, %s72
      %p83 = scmp.eq.s32.totalorder %s14, 0
      %p84 = por %p82, %p83
      %p85 = scmp.ne.s32.totalorder %s71, %s72
      %p86 = scmp.eq.s32.totalorder %s15, 1
      %p87 = por %p85, %p86
      %p89 = scmp.ne.s32.totalorder %s72, %s88
      %p90 = scmp.eq.s32.totalorder %s15, 0
      %p91 = por %p89, %p90
      %s92 = ssub.s32 %s17, %s31
      %p93 = scmp.eq.s32.totalorder %s92, 0
      %s95 = sadd.s32 %s94, 1
      %s96 = scalar_select %p93, %s94, %s95
      %p99 = pneg %p93
      %p100 = scmp.eq.s32.totalorder %s9, 1
      %p101 = por %p99, %p100
      %p102 = scmp.ne.s32.totalorder %s94, %s97
      %p103 = scmp.eq.s32.totalorder %s9, 0
      %p104 = por %p102, %p103
      %p105 = scmp.ne.s32.totalorder %s94, %s97
      %p106 = scmp.eq.s32.totalorder %s14, 1
      %p107 = por %p105, %p106
      %p108 = scmp.ne.s32.totalorder %s97, %s98
      %p109 = scmp.eq.s32.totalorder %s14, 0
      %p110 = por %p108, %p109
      %p111 = scmp.ne.s32.totalorder %s97, %s98
      %p112 = scmp.eq.s32.totalorder %s15, 1
      %p113 = por %p111, %p112
      %p115 = scmp.ne.s32.totalorder %s98, %s114
      %p116 = scmp.eq.s32.totalorder %s15, 0
      %p117 = por %p115, %p116
      %s118 = ssub.s32 %s16, %s35
      %s119 = ssub.s32 %s17, %s31
      %s120 = sor.u32 %s118, %s119
      %p121 = scmp.eq.s32.totalorder %s120, 0
      %s123 = sadd.s32 %s122, 1
      %s124 = scalar_select %p121, %s122, %s123
      %p127 = pneg %p121
      %p128 = scmp.eq.s32.totalorder %s9, 1
      %p129 = por %p127, %p128
      %p130 = scmp.ne.s32.totalorder %s122, %s125
      %p131 = scmp.eq.s32.totalorder %s9, 0
      %p132 = por %p130, %p131
      %p133 = scmp.ne.s32.totalorder %s122, %s125
      %p134 = scmp.eq.s32.totalorder %s14, 1
      %p135 = por %p133, %p134
      %p136 = scmp.ne.s32.totalorder %s125, %s126
      %p137 = scmp.eq.s32.totalorder %s14, 0
      %p138 = por %p136, %p137
      %p139 = scmp.ne.s32.totalorder %s125, %s126
      %p140 = scmp.eq.s32.totalorder %s15, 1
      %p141 = por %p139, %p140
      %p143 = scmp.ne.s32.totalorder %s126, %s142
      %p144 = scmp.eq.s32.totalorder %s15, 0
      %p145 = por %p143, %p144
      %p146 = scmp.le.s32.totalorder 1, %s9
      %p147 = scmp.lt.s32.totalorder %s9, 3
      %p148 = pnand %p146, %p147
      %p149 = pneg %p148
      // Predicated region
      $region9: #{qnet_forward.8} parent=5 // pred_check
        _
      $region10: #{qnet_forward.8} parent=5 // pred_check_branch
        %151 = sbr.rel (%p148) target = $region12
      $region11: #{qnet_forward.8} parent=5 // pred_region
        %s152 = ssub.s32 %s9, 1
        // Predicated region
        $region13: #{qnet_forward.8} parent=11 // pred_check
          %p153 = pneg %p56
        $region14: #{qnet_forward.8} parent=11 // pred_check_branch
          %155 = sbr.rel (%p153) target = $region16
        $region15: #{qnet_forward.8} parent=11 // pred_region
          %s156 = smul.u32 25, %s21
          %p157 = scmp.lt.s32.totalorder %s19, 0
          %s158 = scalar_select %p157, %s19, 0
          %p159 = scmp.lt.s32.totalorder %s156, 24
          %s160 = scalar_select %p159, %s156, 24
          %s161 = smul.addr %s158, 25
          %s162 = sadd.s32 %s160, %s161
          %s163 = scalar_lea.vmem %s0, %s162
          %s164 = smul.u32 25, %s21
        $region16: #{qnet_forward.8} parent=11 // pred_fallthru
          _
      $region12: #{qnet_forward.8} parent=5 // pred_fallthru
        _
      %p165 = scmp.lt.s32.totalorder %s9, 2
      // Predicated region
      $region17: #{qnet_forward.8} parent=5 // pred_check
        %p166 = pneg %p165
      $region18: #{qnet_forward.8} parent=5 // pred_check_branch
        %168 = sbr.rel (%p166) target = $region20
      $region19: #{qnet_forward.8} parent=5 // pred_region
        // Predicated region
        $region21: #{qnet_forward.8} parent=19 // pred_check
          %p169 = pneg %p78
        $region22: #{qnet_forward.8} parent=19 // pred_check_branch
          %171 = sbr.rel (%p169) target = $region24
        $region23: #{qnet_forward.8} parent=19 // pred_region
          %s172 = sand.u32 %s68, 1
          %s173 = sand.u32 %s68, 1
          %s174 = smul.addr %s173, 3136
          %s175 = scalar_lea.vmem [#allocation3], %s174
          %s176 = smul.u32 392, %s18
          %s177 = smul.u32 2, %s17
          %s178 = smul.addr %s176, 4
          %s179 = sadd.s32 %s177, %s178
          %s180 = smul.addr %s179, 4
          %s181 = scalar_lea.vmem %s1, %s180
          // Predicated region
          $region25: #{qnet_forward.8} parent=23 // pred_check
            _
          $region26: #{qnet_forward.8} parent=23 // pred_check_branch
            %183 = sbr.rel (0) target = $region28
          $region27: #{qnet_forward.8} parent=23 // pred_region
            // Predicated region
            $region29: #{qnet_forward.8} parent=27 // pred_check
              _
            $region30: #{qnet_forward.8} parent=27 // pred_check_branch
              %185 = sbr.rel (0) target = $region32
            $region31: #{qnet_forward.8} parent=27 // pred_region
              // Predicated region
              $region44: #{qnet_forward.8} parent=31 // pred_check
                _
              $region45: #{qnet_forward.8} parent=31 // pred_check_branch
                %982 = sbr.rel (0) target = $region47
              $region46: #{qnet_forward.8} parent=31 // pred_region
                loop: start=0, step=1, limit=1
                $region48: #{qnet_forward.8} parent=46 // loop_pre_header
                  _
                $region49: #{qnet_forward.8} parent=46 // loop_header
                  %s984 = sphi 0, %s988
                  %p985 = scmp.ge.s32.totalorder %s984, 1
                  %s989 = sphi %s181, %s181
                  %s990 = sphi %s175, %s175
                $region50: #{qnet_forward.8} parent=46 // loop_header_branch
                  %987 = sbr.rel (%p985) target = $region54
                $region51: #{qnet_forward.8} parent=46 // loop_body
                  %v991 = vld [vmem:[%s989] sm:$0xff]
                  %992 = vst [vmem:[%s990] sm:$0xff] %v991
                  %v993 = vld [vmem:[%s989 + $0x10] sm:$0xff]
                  %994 = vst [vmem:[%s990 + $0x8] sm:$0xff] %v993
                  %v995 = vld [vmem:[%s989 + $0x20] sm:$0xff]
                  %996 = vst [vmem:[%s990 + $0x10] sm:$0xff] %v995
                  %v997 = vld [vmem:[%s989 + $0x30] sm:$0xff]
                  %998 = vst [vmem:[%s990 + $0x18] sm:$0xff] %v997
                  %v999 = vld [vmem:[%s989 + $0x40] sm:$0xff]
                  %1000 = vst [vmem:[%s990 + $0x20] sm:$0xff] %v999
                  %v1001 = vld [vmem:[%s989 + $0x50] sm:$0xff]
                  %1002 = vst [vmem:[%s990 + $0x28] sm:$0xff] %v1001
                  %v1003 = vld [vmem:[%s989 + $0x60] sm:$0xff]
                  %1004 = vst [vmem:[%s990 + $0x30] sm:$0xff] %v1003
                  %v1005 = vld [vmem:[%s989 + $0x70] sm:$0xff]
                  %1006 = vst [vmem:[%s990 + $0x38] sm:$0xff] %v1005
                  %v1007 = vld [vmem:[%s989 + $0x80] sm:$0xff]
                  %1008 = vst [vmem:[%s990 + $0x40] sm:$0xff] %v1007
                  %v1009 = vld [vmem:[%s989 + $0x90] sm:$0xff]
                  %1010 = vst [vmem:[%s990 + $0x48] sm:$0xff] %v1009
                  %v1011 = vld [vmem:[%s989 + $0xa0] sm:$0xff]
                  %1012 = vst [vmem:[%s990 + $0x50] sm:$0xff] %v1011
                  %v1013 = vld [vmem:[%s989 + $0xb0] sm:$0xff]
                  %1014 = vst [vmem:[%s990 + $0x58] sm:$0xff] %v1013
                  %v1015 = vld [vmem:[%s989 + $0xc0] sm:$0xff]
                  %1016 = vst [vmem:[%s990 + $0x60] sm:$0xff] %v1015
                  %v1017 = vld [vmem:[%s989 + $0xd0] sm:$0xff]
                  %1018 = vst [vmem:[%s990 + $0x68] sm:$0xff] %v1017
                  %v1019 = vld [vmem:[%s989 + $0xe0] sm:$0xff]
                  %1020 = vst [vmem:[%s990 + $0x70] sm:$0xff] %v1019
                  %v1021 = vld [vmem:[%s989 + $0xf0] sm:$0xff]
                  %1022 = vst [vmem:[%s990 + $0x78] sm:$0xff] %v1021
                  %v1023 = vld [vmem:[%s989 + $0x100] sm:$0xff]
                  %1024 = vst [vmem:[%s990 + $0x80] sm:$0xff] %v1023
                  %v1025 = vld [vmem:[%s989 + $0x110] sm:$0xff]
                  %1026 = vst [vmem:[%s990 + $0x88] sm:$0xff] %v1025
                  %v1027 = vld [vmem:[%s989 + $0x120] sm:$0xff]
                  %1028 = vst [vmem:[%s990 + $0x90] sm:$0xff] %v1027
                  %v1029 = vld [vmem:[%s989 + $0x130] sm:$0xff]
                  %1030 = vst [vmem:[%s990 + $0x98] sm:$0xff] %v1029
                  %v1031 = vld [vmem:[%s989 + $0x140] sm:$0xff]
                  %1032 = vst [vmem:[%s990 + $0xa0] sm:$0xff] %v1031
                  %v1033 = vld [vmem:[%s989 + $0x150] sm:$0xff]
                  %1034 = vst [vmem:[%s990 + $0xa8] sm:$0xff] %v1033
                  %v1035 = vld [vmem:[%s989 + $0x160] sm:$0xff]
                  %1036 = vst [vmem:[%s990 + $0xb0] sm:$0xff] %v1035
                  %v1037 = vld [vmem:[%s989 + $0x170] sm:$0xff]
                  %1038 = vst [vmem:[%s990 + $0xb8] sm:$0xff] %v1037
                  %v1039 = vld [vmem:[%s989 + $0x180] sm:$0xff]
                  %1040 = vst [vmem:[%s990 + $0xc0] sm:$0xff] %v1039
                  %v1041 = vld [vmem:[%s989 + $0x190] sm:$0xff]
                  %1042 = vst [vmem:[%s990 + $0xc8] sm:$0xff] %v1041
                  %v1043 = vld [vmem:[%s989 + $0x1a0] sm:$0xff]
                  %1044 = vst [vmem:[%s990 + $0xd0] sm:$0xff] %v1043
                  %v1045 = vld [vmem:[%s989 + $0x1b0] sm:$0xff]
                  %1046 = vst [vmem:[%s990 + $0xd8] sm:$0xff] %v1045
                  %v1047 = vld [vmem:[%s989 + $0x1c0] sm:$0xff]
                  %1048 = vst [vmem:[%s990 + $0xe0] sm:$0xff] %v1047
                  %v1049 = vld [vmem:[%s989 + $0x1d0] sm:$0xff]
                  %1050 = vst [vmem:[%s990 + $0xe8] sm:$0xff] %v1049
                  %v1051 = vld [vmem:[%s989 + $0x1e0] sm:$0xff]
                  %1052 = vst [vmem:[%s990 + $0xf0] sm:$0xff] %v1051
                  %v1053 = vld [vmem:[%s989 + $0x1f0] sm:$0xff]
                  %1054 = vst [vmem:[%s990 + $0xf8] sm:$0xff] %v1053
                  %v1055 = vld [vmem:[%s989 + $0x200] sm:$0xff]
                  %1056 = vst [vmem:[%s990 + $0x100] sm:$0xff] %v1055
                  %v1057 = vld [vmem:[%s989 + $0x210] sm:$0xff]
                  %1058 = vst [vmem:[%s990 + $0x108] sm:$0xff] %v1057
                  %v1059 = vld [vmem:[%s989 + $0x220] sm:$0xff]
                  %1060 = vst [vmem:[%s990 + $0x110] sm:$0xff] %v1059
                  %v1061 = vld [vmem:[%s989 + $0x230] sm:$0xff]
                  %1062 = vst [vmem:[%s990 + $0x118] sm:$0xff] %v1061
                  %v1063 = vld [vmem:[%s989 + $0x240] sm:$0xff]
                  %1064 = vst [vmem:[%s990 + $0x120] sm:$0xff] %v1063
                  %v1065 = vld [vmem:[%s989 + $0x250] sm:$0xff]
                  %1066 = vst [vmem:[%s990 + $0x128] sm:$0xff] %v1065
                  %v1067 = vld [vmem:[%s989 + $0x260] sm:$0xff]
                  %1068 = vst [vmem:[%s990 + $0x130] sm:$0xff] %v1067
                  %v1069 = vld [vmem:[%s989 + $0x270] sm:$0xff]
                  %1070 = vst [vmem:[%s990 + $0x138] sm:$0xff] %v1069
                  %v1071 = vld [vmem:[%s989 + $0x280] sm:$0xff]
                  %1072 = vst [vmem:[%s990 + $0x140] sm:$0xff] %v1071
                  %v1073 = vld [vmem:[%s989 + $0x290] sm:$0xff]
                  %1074 = vst [vmem:[%s990 + $0x148] sm:$0xff] %v1073
                  %v1075 = vld [vmem:[%s989 + $0x2a0] sm:$0xff]
                  %1076 = vst [vmem:[%s990 + $0x150] sm:$0xff] %v1075
                  %v1077 = vld [vmem:[%s989 + $0x2b0] sm:$0xff]
                  %1078 = vst [vmem:[%s990 + $0x158] sm:$0xff] %v1077
                  %v1079 = vld [vmem:[%s989 + $0x2c0] sm:$0xff]
                  %1080 = vst [vmem:[%s990 + $0x160] sm:$0xff] %v1079
                  %v1081 = vld [vmem:[%s989 + $0x2d0] sm:$0xff]
                  %1082 = vst [vmem:[%s990 + $0x168] sm:$0xff] %v1081
                  %v1083 = vld [vmem:[%s989 + $0x2e0] sm:$0xff]
                  %1084 = vst [vmem:[%s990 + $0x170] sm:$0xff] %v1083
                  %v1085 = vld [vmem:[%s989 + $0x2f0] sm:$0xff]
                  %1086 = vst [vmem:[%s990 + $0x178] sm:$0xff] %v1085
                  %v1087 = vld [vmem:[%s989 + $0x300] sm:$0xff]
                  %1088 = vst [vmem:[%s990 + $0x180] sm:$0xff] %v1087
                  %v1089 = vld [vmem:[%s989 + $0x310] sm:$0xff]
                  %1090 = vst [vmem:[%s990 + $0x188] sm:$0xff] %v1089
                  %v1091 = vld [vmem:[%s989 + $0x320] sm:$0xff]
                  %1092 = vst [vmem:[%s990 + $0x190] sm:$0xff] %v1091
                  %v1093 = vld [vmem:[%s989 + $0x330] sm:$0xff]
                  %1094 = vst [vmem:[%s990 + $0x198] sm:$0xff] %v1093
                  %v1095 = vld [vmem:[%s989 + $0x340] sm:$0xff]
                  %1096 = vst [vmem:[%s990 + $0x1a0] sm:$0xff] %v1095
                  %v1097 = vld [vmem:[%s989 + $0x350] sm:$0xff]
                  %1098 = vst [vmem:[%s990 + $0x1a8] sm:$0xff] %v1097
                  %v1099 = vld [vmem:[%s989 + $0x360] sm:$0xff]
                  %1100 = vst [vmem:[%s990 + $0x1b0] sm:$0xff] %v1099
                  %v1101 = vld [vmem:[%s989 + $0x370] sm:$0xff]
                  %1102 = vst [vmem:[%s990 + $0x1b8] sm:$0xff] %v1101
                  %v1103 = vld [vmem:[%s989 + $0x380] sm:$0xff]
                  %1104 = vst [vmem:[%s990 + $0x1c0] sm:$0xff] %v1103
                  %v1105 = vld [vmem:[%s989 + $0x390] sm:$0xff]
                  %1106 = vst [vmem:[%s990 + $0x1c8] sm:$0xff] %v1105
                  %v1107 = vld [vmem:[%s989 + $0x3a0] sm:$0xff]
                  %1108 = vst [vmem:[%s990 + $0x1d0] sm:$0xff] %v1107
                  %v1109 = vld [vmem:[%s989 + $0x3b0] sm:$0xff]
                  %1110 = vst [vmem:[%s990 + $0x1d8] sm:$0xff] %v1109
                  %v1111 = vld [vmem:[%s989 + $0x3c0] sm:$0xff]
                  %1112 = vst [vmem:[%s990 + $0x1e0] sm:$0xff] %v1111
                  %v1113 = vld [vmem:[%s989 + $0x3d0] sm:$0xff]
                  %1114 = vst [vmem:[%s990 + $0x1e8] sm:$0xff] %v1113
                  %v1115 = vld [vmem:[%s989 + $0x3e0] sm:$0xff]
                  %1116 = vst [vmem:[%s990 + $0x1f0] sm:$0xff] %v1115
                  %v1117 = vld [vmem:[%s989 + $0x3f0] sm:$0xff]
                  %1118 = vst [vmem:[%s990 + $0x1f8] sm:$0xff] %v1117
                  %v1119 = vld [vmem:[%s989 + $0x400] sm:$0xff]
                  %1120 = vst [vmem:[%s990 + $0x200] sm:$0xff] %v1119
                  %v1121 = vld [vmem:[%s989 + $0x410] sm:$0xff]
                  %1122 = vst [vmem:[%s990 + $0x208] sm:$0xff] %v1121
                  %v1123 = vld [vmem:[%s989 + $0x420] sm:$0xff]
                  %1124 = vst [vmem:[%s990 + $0x210] sm:$0xff] %v1123
                  %v1125 = vld [vmem:[%s989 + $0x430] sm:$0xff]
                  %1126 = vst [vmem:[%s990 + $0x218] sm:$0xff] %v1125
                  %v1127 = vld [vmem:[%s989 + $0x440] sm:$0xff]
                  %1128 = vst [vmem:[%s990 + $0x220] sm:$0xff] %v1127
                  %v1129 = vld [vmem:[%s989 + $0x450] sm:$0xff]
                  %1130 = vst [vmem:[%s990 + $0x228] sm:$0xff] %v1129
                  %v1131 = vld [vmem:[%s989 + $0x460] sm:$0xff]
                  %1132 = vst [vmem:[%s990 + $0x230] sm:$0xff] %v1131
                  %v1133 = vld [vmem:[%s989 + $0x470] sm:$0xff]
                  %1134 = vst [vmem:[%s990 + $0x238] sm:$0xff] %v1133
                  %v1135 = vld [vmem:[%s989 + $0x480] sm:$0xff]
                  %1136 = vst [vmem:[%s990 + $0x240] sm:$0xff] %v1135
                  %v1137 = vld [vmem:[%s989 + $0x490] sm:$0xff]
                  %1138 = vst [vmem:[%s990 + $0x248] sm:$0xff] %v1137
                  %v1139 = vld [vmem:[%s989 + $0x4a0] sm:$0xff]
                  %1140 = vst [vmem:[%s990 + $0x250] sm:$0xff] %v1139
                  %v1141 = vld [vmem:[%s989 + $0x4b0] sm:$0xff]
                  %1142 = vst [vmem:[%s990 + $0x258] sm:$0xff] %v1141
                  %v1143 = vld [vmem:[%s989 + $0x4c0] sm:$0xff]
                  %1144 = vst [vmem:[%s990 + $0x260] sm:$0xff] %v1143
                  %v1145 = vld [vmem:[%s989 + $0x4d0] sm:$0xff]
                  %1146 = vst [vmem:[%s990 + $0x268] sm:$0xff] %v1145
                  %v1147 = vld [vmem:[%s989 + $0x4e0] sm:$0xff]
                  %1148 = vst [vmem:[%s990 + $0x270] sm:$0xff] %v1147
                  %v1149 = vld [vmem:[%s989 + $0x4f0] sm:$0xff]
                  %1150 = vst [vmem:[%s990 + $0x278] sm:$0xff] %v1149
                  %v1151 = vld [vmem:[%s989 + $0x500] sm:$0xff]
                  %1152 = vst [vmem:[%s990 + $0x280] sm:$0xff] %v1151
                  %v1153 = vld [vmem:[%s989 + $0x510] sm:$0xff]
                  %1154 = vst [vmem:[%s990 + $0x288] sm:$0xff] %v1153
                  %v1155 = vld [vmem:[%s989 + $0x520] sm:$0xff]
                  %1156 = vst [vmem:[%s990 + $0x290] sm:$0xff] %v1155
                  %v1157 = vld [vmem:[%s989 + $0x530] sm:$0xff]
                  %1158 = vst [vmem:[%s990 + $0x298] sm:$0xff] %v1157
                  %v1159 = vld [vmem:[%s989 + $0x540] sm:$0xff]
                  %1160 = vst [vmem:[%s990 + $0x2a0] sm:$0xff] %v1159
                  %v1161 = vld [vmem:[%s989 + $0x550] sm:$0xff]
                  %1162 = vst [vmem:[%s990 + $0x2a8] sm:$0xff] %v1161
                  %v1163 = vld [vmem:[%s989 + $0x560] sm:$0xff]
                  %1164 = vst [vmem:[%s990 + $0x2b0] sm:$0xff] %v1163
                  %v1165 = vld [vmem:[%s989 + $0x570] sm:$0xff]
                  %1166 = vst [vmem:[%s990 + $0x2b8] sm:$0xff] %v1165
                  %v1167 = vld [vmem:[%s989 + $0x580] sm:$0xff]
                  %1168 = vst [vmem:[%s990 + $0x2c0] sm:$0xff] %v1167
                  %v1169 = vld [vmem:[%s989 + $0x590] sm:$0xff]
                  %1170 = vst [vmem:[%s990 + $0x2c8] sm:$0xff] %v1169
                  %v1171 = vld [vmem:[%s989 + $0x5a0] sm:$0xff]
                  %1172 = vst [vmem:[%s990 + $0x2d0] sm:$0xff] %v1171
                  %v1173 = vld [vmem:[%s989 + $0x5b0] sm:$0xff]
                  %1174 = vst [vmem:[%s990 + $0x2d8] sm:$0xff] %v1173
                  %v1175 = vld [vmem:[%s989 + $0x5c0] sm:$0xff]
                  %1176 = vst [vmem:[%s990 + $0x2e0] sm:$0xff] %v1175
                  %v1177 = vld [vmem:[%s989 + $0x5d0] sm:$0xff]
                  %1178 = vst [vmem:[%s990 + $0x2e8] sm:$0xff] %v1177
                  %v1179 = vld [vmem:[%s989 + $0x5e0] sm:$0xff]
                  %1180 = vst [vmem:[%s990 + $0x2f0] sm:$0xff] %v1179
                  %v1181 = vld [vmem:[%s989 + $0x5f0] sm:$0xff]
                  %1182 = vst [vmem:[%s990 + $0x2f8] sm:$0xff] %v1181
                  %v1183 = vld [vmem:[%s989 + $0x600] sm:$0xff]
                  %1184 = vst [vmem:[%s990 + $0x300] sm:$0xff] %v1183
                  %v1185 = vld [vmem:[%s989 + $0x610] sm:$0xff]
                  %1186 = vst [vmem:[%s990 + $0x308] sm:$0xff] %v1185
                  %v1187 = vld [vmem:[%s989 + $0x620] sm:$0xff]
                  %1188 = vst [vmem:[%s990 + $0x310] sm:$0xff] %v1187
                  %v1189 = vld [vmem:[%s989 + $0x630] sm:$0xff]
                  %1190 = vst [vmem:[%s990 + $0x318] sm:$0xff] %v1189
                  %v1191 = vld [vmem:[%s989 + $0x640] sm:$0xff]
                  %1192 = vst [vmem:[%s990 + $0x320] sm:$0xff] %v1191
                  %v1193 = vld [vmem:[%s989 + $0x650] sm:$0xff]
                  %1194 = vst [vmem:[%s990 + $0x328] sm:$0xff] %v1193
                  %v1195 = vld [vmem:[%s989 + $0x660] sm:$0xff]
                  %1196 = vst [vmem:[%s990 + $0x330] sm:$0xff] %v1195
                  %v1197 = vld [vmem:[%s989 + $0x670] sm:$0xff]
                  %1198 = vst [vmem:[%s990 + $0x338] sm:$0xff] %v1197
                  %v1199 = vld [vmem:[%s989 + $0x680] sm:$0xff]
                  %1200 = vst [vmem:[%s990 + $0x340] sm:$0xff] %v1199
                  %v1201 = vld [vmem:[%s989 + $0x690] sm:$0xff]
                  %1202 = vst [vmem:[%s990 + $0x348] sm:$0xff] %v1201
                  %v1203 = vld [vmem:[%s989 + $0x6a0] sm:$0xff]
                  %1204 = vst [vmem:[%s990 + $0x350] sm:$0xff] %v1203
                  %v1205 = vld [vmem:[%s989 + $0x6b0] sm:$0xff]
                  %1206 = vst [vmem:[%s990 + $0x358] sm:$0xff] %v1205
                  %v1207 = vld [vmem:[%s989 + $0x6c0] sm:$0xff]
                  %1208 = vst [vmem:[%s990 + $0x360] sm:$0xff] %v1207
                  %v1209 = vld [vmem:[%s989 + $0x6d0] sm:$0xff]
                  %1210 = vst [vmem:[%s990 + $0x368] sm:$0xff] %v1209
                  %v1211 = vld [vmem:[%s989 + $0x6e0] sm:$0xff]
                  %1212 = vst [vmem:[%s990 + $0x370] sm:$0xff] %v1211
                  %v1213 = vld [vmem:[%s989 + $0x6f0] sm:$0xff]
                  %1214 = vst [vmem:[%s990 + $0x378] sm:$0xff] %v1213
                  %v1215 = vld [vmem:[%s989 + $0x700] sm:$0xff]
                  %1216 = vst [vmem:[%s990 + $0x380] sm:$0xff] %v1215
                  %v1217 = vld [vmem:[%s989 + $0x710] sm:$0xff]
                  %1218 = vst [vmem:[%s990 + $0x388] sm:$0xff] %v1217
                  %v1219 = vld [vmem:[%s989 + $0x720] sm:$0xff]
                  %1220 = vst [vmem:[%s990 + $0x390] sm:$0xff] %v1219
                  %v1221 = vld [vmem:[%s989 + $0x730] sm:$0xff]
                  %1222 = vst [vmem:[%s990 + $0x398] sm:$0xff] %v1221
                  %v1223 = vld [vmem:[%s989 + $0x740] sm:$0xff]
                  %1224 = vst [vmem:[%s990 + $0x3a0] sm:$0xff] %v1223
                  %v1225 = vld [vmem:[%s989 + $0x750] sm:$0xff]
                  %1226 = vst [vmem:[%s990 + $0x3a8] sm:$0xff] %v1225
                  %v1227 = vld [vmem:[%s989 + $0x760] sm:$0xff]
                  %1228 = vst [vmem:[%s990 + $0x3b0] sm:$0xff] %v1227
                  %v1229 = vld [vmem:[%s989 + $0x770] sm:$0xff]
                  %1230 = vst [vmem:[%s990 + $0x3b8] sm:$0xff] %v1229
                  %v1231 = vld [vmem:[%s989 + $0x780] sm:$0xff]
                  %1232 = vst [vmem:[%s990 + $0x3c0] sm:$0xff] %v1231
                  %v1233 = vld [vmem:[%s989 + $0x790] sm:$0xff]
                  %1234 = vst [vmem:[%s990 + $0x3c8] sm:$0xff] %v1233
                  %v1235 = vld [vmem:[%s989 + $0x7a0] sm:$0xff]
                  %1236 = vst [vmem:[%s990 + $0x3d0] sm:$0xff] %v1235
                  %v1237 = vld [vmem:[%s989 + $0x7b0] sm:$0xff]
                  %1238 = vst [vmem:[%s990 + $0x3d8] sm:$0xff] %v1237
                  %v1239 = vld [vmem:[%s989 + $0x7c0] sm:$0xff]
                  %1240 = vst [vmem:[%s990 + $0x3e0] sm:$0xff] %v1239
                  %v1241 = vld [vmem:[%s989 + $0x7d0] sm:$0xff]
                  %1242 = vst [vmem:[%s990 + $0x3e8] sm:$0xff] %v1241
                  %v1243 = vld [vmem:[%s989 + $0x7e0] sm:$0xff]
                  %1244 = vst [vmem:[%s990 + $0x3f0] sm:$0xff] %v1243
                  %v1245 = vld [vmem:[%s989 + $0x7f0] sm:$0xff]
                  %1246 = vst [vmem:[%s990 + $0x3f8] sm:$0xff] %v1245
                  %v1247 = vld [vmem:[%s989 + $0x800] sm:$0xff]
                  %1248 = vst [vmem:[%s990 + $0x400] sm:$0xff] %v1247
                  %v1249 = vld [vmem:[%s989 + $0x810] sm:$0xff]
                  %1250 = vst [vmem:[%s990 + $0x408] sm:$0xff] %v1249
                  %v1251 = vld [vmem:[%s989 + $0x820] sm:$0xff]
                  %1252 = vst [vmem:[%s990 + $0x410] sm:$0xff] %v1251
                  %v1253 = vld [vmem:[%s989 + $0x830] sm:$0xff]
                  %1254 = vst [vmem:[%s990 + $0x418] sm:$0xff] %v1253
                  %v1255 = vld [vmem:[%s989 + $0x840] sm:$0xff]
                  %1256 = vst [vmem:[%s990 + $0x420] sm:$0xff] %v1255
                  %v1257 = vld [vmem:[%s989 + $0x850] sm:$0xff]
                  %1258 = vst [vmem:[%s990 + $0x428] sm:$0xff] %v1257
                  %v1259 = vld [vmem:[%s989 + $0x860] sm:$0xff]
                  %1260 = vst [vmem:[%s990 + $0x430] sm:$0xff] %v1259
                  %v1261 = vld [vmem:[%s989 + $0x870] sm:$0xff]
                  %1262 = vst [vmem:[%s990 + $0x438] sm:$0xff] %v1261
                  %v1263 = vld [vmem:[%s989 + $0x880] sm:$0xff]
                  %1264 = vst [vmem:[%s990 + $0x440] sm:$0xff] %v1263
                  %v1265 = vld [vmem:[%s989 + $0x890] sm:$0xff]
                  %1266 = vst [vmem:[%s990 + $0x448] sm:$0xff] %v1265
                  %v1267 = vld [vmem:[%s989 + $0x8a0] sm:$0xff]
                  %1268 = vst [vmem:[%s990 + $0x450] sm:$0xff] %v1267
                  %v1269 = vld [vmem:[%s989 + $0x8b0] sm:$0xff]
                  %1270 = vst [vmem:[%s990 + $0x458] sm:$0xff] %v1269
                  %v1271 = vld [vmem:[%s989 + $0x8c0] sm:$0xff]
                  %1272 = vst [vmem:[%s990 + $0x460] sm:$0xff] %v1271
                  %v1273 = vld [vmem:[%s989 + $0x8d0] sm:$0xff]
                  %1274 = vst [vmem:[%s990 + $0x468] sm:$0xff] %v1273
                  %v1275 = vld [vmem:[%s989 + $0x8e0] sm:$0xff]
                  %1276 = vst [vmem:[%s990 + $0x470] sm:$0xff] %v1275
                  %v1277 = vld [vmem:[%s989 + $0x8f0] sm:$0xff]
                  %1278 = vst [vmem:[%s990 + $0x478] sm:$0xff] %v1277
                  %v1279 = vld [vmem:[%s989 + $0x900] sm:$0xff]
                  %1280 = vst [vmem:[%s990 + $0x480] sm:$0xff] %v1279
                  %v1281 = vld [vmem:[%s989 + $0x910] sm:$0xff]
                  %1282 = vst [vmem:[%s990 + $0x488] sm:$0xff] %v1281
                  %v1283 = vld [vmem:[%s989 + $0x920] sm:$0xff]
                  %1284 = vst [vmem:[%s990 + $0x490] sm:$0xff] %v1283
                  %v1285 = vld [vmem:[%s989 + $0x930] sm:$0xff]
                  %1286 = vst [vmem:[%s990 + $0x498] sm:$0xff] %v1285
                  %v1287 = vld [vmem:[%s989 + $0x940] sm:$0xff]
                  %1288 = vst [vmem:[%s990 + $0x4a0] sm:$0xff] %v1287
                  %v1289 = vld [vmem:[%s989 + $0x950] sm:$0xff]
                  %1290 = vst [vmem:[%s990 + $0x4a8] sm:$0xff] %v1289
                  %v1291 = vld [vmem:[%s989 + $0x960] sm:$0xff]
                  %1292 = vst [vmem:[%s990 + $0x4b0] sm:$0xff] %v1291
                  %v1293 = vld [vmem:[%s989 + $0x970] sm:$0xff]
                  %1294 = vst [vmem:[%s990 + $0x4b8] sm:$0xff] %v1293
                  %v1295 = vld [vmem:[%s989 + $0x980] sm:$0xff]
                  %1296 = vst [vmem:[%s990 + $0x4c0] sm:$0xff] %v1295
                  %v1297 = vld [vmem:[%s989 + $0x990] sm:$0xff]
                  %1298 = vst [vmem:[%s990 + $0x4c8] sm:$0xff] %v1297
                  %v1299 = vld [vmem:[%s989 + $0x9a0] sm:$0xff]
                  %1300 = vst [vmem:[%s990 + $0x4d0] sm:$0xff] %v1299
                  %v1301 = vld [vmem:[%s989 + $0x9b0] sm:$0xff]
                  %1302 = vst [vmem:[%s990 + $0x4d8] sm:$0xff] %v1301
                  %v1303 = vld [vmem:[%s989 + $0x9c0] sm:$0xff]
                  %1304 = vst [vmem:[%s990 + $0x4e0] sm:$0xff] %v1303
                  %v1305 = vld [vmem:[%s989 + $0x9d0] sm:$0xff]
                  %1306 = vst [vmem:[%s990 + $0x4e8] sm:$0xff] %v1305
                  %v1307 = vld [vmem:[%s989 + $0x9e0] sm:$0xff]
                  %1308 = vst [vmem:[%s990 + $0x4f0] sm:$0xff] %v1307
                  %v1309 = vld [vmem:[%s989 + $0x9f0] sm:$0xff]
                  %1310 = vst [vmem:[%s990 + $0x4f8] sm:$0xff] %v1309
                  %v1311 = vld [vmem:[%s989 + $0xa00] sm:$0xff]
                  %1312 = vst [vmem:[%s990 + $0x500] sm:$0xff] %v1311
                  %v1313 = vld [vmem:[%s989 + $0xa10] sm:$0xff]
                  %1314 = vst [vmem:[%s990 + $0x508] sm:$0xff] %v1313
                  %v1315 = vld [vmem:[%s989 + $0xa20] sm:$0xff]
                  %1316 = vst [vmem:[%s990 + $0x510] sm:$0xff] %v1315
                  %v1317 = vld [vmem:[%s989 + $0xa30] sm:$0xff]
                  %1318 = vst [vmem:[%s990 + $0x518] sm:$0xff] %v1317
                  %v1319 = vld [vmem:[%s989 + $0xa40] sm:$0xff]
                  %1320 = vst [vmem:[%s990 + $0x520] sm:$0xff] %v1319
                  %v1321 = vld [vmem:[%s989 + $0xa50] sm:$0xff]
                  %1322 = vst [vmem:[%s990 + $0x528] sm:$0xff] %v1321
                  %v1323 = vld [vmem:[%s989 + $0xa60] sm:$0xff]
                  %1324 = vst [vmem:[%s990 + $0x530] sm:$0xff] %v1323
                  %v1325 = vld [vmem:[%s989 + $0xa70] sm:$0xff]
                  %1326 = vst [vmem:[%s990 + $0x538] sm:$0xff] %v1325
                  %v1327 = vld [vmem:[%s989 + $0xa80] sm:$0xff]
                  %1328 = vst [vmem:[%s990 + $0x540] sm:$0xff] %v1327
                  %v1329 = vld [vmem:[%s989 + $0xa90] sm:$0xff]
                  %1330 = vst [vmem:[%s990 + $0x548] sm:$0xff] %v1329
                  %v1331 = vld [vmem:[%s989 + $0xaa0] sm:$0xff]
                  %1332 = vst [vmem:[%s990 + $0x550] sm:$0xff] %v1331
                  %v1333 = vld [vmem:[%s989 + $0xab0] sm:$0xff]
                  %1334 = vst [vmem:[%s990 + $0x558] sm:$0xff] %v1333
                  %v1335 = vld [vmem:[%s989 + $0xac0] sm:$0xff]
                  %1336 = vst [vmem:[%s990 + $0x560] sm:$0xff] %v1335
                  %v1337 = vld [vmem:[%s989 + $0xad0] sm:$0xff]
                  %1338 = vst [vmem:[%s990 + $0x568] sm:$0xff] %v1337
                  %v1339 = vld [vmem:[%s989 + $0xae0] sm:$0xff]
                  %1340 = vst [vmem:[%s990 + $0x570] sm:$0xff] %v1339
                  %v1341 = vld [vmem:[%s989 + $0xaf0] sm:$0xff]
                  %1342 = vst [vmem:[%s990 + $0x578] sm:$0xff] %v1341
                  %v1343 = vld [vmem:[%s989 + $0xb00] sm:$0xff]
                  %1344 = vst [vmem:[%s990 + $0x580] sm:$0xff] %v1343
                  %v1345 = vld [vmem:[%s989 + $0xb10] sm:$0xff]
                  %1346 = vst [vmem:[%s990 + $0x588] sm:$0xff] %v1345
                  %v1347 = vld [vmem:[%s989 + $0xb20] sm:$0xff]
                  %1348 = vst [vmem:[%s990 + $0x590] sm:$0xff] %v1347
                  %v1349 = vld [vmem:[%s989 + $0xb30] sm:$0xff]
                  %1350 = vst [vmem:[%s990 + $0x598] sm:$0xff] %v1349
                  %v1351 = vld [vmem:[%s989 + $0xb40] sm:$0xff]
                  %1352 = vst [vmem:[%s990 + $0x5a0] sm:$0xff] %v1351
                  %v1353 = vld [vmem:[%s989 + $0xb50] sm:$0xff]
                  %1354 = vst [vmem:[%s990 + $0x5a8] sm:$0xff] %v1353
                  %v1355 = vld [vmem:[%s989 + $0xb60] sm:$0xff]
                  %1356 = vst [vmem:[%s990 + $0x5b0] sm:$0xff] %v1355
                  %v1357 = vld [vmem:[%s989 + $0xb70] sm:$0xff]
                  %1358 = vst [vmem:[%s990 + $0x5b8] sm:$0xff] %v1357
                  %v1359 = vld [vmem:[%s989 + $0xb80] sm:$0xff]
                  %1360 = vst [vmem:[%s990 + $0x5c0] sm:$0xff] %v1359
                  %v1361 = vld [vmem:[%s989 + $0xb90] sm:$0xff]
                  %1362 = vst [vmem:[%s990 + $0x5c8] sm:$0xff] %v1361
                  %v1363 = vld [vmem:[%s989 + $0xba0] sm:$0xff]
                  %1364 = vst [vmem:[%s990 + $0x5d0] sm:$0xff] %v1363
                  %v1365 = vld [vmem:[%s989 + $0xbb0] sm:$0xff]
                  %1366 = vst [vmem:[%s990 + $0x5d8] sm:$0xff] %v1365
                  %v1367 = vld [vmem:[%s989 + $0xbc0] sm:$0xff]
                  %1368 = vst [vmem:[%s990 + $0x5e0] sm:$0xff] %v1367
                  %v1369 = vld [vmem:[%s989 + $0xbd0] sm:$0xff]
                  %1370 = vst [vmem:[%s990 + $0x5e8] sm:$0xff] %v1369
                  %v1371 = vld [vmem:[%s989 + $0xbe0] sm:$0xff]
                  %1372 = vst [vmem:[%s990 + $0x5f0] sm:$0xff] %v1371
                  %v1373 = vld [vmem:[%s989 + $0xbf0] sm:$0xff]
                  %1374 = vst [vmem:[%s990 + $0x5f8] sm:$0xff] %v1373
                  %v1375 = vld [vmem:[%s989 + $0xc00] sm:$0xff]
                  %1376 = vst [vmem:[%s990 + $0x600] sm:$0xff] %v1375
                  %v1377 = vld [vmem:[%s989 + $0xc10] sm:$0xff]
                  %1378 = vst [vmem:[%s990 + $0x608] sm:$0xff] %v1377
                  %v1379 = vld [vmem:[%s989 + $0xc20] sm:$0xff]
                  %1380 = vst [vmem:[%s990 + $0x610] sm:$0xff] %v1379
                  %v1381 = vld [vmem:[%s989 + $0xc30] sm:$0xff]
                  %1382 = vst [vmem:[%s990 + $0x618] sm:$0xff] %v1381
                  %v1383 = vld [vmem:[%s989 + $0xc40] sm:$0xff]
                  %1384 = vst [vmem:[%s990 + $0x620] sm:$0xff] %v1383
                  %v1385 = vld [vmem:[%s989 + $0xc50] sm:$0xff]
                  %1386 = vst [vmem:[%s990 + $0x628] sm:$0xff] %v1385
                  %v1387 = vld [vmem:[%s989 + $0xc60] sm:$0xff]
                  %1388 = vst [vmem:[%s990 + $0x630] sm:$0xff] %v1387
                  %v1389 = vld [vmem:[%s989 + $0xc70] sm:$0xff]
                  %1390 = vst [vmem:[%s990 + $0x638] sm:$0xff] %v1389
                  %v1391 = vld [vmem:[%s989 + $0xc80] sm:$0xff]
                  %1392 = vst [vmem:[%s990 + $0x640] sm:$0xff] %v1391
                  %v1393 = vld [vmem:[%s989 + $0xc90] sm:$0xff]
                  %1394 = vst [vmem:[%s990 + $0x648] sm:$0xff] %v1393
                  %v1395 = vld [vmem:[%s989 + $0xca0] sm:$0xff]
                  %1396 = vst [vmem:[%s990 + $0x650] sm:$0xff] %v1395
                  %v1397 = vld [vmem:[%s989 + $0xcb0] sm:$0xff]
                  %1398 = vst [vmem:[%s990 + $0x658] sm:$0xff] %v1397
                  %v1399 = vld [vmem:[%s989 + $0xcc0] sm:$0xff]
                  %1400 = vst [vmem:[%s990 + $0x660] sm:$0xff] %v1399
                  %v1401 = vld [vmem:[%s989 + $0xcd0] sm:$0xff]
                  %1402 = vst [vmem:[%s990 + $0x668] sm:$0xff] %v1401
                  %v1403 = vld [vmem:[%s989 + $0xce0] sm:$0xff]
                  %1404 = vst [vmem:[%s990 + $0x670] sm:$0xff] %v1403
                  %v1405 = vld [vmem:[%s989 + $0xcf0] sm:$0xff]
                  %1406 = vst [vmem:[%s990 + $0x678] sm:$0xff] %v1405
                  %v1407 = vld [vmem:[%s989 + $0xd00] sm:$0xff]
                  %1408 = vst [vmem:[%s990 + $0x680] sm:$0xff] %v1407
                  %v1409 = vld [vmem:[%s989 + $0xd10] sm:$0xff]
                  %1410 = vst [vmem:[%s990 + $0x688] sm:$0xff] %v1409
                  %v1411 = vld [vmem:[%s989 + $0xd20] sm:$0xff]
                  %1412 = vst [vmem:[%s990 + $0x690] sm:$0xff] %v1411
                  %v1413 = vld [vmem:[%s989 + $0xd30] sm:$0xff]
                  %1414 = vst [vmem:[%s990 + $0x698] sm:$0xff] %v1413
                  %v1415 = vld [vmem:[%s989 + $0xd40] sm:$0xff]
                  %1416 = vst [vmem:[%s990 + $0x6a0] sm:$0xff] %v1415
                  %v1417 = vld [vmem:[%s989 + $0xd50] sm:$0xff]
                  %1418 = vst [vmem:[%s990 + $0x6a8] sm:$0xff] %v1417
                  %v1419 = vld [vmem:[%s989 + $0xd60] sm:$0xff]
                  %1420 = vst [vmem:[%s990 + $0x6b0] sm:$0xff] %v1419
                  %v1421 = vld [vmem:[%s989 + $0xd70] sm:$0xff]
                  %1422 = vst [vmem:[%s990 + $0x6b8] sm:$0xff] %v1421
                  %v1423 = vld [vmem:[%s989 + $0xd80] sm:$0xff]
                  %1424 = vst [vmem:[%s990 + $0x6c0] sm:$0xff] %v1423
                  %v1425 = vld [vmem:[%s989 + $0xd90] sm:$0xff]
                  %1426 = vst [vmem:[%s990 + $0x6c8] sm:$0xff] %v1425
                  %v1427 = vld [vmem:[%s989 + $0xda0] sm:$0xff]
                  %1428 = vst [vmem:[%s990 + $0x6d0] sm:$0xff] %v1427
                  %v1429 = vld [vmem:[%s989 + $0xdb0] sm:$0xff]
                  %1430 = vst [vmem:[%s990 + $0x6d8] sm:$0xff] %v1429
                  %v1431 = vld [vmem:[%s989 + $0xdc0] sm:$0xff]
                  %1432 = vst [vmem:[%s990 + $0x6e0] sm:$0xff] %v1431
                  %v1433 = vld [vmem:[%s989 + $0xdd0] sm:$0xff]
                  %1434 = vst [vmem:[%s990 + $0x6e8] sm:$0xff] %v1433
                  %v1435 = vld [vmem:[%s989 + $0xde0] sm:$0xff]
                  %1436 = vst [vmem:[%s990 + $0x6f0] sm:$0xff] %v1435
                  %v1437 = vld [vmem:[%s989 + $0xdf0] sm:$0xff]
                  %1438 = vst [vmem:[%s990 + $0x6f8] sm:$0xff] %v1437
                  %v1439 = vld [vmem:[%s989 + $0xe00] sm:$0xff]
                  %1440 = vst [vmem:[%s990 + $0x700] sm:$0xff] %v1439
                  %v1441 = vld [vmem:[%s989 + $0xe10] sm:$0xff]
                  %1442 = vst [vmem:[%s990 + $0x708] sm:$0xff] %v1441
                  %v1443 = vld [vmem:[%s989 + $0xe20] sm:$0xff]
                  %1444 = vst [vmem:[%s990 + $0x710] sm:$0xff] %v1443
                  %v1445 = vld [vmem:[%s989 + $0xe30] sm:$0xff]
                  %1446 = vst [vmem:[%s990 + $0x718] sm:$0xff] %v1445
                  %v1447 = vld [vmem:[%s989 + $0xe40] sm:$0xff]
                  %1448 = vst [vmem:[%s990 + $0x720] sm:$0xff] %v1447
                  %v1449 = vld [vmem:[%s989 + $0xe50] sm:$0xff]
                  %1450 = vst [vmem:[%s990 + $0x728] sm:$0xff] %v1449
                  %v1451 = vld [vmem:[%s989 + $0xe60] sm:$0xff]
                  %1452 = vst [vmem:[%s990 + $0x730] sm:$0xff] %v1451
                  %v1453 = vld [vmem:[%s989 + $0xe70] sm:$0xff]
                  %1454 = vst [vmem:[%s990 + $0x738] sm:$0xff] %v1453
                  %v1455 = vld [vmem:[%s989 + $0xe80] sm:$0xff]
                  %1456 = vst [vmem:[%s990 + $0x740] sm:$0xff] %v1455
                  %v1457 = vld [vmem:[%s989 + $0xe90] sm:$0xff]
                  %1458 = vst [vmem:[%s990 + $0x748] sm:$0xff] %v1457
                  %v1459 = vld [vmem:[%s989 + $0xea0] sm:$0xff]
                  %1460 = vst [vmem:[%s990 + $0x750] sm:$0xff] %v1459
                  %v1461 = vld [vmem:[%s989 + $0xeb0] sm:$0xff]
                  %1462 = vst [vmem:[%s990 + $0x758] sm:$0xff] %v1461
                  %v1463 = vld [vmem:[%s989 + $0xec0] sm:$0xff]
                  %1464 = vst [vmem:[%s990 + $0x760] sm:$0xff] %v1463
                  %v1465 = vld [vmem:[%s989 + $0xed0] sm:$0xff]
                  %1466 = vst [vmem:[%s990 + $0x768] sm:$0xff] %v1465
                  %v1467 = vld [vmem:[%s989 + $0xee0] sm:$0xff]
                  %1468 = vst [vmem:[%s990 + $0x770] sm:$0xff] %v1467
                  %v1469 = vld [vmem:[%s989 + $0xef0] sm:$0xff]
                  %1470 = vst [vmem:[%s990 + $0x778] sm:$0xff] %v1469
                  %v1471 = vld [vmem:[%s989 + $0xf00] sm:$0xff]
                  %1472 = vst [vmem:[%s990 + $0x780] sm:$0xff] %v1471
                  %v1473 = vld [vmem:[%s989 + $0xf10] sm:$0xff]
                  %1474 = vst [vmem:[%s990 + $0x788] sm:$0xff] %v1473
                  %v1475 = vld [vmem:[%s989 + $0xf20] sm:$0xff]
                  %1476 = vst [vmem:[%s990 + $0x790] sm:$0xff] %v1475
                  %v1477 = vld [vmem:[%s989 + $0xf30] sm:$0xff]
                  %1478 = vst [vmem:[%s990 + $0x798] sm:$0xff] %v1477
                  %v1479 = vld [vmem:[%s989 + $0xf40] sm:$0xff]
                  %1480 = vst [vmem:[%s990 + $0x7a0] sm:$0xff] %v1479
                  %v1481 = vld [vmem:[%s989 + $0xf50] sm:$0xff]
                  %1482 = vst [vmem:[%s990 + $0x7a8] sm:$0xff] %v1481
                  %v1483 = vld [vmem:[%s989 + $0xf60] sm:$0xff]
                  %1484 = vst [vmem:[%s990 + $0x7b0] sm:$0xff] %v1483
                  %v1485 = vld [vmem:[%s989 + $0xf70] sm:$0xff]
                  %1486 = vst [vmem:[%s990 + $0x7b8] sm:$0xff] %v1485
                  %v1487 = vld [vmem:[%s989 + $0xf80] sm:$0xff]
                  %1488 = vst [vmem:[%s990 + $0x7c0] sm:$0xff] %v1487
                  %v1489 = vld [vmem:[%s989 + $0xf90] sm:$0xff]
                  %1490 = vst [vmem:[%s990 + $0x7c8] sm:$0xff] %v1489
                  %v1491 = vld [vmem:[%s989 + $0xfa0] sm:$0xff]
                  %1492 = vst [vmem:[%s990 + $0x7d0] sm:$0xff] %v1491
                  %v1493 = vld [vmem:[%s989 + $0xfb0] sm:$0xff]
                  %1494 = vst [vmem:[%s990 + $0x7d8] sm:$0xff] %v1493
                  %v1495 = vld [vmem:[%s989 + $0xfc0] sm:$0xff]
                  %1496 = vst [vmem:[%s990 + $0x7e0] sm:$0xff] %v1495
                  %v1497 = vld [vmem:[%s989 + $0xfd0] sm:$0xff]
                  %1498 = vst [vmem:[%s990 + $0x7e8] sm:$0xff] %v1497
                  %v1499 = vld [vmem:[%s989 + $0xfe0] sm:$0xff]
                  %1500 = vst [vmem:[%s990 + $0x7f0] sm:$0xff] %v1499
                  %v1501 = vld [vmem:[%s989 + $0xff0] sm:$0xff]
                  %1502 = vst [vmem:[%s990 + $0x7f8] sm:$0xff] %v1501
                  %v1503 = vld [vmem:[%s989 + $0x1000] sm:$0xff]
                  %1504 = vst [vmem:[%s990 + $0x800] sm:$0xff] %v1503
                  %v1505 = vld [vmem:[%s989 + $0x1010] sm:$0xff]
                  %1506 = vst [vmem:[%s990 + $0x808] sm:$0xff] %v1505
                  %v1507 = vld [vmem:[%s989 + $0x1020] sm:$0xff]
                  %1508 = vst [vmem:[%s990 + $0x810] sm:$0xff] %v1507
                  %v1509 = vld [vmem:[%s989 + $0x1030] sm:$0xff]
                  %1510 = vst [vmem:[%s990 + $0x818] sm:$0xff] %v1509
                  %v1511 = vld [vmem:[%s989 + $0x1040] sm:$0xff]
                  %1512 = vst [vmem:[%s990 + $0x820] sm:$0xff] %v1511
                  %v1513 = vld [vmem:[%s989 + $0x1050] sm:$0xff]
                  %1514 = vst [vmem:[%s990 + $0x828] sm:$0xff] %v1513
                  %v1515 = vld [vmem:[%s989 + $0x1060] sm:$0xff]
                  %1516 = vst [vmem:[%s990 + $0x830] sm:$0xff] %v1515
                  %v1517 = vld [vmem:[%s989 + $0x1070] sm:$0xff]
                  %1518 = vst [vmem:[%s990 + $0x838] sm:$0xff] %v1517
                  %v1519 = vld [vmem:[%s989 + $0x1080] sm:$0xff]
                  %1520 = vst [vmem:[%s990 + $0x840] sm:$0xff] %v1519
                  %v1521 = vld [vmem:[%s989 + $0x1090] sm:$0xff]
                  %1522 = vst [vmem:[%s990 + $0x848] sm:$0xff] %v1521
                  %v1523 = vld [vmem:[%s989 + $0x10a0] sm:$0xff]
                  %1524 = vst [vmem:[%s990 + $0x850] sm:$0xff] %v1523
                  %v1525 = vld [vmem:[%s989 + $0x10b0] sm:$0xff]
                  %1526 = vst [vmem:[%s990 + $0x858] sm:$0xff] %v1525
                  %v1527 = vld [vmem:[%s989 + $0x10c0] sm:$0xff]
                  %1528 = vst [vmem:[%s990 + $0x860] sm:$0xff] %v1527
                  %v1529 = vld [vmem:[%s989 + $0x10d0] sm:$0xff]
                  %1530 = vst [vmem:[%s990 + $0x868] sm:$0xff] %v1529
                  %v1531 = vld [vmem:[%s989 + $0x10e0] sm:$0xff]
                  %1532 = vst [vmem:[%s990 + $0x870] sm:$0xff] %v1531
                  %v1533 = vld [vmem:[%s989 + $0x10f0] sm:$0xff]
                  %1534 = vst [vmem:[%s990 + $0x878] sm:$0xff] %v1533
                  %v1535 = vld [vmem:[%s989 + $0x1100] sm:$0xff]
                  %1536 = vst [vmem:[%s990 + $0x880] sm:$0xff] %v1535
                  %v1537 = vld [vmem:[%s989 + $0x1110] sm:$0xff]
                  %1538 = vst [vmem:[%s990 + $0x888] sm:$0xff] %v1537
                  %v1539 = vld [vmem:[%s989 + $0x1120] sm:$0xff]
                  %1540 = vst [vmem:[%s990 + $0x890] sm:$0xff] %v1539
                  %v1541 = vld [vmem:[%s989 + $0x1130] sm:$0xff]
                  %1542 = vst [vmem:[%s990 + $0x898] sm:$0xff] %v1541
                  %v1543 = vld [vmem:[%s989 + $0x1140] sm:$0xff]
                  %1544 = vst [vmem:[%s990 + $0x8a0] sm:$0xff] %v1543
                  %v1545 = vld [vmem:[%s989 + $0x1150] sm:$0xff]
                  %1546 = vst [vmem:[%s990 + $0x8a8] sm:$0xff] %v1545
                  %v1547 = vld [vmem:[%s989 + $0x1160] sm:$0xff]
                  %1548 = vst [vmem:[%s990 + $0x8b0] sm:$0xff] %v1547
                  %v1549 = vld [vmem:[%s989 + $0x1170] sm:$0xff]
                  %1550 = vst [vmem:[%s990 + $0x8b8] sm:$0xff] %v1549
                  %v1551 = vld [vmem:[%s989 + $0x1180] sm:$0xff]
                  %1552 = vst [vmem:[%s990 + $0x8c0] sm:$0xff] %v1551
                  %v1553 = vld [vmem:[%s989 + $0x1190] sm:$0xff]
                  %1554 = vst [vmem:[%s990 + $0x8c8] sm:$0xff] %v1553
                  %v1555 = vld [vmem:[%s989 + $0x11a0] sm:$0xff]
                  %1556 = vst [vmem:[%s990 + $0x8d0] sm:$0xff] %v1555
                  %v1557 = vld [vmem:[%s989 + $0x11b0] sm:$0xff]
                  %1558 = vst [vmem:[%s990 + $0x8d8] sm:$0xff] %v1557
                  %v1559 = vld [vmem:[%s989 + $0x11c0] sm:$0xff]
                  %1560 = vst [vmem:[%s990 + $0x8e0] sm:$0xff] %v1559
                  %v1561 = vld [vmem:[%s989 + $0x11d0] sm:$0xff]
                  %1562 = vst [vmem:[%s990 + $0x8e8] sm:$0xff] %v1561
                  %v1563 = vld [vmem:[%s989 + $0x11e0] sm:$0xff]
                  %1564 = vst [vmem:[%s990 + $0x8f0] sm:$0xff] %v1563
                  %v1565 = vld [vmem:[%s989 + $0x11f0] sm:$0xff]
                  %1566 = vst [vmem:[%s990 + $0x8f8] sm:$0xff] %v1565
                  %v1567 = vld [vmem:[%s989 + $0x1200] sm:$0xff]
                  %1568 = vst [vmem:[%s990 + $0x900] sm:$0xff] %v1567
                  %v1569 = vld [vmem:[%s989 + $0x1210] sm:$0xff]
                  %1570 = vst [vmem:[%s990 + $0x908] sm:$0xff] %v1569
                  %v1571 = vld [vmem:[%s989 + $0x1220] sm:$0xff]
                  %1572 = vst [vmem:[%s990 + $0x910] sm:$0xff] %v1571
                  %v1573 = vld [vmem:[%s989 + $0x1230] sm:$0xff]
                  %1574 = vst [vmem:[%s990 + $0x918] sm:$0xff] %v1573
                  %v1575 = vld [vmem:[%s989 + $0x1240] sm:$0xff]
                  %1576 = vst [vmem:[%s990 + $0x920] sm:$0xff] %v1575
                  %v1577 = vld [vmem:[%s989 + $0x1250] sm:$0xff]
                  %1578 = vst [vmem:[%s990 + $0x928] sm:$0xff] %v1577
                  %v1579 = vld [vmem:[%s989 + $0x1260] sm:$0xff]
                  %1580 = vst [vmem:[%s990 + $0x930] sm:$0xff] %v1579
                  %v1581 = vld [vmem:[%s989 + $0x1270] sm:$0xff]
                  %1582 = vst [vmem:[%s990 + $0x938] sm:$0xff] %v1581
                  %v1583 = vld [vmem:[%s989 + $0x1280] sm:$0xff]
                  %1584 = vst [vmem:[%s990 + $0x940] sm:$0xff] %v1583
                  %v1585 = vld [vmem:[%s989 + $0x1290] sm:$0xff]
                  %1586 = vst [vmem:[%s990 + $0x948] sm:$0xff] %v1585
                  %v1587 = vld [vmem:[%s989 + $0x12a0] sm:$0xff]
                  %1588 = vst [vmem:[%s990 + $0x950] sm:$0xff] %v1587
                  %v1589 = vld [vmem:[%s989 + $0x12b0] sm:$0xff]
                  %1590 = vst [vmem:[%s990 + $0x958] sm:$0xff] %v1589
                  %v1591 = vld [vmem:[%s989 + $0x12c0] sm:$0xff]
                  %1592 = vst [vmem:[%s990 + $0x960] sm:$0xff] %v1591
                  %v1593 = vld [vmem:[%s989 + $0x12d0] sm:$0xff]
                  %1594 = vst [vmem:[%s990 + $0x968] sm:$0xff] %v1593
                  %v1595 = vld [vmem:[%s989 + $0x12e0] sm:$0xff]
                  %1596 = vst [vmem:[%s990 + $0x970] sm:$0xff] %v1595
                  %v1597 = vld [vmem:[%s989 + $0x12f0] sm:$0xff]
                  %1598 = vst [vmem:[%s990 + $0x978] sm:$0xff] %v1597
                  %v1599 = vld [vmem:[%s989 + $0x1300] sm:$0xff]
                  %1600 = vst [vmem:[%s990 + $0x980] sm:$0xff] %v1599
                  %v1601 = vld [vmem:[%s989 + $0x1310] sm:$0xff]
                  %1602 = vst [vmem:[%s990 + $0x988] sm:$0xff] %v1601
                  %v1603 = vld [vmem:[%s989 + $0x1320] sm:$0xff]
                  %1604 = vst [vmem:[%s990 + $0x990] sm:$0xff] %v1603
                  %v1605 = vld [vmem:[%s989 + $0x1330] sm:$0xff]
                  %1606 = vst [vmem:[%s990 + $0x998] sm:$0xff] %v1605
                  %v1607 = vld [vmem:[%s989 + $0x1340] sm:$0xff]
                  %1608 = vst [vmem:[%s990 + $0x9a0] sm:$0xff] %v1607
                  %v1609 = vld [vmem:[%s989 + $0x1350] sm:$0xff]
                  %1610 = vst [vmem:[%s990 + $0x9a8] sm:$0xff] %v1609
                  %v1611 = vld [vmem:[%s989 + $0x1360] sm:$0xff]
                  %1612 = vst [vmem:[%s990 + $0x9b0] sm:$0xff] %v1611
                  %v1613 = vld [vmem:[%s989 + $0x1370] sm:$0xff]
                  %1614 = vst [vmem:[%s990 + $0x9b8] sm:$0xff] %v1613
                  %v1615 = vld [vmem:[%s989 + $0x1380] sm:$0xff]
                  %1616 = vst [vmem:[%s990 + $0x9c0] sm:$0xff] %v1615
                  %v1617 = vld [vmem:[%s989 + $0x1390] sm:$0xff]
                  %1618 = vst [vmem:[%s990 + $0x9c8] sm:$0xff] %v1617
                  %v1619 = vld [vmem:[%s989 + $0x13a0] sm:$0xff]
                  %1620 = vst [vmem:[%s990 + $0x9d0] sm:$0xff] %v1619
                  %v1621 = vld [vmem:[%s989 + $0x13b0] sm:$0xff]
                  %1622 = vst [vmem:[%s990 + $0x9d8] sm:$0xff] %v1621
                  %v1623 = vld [vmem:[%s989 + $0x13c0] sm:$0xff]
                  %1624 = vst [vmem:[%s990 + $0x9e0] sm:$0xff] %v1623
                  %v1625 = vld [vmem:[%s989 + $0x13d0] sm:$0xff]
                  %1626 = vst [vmem:[%s990 + $0x9e8] sm:$0xff] %v1625
                  %v1627 = vld [vmem:[%s989 + $0x13e0] sm:$0xff]
                  %1628 = vst [vmem:[%s990 + $0x9f0] sm:$0xff] %v1627
                  %v1629 = vld [vmem:[%s989 + $0x13f0] sm:$0xff]
                  %1630 = vst [vmem:[%s990 + $0x9f8] sm:$0xff] %v1629
                  %v1631 = vld [vmem:[%s989 + $0x1400] sm:$0xff]
                  %1632 = vst [vmem:[%s990 + $0xa00] sm:$0xff] %v1631
                  %v1633 = vld [vmem:[%s989 + $0x1410] sm:$0xff]
                  %1634 = vst [vmem:[%s990 + $0xa08] sm:$0xff] %v1633
                  %v1635 = vld [vmem:[%s989 + $0x1420] sm:$0xff]
                  %1636 = vst [vmem:[%s990 + $0xa10] sm:$0xff] %v1635
                  %v1637 = vld [vmem:[%s989 + $0x1430] sm:$0xff]
                  %1638 = vst [vmem:[%s990 + $0xa18] sm:$0xff] %v1637
                  %v1639 = vld [vmem:[%s989 + $0x1440] sm:$0xff]
                  %1640 = vst [vmem:[%s990 + $0xa20] sm:$0xff] %v1639
                  %v1641 = vld [vmem:[%s989 + $0x1450] sm:$0xff]
                  %1642 = vst [vmem:[%s990 + $0xa28] sm:$0xff] %v1641
                  %v1643 = vld [vmem:[%s989 + $0x1460] sm:$0xff]
                  %1644 = vst [vmem:[%s990 + $0xa30] sm:$0xff] %v1643
                  %v1645 = vld [vmem:[%s989 + $0x1470] sm:$0xff]
                  %1646 = vst [vmem:[%s990 + $0xa38] sm:$0xff] %v1645
                  %v1647 = vld [vmem:[%s989 + $0x1480] sm:$0xff]
                  %1648 = vst [vmem:[%s990 + $0xa40] sm:$0xff] %v1647
                  %v1649 = vld [vmem:[%s989 + $0x1490] sm:$0xff]
                  %1650 = vst [vmem:[%s990 + $0xa48] sm:$0xff] %v1649
                  %v1651 = vld [vmem:[%s989 + $0x14a0] sm:$0xff]
                  %1652 = vst [vmem:[%s990 + $0xa50] sm:$0xff] %v1651
                  %v1653 = vld [vmem:[%s989 + $0x14b0] sm:$0xff]
                  %1654 = vst [vmem:[%s990 + $0xa58] sm:$0xff] %v1653
                  %v1655 = vld [vmem:[%s989 + $0x14c0] sm:$0xff]
                  %1656 = vst [vmem:[%s990 + $0xa60] sm:$0xff] %v1655
                  %v1657 = vld [vmem:[%s989 + $0x14d0] sm:$0xff]
                  %1658 = vst [vmem:[%s990 + $0xa68] sm:$0xff] %v1657
                  %v1659 = vld [vmem:[%s989 + $0x14e0] sm:$0xff]
                  %1660 = vst [vmem:[%s990 + $0xa70] sm:$0xff] %v1659
                  %v1661 = vld [vmem:[%s989 + $0x14f0] sm:$0xff]
                  %1662 = vst [vmem:[%s990 + $0xa78] sm:$0xff] %v1661
                  %v1663 = vld [vmem:[%s989 + $0x1500] sm:$0xff]
                  %1664 = vst [vmem:[%s990 + $0xa80] sm:$0xff] %v1663
                  %v1665 = vld [vmem:[%s989 + $0x1510] sm:$0xff]
                  %1666 = vst [vmem:[%s990 + $0xa88] sm:$0xff] %v1665
                  %v1667 = vld [vmem:[%s989 + $0x1520] sm:$0xff]
                  %1668 = vst [vmem:[%s990 + $0xa90] sm:$0xff] %v1667
                  %v1669 = vld [vmem:[%s989 + $0x1530] sm:$0xff]
                  %1670 = vst [vmem:[%s990 + $0xa98] sm:$0xff] %v1669
                  %v1671 = vld [vmem:[%s989 + $0x1540] sm:$0xff]
                  %1672 = vst [vmem:[%s990 + $0xaa0] sm:$0xff] %v1671
                  %v1673 = vld [vmem:[%s989 + $0x1550] sm:$0xff]
                  %1674 = vst [vmem:[%s990 + $0xaa8] sm:$0xff] %v1673
                  %v1675 = vld [vmem:[%s989 + $0x1560] sm:$0xff]
                  %1676 = vst [vmem:[%s990 + $0xab0] sm:$0xff] %v1675
                  %v1677 = vld [vmem:[%s989 + $0x1570] sm:$0xff]
                  %1678 = vst [vmem:[%s990 + $0xab8] sm:$0xff] %v1677
                  %v1679 = vld [vmem:[%s989 + $0x1580] sm:$0xff]
                  %1680 = vst [vmem:[%s990 + $0xac0] sm:$0xff] %v1679
                  %v1681 = vld [vmem:[%s989 + $0x1590] sm:$0xff]
                  %1682 = vst [vmem:[%s990 + $0xac8] sm:$0xff] %v1681
                  %v1683 = vld [vmem:[%s989 + $0x15a0] sm:$0xff]
                  %1684 = vst [vmem:[%s990 + $0xad0] sm:$0xff] %v1683
                  %v1685 = vld [vmem:[%s989 + $0x15b0] sm:$0xff]
                  %1686 = vst [vmem:[%s990 + $0xad8] sm:$0xff] %v1685
                  %v1687 = vld [vmem:[%s989 + $0x15c0] sm:$0xff]
                  %1688 = vst [vmem:[%s990 + $0xae0] sm:$0xff] %v1687
                  %v1689 = vld [vmem:[%s989 + $0x15d0] sm:$0xff]
                  %1690 = vst [vmem:[%s990 + $0xae8] sm:$0xff] %v1689
                  %v1691 = vld [vmem:[%s989 + $0x15e0] sm:$0xff]
                  %1692 = vst [vmem:[%s990 + $0xaf0] sm:$0xff] %v1691
                  %v1693 = vld [vmem:[%s989 + $0x15f0] sm:$0xff]
                  %1694 = vst [vmem:[%s990 + $0xaf8] sm:$0xff] %v1693
                  %v1695 = vld [vmem:[%s989 + $0x1600] sm:$0xff]
                  %1696 = vst [vmem:[%s990 + $0xb00] sm:$0xff] %v1695
                  %v1697 = vld [vmem:[%s989 + $0x1610] sm:$0xff]
                  %1698 = vst [vmem:[%s990 + $0xb08] sm:$0xff] %v1697
                  %v1699 = vld [vmem:[%s989 + $0x1620] sm:$0xff]
                  %1700 = vst [vmem:[%s990 + $0xb10] sm:$0xff] %v1699
                  %v1701 = vld [vmem:[%s989 + $0x1630] sm:$0xff]
                  %1702 = vst [vmem:[%s990 + $0xb18] sm:$0xff] %v1701
                  %v1703 = vld [vmem:[%s989 + $0x1640] sm:$0xff]
                  %1704 = vst [vmem:[%s990 + $0xb20] sm:$0xff] %v1703
                  %v1705 = vld [vmem:[%s989 + $0x1650] sm:$0xff]
                  %1706 = vst [vmem:[%s990 + $0xb28] sm:$0xff] %v1705
                  %v1707 = vld [vmem:[%s989 + $0x1660] sm:$0xff]
                  %1708 = vst [vmem:[%s990 + $0xb30] sm:$0xff] %v1707
                  %v1709 = vld [vmem:[%s989 + $0x1670] sm:$0xff]
                  %1710 = vst [vmem:[%s990 + $0xb38] sm:$0xff] %v1709
                  %v1711 = vld [vmem:[%s989 + $0x1680] sm:$0xff]
                  %1712 = vst [vmem:[%s990 + $0xb40] sm:$0xff] %v1711
                  %v1713 = vld [vmem:[%s989 + $0x1690] sm:$0xff]
                  %1714 = vst [vmem:[%s990 + $0xb48] sm:$0xff] %v1713
                  %v1715 = vld [vmem:[%s989 + $0x16a0] sm:$0xff]
                  %1716 = vst [vmem:[%s990 + $0xb50] sm:$0xff] %v1715
                  %v1717 = vld [vmem:[%s989 + $0x16b0] sm:$0xff]
                  %1718 = vst [vmem:[%s990 + $0xb58] sm:$0xff] %v1717
                  %v1719 = vld [vmem:[%s989 + $0x16c0] sm:$0xff]
                  %1720 = vst [vmem:[%s990 + $0xb60] sm:$0xff] %v1719
                  %v1721 = vld [vmem:[%s989 + $0x16d0] sm:$0xff]
                  %1722 = vst [vmem:[%s990 + $0xb68] sm:$0xff] %v1721
                  %v1723 = vld [vmem:[%s989 + $0x16e0] sm:$0xff]
                  %1724 = vst [vmem:[%s990 + $0xb70] sm:$0xff] %v1723
                  %v1725 = vld [vmem:[%s989 + $0x16f0] sm:$0xff]
                  %1726 = vst [vmem:[%s990 + $0xb78] sm:$0xff] %v1725
                  %v1727 = vld [vmem:[%s989 + $0x1700] sm:$0xff]
                  %1728 = vst [vmem:[%s990 + $0xb80] sm:$0xff] %v1727
                  %v1729 = vld [vmem:[%s989 + $0x1710] sm:$0xff]
                  %1730 = vst [vmem:[%s990 + $0xb88] sm:$0xff] %v1729
                  %v1731 = vld [vmem:[%s989 + $0x1720] sm:$0xff]
                  %1732 = vst [vmem:[%s990 + $0xb90] sm:$0xff] %v1731
                  %v1733 = vld [vmem:[%s989 + $0x1730] sm:$0xff]
                  %1734 = vst [vmem:[%s990 + $0xb98] sm:$0xff] %v1733
                  %v1735 = vld [vmem:[%s989 + $0x1740] sm:$0xff]
                  %1736 = vst [vmem:[%s990 + $0xba0] sm:$0xff] %v1735
                  %v1737 = vld [vmem:[%s989 + $0x1750] sm:$0xff]
                  %1738 = vst [vmem:[%s990 + $0xba8] sm:$0xff] %v1737
                  %v1739 = vld [vmem:[%s989 + $0x1760] sm:$0xff]
                  %1740 = vst [vmem:[%s990 + $0xbb0] sm:$0xff] %v1739
                  %v1741 = vld [vmem:[%s989 + $0x1770] sm:$0xff]
                  %1742 = vst [vmem:[%s990 + $0xbb8] sm:$0xff] %v1741
                  %v1743 = vld [vmem:[%s989 + $0x1780] sm:$0xff]
                  %1744 = vst [vmem:[%s990 + $0xbc0] sm:$0xff] %v1743
                  %v1745 = vld [vmem:[%s989 + $0x1790] sm:$0xff]
                  %1746 = vst [vmem:[%s990 + $0xbc8] sm:$0xff] %v1745
                  %v1747 = vld [vmem:[%s989 + $0x17a0] sm:$0xff]
                  %1748 = vst [vmem:[%s990 + $0xbd0] sm:$0xff] %v1747
                  %v1749 = vld [vmem:[%s989 + $0x17b0] sm:$0xff]
                  %1750 = vst [vmem:[%s990 + $0xbd8] sm:$0xff] %v1749
                  %v1751 = vld [vmem:[%s989 + $0x17c0] sm:$0xff]
                  %1752 = vst [vmem:[%s990 + $0xbe0] sm:$0xff] %v1751
                  %v1753 = vld [vmem:[%s989 + $0x17d0] sm:$0xff]
                  %1754 = vst [vmem:[%s990 + $0xbe8] sm:$0xff] %v1753
                  %v1755 = vld [vmem:[%s989 + $0x17e0] sm:$0xff]
                  %1756 = vst [vmem:[%s990 + $0xbf0] sm:$0xff] %v1755
                  %v1757 = vld [vmem:[%s989 + $0x17f0] sm:$0xff]
                  %1758 = vst [vmem:[%s990 + $0xbf8] sm:$0xff] %v1757
                  %v1759 = vld [vmem:[%s989 + $0x1800] sm:$0xff]
                  %1760 = vst [vmem:[%s990 + $0xc00] sm:$0xff] %v1759
                  %v1761 = vld [vmem:[%s989 + $0x1810] sm:$0xff]
                  %1762 = vst [vmem:[%s990 + $0xc08] sm:$0xff] %v1761
                  %v1763 = vld [vmem:[%s989 + $0x1820] sm:$0xff]
                  %1764 = vst [vmem:[%s990 + $0xc10] sm:$0xff] %v1763
                  %v1765 = vld [vmem:[%s989 + $0x1830] sm:$0xff]
                  %1766 = vst [vmem:[%s990 + $0xc18] sm:$0xff] %v1765
                  %v1767 = vld [vmem:[%s989 + $0x1840] sm:$0xff]
                  %1768 = vst [vmem:[%s990 + $0xc20] sm:$0xff] %v1767
                  %v1769 = vld [vmem:[%s989 + $0x1850] sm:$0xff]
                  %1770 = vst [vmem:[%s990 + $0xc28] sm:$0xff] %v1769
                  %v1771 = vld [vmem:[%s989 + $0x1860] sm:$0xff]
                  %1772 = vst [vmem:[%s990 + $0xc30] sm:$0xff] %v1771
                  %v1773 = vld [vmem:[%s989 + $0x1870] sm:$0xff]
                  %1774 = vst [vmem:[%s990 + $0xc38] sm:$0xff] %v1773
                $region52: #{qnet_forward.8} parent=46 // loop_footer
                  %s988 = sadd.s32 1, %s984
                $region53: #{qnet_forward.8} parent=46 // loop_footer_branch
                  %983 = sbr.rel target = $region49
                $region54: #{qnet_forward.8} parent=46 // loop_exit
                  _
              $region47: #{qnet_forward.8} parent=31 // pred_fallthru
                _
              // Predicated region
              $region55: #{qnet_forward.8} parent=31 // pred_check
                _
              $region56: #{qnet_forward.8} parent=31 // pred_check_branch
                %1776 = sbr.rel target = $region58
              $region57: #{qnet_forward.8} parent=31 // pred_region
                _
              $region58: #{qnet_forward.8} parent=31 // pred_fallthru
                _
            $region32: #{qnet_forward.8} parent=27 // pred_fallthru
              _
            // Predicated region
            $region33: #{qnet_forward.8} parent=27 // pred_check
              _
            $region34: #{qnet_forward.8} parent=27 // pred_check_branch
              %187 = sbr.rel target = $region36
            $region35: #{qnet_forward.8} parent=27 // pred_region
              loop: start=0, step=1, limit=1
              $region37: #{qnet_forward.8} parent=35 // loop_pre_header
                _
              $region38: #{qnet_forward.8} parent=35 // loop_header
                %s190 = sphi 0, %s194
                %p191 = scmp.ge.s32.totalorder %s190, 1
                %s195 = sphi %s181, %s181
                %s196 = sphi %s175, %s175
              $region39: #{qnet_forward.8} parent=35 // loop_header_branch
                %193 = sbr.rel (%p191) target = $region43
              $region40: #{qnet_forward.8} parent=35 // loop_body
                %v197 = vld [vmem:[%s195] sm:$0xff]
                %198 = vst [vmem:[%s196] sm:$0xff] %v197
                %v199 = vld [vmem:[%s195 + $0x10] sm:$0xff]
                %200 = vst [vmem:[%s196 + $0x8] sm:$0xff] %v199
                %v201 = vld [vmem:[%s195 + $0x20] sm:$0xff]
                %202 = vst [vmem:[%s196 + $0x10] sm:$0xff] %v201
                %v203 = vld [vmem:[%s195 + $0x30] sm:$0xff]
                %204 = vst [vmem:[%s196 + $0x18] sm:$0xff] %v203
                %v205 = vld [vmem:[%s195 + $0x40] sm:$0xff]
                %206 = vst [vmem:[%s196 + $0x20] sm:$0xff] %v205
                %v207 = vld [vmem:[%s195 + $0x50] sm:$0xff]
                %208 = vst [vmem:[%s196 + $0x28] sm:$0xff] %v207
                %v209 = vld [vmem:[%s195 + $0x60] sm:$0xff]
                %210 = vst [vmem:[%s196 + $0x30] sm:$0xff] %v209
                %v211 = vld [vmem:[%s195 + $0x70] sm:$0xff]
                %212 = vst [vmem:[%s196 + $0x38] sm:$0xff] %v211
                %v213 = vld [vmem:[%s195 + $0x80] sm:$0xff]
                %214 = vst [vmem:[%s196 + $0x40] sm:$0xff] %v213
                %v215 = vld [vmem:[%s195 + $0x90] sm:$0xff]
                %216 = vst [vmem:[%s196 + $0x48] sm:$0xff] %v215
                %v217 = vld [vmem:[%s195 + $0xa0] sm:$0xff]
                %218 = vst [vmem:[%s196 + $0x50] sm:$0xff] %v217
                %v219 = vld [vmem:[%s195 + $0xb0] sm:$0xff]
                %220 = vst [vmem:[%s196 + $0x58] sm:$0xff] %v219
                %v221 = vld [vmem:[%s195 + $0xc0] sm:$0xff]
                %222 = vst [vmem:[%s196 + $0x60] sm:$0xff] %v221
                %v223 = vld [vmem:[%s195 + $0xd0] sm:$0xff]
                %224 = vst [vmem:[%s196 + $0x68] sm:$0xff] %v223
                %v225 = vld [vmem:[%s195 + $0xe0] sm:$0xff]
                %226 = vst [vmem:[%s196 + $0x70] sm:$0xff] %v225
                %v227 = vld [vmem:[%s195 + $0xf0] sm:$0xff]
                %228 = vst [vmem:[%s196 + $0x78] sm:$0xff] %v227
                %v229 = vld [vmem:[%s195 + $0x100] sm:$0xff]
                %230 = vst [vmem:[%s196 + $0x80] sm:$0xff] %v229
                %v231 = vld [vmem:[%s195 + $0x110] sm:$0xff]
                %232 = vst [vmem:[%s196 + $0x88] sm:$0xff] %v231
                %v233 = vld [vmem:[%s195 + $0x120] sm:$0xff]
                %234 = vst [vmem:[%s196 + $0x90] sm:$0xff] %v233
                %v235 = vld [vmem:[%s195 + $0x130] sm:$0xff]
                %236 = vst [vmem:[%s196 + $0x98] sm:$0xff] %v235
                %v237 = vld [vmem:[%s195 + $0x140] sm:$0xff]
                %238 = vst [vmem:[%s196 + $0xa0] sm:$0xff] %v237
                %v239 = vld [vmem:[%s195 + $0x150] sm:$0xff]
                %240 = vst [vmem:[%s196 + $0xa8] sm:$0xff] %v239
                %v241 = vld [vmem:[%s195 + $0x160] sm:$0xff]
                %242 = vst [vmem:[%s196 + $0xb0] sm:$0xff] %v241
                %v243 = vld [vmem:[%s195 + $0x170] sm:$0xff]
                %244 = vst [vmem:[%s196 + $0xb8] sm:$0xff] %v243
                %v245 = vld [vmem:[%s195 + $0x180] sm:$0xff]
                %246 = vst [vmem:[%s196 + $0xc0] sm:$0xff] %v245
                %v247 = vld [vmem:[%s195 + $0x190] sm:$0xff]
                %248 = vst [vmem:[%s196 + $0xc8] sm:$0xff] %v247
                %v249 = vld [vmem:[%s195 + $0x1a0] sm:$0xff]
                %250 = vst [vmem:[%s196 + $0xd0] sm:$0xff] %v249
                %v251 = vld [vmem:[%s195 + $0x1b0] sm:$0xff]
                %252 = vst [vmem:[%s196 + $0xd8] sm:$0xff] %v251
                %v253 = vld [vmem:[%s195 + $0x1c0] sm:$0xff]
                %254 = vst [vmem:[%s196 + $0xe0] sm:$0xff] %v253
                %v255 = vld [vmem:[%s195 + $0x1d0] sm:$0xff]
                %256 = vst [vmem:[%s196 + $0xe8] sm:$0xff] %v255
                %v257 = vld [vmem:[%s195 + $0x1e0] sm:$0xff]
                %258 = vst [vmem:[%s196 + $0xf0] sm:$0xff] %v257
                %v259 = vld [vmem:[%s195 + $0x1f0] sm:$0xff]
                %260 = vst [vmem:[%s196 + $0xf8] sm:$0xff] %v259
                %v261 = vld [vmem:[%s195 + $0x200] sm:$0xff]
                %262 = vst [vmem:[%s196 + $0x100] sm:$0xff] %v261
                %v263 = vld [vmem:[%s195 + $0x210] sm:$0xff]
                %264 = vst [vmem:[%s196 + $0x108] sm:$0xff] %v263
                %v265 = vld [vmem:[%s195 + $0x220] sm:$0xff]
                %266 = vst [vmem:[%s196 + $0x110] sm:$0xff] %v265
                %v267 = vld [vmem:[%s195 + $0x230] sm:$0xff]
                %268 = vst [vmem:[%s196 + $0x118] sm:$0xff] %v267
                %v269 = vld [vmem:[%s195 + $0x240] sm:$0xff]
                %270 = vst [vmem:[%s196 + $0x120] sm:$0xff] %v269
                %v271 = vld [vmem:[%s195 + $0x250] sm:$0xff]
                %272 = vst [vmem:[%s196 + $0x128] sm:$0xff] %v271
                %v273 = vld [vmem:[%s195 + $0x260] sm:$0xff]
                %274 = vst [vmem:[%s196 + $0x130] sm:$0xff] %v273
                %v275 = vld [vmem:[%s195 + $0x270] sm:$0xff]
                %276 = vst [vmem:[%s196 + $0x138] sm:$0xff] %v275
                %v277 = vld [vmem:[%s195 + $0x280] sm:$0xff]
                %278 = vst [vmem:[%s196 + $0x140] sm:$0xff] %v277
                %v279 = vld [vmem:[%s195 + $0x290] sm:$0xff]
                %280 = vst [vmem:[%s196 + $0x148] sm:$0xff] %v279
                %v281 = vld [vmem:[%s195 + $0x2a0] sm:$0xff]
                %282 = vst [vmem:[%s196 + $0x150] sm:$0xff] %v281
                %v283 = vld [vmem:[%s195 + $0x2b0] sm:$0xff]
                %284 = vst [vmem:[%s196 + $0x158] sm:$0xff] %v283
                %v285 = vld [vmem:[%s195 + $0x2c0] sm:$0xff]
                %286 = vst [vmem:[%s196 + $0x160] sm:$0xff] %v285
                %v287 = vld [vmem:[%s195 + $0x2d0] sm:$0xff]
                %288 = vst [vmem:[%s196 + $0x168] sm:$0xff] %v287
                %v289 = vld [vmem:[%s195 + $0x2e0] sm:$0xff]
                %290 = vst [vmem:[%s196 + $0x170] sm:$0xff] %v289
                %v291 = vld [vmem:[%s195 + $0x2f0] sm:$0xff]
                %292 = vst [vmem:[%s196 + $0x178] sm:$0xff] %v291
                %v293 = vld [vmem:[%s195 + $0x300] sm:$0xff]
                %294 = vst [vmem:[%s196 + $0x180] sm:$0xff] %v293
                %v295 = vld [vmem:[%s195 + $0x310] sm:$0xff]
                %296 = vst [vmem:[%s196 + $0x188] sm:$0xff] %v295
                %v297 = vld [vmem:[%s195 + $0x320] sm:$0xff]
                %298 = vst [vmem:[%s196 + $0x190] sm:$0xff] %v297
                %v299 = vld [vmem:[%s195 + $0x330] sm:$0xff]
                %300 = vst [vmem:[%s196 + $0x198] sm:$0xff] %v299
                %v301 = vld [vmem:[%s195 + $0x340] sm:$0xff]
                %302 = vst [vmem:[%s196 + $0x1a0] sm:$0xff] %v301
                %v303 = vld [vmem:[%s195 + $0x350] sm:$0xff]
                %304 = vst [vmem:[%s196 + $0x1a8] sm:$0xff] %v303
                %v305 = vld [vmem:[%s195 + $0x360] sm:$0xff]
                %306 = vst [vmem:[%s196 + $0x1b0] sm:$0xff] %v305
                %v307 = vld [vmem:[%s195 + $0x370] sm:$0xff]
                %308 = vst [vmem:[%s196 + $0x1b8] sm:$0xff] %v307
                %v309 = vld [vmem:[%s195 + $0x380] sm:$0xff]
                %310 = vst [vmem:[%s196 + $0x1c0] sm:$0xff] %v309
                %v311 = vld [vmem:[%s195 + $0x390] sm:$0xff]
                %312 = vst [vmem:[%s196 + $0x1c8] sm:$0xff] %v311
                %v313 = vld [vmem:[%s195 + $0x3a0] sm:$0xff]
                %314 = vst [vmem:[%s196 + $0x1d0] sm:$0xff] %v313
                %v315 = vld [vmem:[%s195 + $0x3b0] sm:$0xff]
                %316 = vst [vmem:[%s196 + $0x1d8] sm:$0xff] %v315
                %v317 = vld [vmem:[%s195 + $0x3c0] sm:$0xff]
                %318 = vst [vmem:[%s196 + $0x1e0] sm:$0xff] %v317
                %v319 = vld [vmem:[%s195 + $0x3d0] sm:$0xff]
                %320 = vst [vmem:[%s196 + $0x1e8] sm:$0xff] %v319
                %v321 = vld [vmem:[%s195 + $0x3e0] sm:$0xff]
                %322 = vst [vmem:[%s196 + $0x1f0] sm:$0xff] %v321
                %v323 = vld [vmem:[%s195 + $0x3f0] sm:$0xff]
                %324 = vst [vmem:[%s196 + $0x1f8] sm:$0xff] %v323
                %v325 = vld [vmem:[%s195 + $0x400] sm:$0xff]
                %326 = vst [vmem:[%s196 + $0x200] sm:$0xff] %v325
                %v327 = vld [vmem:[%s195 + $0x410] sm:$0xff]
                %328 = vst [vmem:[%s196 + $0x208] sm:$0xff] %v327
                %v329 = vld [vmem:[%s195 + $0x420] sm:$0xff]
                %330 = vst [vmem:[%s196 + $0x210] sm:$0xff] %v329
                %v331 = vld [vmem:[%s195 + $0x430] sm:$0xff]
                %332 = vst [vmem:[%s196 + $0x218] sm:$0xff] %v331
                %v333 = vld [vmem:[%s195 + $0x440] sm:$0xff]
                %334 = vst [vmem:[%s196 + $0x220] sm:$0xff] %v333
                %v335 = vld [vmem:[%s195 + $0x450] sm:$0xff]
                %336 = vst [vmem:[%s196 + $0x228] sm:$0xff] %v335
                %v337 = vld [vmem:[%s195 + $0x460] sm:$0xff]
                %338 = vst [vmem:[%s196 + $0x230] sm:$0xff] %v337
                %v339 = vld [vmem:[%s195 + $0x470] sm:$0xff]
                %340 = vst [vmem:[%s196 + $0x238] sm:$0xff] %v339
                %v341 = vld [vmem:[%s195 + $0x480] sm:$0xff]
                %342 = vst [vmem:[%s196 + $0x240] sm:$0xff] %v341
                %v343 = vld [vmem:[%s195 + $0x490] sm:$0xff]
                %344 = vst [vmem:[%s196 + $0x248] sm:$0xff] %v343
                %v345 = vld [vmem:[%s195 + $0x4a0] sm:$0xff]
                %346 = vst [vmem:[%s196 + $0x250] sm:$0xff] %v345
                %v347 = vld [vmem:[%s195 + $0x4b0] sm:$0xff]
                %348 = vst [vmem:[%s196 + $0x258] sm:$0xff] %v347
                %v349 = vld [vmem:[%s195 + $0x4c0] sm:$0xff]
                %350 = vst [vmem:[%s196 + $0x260] sm:$0xff] %v349
                %v351 = vld [vmem:[%s195 + $0x4d0] sm:$0xff]
                %352 = vst [vmem:[%s196 + $0x268] sm:$0xff] %v351
                %v353 = vld [vmem:[%s195 + $0x4e0] sm:$0xff]
                %354 = vst [vmem:[%s196 + $0x270] sm:$0xff] %v353
                %v355 = vld [vmem:[%s195 + $0x4f0] sm:$0xff]
                %356 = vst [vmem:[%s196 + $0x278] sm:$0xff] %v355
                %v357 = vld [vmem:[%s195 + $0x500] sm:$0xff]
                %358 = vst [vmem:[%s196 + $0x280] sm:$0xff] %v357
                %v359 = vld [vmem:[%s195 + $0x510] sm:$0xff]
                %360 = vst [vmem:[%s196 + $0x288] sm:$0xff] %v359
                %v361 = vld [vmem:[%s195 + $0x520] sm:$0xff]
                %362 = vst [vmem:[%s196 + $0x290] sm:$0xff] %v361
                %v363 = vld [vmem:[%s195 + $0x530] sm:$0xff]
                %364 = vst [vmem:[%s196 + $0x298] sm:$0xff] %v363
                %v365 = vld [vmem:[%s195 + $0x540] sm:$0xff]
                %366 = vst [vmem:[%s196 + $0x2a0] sm:$0xff] %v365
                %v367 = vld [vmem:[%s195 + $0x550] sm:$0xff]
                %368 = vst [vmem:[%s196 + $0x2a8] sm:$0xff] %v367
                %v369 = vld [vmem:[%s195 + $0x560] sm:$0xff]
                %370 = vst [vmem:[%s196 + $0x2b0] sm:$0xff] %v369
                %v371 = vld [vmem:[%s195 + $0x570] sm:$0xff]
                %372 = vst [vmem:[%s196 + $0x2b8] sm:$0xff] %v371
                %v373 = vld [vmem:[%s195 + $0x580] sm:$0xff]
                %374 = vst [vmem:[%s196 + $0x2c0] sm:$0xff] %v373
                %v375 = vld [vmem:[%s195 + $0x590] sm:$0xff]
                %376 = vst [vmem:[%s196 + $0x2c8] sm:$0xff] %v375
                %v377 = vld [vmem:[%s195 + $0x5a0] sm:$0xff]
                %378 = vst [vmem:[%s196 + $0x2d0] sm:$0xff] %v377
                %v379 = vld [vmem:[%s195 + $0x5b0] sm:$0xff]
                %380 = vst [vmem:[%s196 + $0x2d8] sm:$0xff] %v379
                %v381 = vld [vmem:[%s195 + $0x5c0] sm:$0xff]
                %382 = vst [vmem:[%s196 + $0x2e0] sm:$0xff] %v381
                %v383 = vld [vmem:[%s195 + $0x5d0] sm:$0xff]
                %384 = vst [vmem:[%s196 + $0x2e8] sm:$0xff] %v383
                %v385 = vld [vmem:[%s195 + $0x5e0] sm:$0xff]
                %386 = vst [vmem:[%s196 + $0x2f0] sm:$0xff] %v385
                %v387 = vld [vmem:[%s195 + $0x5f0] sm:$0xff]
                %388 = vst [vmem:[%s196 + $0x2f8] sm:$0xff] %v387
                %v389 = vld [vmem:[%s195 + $0x600] sm:$0xff]
                %390 = vst [vmem:[%s196 + $0x300] sm:$0xff] %v389
                %v391 = vld [vmem:[%s195 + $0x610] sm:$0xff]
                %392 = vst [vmem:[%s196 + $0x308] sm:$0xff] %v391
                %v393 = vld [vmem:[%s195 + $0x620] sm:$0xff]
                %394 = vst [vmem:[%s196 + $0x310] sm:$0xff] %v393
                %v395 = vld [vmem:[%s195 + $0x630] sm:$0xff]
                %396 = vst [vmem:[%s196 + $0x318] sm:$0xff] %v395
                %v397 = vld [vmem:[%s195 + $0x640] sm:$0xff]
                %398 = vst [vmem:[%s196 + $0x320] sm:$0xff] %v397
                %v399 = vld [vmem:[%s195 + $0x650] sm:$0xff]
                %400 = vst [vmem:[%s196 + $0x328] sm:$0xff] %v399
                %v401 = vld [vmem:[%s195 + $0x660] sm:$0xff]
                %402 = vst [vmem:[%s196 + $0x330] sm:$0xff] %v401
                %v403 = vld [vmem:[%s195 + $0x670] sm:$0xff]
                %404 = vst [vmem:[%s196 + $0x338] sm:$0xff] %v403
                %v405 = vld [vmem:[%s195 + $0x680] sm:$0xff]
                %406 = vst [vmem:[%s196 + $0x340] sm:$0xff] %v405
                %v407 = vld [vmem:[%s195 + $0x690] sm:$0xff]
                %408 = vst [vmem:[%s196 + $0x348] sm:$0xff] %v407
                %v409 = vld [vmem:[%s195 + $0x6a0] sm:$0xff]
                %410 = vst [vmem:[%s196 + $0x350] sm:$0xff] %v409
                %v411 = vld [vmem:[%s195 + $0x6b0] sm:$0xff]
                %412 = vst [vmem:[%s196 + $0x358] sm:$0xff] %v411
                %v413 = vld [vmem:[%s195 + $0x6c0] sm:$0xff]
                %414 = vst [vmem:[%s196 + $0x360] sm:$0xff] %v413
                %v415 = vld [vmem:[%s195 + $0x6d0] sm:$0xff]
                %416 = vst [vmem:[%s196 + $0x368] sm:$0xff] %v415
                %v417 = vld [vmem:[%s195 + $0x6e0] sm:$0xff]
                %418 = vst [vmem:[%s196 + $0x370] sm:$0xff] %v417
                %v419 = vld [vmem:[%s195 + $0x6f0] sm:$0xff]
                %420 = vst [vmem:[%s196 + $0x378] sm:$0xff] %v419
                %v421 = vld [vmem:[%s195 + $0x700] sm:$0xff]
                %422 = vst [vmem:[%s196 + $0x380] sm:$0xff] %v421
                %v423 = vld [vmem:[%s195 + $0x710] sm:$0xff]
                %424 = vst [vmem:[%s196 + $0x388] sm:$0xff] %v423
                %v425 = vld [vmem:[%s195 + $0x720] sm:$0xff]
                %426 = vst [vmem:[%s196 + $0x390] sm:$0xff] %v425
                %v427 = vld [vmem:[%s195 + $0x730] sm:$0xff]
                %428 = vst [vmem:[%s196 + $0x398] sm:$0xff] %v427
                %v429 = vld [vmem:[%s195 + $0x740] sm:$0xff]
                %430 = vst [vmem:[%s196 + $0x3a0] sm:$0xff] %v429
                %v431 = vld [vmem:[%s195 + $0x750] sm:$0xff]
                %432 = vst [vmem:[%s196 + $0x3a8] sm:$0xff] %v431
                %v433 = vld [vmem:[%s195 + $0x760] sm:$0xff]
                %434 = vst [vmem:[%s196 + $0x3b0] sm:$0xff] %v433
                %v435 = vld [vmem:[%s195 + $0x770] sm:$0xff]
                %436 = vst [vmem:[%s196 + $0x3b8] sm:$0xff] %v435
                %v437 = vld [vmem:[%s195 + $0x780] sm:$0xff]
                %438 = vst [vmem:[%s196 + $0x3c0] sm:$0xff] %v437
                %v439 = vld [vmem:[%s195 + $0x790] sm:$0xff]
                %440 = vst [vmem:[%s196 + $0x3c8] sm:$0xff] %v439
                %v441 = vld [vmem:[%s195 + $0x7a0] sm:$0xff]
                %442 = vst [vmem:[%s196 + $0x3d0] sm:$0xff] %v441
                %v443 = vld [vmem:[%s195 + $0x7b0] sm:$0xff]
                %444 = vst [vmem:[%s196 + $0x3d8] sm:$0xff] %v443
                %v445 = vld [vmem:[%s195 + $0x7c0] sm:$0xff]
                %446 = vst [vmem:[%s196 + $0x3e0] sm:$0xff] %v445
                %v447 = vld [vmem:[%s195 + $0x7d0] sm:$0xff]
                %448 = vst [vmem:[%s196 + $0x3e8] sm:$0xff] %v447
                %v449 = vld [vmem:[%s195 + $0x7e0] sm:$0xff]
                %450 = vst [vmem:[%s196 + $0x3f0] sm:$0xff] %v449
                %v451 = vld [vmem:[%s195 + $0x7f0] sm:$0xff]
                %452 = vst [vmem:[%s196 + $0x3f8] sm:$0xff] %v451
                %v453 = vld [vmem:[%s195 + $0x800] sm:$0xff]
                %454 = vst [vmem:[%s196 + $0x400] sm:$0xff] %v453
                %v455 = vld [vmem:[%s195 + $0x810] sm:$0xff]
                %456 = vst [vmem:[%s196 + $0x408] sm:$0xff] %v455
                %v457 = vld [vmem:[%s195 + $0x820] sm:$0xff]
                %458 = vst [vmem:[%s196 + $0x410] sm:$0xff] %v457
                %v459 = vld [vmem:[%s195 + $0x830] sm:$0xff]
                %460 = vst [vmem:[%s196 + $0x418] sm:$0xff] %v459
                %v461 = vld [vmem:[%s195 + $0x840] sm:$0xff]
                %462 = vst [vmem:[%s196 + $0x420] sm:$0xff] %v461
                %v463 = vld [vmem:[%s195 + $0x850] sm:$0xff]
                %464 = vst [vmem:[%s196 + $0x428] sm:$0xff] %v463
                %v465 = vld [vmem:[%s195 + $0x860] sm:$0xff]
                %466 = vst [vmem:[%s196 + $0x430] sm:$0xff] %v465
                %v467 = vld [vmem:[%s195 + $0x870] sm:$0xff]
                %468 = vst [vmem:[%s196 + $0x438] sm:$0xff] %v467
                %v469 = vld [vmem:[%s195 + $0x880] sm:$0xff]
                %470 = vst [vmem:[%s196 + $0x440] sm:$0xff] %v469
                %v471 = vld [vmem:[%s195 + $0x890] sm:$0xff]
                %472 = vst [vmem:[%s196 + $0x448] sm:$0xff] %v471
                %v473 = vld [vmem:[%s195 + $0x8a0] sm:$0xff]
                %474 = vst [vmem:[%s196 + $0x450] sm:$0xff] %v473
                %v475 = vld [vmem:[%s195 + $0x8b0] sm:$0xff]
                %476 = vst [vmem:[%s196 + $0x458] sm:$0xff] %v475
                %v477 = vld [vmem:[%s195 + $0x8c0] sm:$0xff]
                %478 = vst [vmem:[%s196 + $0x460] sm:$0xff] %v477
                %v479 = vld [vmem:[%s195 + $0x8d0] sm:$0xff]
                %480 = vst [vmem:[%s196 + $0x468] sm:$0xff] %v479
                %v481 = vld [vmem:[%s195 + $0x8e0] sm:$0xff]
                %482 = vst [vmem:[%s196 + $0x470] sm:$0xff] %v481
                %v483 = vld [vmem:[%s195 + $0x8f0] sm:$0xff]
                %484 = vst [vmem:[%s196 + $0x478] sm:$0xff] %v483
                %v485 = vld [vmem:[%s195 + $0x900] sm:$0xff]
                %486 = vst [vmem:[%s196 + $0x480] sm:$0xff] %v485
                %v487 = vld [vmem:[%s195 + $0x910] sm:$0xff]
                %488 = vst [vmem:[%s196 + $0x488] sm:$0xff] %v487
                %v489 = vld [vmem:[%s195 + $0x920] sm:$0xff]
                %490 = vst [vmem:[%s196 + $0x490] sm:$0xff] %v489
                %v491 = vld [vmem:[%s195 + $0x930] sm:$0xff]
                %492 = vst [vmem:[%s196 + $0x498] sm:$0xff] %v491
                %v493 = vld [vmem:[%s195 + $0x940] sm:$0xff]
                %494 = vst [vmem:[%s196 + $0x4a0] sm:$0xff] %v493
                %v495 = vld [vmem:[%s195 + $0x950] sm:$0xff]
                %496 = vst [vmem:[%s196 + $0x4a8] sm:$0xff] %v495
                %v497 = vld [vmem:[%s195 + $0x960] sm:$0xff]
                %498 = vst [vmem:[%s196 + $0x4b0] sm:$0xff] %v497
                %v499 = vld [vmem:[%s195 + $0x970] sm:$0xff]
                %500 = vst [vmem:[%s196 + $0x4b8] sm:$0xff] %v499
                %v501 = vld [vmem:[%s195 + $0x980] sm:$0xff]
                %502 = vst [vmem:[%s196 + $0x4c0] sm:$0xff] %v501
                %v503 = vld [vmem:[%s195 + $0x990] sm:$0xff]
                %504 = vst [vmem:[%s196 + $0x4c8] sm:$0xff] %v503
                %v505 = vld [vmem:[%s195 + $0x9a0] sm:$0xff]
                %506 = vst [vmem:[%s196 + $0x4d0] sm:$0xff] %v505
                %v507 = vld [vmem:[%s195 + $0x9b0] sm:$0xff]
                %508 = vst [vmem:[%s196 + $0x4d8] sm:$0xff] %v507
                %v509 = vld [vmem:[%s195 + $0x9c0] sm:$0xff]
                %510 = vst [vmem:[%s196 + $0x4e0] sm:$0xff] %v509
                %v511 = vld [vmem:[%s195 + $0x9d0] sm:$0xff]
                %512 = vst [vmem:[%s196 + $0x4e8] sm:$0xff] %v511
                %v513 = vld [vmem:[%s195 + $0x9e0] sm:$0xff]
                %514 = vst [vmem:[%s196 + $0x4f0] sm:$0xff] %v513
                %v515 = vld [vmem:[%s195 + $0x9f0] sm:$0xff]
                %516 = vst [vmem:[%s196 + $0x4f8] sm:$0xff] %v515
                %v517 = vld [vmem:[%s195 + $0xa00] sm:$0xff]
                %518 = vst [vmem:[%s196 + $0x500] sm:$0xff] %v517
                %v519 = vld [vmem:[%s195 + $0xa10] sm:$0xff]
                %520 = vst [vmem:[%s196 + $0x508] sm:$0xff] %v519
                %v521 = vld [vmem:[%s195 + $0xa20] sm:$0xff]
                %522 = vst [vmem:[%s196 + $0x510] sm:$0xff] %v521
                %v523 = vld [vmem:[%s195 + $0xa30] sm:$0xff]
                %524 = vst [vmem:[%s196 + $0x518] sm:$0xff] %v523
                %v525 = vld [vmem:[%s195 + $0xa40] sm:$0xff]
                %526 = vst [vmem:[%s196 + $0x520] sm:$0xff] %v525
                %v527 = vld [vmem:[%s195 + $0xa50] sm:$0xff]
                %528 = vst [vmem:[%s196 + $0x528] sm:$0xff] %v527
                %v529 = vld [vmem:[%s195 + $0xa60] sm:$0xff]
                %530 = vst [vmem:[%s196 + $0x530] sm:$0xff] %v529
                %v531 = vld [vmem:[%s195 + $0xa70] sm:$0xff]
                %532 = vst [vmem:[%s196 + $0x538] sm:$0xff] %v531
                %v533 = vld [vmem:[%s195 + $0xa80] sm:$0xff]
                %534 = vst [vmem:[%s196 + $0x540] sm:$0xff] %v533
                %v535 = vld [vmem:[%s195 + $0xa90] sm:$0xff]
                %536 = vst [vmem:[%s196 + $0x548] sm:$0xff] %v535
                %v537 = vld [vmem:[%s195 + $0xaa0] sm:$0xff]
                %538 = vst [vmem:[%s196 + $0x550] sm:$0xff] %v537
                %v539 = vld [vmem:[%s195 + $0xab0] sm:$0xff]
                %540 = vst [vmem:[%s196 + $0x558] sm:$0xff] %v539
                %v541 = vld [vmem:[%s195 + $0xac0] sm:$0xff]
                %542 = vst [vmem:[%s196 + $0x560] sm:$0xff] %v541
                %v543 = vld [vmem:[%s195 + $0xad0] sm:$0xff]
                %544 = vst [vmem:[%s196 + $0x568] sm:$0xff] %v543
                %v545 = vld [vmem:[%s195 + $0xae0] sm:$0xff]
                %546 = vst [vmem:[%s196 + $0x570] sm:$0xff] %v545
                %v547 = vld [vmem:[%s195 + $0xaf0] sm:$0xff]
                %548 = vst [vmem:[%s196 + $0x578] sm:$0xff] %v547
                %v549 = vld [vmem:[%s195 + $0xb00] sm:$0xff]
                %550 = vst [vmem:[%s196 + $0x580] sm:$0xff] %v549
                %v551 = vld [vmem:[%s195 + $0xb10] sm:$0xff]
                %552 = vst [vmem:[%s196 + $0x588] sm:$0xff] %v551
                %v553 = vld [vmem:[%s195 + $0xb20] sm:$0xff]
                %554 = vst [vmem:[%s196 + $0x590] sm:$0xff] %v553
                %v555 = vld [vmem:[%s195 + $0xb30] sm:$0xff]
                %556 = vst [vmem:[%s196 + $0x598] sm:$0xff] %v555
                %v557 = vld [vmem:[%s195 + $0xb40] sm:$0xff]
                %558 = vst [vmem:[%s196 + $0x5a0] sm:$0xff] %v557
                %v559 = vld [vmem:[%s195 + $0xb50] sm:$0xff]
                %560 = vst [vmem:[%s196 + $0x5a8] sm:$0xff] %v559
                %v561 = vld [vmem:[%s195 + $0xb60] sm:$0xff]
                %562 = vst [vmem:[%s196 + $0x5b0] sm:$0xff] %v561
                %v563 = vld [vmem:[%s195 + $0xb70] sm:$0xff]
                %564 = vst [vmem:[%s196 + $0x5b8] sm:$0xff] %v563
                %v565 = vld [vmem:[%s195 + $0xb80] sm:$0xff]
                %566 = vst [vmem:[%s196 + $0x5c0] sm:$0xff] %v565
                %v567 = vld [vmem:[%s195 + $0xb90] sm:$0xff]
                %568 = vst [vmem:[%s196 + $0x5c8] sm:$0xff] %v567
                %v569 = vld [vmem:[%s195 + $0xba0] sm:$0xff]
                %570 = vst [vmem:[%s196 + $0x5d0] sm:$0xff] %v569
                %v571 = vld [vmem:[%s195 + $0xbb0] sm:$0xff]
                %572 = vst [vmem:[%s196 + $0x5d8] sm:$0xff] %v571
                %v573 = vld [vmem:[%s195 + $0xbc0] sm:$0xff]
                %574 = vst [vmem:[%s196 + $0x5e0] sm:$0xff] %v573
                %v575 = vld [vmem:[%s195 + $0xbd0] sm:$0xff]
                %576 = vst [vmem:[%s196 + $0x5e8] sm:$0xff] %v575
                %v577 = vld [vmem:[%s195 + $0xbe0] sm:$0xff]
                %578 = vst [vmem:[%s196 + $0x5f0] sm:$0xff] %v577
                %v579 = vld [vmem:[%s195 + $0xbf0] sm:$0xff]
                %580 = vst [vmem:[%s196 + $0x5f8] sm:$0xff] %v579
                %v581 = vld [vmem:[%s195 + $0xc00] sm:$0xff]
                %582 = vst [vmem:[%s196 + $0x600] sm:$0xff] %v581
                %v583 = vld [vmem:[%s195 + $0xc10] sm:$0xff]
                %584 = vst [vmem:[%s196 + $0x608] sm:$0xff] %v583
                %v585 = vld [vmem:[%s195 + $0xc20] sm:$0xff]
                %586 = vst [vmem:[%s196 + $0x610] sm:$0xff] %v585
                %v587 = vld [vmem:[%s195 + $0xc30] sm:$0xff]
                %588 = vst [vmem:[%s196 + $0x618] sm:$0xff] %v587
                %v589 = vld [vmem:[%s195 + $0xc40] sm:$0xff]
                %590 = vst [vmem:[%s196 + $0x620] sm:$0xff] %v589
                %v591 = vld [vmem:[%s195 + $0xc50] sm:$0xff]
                %592 = vst [vmem:[%s196 + $0x628] sm:$0xff] %v591
                %v593 = vld [vmem:[%s195 + $0xc60] sm:$0xff]
                %594 = vst [vmem:[%s196 + $0x630] sm:$0xff] %v593
                %v595 = vld [vmem:[%s195 + $0xc70] sm:$0xff]
                %596 = vst [vmem:[%s196 + $0x638] sm:$0xff] %v595
                %v597 = vld [vmem:[%s195 + $0xc80] sm:$0xff]
                %598 = vst [vmem:[%s196 + $0x640] sm:$0xff] %v597
                %v599 = vld [vmem:[%s195 + $0xc90] sm:$0xff]
                %600 = vst [vmem:[%s196 + $0x648] sm:$0xff] %v599
                %v601 = vld [vmem:[%s195 + $0xca0] sm:$0xff]
                %602 = vst [vmem:[%s196 + $0x650] sm:$0xff] %v601
                %v603 = vld [vmem:[%s195 + $0xcb0] sm:$0xff]
                %604 = vst [vmem:[%s196 + $0x658] sm:$0xff] %v603
                %v605 = vld [vmem:[%s195 + $0xcc0] sm:$0xff]
                %606 = vst [vmem:[%s196 + $0x660] sm:$0xff] %v605
                %v607 = vld [vmem:[%s195 + $0xcd0] sm:$0xff]
                %608 = vst [vmem:[%s196 + $0x668] sm:$0xff] %v607
                %v609 = vld [vmem:[%s195 + $0xce0] sm:$0xff]
                %610 = vst [vmem:[%s196 + $0x670] sm:$0xff] %v609
                %v611 = vld [vmem:[%s195 + $0xcf0] sm:$0xff]
                %612 = vst [vmem:[%s196 + $0x678] sm:$0xff] %v611
                %v613 = vld [vmem:[%s195 + $0xd00] sm:$0xff]
                %614 = vst [vmem:[%s196 + $0x680] sm:$0xff] %v613
                %v615 = vld [vmem:[%s195 + $0xd10] sm:$0xff]
                %616 = vst [vmem:[%s196 + $0x688] sm:$0xff] %v615
                %v617 = vld [vmem:[%s195 + $0xd20] sm:$0xff]
                %618 = vst [vmem:[%s196 + $0x690] sm:$0xff] %v617
                %v619 = vld [vmem:[%s195 + $0xd30] sm:$0xff]
                %620 = vst [vmem:[%s196 + $0x698] sm:$0xff] %v619
                %v621 = vld [vmem:[%s195 + $0xd40] sm:$0xff]
                %622 = vst [vmem:[%s196 + $0x6a0] sm:$0xff] %v621
                %v623 = vld [vmem:[%s195 + $0xd50] sm:$0xff]
                %624 = vst [vmem:[%s196 + $0x6a8] sm:$0xff] %v623
                %v625 = vld [vmem:[%s195 + $0xd60] sm:$0xff]
                %626 = vst [vmem:[%s196 + $0x6b0] sm:$0xff] %v625
                %v627 = vld [vmem:[%s195 + $0xd70] sm:$0xff]
                %628 = vst [vmem:[%s196 + $0x6b8] sm:$0xff] %v627
                %v629 = vld [vmem:[%s195 + $0xd80] sm:$0xff]
                %630 = vst [vmem:[%s196 + $0x6c0] sm:$0xff] %v629
                %v631 = vld [vmem:[%s195 + $0xd90] sm:$0xff]
                %632 = vst [vmem:[%s196 + $0x6c8] sm:$0xff] %v631
                %v633 = vld [vmem:[%s195 + $0xda0] sm:$0xff]
                %634 = vst [vmem:[%s196 + $0x6d0] sm:$0xff] %v633
                %v635 = vld [vmem:[%s195 + $0xdb0] sm:$0xff]
                %636 = vst [vmem:[%s196 + $0x6d8] sm:$0xff] %v635
                %v637 = vld [vmem:[%s195 + $0xdc0] sm:$0xff]
                %638 = vst [vmem:[%s196 + $0x6e0] sm:$0xff] %v637
                %v639 = vld [vmem:[%s195 + $0xdd0] sm:$0xff]
                %640 = vst [vmem:[%s196 + $0x6e8] sm:$0xff] %v639
                %v641 = vld [vmem:[%s195 + $0xde0] sm:$0xff]
                %642 = vst [vmem:[%s196 + $0x6f0] sm:$0xff] %v641
                %v643 = vld [vmem:[%s195 + $0xdf0] sm:$0xff]
                %644 = vst [vmem:[%s196 + $0x6f8] sm:$0xff] %v643
                %v645 = vld [vmem:[%s195 + $0xe00] sm:$0xff]
                %646 = vst [vmem:[%s196 + $0x700] sm:$0xff] %v645
                %v647 = vld [vmem:[%s195 + $0xe10] sm:$0xff]
                %648 = vst [vmem:[%s196 + $0x708] sm:$0xff] %v647
                %v649 = vld [vmem:[%s195 + $0xe20] sm:$0xff]
                %650 = vst [vmem:[%s196 + $0x710] sm:$0xff] %v649
                %v651 = vld [vmem:[%s195 + $0xe30] sm:$0xff]
                %652 = vst [vmem:[%s196 + $0x718] sm:$0xff] %v651
                %v653 = vld [vmem:[%s195 + $0xe40] sm:$0xff]
                %654 = vst [vmem:[%s196 + $0x720] sm:$0xff] %v653
                %v655 = vld [vmem:[%s195 + $0xe50] sm:$0xff]
                %656 = vst [vmem:[%s196 + $0x728] sm:$0xff] %v655
                %v657 = vld [vmem:[%s195 + $0xe60] sm:$0xff]
                %658 = vst [vmem:[%s196 + $0x730] sm:$0xff] %v657
                %v659 = vld [vmem:[%s195 + $0xe70] sm:$0xff]
                %660 = vst [vmem:[%s196 + $0x738] sm:$0xff] %v659
                %v661 = vld [vmem:[%s195 + $0xe80] sm:$0xff]
                %662 = vst [vmem:[%s196 + $0x740] sm:$0xff] %v661
                %v663 = vld [vmem:[%s195 + $0xe90] sm:$0xff]
                %664 = vst [vmem:[%s196 + $0x748] sm:$0xff] %v663
                %v665 = vld [vmem:[%s195 + $0xea0] sm:$0xff]
                %666 = vst [vmem:[%s196 + $0x750] sm:$0xff] %v665
                %v667 = vld [vmem:[%s195 + $0xeb0] sm:$0xff]
                %668 = vst [vmem:[%s196 + $0x758] sm:$0xff] %v667
                %v669 = vld [vmem:[%s195 + $0xec0] sm:$0xff]
                %670 = vst [vmem:[%s196 + $0x760] sm:$0xff] %v669
                %v671 = vld [vmem:[%s195 + $0xed0] sm:$0xff]
                %672 = vst [vmem:[%s196 + $0x768] sm:$0xff] %v671
                %v673 = vld [vmem:[%s195 + $0xee0] sm:$0xff]
                %674 = vst [vmem:[%s196 + $0x770] sm:$0xff] %v673
                %v675 = vld [vmem:[%s195 + $0xef0] sm:$0xff]
                %676 = vst [vmem:[%s196 + $0x778] sm:$0xff] %v675
                %v677 = vld [vmem:[%s195 + $0xf00] sm:$0xff]
                %678 = vst [vmem:[%s196 + $0x780] sm:$0xff] %v677
                %v679 = vld [vmem:[%s195 + $0xf10] sm:$0xff]
                %680 = vst [vmem:[%s196 + $0x788] sm:$0xff] %v679
                %v681 = vld [vmem:[%s195 + $0xf20] sm:$0xff]
                %682 = vst [vmem:[%s196 + $0x790] sm:$0xff] %v681
                %v683 = vld [vmem:[%s195 + $0xf30] sm:$0xff]
                %684 = vst [vmem:[%s196 + $0x798] sm:$0xff] %v683
                %v685 = vld [vmem:[%s195 + $0xf40] sm:$0xff]
                %686 = vst [vmem:[%s196 + $0x7a0] sm:$0xff] %v685
                %v687 = vld [vmem:[%s195 + $0xf50] sm:$0xff]
                %688 = vst [vmem:[%s196 + $0x7a8] sm:$0xff] %v687
                %v689 = vld [vmem:[%s195 + $0xf60] sm:$0xff]
                %690 = vst [vmem:[%s196 + $0x7b0] sm:$0xff] %v689
                %v691 = vld [vmem:[%s195 + $0xf70] sm:$0xff]
                %692 = vst [vmem:[%s196 + $0x7b8] sm:$0xff] %v691
                %v693 = vld [vmem:[%s195 + $0xf80] sm:$0xff]
                %694 = vst [vmem:[%s196 + $0x7c0] sm:$0xff] %v693
                %v695 = vld [vmem:[%s195 + $0xf90] sm:$0xff]
                %696 = vst [vmem:[%s196 + $0x7c8] sm:$0xff] %v695
                %v697 = vld [vmem:[%s195 + $0xfa0] sm:$0xff]
                %698 = vst [vmem:[%s196 + $0x7d0] sm:$0xff] %v697
                %v699 = vld [vmem:[%s195 + $0xfb0] sm:$0xff]
                %700 = vst [vmem:[%s196 + $0x7d8] sm:$0xff] %v699
                %v701 = vld [vmem:[%s195 + $0xfc0] sm:$0xff]
                %702 = vst [vmem:[%s196 + $0x7e0] sm:$0xff] %v701
                %v703 = vld [vmem:[%s195 + $0xfd0] sm:$0xff]
                %704 = vst [vmem:[%s196 + $0x7e8] sm:$0xff] %v703
                %v705 = vld [vmem:[%s195 + $0xfe0] sm:$0xff]
                %706 = vst [vmem:[%s196 + $0x7f0] sm:$0xff] %v705
                %v707 = vld [vmem:[%s195 + $0xff0] sm:$0xff]
                %708 = vst [vmem:[%s196 + $0x7f8] sm:$0xff] %v707
                %v709 = vld [vmem:[%s195 + $0x1000] sm:$0xff]
                %710 = vst [vmem:[%s196 + $0x800] sm:$0xff] %v709
                %v711 = vld [vmem:[%s195 + $0x1010] sm:$0xff]
                %712 = vst [vmem:[%s196 + $0x808] sm:$0xff] %v711
                %v713 = vld [vmem:[%s195 + $0x1020] sm:$0xff]
                %714 = vst [vmem:[%s196 + $0x810] sm:$0xff] %v713
                %v715 = vld [vmem:[%s195 + $0x1030] sm:$0xff]
                %716 = vst [vmem:[%s196 + $0x818] sm:$0xff] %v715
                %v717 = vld [vmem:[%s195 + $0x1040] sm:$0xff]
                %718 = vst [vmem:[%s196 + $0x820] sm:$0xff] %v717
                %v719 = vld [vmem:[%s195 + $0x1050] sm:$0xff]
                %720 = vst [vmem:[%s196 + $0x828] sm:$0xff] %v719
                %v721 = vld [vmem:[%s195 + $0x1060] sm:$0xff]
                %722 = vst [vmem:[%s196 + $0x830] sm:$0xff] %v721
                %v723 = vld [vmem:[%s195 + $0x1070] sm:$0xff]
                %724 = vst [vmem:[%s196 + $0x838] sm:$0xff] %v723
                %v725 = vld [vmem:[%s195 + $0x1080] sm:$0xff]
                %726 = vst [vmem:[%s196 + $0x840] sm:$0xff] %v725
                %v727 = vld [vmem:[%s195 + $0x1090] sm:$0xff]
                %728 = vst [vmem:[%s196 + $0x848] sm:$0xff] %v727
                %v729 = vld [vmem:[%s195 + $0x10a0] sm:$0xff]
                %730 = vst [vmem:[%s196 + $0x850] sm:$0xff] %v729
                %v731 = vld [vmem:[%s195 + $0x10b0] sm:$0xff]
                %732 = vst [vmem:[%s196 + $0x858] sm:$0xff] %v731
                %v733 = vld [vmem:[%s195 + $0x10c0] sm:$0xff]
                %734 = vst [vmem:[%s196 + $0x860] sm:$0xff] %v733
                %v735 = vld [vmem:[%s195 + $0x10d0] sm:$0xff]
                %736 = vst [vmem:[%s196 + $0x868] sm:$0xff] %v735
                %v737 = vld [vmem:[%s195 + $0x10e0] sm:$0xff]
                %738 = vst [vmem:[%s196 + $0x870] sm:$0xff] %v737
                %v739 = vld [vmem:[%s195 + $0x10f0] sm:$0xff]
                %740 = vst [vmem:[%s196 + $0x878] sm:$0xff] %v739
                %v741 = vld [vmem:[%s195 + $0x1100] sm:$0xff]
                %742 = vst [vmem:[%s196 + $0x880] sm:$0xff] %v741
                %v743 = vld [vmem:[%s195 + $0x1110] sm:$0xff]
                %744 = vst [vmem:[%s196 + $0x888] sm:$0xff] %v743
                %v745 = vld [vmem:[%s195 + $0x1120] sm:$0xff]
                %746 = vst [vmem:[%s196 + $0x890] sm:$0xff] %v745
                %v747 = vld [vmem:[%s195 + $0x1130] sm:$0xff]
                %748 = vst [vmem:[%s196 + $0x898] sm:$0xff] %v747
                %v749 = vld [vmem:[%s195 + $0x1140] sm:$0xff]
                %750 = vst [vmem:[%s196 + $0x8a0] sm:$0xff] %v749
                %v751 = vld [vmem:[%s195 + $0x1150] sm:$0xff]
                %752 = vst [vmem:[%s196 + $0x8a8] sm:$0xff] %v751
                %v753 = vld [vmem:[%s195 + $0x1160] sm:$0xff]
                %754 = vst [vmem:[%s196 + $0x8b0] sm:$0xff] %v753
                %v755 = vld [vmem:[%s195 + $0x1170] sm:$0xff]
                %756 = vst [vmem:[%s196 + $0x8b8] sm:$0xff] %v755
                %v757 = vld [vmem:[%s195 + $0x1180] sm:$0xff]
                %758 = vst [vmem:[%s196 + $0x8c0] sm:$0xff] %v757
                %v759 = vld [vmem:[%s195 + $0x1190] sm:$0xff]
                %760 = vst [vmem:[%s196 + $0x8c8] sm:$0xff] %v759
                %v761 = vld [vmem:[%s195 + $0x11a0] sm:$0xff]
                %762 = vst [vmem:[%s196 + $0x8d0] sm:$0xff] %v761
                %v763 = vld [vmem:[%s195 + $0x11b0] sm:$0xff]
                %764 = vst [vmem:[%s196 + $0x8d8] sm:$0xff] %v763
                %v765 = vld [vmem:[%s195 + $0x11c0] sm:$0xff]
                %766 = vst [vmem:[%s196 + $0x8e0] sm:$0xff] %v765
                %v767 = vld [vmem:[%s195 + $0x11d0] sm:$0xff]
                %768 = vst [vmem:[%s196 + $0x8e8] sm:$0xff] %v767
                %v769 = vld [vmem:[%s195 + $0x11e0] sm:$0xff]
                %770 = vst [vmem:[%s196 + $0x8f0] sm:$0xff] %v769
                %v771 = vld [vmem:[%s195 + $0x11f0] sm:$0xff]
                %772 = vst [vmem:[%s196 + $0x8f8] sm:$0xff] %v771
                %v773 = vld [vmem:[%s195 + $0x1200] sm:$0xff]
                %774 = vst [vmem:[%s196 + $0x900] sm:$0xff] %v773
                %v775 = vld [vmem:[%s195 + $0x1210] sm:$0xff]
                %776 = vst [vmem:[%s196 + $0x908] sm:$0xff] %v775
                %v777 = vld [vmem:[%s195 + $0x1220] sm:$0xff]
                %778 = vst [vmem:[%s196 + $0x910] sm:$0xff] %v777
                %v779 = vld [vmem:[%s195 + $0x1230] sm:$0xff]
                %780 = vst [vmem:[%s196 + $0x918] sm:$0xff] %v779
                %v781 = vld [vmem:[%s195 + $0x1240] sm:$0xff]
                %782 = vst [vmem:[%s196 + $0x920] sm:$0xff] %v781
                %v783 = vld [vmem:[%s195 + $0x1250] sm:$0xff]
                %784 = vst [vmem:[%s196 + $0x928] sm:$0xff] %v783
                %v785 = vld [vmem:[%s195 + $0x1260] sm:$0xff]
                %786 = vst [vmem:[%s196 + $0x930] sm:$0xff] %v785
                %v787 = vld [vmem:[%s195 + $0x1270] sm:$0xff]
                %788 = vst [vmem:[%s196 + $0x938] sm:$0xff] %v787
                %v789 = vld [vmem:[%s195 + $0x1280] sm:$0xff]
                %790 = vst [vmem:[%s196 + $0x940] sm:$0xff] %v789
                %v791 = vld [vmem:[%s195 + $0x1290] sm:$0xff]
                %792 = vst [vmem:[%s196 + $0x948] sm:$0xff] %v791
                %v793 = vld [vmem:[%s195 + $0x12a0] sm:$0xff]
                %794 = vst [vmem:[%s196 + $0x950] sm:$0xff] %v793
                %v795 = vld [vmem:[%s195 + $0x12b0] sm:$0xff]
                %796 = vst [vmem:[%s196 + $0x958] sm:$0xff] %v795
                %v797 = vld [vmem:[%s195 + $0x12c0] sm:$0xff]
                %798 = vst [vmem:[%s196 + $0x960] sm:$0xff] %v797
                %v799 = vld [vmem:[%s195 + $0x12d0] sm:$0xff]
                %800 = vst [vmem:[%s196 + $0x968] sm:$0xff] %v799
                %v801 = vld [vmem:[%s195 + $0x12e0] sm:$0xff]
                %802 = vst [vmem:[%s196 + $0x970] sm:$0xff] %v801
                %v803 = vld [vmem:[%s195 + $0x12f0] sm:$0xff]
                %804 = vst [vmem:[%s196 + $0x978] sm:$0xff] %v803
                %v805 = vld [vmem:[%s195 + $0x1300] sm:$0xff]
                %806 = vst [vmem:[%s196 + $0x980] sm:$0xff] %v805
                %v807 = vld [vmem:[%s195 + $0x1310] sm:$0xff]
                %808 = vst [vmem:[%s196 + $0x988] sm:$0xff] %v807
                %v809 = vld [vmem:[%s195 + $0x1320] sm:$0xff]
                %810 = vst [vmem:[%s196 + $0x990] sm:$0xff] %v809
                %v811 = vld [vmem:[%s195 + $0x1330] sm:$0xff]
                %812 = vst [vmem:[%s196 + $0x998] sm:$0xff] %v811
                %v813 = vld [vmem:[%s195 + $0x1340] sm:$0xff]
                %814 = vst [vmem:[%s196 + $0x9a0] sm:$0xff] %v813
                %v815 = vld [vmem:[%s195 + $0x1350] sm:$0xff]
                %816 = vst [vmem:[%s196 + $0x9a8] sm:$0xff] %v815
                %v817 = vld [vmem:[%s195 + $0x1360] sm:$0xff]
                %818 = vst [vmem:[%s196 + $0x9b0] sm:$0xff] %v817
                %v819 = vld [vmem:[%s195 + $0x1370] sm:$0xff]
                %820 = vst [vmem:[%s196 + $0x9b8] sm:$0xff] %v819
                %v821 = vld [vmem:[%s195 + $0x1380] sm:$0xff]
                %822 = vst [vmem:[%s196 + $0x9c0] sm:$0xff] %v821
                %v823 = vld [vmem:[%s195 + $0x1390] sm:$0xff]
                %824 = vst [vmem:[%s196 + $0x9c8] sm:$0xff] %v823
                %v825 = vld [vmem:[%s195 + $0x13a0] sm:$0xff]
                %826 = vst [vmem:[%s196 + $0x9d0] sm:$0xff] %v825
                %v827 = vld [vmem:[%s195 + $0x13b0] sm:$0xff]
                %828 = vst [vmem:[%s196 + $0x9d8] sm:$0xff] %v827
                %v829 = vld [vmem:[%s195 + $0x13c0] sm:$0xff]
                %830 = vst [vmem:[%s196 + $0x9e0] sm:$0xff] %v829
                %v831 = vld [vmem:[%s195 + $0x13d0] sm:$0xff]
                %832 = vst [vmem:[%s196 + $0x9e8] sm:$0xff] %v831
                %v833 = vld [vmem:[%s195 + $0x13e0] sm:$0xff]
                %834 = vst [vmem:[%s196 + $0x9f0] sm:$0xff] %v833
                %v835 = vld [vmem:[%s195 + $0x13f0] sm:$0xff]
                %836 = vst [vmem:[%s196 + $0x9f8] sm:$0xff] %v835
                %v837 = vld [vmem:[%s195 + $0x1400] sm:$0xff]
                %838 = vst [vmem:[%s196 + $0xa00] sm:$0xff] %v837
                %v839 = vld [vmem:[%s195 + $0x1410] sm:$0xff]
                %840 = vst [vmem:[%s196 + $0xa08] sm:$0xff] %v839
                %v841 = vld [vmem:[%s195 + $0x1420] sm:$0xff]
                %842 = vst [vmem:[%s196 + $0xa10] sm:$0xff] %v841
                %v843 = vld [vmem:[%s195 + $0x1430] sm:$0xff]
                %844 = vst [vmem:[%s196 + $0xa18] sm:$0xff] %v843
                %v845 = vld [vmem:[%s195 + $0x1440] sm:$0xff]
                %846 = vst [vmem:[%s196 + $0xa20] sm:$0xff] %v845
                %v847 = vld [vmem:[%s195 + $0x1450] sm:$0xff]
                %848 = vst [vmem:[%s196 + $0xa28] sm:$0xff] %v847
                %v849 = vld [vmem:[%s195 + $0x1460] sm:$0xff]
                %850 = vst [vmem:[%s196 + $0xa30] sm:$0xff] %v849
                %v851 = vld [vmem:[%s195 + $0x1470] sm:$0xff]
                %852 = vst [vmem:[%s196 + $0xa38] sm:$0xff] %v851
                %v853 = vld [vmem:[%s195 + $0x1480] sm:$0xff]
                %854 = vst [vmem:[%s196 + $0xa40] sm:$0xff] %v853
                %v855 = vld [vmem:[%s195 + $0x1490] sm:$0xff]
                %856 = vst [vmem:[%s196 + $0xa48] sm:$0xff] %v855
                %v857 = vld [vmem:[%s195 + $0x14a0] sm:$0xff]
                %858 = vst [vmem:[%s196 + $0xa50] sm:$0xff] %v857
                %v859 = vld [vmem:[%s195 + $0x14b0] sm:$0xff]
                %860 = vst [vmem:[%s196 + $0xa58] sm:$0xff] %v859
                %v861 = vld [vmem:[%s195 + $0x14c0] sm:$0xff]
                %862 = vst [vmem:[%s196 + $0xa60] sm:$0xff] %v861
                %v863 = vld [vmem:[%s195 + $0x14d0] sm:$0xff]
                %864 = vst [vmem:[%s196 + $0xa68] sm:$0xff] %v863
                %v865 = vld [vmem:[%s195 + $0x14e0] sm:$0xff]
                %866 = vst [vmem:[%s196 + $0xa70] sm:$0xff] %v865
                %v867 = vld [vmem:[%s195 + $0x14f0] sm:$0xff]
                %868 = vst [vmem:[%s196 + $0xa78] sm:$0xff] %v867
                %v869 = vld [vmem:[%s195 + $0x1500] sm:$0xff]
                %870 = vst [vmem:[%s196 + $0xa80] sm:$0xff] %v869
                %v871 = vld [vmem:[%s195 + $0x1510] sm:$0xff]
                %872 = vst [vmem:[%s196 + $0xa88] sm:$0xff] %v871
                %v873 = vld [vmem:[%s195 + $0x1520] sm:$0xff]
                %874 = vst [vmem:[%s196 + $0xa90] sm:$0xff] %v873
                %v875 = vld [vmem:[%s195 + $0x1530] sm:$0xff]
                %876 = vst [vmem:[%s196 + $0xa98] sm:$0xff] %v875
                %v877 = vld [vmem:[%s195 + $0x1540] sm:$0xff]
                %878 = vst [vmem:[%s196 + $0xaa0] sm:$0xff] %v877
                %v879 = vld [vmem:[%s195 + $0x1550] sm:$0xff]
                %880 = vst [vmem:[%s196 + $0xaa8] sm:$0xff] %v879
                %v881 = vld [vmem:[%s195 + $0x1560] sm:$0xff]
                %882 = vst [vmem:[%s196 + $0xab0] sm:$0xff] %v881
                %v883 = vld [vmem:[%s195 + $0x1570] sm:$0xff]
                %884 = vst [vmem:[%s196 + $0xab8] sm:$0xff] %v883
                %v885 = vld [vmem:[%s195 + $0x1580] sm:$0xff]
                %886 = vst [vmem:[%s196 + $0xac0] sm:$0xff] %v885
                %v887 = vld [vmem:[%s195 + $0x1590] sm:$0xff]
                %888 = vst [vmem:[%s196 + $0xac8] sm:$0xff] %v887
                %v889 = vld [vmem:[%s195 + $0x15a0] sm:$0xff]
                %890 = vst [vmem:[%s196 + $0xad0] sm:$0xff] %v889
                %v891 = vld [vmem:[%s195 + $0x15b0] sm:$0xff]
                %892 = vst [vmem:[%s196 + $0xad8] sm:$0xff] %v891
                %v893 = vld [vmem:[%s195 + $0x15c0] sm:$0xff]
                %894 = vst [vmem:[%s196 + $0xae0] sm:$0xff] %v893
                %v895 = vld [vmem:[%s195 + $0x15d0] sm:$0xff]
                %896 = vst [vmem:[%s196 + $0xae8] sm:$0xff] %v895
                %v897 = vld [vmem:[%s195 + $0x15e0] sm:$0xff]
                %898 = vst [vmem:[%s196 + $0xaf0] sm:$0xff] %v897
                %v899 = vld [vmem:[%s195 + $0x15f0] sm:$0xff]
                %900 = vst [vmem:[%s196 + $0xaf8] sm:$0xff] %v899
                %v901 = vld [vmem:[%s195 + $0x1600] sm:$0xff]
                %902 = vst [vmem:[%s196 + $0xb00] sm:$0xff] %v901
                %v903 = vld [vmem:[%s195 + $0x1610] sm:$0xff]
                %904 = vst [vmem:[%s196 + $0xb08] sm:$0xff] %v903
                %v905 = vld [vmem:[%s195 + $0x1620] sm:$0xff]
                %906 = vst [vmem:[%s196 + $0xb10] sm:$0xff] %v905
                %v907 = vld [vmem:[%s195 + $0x1630] sm:$0xff]
                %908 = vst [vmem:[%s196 + $0xb18] sm:$0xff] %v907
                %v909 = vld [vmem:[%s195 + $0x1640] sm:$0xff]
                %910 = vst [vmem:[%s196 + $0xb20] sm:$0xff] %v909
                %v911 = vld [vmem:[%s195 + $0x1650] sm:$0xff]
                %912 = vst [vmem:[%s196 + $0xb28] sm:$0xff] %v911
                %v913 = vld [vmem:[%s195 + $0x1660] sm:$0xff]
                %914 = vst [vmem:[%s196 + $0xb30] sm:$0xff] %v913
                %v915 = vld [vmem:[%s195 + $0x1670] sm:$0xff]
                %916 = vst [vmem:[%s196 + $0xb38] sm:$0xff] %v915
                %v917 = vld [vmem:[%s195 + $0x1680] sm:$0xff]
                %918 = vst [vmem:[%s196 + $0xb40] sm:$0xff] %v917
                %v919 = vld [vmem:[%s195 + $0x1690] sm:$0xff]
                %920 = vst [vmem:[%s196 + $0xb48] sm:$0xff] %v919
                %v921 = vld [vmem:[%s195 + $0x16a0] sm:$0xff]
                %922 = vst [vmem:[%s196 + $0xb50] sm:$0xff] %v921
                %v923 = vld [vmem:[%s195 + $0x16b0] sm:$0xff]
                %924 = vst [vmem:[%s196 + $0xb58] sm:$0xff] %v923
                %v925 = vld [vmem:[%s195 + $0x16c0] sm:$0xff]
                %926 = vst [vmem:[%s196 + $0xb60] sm:$0xff] %v925
                %v927 = vld [vmem:[%s195 + $0x16d0] sm:$0xff]
                %928 = vst [vmem:[%s196 + $0xb68] sm:$0xff] %v927
                %v929 = vld [vmem:[%s195 + $0x16e0] sm:$0xff]
                %930 = vst [vmem:[%s196 + $0xb70] sm:$0xff] %v929
                %v931 = vld [vmem:[%s195 + $0x16f0] sm:$0xff]
                %932 = vst [vmem:[%s196 + $0xb78] sm:$0xff] %v931
                %v933 = vld [vmem:[%s195 + $0x1700] sm:$0xff]
                %934 = vst [vmem:[%s196 + $0xb80] sm:$0xff] %v933
                %v935 = vld [vmem:[%s195 + $0x1710] sm:$0xff]
                %936 = vst [vmem:[%s196 + $0xb88] sm:$0xff] %v935
                %v937 = vld [vmem:[%s195 + $0x1720] sm:$0xff]
                %938 = vst [vmem:[%s196 + $0xb90] sm:$0xff] %v937
                %v939 = vld [vmem:[%s195 + $0x1730] sm:$0xff]
                %940 = vst [vmem:[%s196 + $0xb98] sm:$0xff] %v939
                %v941 = vld [vmem:[%s195 + $0x1740] sm:$0xff]
                %942 = vst [vmem:[%s196 + $0xba0] sm:$0xff] %v941
                %v943 = vld [vmem:[%s195 + $0x1750] sm:$0xff]
                %944 = vst [vmem:[%s196 + $0xba8] sm:$0xff] %v943
                %v945 = vld [vmem:[%s195 + $0x1760] sm:$0xff]
                %946 = vst [vmem:[%s196 + $0xbb0] sm:$0xff] %v945
                %v947 = vld [vmem:[%s195 + $0x1770] sm:$0xff]
                %948 = vst [vmem:[%s196 + $0xbb8] sm:$0xff] %v947
                %v949 = vld [vmem:[%s195 + $0x1780] sm:$0xff]
                %950 = vst [vmem:[%s196 + $0xbc0] sm:$0xff] %v949
                %v951 = vld [vmem:[%s195 + $0x1790] sm:$0xff]
                %952 = vst [vmem:[%s196 + $0xbc8] sm:$0xff] %v951
                %v953 = vld [vmem:[%s195 + $0x17a0] sm:$0xff]
                %954 = vst [vmem:[%s196 + $0xbd0] sm:$0xff] %v953
                %v955 = vld [vmem:[%s195 + $0x17b0] sm:$0xff]
                %956 = vst [vmem:[%s196 + $0xbd8] sm:$0xff] %v955
                %v957 = vld [vmem:[%s195 + $0x17c0] sm:$0xff]
                %958 = vst [vmem:[%s196 + $0xbe0] sm:$0xff] %v957
                %v959 = vld [vmem:[%s195 + $0x17d0] sm:$0xff]
                %960 = vst [vmem:[%s196 + $0xbe8] sm:$0xff] %v959
                %v961 = vld [vmem:[%s195 + $0x17e0] sm:$0xff]
                %962 = vst [vmem:[%s196 + $0xbf0] sm:$0xff] %v961
                %v963 = vld [vmem:[%s195 + $0x17f0] sm:$0xff]
                %964 = vst [vmem:[%s196 + $0xbf8] sm:$0xff] %v963
                %v965 = vld [vmem:[%s195 + $0x1800] sm:$0xff]
                %966 = vst [vmem:[%s196 + $0xc00] sm:$0xff] %v965
                %v967 = vld [vmem:[%s195 + $0x1810] sm:$0xff]
                %968 = vst [vmem:[%s196 + $0xc08] sm:$0xff] %v967
                %v969 = vld [vmem:[%s195 + $0x1820] sm:$0xff]
                %970 = vst [vmem:[%s196 + $0xc10] sm:$0xff] %v969
                %v971 = vld [vmem:[%s195 + $0x1830] sm:$0xff]
                %972 = vst [vmem:[%s196 + $0xc18] sm:$0xff] %v971
                %v973 = vld [vmem:[%s195 + $0x1840] sm:$0xff]
                %974 = vst [vmem:[%s196 + $0xc20] sm:$0xff] %v973
                %v975 = vld [vmem:[%s195 + $0x1850] sm:$0xff]
                %976 = vst [vmem:[%s196 + $0xc28] sm:$0xff] %v975
                %v977 = vld [vmem:[%s195 + $0x1860] sm:$0xff]
                %978 = vst [vmem:[%s196 + $0xc30] sm:$0xff] %v977
                %v979 = vld [vmem:[%s195 + $0x1870] sm:$0xff]
                %980 = vst [vmem:[%s196 + $0xc38] sm:$0xff] %v979
              $region41: #{qnet_forward.8} parent=35 // loop_footer
                %s194 = sadd.s32 1, %s190
              $region42: #{qnet_forward.8} parent=35 // loop_footer_branch
                %189 = sbr.rel target = $region38
              $region43: #{qnet_forward.8} parent=35 // loop_exit
                _
            $region36: #{qnet_forward.8} parent=27 // pred_fallthru
              _
          $region28: #{qnet_forward.8} parent=23 // pred_fallthru
            _
          %1777 = vnop
        $region24: #{qnet_forward.8} parent=19 // pred_fallthru
          _
        // Predicated region
        $region59: #{qnet_forward.8} parent=19 // pred_check
          %p1778 = pneg %p104
        $region60: #{qnet_forward.8} parent=19 // pred_check_branch
          %1780 = sbr.rel (%p1778) target = $region62
        $region61: #{qnet_forward.8} parent=19 // pred_region
          %s1781 = smul.u32 2, %s17
          %p1782 = scmp.lt.s32.totalorder %s1781, 3
          %s1783 = scalar_select %p1782, %s1781, 3
          %s1784 = scalar_lea.vmem %s2, %s1783
          %s1785 = smul.u32 2, %s17
        $region62: #{qnet_forward.8} parent=19 // pred_fallthru
          _
      $region20: #{qnet_forward.8} parent=5 // pred_fallthru
        _
      %p1786 = scmp.le.s32.totalorder 1, %s9
      %p1787 = scmp.lt.s32.totalorder %s9, 3
      %p1788 = pnand %p1786, %p1787
      %p1789 = pneg %p1788
      // Predicated region
      $region63: #{qnet_forward.8} parent=5 // pred_check
        _
      $region64: #{qnet_forward.8} parent=5 // pred_check_branch
        %1791 = sbr.rel (%p1788) target = $region66
      $region65: #{qnet_forward.8} parent=5 // pred_region
        %s1792 = ssub.s32 %s9, 1
        %s1793 = sand.u32 %s71, 1
        %s1794 = sand.u32 %s71, 1
        %s1795 = smul.addr %s1794, 3136
        %s1796 = scalar_lea.vmem [#allocation3], %s1795
        // Predicated region
        $region67: #{qnet_forward.8} parent=65 // pred_check
          %p1797 = pneg %p84
        $region68: #{qnet_forward.8} parent=65 // pred_check_branch
          %1799 = sbr.rel (%p1797) target = $region70
        $region69: #{qnet_forward.8} parent=65 // pred_region
          _
        $region70: #{qnet_forward.8} parent=65 // pred_fallthru
          _
        %s1800 = smul.u32 25, %s21
        %p1801 = scmp.lt.s32.totalorder %s19, 0
        %s1802 = scalar_select %p1801, %s19, 0
        %p1803 = scmp.lt.s32.totalorder %s1800, 24
        %s1804 = scalar_select %p1803, %s1800, 24
        %s1805 = smul.addr %s1802, 25
        %s1806 = sadd.s32 %s1804, %s1805
        %s1807 = scalar_lea.vmem %s0, %s1806
        %p1808 = pneg %p56
        %p1809 = pneg %p53
        %s1810 = sand.u32 %s71, 1
        %s1811 = sand.u32 %s71, 1
        %s1812 = smul.addr %s1811, 3136
        %s1813 = scalar_lea.vmem [#allocation3], %s1812
        %p1814 = pneg %p84
        %p1815 = pneg %p81
        %s1816 = smul.u32 2, %s20
        %p1817 = scmp.lt.s32.totalorder %s1816, 3
        %s1818 = scalar_select %p1817, %s1816, 3
        %s1819 = scalar_lea.vmem %s2, %s1818
        %p1820 = pneg %p110
        %p1821 = pneg %p107
        %p1822 = pneg %p138
        %p1823 = pneg %p135
        %s1824 = smul.u32 2, %s20
        %p1825 = scmp.lt.s32.totalorder %s19, 0
        %s1826 = scalar_select %p1825, %s19, 0
        %p1827 = scmp.lt.s32.totalorder %s1824, 3
        %s1828 = scalar_select %p1827, %s1824, 3
        %s1829 = smul.addr %s1826, 4
        %s1830 = sadd.s32 %s1828, %s1829
        %s1831 = scalar_lea.vmem %s3, %s1830
        %s1832 = smul.u32 25, %s21
        %p1833 = scmp.lt.s32.totalorder %s19, 0
        %s1834 = scalar_select %p1833, %s19, 0
        %p1835 = scmp.lt.s32.totalorder %s1832, 24
        %s1836 = scalar_select %p1835, %s1832, 24
        %s1837 = smul.addr %s1834, 25
        %s1838 = sadd.s32 %s1836, %s1837
        %s1839 = scalar_lea.vmem %s0, %s1838
        %s1840 = smul.u32 25, %s21
        %s1841 = smul.u32 392, %s21
        %s1842 = smul.u32 2, %s20
        %s1843 = smul.u32 2, %s20
        %p1844 = scmp.lt.s32.totalorder %s1843, 3
        %s1845 = scalar_select %p1844, %s1843, 3
        %s1846 = scalar_lea.vmem %s2, %s1845
        %s1847 = smul.u32 2, %s20
        %s1848 = smul.u32 2, %s20
        %p1849 = scmp.lt.s32.totalorder %s19, 0
        %s1850 = scalar_select %p1849, %s19, 0
        %p1851 = scmp.lt.s32.totalorder %s1848, 3
        %s1852 = scalar_select %p1851, %s1848, 3
        %s1853 = smul.addr %s1850, 4
        %s1854 = sadd.s32 %s1852, %s1853
        %s1855 = scalar_lea.vmem %s3, %s1854
        %s1856 = smul.u32 2, %s20
        %p1858 = scmp.eq.s32.totalorder %s21, 0
        // Predicated region
        $region71: #{qnet_forward.8} parent=65 // pred_check
          %p1859 = pneg %p1858
        $region72: #{qnet_forward.8} parent=65 // pred_check_branch
          %1861 = sbr.rel (%p1859) target = $region74
        $region73: #{qnet_forward.8} parent=65 // pred_region
          %1862 = vst [vmem:[#allocation2] sm:$0xf] 0.0
        $region74: #{qnet_forward.8} parent=65 // pred_fallthru
          _
        %v1863 = vld [vmem:[#allocation2] sm:$0xf]
        %v1864 = vld [vmem:[%s1839] sm:$0xff]
        %v1865 = vld [vmem:[%s1839 + $0x8] sm:$0xff]
        %v1866 = vld [vmem:[%s1839 + $0x10] sm:$0xff]
        %v1867 = vld [vmem:[%s1839 + $0x18] sm:$0x1]
        %v1868 = vld [vmem:[%s1796] sm:$0xff]
        %v1869 = vld [vmem:[%s1796 + $0x8] sm:$0xff]
        %v1870 = vld [vmem:[%s1796 + $0x10] sm:$0xff]
        %v1871 = vld [vmem:[%s1796 + $0x18] sm:$0xff]
        %v1872 = vld [vmem:[%s1796 + $0x20] sm:$0xff]
        %v1873 = vld [vmem:[%s1796 + $0x28] sm:$0xff]
        %v1874 = vld [vmem:[%s1796 + $0x30] sm:$0xff]
        %v1875 = vld [vmem:[%s1796 + $0x38] sm:$0xff]
        %v1876 = vld [vmem:[%s1796 + $0x40] sm:$0xff]
        %v1877 = vld [vmem:[%s1796 + $0x48] sm:$0xff]
        %v1878 = vld [vmem:[%s1796 + $0x50] sm:$0xff]
        %v1879 = vld [vmem:[%s1796 + $0x58] sm:$0xff]
        %v1880 = vld [vmem:[%s1796 + $0x60] sm:$0xff]
        %v1881 = vld [vmem:[%s1796 + $0x68] sm:$0xff]
        %v1882 = vld [vmem:[%s1796 + $0x70] sm:$0xff]
        %v1883 = vld [vmem:[%s1796 + $0x78] sm:$0xff]
        %v1884 = vld [vmem:[%s1796 + $0x80] sm:$0xff]
        %v1885 = vld [vmem:[%s1796 + $0x88] sm:$0xff]
        %v1886 = vld [vmem:[%s1796 + $0x90] sm:$0xff]
        %v1887 = vld [vmem:[%s1796 + $0x98] sm:$0xff]
        %v1888 = vld [vmem:[%s1796 + $0xa0] sm:$0xff]
        %v1889 = vld [vmem:[%s1796 + $0xa8] sm:$0xff]
        %v1890 = vld [vmem:[%s1796 + $0xb0] sm:$0xff]
        %v1891 = vld [vmem:[%s1796 + $0xb8] sm:$0xff]
        %v1892 = vld [vmem:[%s1796 + $0xc0] sm:$0xff]
        %v1893 = vld [vmem:[%s1796 + $0xc8] sm:$0xff]
        %v1894 = vld [vmem:[%s1796 + $0xd0] sm:$0xff]
        %v1895 = vld [vmem:[%s1796 + $0xd8] sm:$0xff]
        %v1896 = vld [vmem:[%s1796 + $0xe0] sm:$0xff]
        %v1897 = vld [vmem:[%s1796 + $0xe8] sm:$0xff]
        %v1898 = vld [vmem:[%s1796 + $0xf0] sm:$0xff]
        %v1899 = vld [vmem:[%s1796 + $0xf8] sm:$0xff]
        %v1900 = vld [vmem:[%s1796 + $0x100] sm:$0xff]
        %v1901 = vld [vmem:[%s1796 + $0x108] sm:$0xff]
        %v1902 = vld [vmem:[%s1796 + $0x110] sm:$0xff]
        %v1903 = vld [vmem:[%s1796 + $0x118] sm:$0xff]
        %v1904 = vld [vmem:[%s1796 + $0x120] sm:$0xff]
        %v1905 = vld [vmem:[%s1796 + $0x128] sm:$0xff]
        %v1906 = vld [vmem:[%s1796 + $0x130] sm:$0xff]
        %v1907 = vld [vmem:[%s1796 + $0x138] sm:$0xff]
        %v1908 = vld [vmem:[%s1796 + $0x140] sm:$0xff]
        %v1909 = vld [vmem:[%s1796 + $0x148] sm:$0xff]
        %v1910 = vld [vmem:[%s1796 + $0x150] sm:$0xff]
        %v1911 = vld [vmem:[%s1796 + $0x158] sm:$0xff]
        %v1912 = vld [vmem:[%s1796 + $0x160] sm:$0xff]
        %v1913 = vld [vmem:[%s1796 + $0x168] sm:$0xff]
        %v1914 = vld [vmem:[%s1796 + $0x170] sm:$0xff]
        %v1915 = vld [vmem:[%s1796 + $0x178] sm:$0xff]
        %v1916 = vld [vmem:[%s1796 + $0x180] sm:$0xff]
        %v1917 = vld [vmem:[%s1796 + $0x188] sm:$0xff]
        %v1918 = vld [vmem:[%s1796 + $0x190] sm:$0xff]
        %v1919 = vld [vmem:[%s1796 + $0x198] sm:$0xff]
        %v1920 = vld [vmem:[%s1796 + $0x1a0] sm:$0xff]
        %v1921 = vld [vmem:[%s1796 + $0x1a8] sm:$0xff]
        %v1922 = vld [vmem:[%s1796 + $0x1b0] sm:$0xff]
        %v1923 = vld [vmem:[%s1796 + $0x1b8] sm:$0xff]
        %v1924 = vld [vmem:[%s1796 + $0x1c0] sm:$0xff]
        %v1925 = vld [vmem:[%s1796 + $0x1c8] sm:$0xff]
        %v1926 = vld [vmem:[%s1796 + $0x1d0] sm:$0xff]
        %v1927 = vld [vmem:[%s1796 + $0x1d8] sm:$0xff]
        %v1928 = vld [vmem:[%s1796 + $0x1e0] sm:$0xff]
        %v1929 = vld [vmem:[%s1796 + $0x1e8] sm:$0xff]
        %v1930 = vld [vmem:[%s1796 + $0x1f0] sm:$0xff]
        %v1931 = vld [vmem:[%s1796 + $0x1f8] sm:$0xff]
        %v1932 = vld [vmem:[%s1796 + $0x200] sm:$0xff]
        %v1933 = vld [vmem:[%s1796 + $0x208] sm:$0xff]
        %v1934 = vld [vmem:[%s1796 + $0x210] sm:$0xff]
        %v1935 = vld [vmem:[%s1796 + $0x218] sm:$0xff]
        %v1936 = vld [vmem:[%s1796 + $0x220] sm:$0xff]
        %v1937 = vld [vmem:[%s1796 + $0x228] sm:$0xff]
        %v1938 = vld [vmem:[%s1796 + $0x230] sm:$0xff]
        %v1939 = vld [vmem:[%s1796 + $0x238] sm:$0xff]
        %v1940 = vld [vmem:[%s1796 + $0x240] sm:$0xff]
        %v1941 = vld [vmem:[%s1796 + $0x248] sm:$0xff]
        %v1942 = vld [vmem:[%s1796 + $0x250] sm:$0xff]
        %v1943 = vld [vmem:[%s1796 + $0x258] sm:$0xff]
        %v1944 = vld [vmem:[%s1796 + $0x260] sm:$0xff]
        %v1945 = vld [vmem:[%s1796 + $0x268] sm:$0xff]
        %v1946 = vld [vmem:[%s1796 + $0x270] sm:$0xff]
        %v1947 = vld [vmem:[%s1796 + $0x278] sm:$0xff]
        %v1948 = vld [vmem:[%s1796 + $0x280] sm:$0xff]
        %v1949 = vld [vmem:[%s1796 + $0x288] sm:$0xff]
        %v1950 = vld [vmem:[%s1796 + $0x290] sm:$0xff]
        %v1951 = vld [vmem:[%s1796 + $0x298] sm:$0xff]
        %v1952 = vld [vmem:[%s1796 + $0x2a0] sm:$0xff]
        %v1953 = vld [vmem:[%s1796 + $0x2a8] sm:$0xff]
        %v1954 = vld [vmem:[%s1796 + $0x2b0] sm:$0xff]
        %v1955 = vld [vmem:[%s1796 + $0x2b8] sm:$0xff]
        %v1956 = vld [vmem:[%s1796 + $0x2c0] sm:$0xff]
        %v1957 = vld [vmem:[%s1796 + $0x2c8] sm:$0xff]
        %v1958 = vld [vmem:[%s1796 + $0x2d0] sm:$0xff]
        %v1959 = vld [vmem:[%s1796 + $0x2d8] sm:$0xff]
        %v1960 = vld [vmem:[%s1796 + $0x2e0] sm:$0xff]
        %v1961 = vld [vmem:[%s1796 + $0x2e8] sm:$0xff]
        %v1962 = vld [vmem:[%s1796 + $0x2f0] sm:$0xff]
        %v1963 = vld [vmem:[%s1796 + $0x2f8] sm:$0xff]
        %v1964 = vld [vmem:[%s1796 + $0x300] sm:$0xff]
        %v1965 = vld [vmem:[%s1796 + $0x308] sm:$0xff]
        %v1966 = vld [vmem:[%s1796 + $0x310] sm:$0xff]
        %v1967 = vld [vmem:[%s1796 + $0x318] sm:$0xff]
        %v1968 = vld [vmem:[%s1796 + $0x320] sm:$0xff]
        %v1969 = vld [vmem:[%s1796 + $0x328] sm:$0xff]
        %v1970 = vld [vmem:[%s1796 + $0x330] sm:$0xff]
        %v1971 = vld [vmem:[%s1796 + $0x338] sm:$0xff]
        %v1972 = vld [vmem:[%s1796 + $0x340] sm:$0xff]
        %v1973 = vld [vmem:[%s1796 + $0x348] sm:$0xff]
        %v1974 = vld [vmem:[%s1796 + $0x350] sm:$0xff]
        %v1975 = vld [vmem:[%s1796 + $0x358] sm:$0xff]
        %v1976 = vld [vmem:[%s1796 + $0x360] sm:$0xff]
        %v1977 = vld [vmem:[%s1796 + $0x368] sm:$0xff]
        %v1978 = vld [vmem:[%s1796 + $0x370] sm:$0xff]
        %v1979 = vld [vmem:[%s1796 + $0x378] sm:$0xff]
        %v1980 = vld [vmem:[%s1796 + $0x380] sm:$0xff]
        %v1981 = vld [vmem:[%s1796 + $0x388] sm:$0xff]
        %v1982 = vld [vmem:[%s1796 + $0x390] sm:$0xff]
        %v1983 = vld [vmem:[%s1796 + $0x398] sm:$0xff]
        %v1984 = vld [vmem:[%s1796 + $0x3a0] sm:$0xff]
        %v1985 = vld [vmem:[%s1796 + $0x3a8] sm:$0xff]
        %v1986 = vld [vmem:[%s1796 + $0x3b0] sm:$0xff]
        %v1987 = vld [vmem:[%s1796 + $0x3b8] sm:$0xff]
        %v1988 = vld [vmem:[%s1796 + $0x3c0] sm:$0xff]
        %v1989 = vld [vmem:[%s1796 + $0x3c8] sm:$0xff]
        %v1990 = vld [vmem:[%s1796 + $0x3d0] sm:$0xff]
        %v1991 = vld [vmem:[%s1796 + $0x3d8] sm:$0xff]
        %v1992 = vld [vmem:[%s1796 + $0x3e0] sm:$0xff]
        %v1993 = vld [vmem:[%s1796 + $0x3e8] sm:$0xff]
        %v1994 = vld [vmem:[%s1796 + $0x3f0] sm:$0xff]
        %v1995 = vld [vmem:[%s1796 + $0x3f8] sm:$0xff]
        %v1996 = vld [vmem:[%s1796 + $0x400] sm:$0xff]
        %v1997 = vld [vmem:[%s1796 + $0x408] sm:$0xff]
        %v1998 = vld [vmem:[%s1796 + $0x410] sm:$0xff]
        %v1999 = vld [vmem:[%s1796 + $0x418] sm:$0xff]
        %v2000 = vld [vmem:[%s1796 + $0x420] sm:$0xff]
        %v2001 = vld [vmem:[%s1796 + $0x428] sm:$0xff]
        %v2002 = vld [vmem:[%s1796 + $0x430] sm:$0xff]
        %v2003 = vld [vmem:[%s1796 + $0x438] sm:$0xff]
        %v2004 = vld [vmem:[%s1796 + $0x440] sm:$0xff]
        %v2005 = vld [vmem:[%s1796 + $0x448] sm:$0xff]
        %v2006 = vld [vmem:[%s1796 + $0x450] sm:$0xff]
        %v2007 = vld [vmem:[%s1796 + $0x458] sm:$0xff]
        %v2008 = vld [vmem:[%s1796 + $0x460] sm:$0xff]
        %v2009 = vld [vmem:[%s1796 + $0x468] sm:$0xff]
        %v2010 = vld [vmem:[%s1796 + $0x470] sm:$0xff]
        %v2011 = vld [vmem:[%s1796 + $0x478] sm:$0xff]
        %v2012 = vld [vmem:[%s1796 + $0x480] sm:$0xff]
        %v2013 = vld [vmem:[%s1796 + $0x488] sm:$0xff]
        %v2014 = vld [vmem:[%s1796 + $0x490] sm:$0xff]
        %v2015 = vld [vmem:[%s1796 + $0x498] sm:$0xff]
        %v2016 = vld [vmem:[%s1796 + $0x4a0] sm:$0xff]
        %v2017 = vld [vmem:[%s1796 + $0x4a8] sm:$0xff]
        %v2018 = vld [vmem:[%s1796 + $0x4b0] sm:$0xff]
        %v2019 = vld [vmem:[%s1796 + $0x4b8] sm:$0xff]
        %v2020 = vld [vmem:[%s1796 + $0x4c0] sm:$0xff]
        %v2021 = vld [vmem:[%s1796 + $0x4c8] sm:$0xff]
        %v2022 = vld [vmem:[%s1796 + $0x4d0] sm:$0xff]
        %v2023 = vld [vmem:[%s1796 + $0x4d8] sm:$0xff]
        %v2024 = vld [vmem:[%s1796 + $0x4e0] sm:$0xff]
        %v2025 = vld [vmem:[%s1796 + $0x4e8] sm:$0xff]
        %v2026 = vld [vmem:[%s1796 + $0x4f0] sm:$0xff]
        %v2027 = vld [vmem:[%s1796 + $0x4f8] sm:$0xff]
        %v2028 = vld [vmem:[%s1796 + $0x500] sm:$0xff]
        %v2029 = vld [vmem:[%s1796 + $0x508] sm:$0xff]
        %v2030 = vld [vmem:[%s1796 + $0x510] sm:$0xff]
        %v2031 = vld [vmem:[%s1796 + $0x518] sm:$0xff]
        %v2032 = vld [vmem:[%s1796 + $0x520] sm:$0xff]
        %v2033 = vld [vmem:[%s1796 + $0x528] sm:$0xff]
        %v2034 = vld [vmem:[%s1796 + $0x530] sm:$0xff]
        %v2035 = vld [vmem:[%s1796 + $0x538] sm:$0xff]
        %v2036 = vld [vmem:[%s1796 + $0x540] sm:$0xff]
        %v2037 = vld [vmem:[%s1796 + $0x548] sm:$0xff]
        %v2038 = vld [vmem:[%s1796 + $0x550] sm:$0xff]
        %v2039 = vld [vmem:[%s1796 + $0x558] sm:$0xff]
        %v2040 = vld [vmem:[%s1796 + $0x560] sm:$0xff]
        %v2041 = vld [vmem:[%s1796 + $0x568] sm:$0xff]
        %v2042 = vld [vmem:[%s1796 + $0x570] sm:$0xff]
        %v2043 = vld [vmem:[%s1796 + $0x578] sm:$0xff]
        %v2044 = vld [vmem:[%s1796 + $0x580] sm:$0xff]
        %v2045 = vld [vmem:[%s1796 + $0x588] sm:$0xff]
        %v2046 = vld [vmem:[%s1796 + $0x590] sm:$0xff]
        %v2047 = vld [vmem:[%s1796 + $0x598] sm:$0xff]
        %v2048 = vld [vmem:[%s1796 + $0x5a0] sm:$0xff]
        %v2049 = vld [vmem:[%s1796 + $0x5a8] sm:$0xff]
        %v2050 = vld [vmem:[%s1796 + $0x5b0] sm:$0xff]
        %v2051 = vld [vmem:[%s1796 + $0x5b8] sm:$0xff]
        %v2052 = vld [vmem:[%s1796 + $0x5c0] sm:$0xff]
        %v2053 = vld [vmem:[%s1796 + $0x5c8] sm:$0xff]
        %v2054 = vld [vmem:[%s1796 + $0x5d0] sm:$0xff]
        %v2055 = vld [vmem:[%s1796 + $0x5d8] sm:$0xff]
        %v2056 = vld [vmem:[%s1796 + $0x5e0] sm:$0xff]
        %v2057 = vld [vmem:[%s1796 + $0x5e8] sm:$0xff]
        %v2058 = vld [vmem:[%s1796 + $0x5f0] sm:$0xff]
        %v2059 = vld [vmem:[%s1796 + $0x5f8] sm:$0xff]
        %v2060 = vld [vmem:[%s1796 + $0x600] sm:$0xff]
        %v2061 = vld [vmem:[%s1796 + $0x608] sm:$0xff]
        %v2062 = vld [vmem:[%s1796 + $0x610] sm:$0xff]
        %v2063 = vld [vmem:[%s1796 + $0x618] sm:$0xff]
        %v2064 = vld [vmem:[%s1796 + $0x620] sm:$0xff]
        %v2065 = vld [vmem:[%s1796 + $0x628] sm:$0xff]
        %v2066 = vld [vmem:[%s1796 + $0x630] sm:$0xff]
        %v2067 = vld [vmem:[%s1796 + $0x638] sm:$0xff]
        %v2068 = vld [vmem:[%s1796 + $0x640] sm:$0xff]
        %v2069 = vld [vmem:[%s1796 + $0x648] sm:$0xff]
        %v2070 = vld [vmem:[%s1796 + $0x650] sm:$0xff]
        %v2071 = vld [vmem:[%s1796 + $0x658] sm:$0xff]
        %v2072 = vld [vmem:[%s1796 + $0x660] sm:$0xff]
        %v2073 = vld [vmem:[%s1796 + $0x668] sm:$0xff]
        %v2074 = vld [vmem:[%s1796 + $0x670] sm:$0xff]
        %v2075 = vld [vmem:[%s1796 + $0x678] sm:$0xff]
        %v2076 = vld [vmem:[%s1796 + $0x680] sm:$0xff]
        %v2077 = vld [vmem:[%s1796 + $0x688] sm:$0xff]
        %v2078 = vld [vmem:[%s1796 + $0x690] sm:$0xff]
        %v2079 = vld [vmem:[%s1796 + $0x698] sm:$0xff]
        %v2080 = vld [vmem:[%s1796 + $0x6a0] sm:$0xff]
        %v2081 = vld [vmem:[%s1796 + $0x6a8] sm:$0xff]
        %v2082 = vld [vmem:[%s1796 + $0x6b0] sm:$0xff]
        %v2083 = vld [vmem:[%s1796 + $0x6b8] sm:$0xff]
        %v2084 = vld [vmem:[%s1796 + $0x6c0] sm:$0xff]
        %v2085 = vld [vmem:[%s1796 + $0x6c8] sm:$0xff]
        %v2086 = vld [vmem:[%s1796 + $0x6d0] sm:$0xff]
        %v2087 = vld [vmem:[%s1796 + $0x6d8] sm:$0xff]
        %v2088 = vld [vmem:[%s1796 + $0x6e0] sm:$0xff]
        %v2089 = vld [vmem:[%s1796 + $0x6e8] sm:$0xff]
        %v2090 = vld [vmem:[%s1796 + $0x6f0] sm:$0xff]
        %v2091 = vld [vmem:[%s1796 + $0x6f8] sm:$0xff]
        %v2092 = vld [vmem:[%s1796 + $0x700] sm:$0xff]
        %v2093 = vld [vmem:[%s1796 + $0x708] sm:$0xff]
        %v2094 = vld [vmem:[%s1796 + $0x710] sm:$0xff]
        %v2095 = vld [vmem:[%s1796 + $0x718] sm:$0xff]
        %v2096 = vld [vmem:[%s1796 + $0x720] sm:$0xff]
        %v2097 = vld [vmem:[%s1796 + $0x728] sm:$0xff]
        %v2098 = vld [vmem:[%s1796 + $0x730] sm:$0xff]
        %v2099 = vld [vmem:[%s1796 + $0x738] sm:$0xff]
        %v2100 = vld [vmem:[%s1796 + $0x740] sm:$0xff]
        %v2101 = vld [vmem:[%s1796 + $0x748] sm:$0xff]
        %v2102 = vld [vmem:[%s1796 + $0x750] sm:$0xff]
        %v2103 = vld [vmem:[%s1796 + $0x758] sm:$0xff]
        %v2104 = vld [vmem:[%s1796 + $0x760] sm:$0xff]
        %v2105 = vld [vmem:[%s1796 + $0x768] sm:$0xff]
        %v2106 = vld [vmem:[%s1796 + $0x770] sm:$0xff]
        %v2107 = vld [vmem:[%s1796 + $0x778] sm:$0xff]
        %v2108 = vld [vmem:[%s1796 + $0x780] sm:$0xff]
        %v2109 = vld [vmem:[%s1796 + $0x788] sm:$0xff]
        %v2110 = vld [vmem:[%s1796 + $0x790] sm:$0xff]
        %v2111 = vld [vmem:[%s1796 + $0x798] sm:$0xff]
        %v2112 = vld [vmem:[%s1796 + $0x7a0] sm:$0xff]
        %v2113 = vld [vmem:[%s1796 + $0x7a8] sm:$0xff]
        %v2114 = vld [vmem:[%s1796 + $0x7b0] sm:$0xff]
        %v2115 = vld [vmem:[%s1796 + $0x7b8] sm:$0xff]
        %v2116 = vld [vmem:[%s1796 + $0x7c0] sm:$0xff]
        %v2117 = vld [vmem:[%s1796 + $0x7c8] sm:$0xff]
        %v2118 = vld [vmem:[%s1796 + $0x7d0] sm:$0xff]
        %v2119 = vld [vmem:[%s1796 + $0x7d8] sm:$0xff]
        %v2120 = vld [vmem:[%s1796 + $0x7e0] sm:$0xff]
        %v2121 = vld [vmem:[%s1796 + $0x7e8] sm:$0xff]
        %v2122 = vld [vmem:[%s1796 + $0x7f0] sm:$0xff]
        %v2123 = vld [vmem:[%s1796 + $0x7f8] sm:$0xff]
        %v2124 = vld [vmem:[%s1796 + $0x800] sm:$0xff]
        %v2125 = vld [vmem:[%s1796 + $0x808] sm:$0xff]
        %v2126 = vld [vmem:[%s1796 + $0x810] sm:$0xff]
        %v2127 = vld [vmem:[%s1796 + $0x818] sm:$0xff]
        %v2128 = vld [vmem:[%s1796 + $0x820] sm:$0xff]
        %v2129 = vld [vmem:[%s1796 + $0x828] sm:$0xff]
        %v2130 = vld [vmem:[%s1796 + $0x830] sm:$0xff]
        %v2131 = vld [vmem:[%s1796 + $0x838] sm:$0xff]
        %v2132 = vld [vmem:[%s1796 + $0x840] sm:$0xff]
        %v2133 = vld [vmem:[%s1796 + $0x848] sm:$0xff]
        %v2134 = vld [vmem:[%s1796 + $0x850] sm:$0xff]
        %v2135 = vld [vmem:[%s1796 + $0x858] sm:$0xff]
        %v2136 = vld [vmem:[%s1796 + $0x860] sm:$0xff]
        %v2137 = vld [vmem:[%s1796 + $0x868] sm:$0xff]
        %v2138 = vld [vmem:[%s1796 + $0x870] sm:$0xff]
        %v2139 = vld [vmem:[%s1796 + $0x878] sm:$0xff]
        %v2140 = vld [vmem:[%s1796 + $0x880] sm:$0xff]
        %v2141 = vld [vmem:[%s1796 + $0x888] sm:$0xff]
        %v2142 = vld [vmem:[%s1796 + $0x890] sm:$0xff]
        %v2143 = vld [vmem:[%s1796 + $0x898] sm:$0xff]
        %v2144 = vld [vmem:[%s1796 + $0x8a0] sm:$0xff]
        %v2145 = vld [vmem:[%s1796 + $0x8a8] sm:$0xff]
        %v2146 = vld [vmem:[%s1796 + $0x8b0] sm:$0xff]
        %v2147 = vld [vmem:[%s1796 + $0x8b8] sm:$0xff]
        %v2148 = vld [vmem:[%s1796 + $0x8c0] sm:$0xff]
        %v2149 = vld [vmem:[%s1796 + $0x8c8] sm:$0xff]
        %v2150 = vld [vmem:[%s1796 + $0x8d0] sm:$0xff]
        %v2151 = vld [vmem:[%s1796 + $0x8d8] sm:$0xff]
        %v2152 = vld [vmem:[%s1796 + $0x8e0] sm:$0xff]
        %v2153 = vld [vmem:[%s1796 + $0x8e8] sm:$0xff]
        %v2154 = vld [vmem:[%s1796 + $0x8f0] sm:$0xff]
        %v2155 = vld [vmem:[%s1796 + $0x8f8] sm:$0xff]
        %v2156 = vld [vmem:[%s1796 + $0x900] sm:$0xff]
        %v2157 = vld [vmem:[%s1796 + $0x908] sm:$0xff]
        %v2158 = vld [vmem:[%s1796 + $0x910] sm:$0xff]
        %v2159 = vld [vmem:[%s1796 + $0x918] sm:$0xff]
        %v2160 = vld [vmem:[%s1796 + $0x920] sm:$0xff]
        %v2161 = vld [vmem:[%s1796 + $0x928] sm:$0xff]
        %v2162 = vld [vmem:[%s1796 + $0x930] sm:$0xff]
        %v2163 = vld [vmem:[%s1796 + $0x938] sm:$0xff]
        %v2164 = vld [vmem:[%s1796 + $0x940] sm:$0xff]
        %v2165 = vld [vmem:[%s1796 + $0x948] sm:$0xff]
        %v2166 = vld [vmem:[%s1796 + $0x950] sm:$0xff]
        %v2167 = vld [vmem:[%s1796 + $0x958] sm:$0xff]
        %v2168 = vld [vmem:[%s1796 + $0x960] sm:$0xff]
        %v2169 = vld [vmem:[%s1796 + $0x968] sm:$0xff]
        %v2170 = vld [vmem:[%s1796 + $0x970] sm:$0xff]
        %v2171 = vld [vmem:[%s1796 + $0x978] sm:$0xff]
        %v2172 = vld [vmem:[%s1796 + $0x980] sm:$0xff]
        %v2173 = vld [vmem:[%s1796 + $0x988] sm:$0xff]
        %v2174 = vld [vmem:[%s1796 + $0x990] sm:$0xff]
        %v2175 = vld [vmem:[%s1796 + $0x998] sm:$0xff]
        %v2176 = vld [vmem:[%s1796 + $0x9a0] sm:$0xff]
        %v2177 = vld [vmem:[%s1796 + $0x9a8] sm:$0xff]
        %v2178 = vld [vmem:[%s1796 + $0x9b0] sm:$0xff]
        %v2179 = vld [vmem:[%s1796 + $0x9b8] sm:$0xff]
        %v2180 = vld [vmem:[%s1796 + $0x9c0] sm:$0xff]
        %v2181 = vld [vmem:[%s1796 + $0x9c8] sm:$0xff]
        %v2182 = vld [vmem:[%s1796 + $0x9d0] sm:$0xff]
        %v2183 = vld [vmem:[%s1796 + $0x9d8] sm:$0xff]
        %v2184 = vld [vmem:[%s1796 + $0x9e0] sm:$0xff]
        %v2185 = vld [vmem:[%s1796 + $0x9e8] sm:$0xff]
        %v2186 = vld [vmem:[%s1796 + $0x9f0] sm:$0xff]
        %v2187 = vld [vmem:[%s1796 + $0x9f8] sm:$0xff]
        %v2188 = vld [vmem:[%s1796 + $0xa00] sm:$0xff]
        %v2189 = vld [vmem:[%s1796 + $0xa08] sm:$0xff]
        %v2190 = vld [vmem:[%s1796 + $0xa10] sm:$0xff]
        %v2191 = vld [vmem:[%s1796 + $0xa18] sm:$0xff]
        %v2192 = vld [vmem:[%s1796 + $0xa20] sm:$0xff]
        %v2193 = vld [vmem:[%s1796 + $0xa28] sm:$0xff]
        %v2194 = vld [vmem:[%s1796 + $0xa30] sm:$0xff]
        %v2195 = vld [vmem:[%s1796 + $0xa38] sm:$0xff]
        %v2196 = vld [vmem:[%s1796 + $0xa40] sm:$0xff]
        %v2197 = vld [vmem:[%s1796 + $0xa48] sm:$0xff]
        %v2198 = vld [vmem:[%s1796 + $0xa50] sm:$0xff]
        %v2199 = vld [vmem:[%s1796 + $0xa58] sm:$0xff]
        %v2200 = vld [vmem:[%s1796 + $0xa60] sm:$0xff]
        %v2201 = vld [vmem:[%s1796 + $0xa68] sm:$0xff]
        %v2202 = vld [vmem:[%s1796 + $0xa70] sm:$0xff]
        %v2203 = vld [vmem:[%s1796 + $0xa78] sm:$0xff]
        %v2204 = vld [vmem:[%s1796 + $0xa80] sm:$0xff]
        %v2205 = vld [vmem:[%s1796 + $0xa88] sm:$0xff]
        %v2206 = vld [vmem:[%s1796 + $0xa90] sm:$0xff]
        %v2207 = vld [vmem:[%s1796 + $0xa98] sm:$0xff]
        %v2208 = vld [vmem:[%s1796 + $0xaa0] sm:$0xff]
        %v2209 = vld [vmem:[%s1796 + $0xaa8] sm:$0xff]
        %v2210 = vld [vmem:[%s1796 + $0xab0] sm:$0xff]
        %v2211 = vld [vmem:[%s1796 + $0xab8] sm:$0xff]
        %v2212 = vld [vmem:[%s1796 + $0xac0] sm:$0xff]
        %v2213 = vld [vmem:[%s1796 + $0xac8] sm:$0xff]
        %v2214 = vld [vmem:[%s1796 + $0xad0] sm:$0xff]
        %v2215 = vld [vmem:[%s1796 + $0xad8] sm:$0xff]
        %v2216 = vld [vmem:[%s1796 + $0xae0] sm:$0xff]
        %v2217 = vld [vmem:[%s1796 + $0xae8] sm:$0xff]
        %v2218 = vld [vmem:[%s1796 + $0xaf0] sm:$0xff]
        %v2219 = vld [vmem:[%s1796 + $0xaf8] sm:$0xff]
        %v2220 = vld [vmem:[%s1796 + $0xb00] sm:$0xff]
        %v2221 = vld [vmem:[%s1796 + $0xb08] sm:$0xff]
        %v2222 = vld [vmem:[%s1796 + $0xb10] sm:$0xff]
        %v2223 = vld [vmem:[%s1796 + $0xb18] sm:$0xff]
        %v2224 = vld [vmem:[%s1796 + $0xb20] sm:$0xff]
        %v2225 = vld [vmem:[%s1796 + $0xb28] sm:$0xff]
        %v2226 = vld [vmem:[%s1796 + $0xb30] sm:$0xff]
        %v2227 = vld [vmem:[%s1796 + $0xb38] sm:$0xff]
        %v2228 = vld [vmem:[%s1796 + $0xb40] sm:$0xff]
        %v2229 = vld [vmem:[%s1796 + $0xb48] sm:$0xff]
        %v2230 = vld [vmem:[%s1796 + $0xb50] sm:$0xff]
        %v2231 = vld [vmem:[%s1796 + $0xb58] sm:$0xff]
        %v2232 = vld [vmem:[%s1796 + $0xb60] sm:$0xff]
        %v2233 = vld [vmem:[%s1796 + $0xb68] sm:$0xff]
        %v2234 = vld [vmem:[%s1796 + $0xb70] sm:$0xff]
        %v2235 = vld [vmem:[%s1796 + $0xb78] sm:$0xff]
        %v2236 = vld [vmem:[%s1796 + $0xb80] sm:$0xff]
        %v2237 = vld [vmem:[%s1796 + $0xb88] sm:$0xff]
        %v2238 = vld [vmem:[%s1796 + $0xb90] sm:$0xff]
        %v2239 = vld [vmem:[%s1796 + $0xb98] sm:$0xff]
        %v2240 = vld [vmem:[%s1796 + $0xba0] sm:$0xff]
        %v2241 = vld [vmem:[%s1796 + $0xba8] sm:$0xff]
        %v2242 = vld [vmem:[%s1796 + $0xbb0] sm:$0xff]
        %v2243 = vld [vmem:[%s1796 + $0xbb8] sm:$0xff]
        %v2244 = vld [vmem:[%s1796 + $0xbc0] sm:$0xff]
        %v2245 = vld [vmem:[%s1796 + $0xbc8] sm:$0xff]
        %v2246 = vld [vmem:[%s1796 + $0xbd0] sm:$0xff]
        %v2247 = vld [vmem:[%s1796 + $0xbd8] sm:$0xff]
        %v2248 = vld [vmem:[%s1796 + $0xbe0] sm:$0xff]
        %v2249 = vld [vmem:[%s1796 + $0xbe8] sm:$0xff]
        %v2250 = vld [vmem:[%s1796 + $0xbf0] sm:$0xff]
        %v2251 = vld [vmem:[%s1796 + $0xbf8] sm:$0xff]
        %v2252 = vld [vmem:[%s1796 + $0xc00] sm:$0xff]
        %v2253 = vld [vmem:[%s1796 + $0xc08] sm:$0xff]
        %v2254 = vld [vmem:[%s1796 + $0xc10] sm:$0xff]
        %v2255 = vld [vmem:[%s1796 + $0xc18] sm:$0xff]
        %v2256 = vld [vmem:[%s1796 + $0xc20] sm:$0xff]
        %v2257 = vld [vmem:[%s1796 + $0xc28] sm:$0xff]
        %v2258 = vld [vmem:[%s1796 + $0xc30] sm:$0xff]
        %v2259 = vld [vmem:[%s1796 + $0xc38] sm:$0xff]
        %v2264 = vcombine.high %v1864, %v1864
        %v2266 = vunpack.c.l.s4 1966171168
        %v2267 = vunpack.c.0.s8 %v2266
        %v2268 = vlaneseq
        %v2269 = vshrl.u32 %v2268, 7
        %v2270 = vsub.s32 %v2267, %v2269
        %v2271 = vrot.slane %v1864, %v2270
        %v2273 = vunpack.c.l.s4 1966171168
        %v2274 = vunpack.c.0.s8 %v2273
        %v2275 = vlaneseq
        %v2276 = vshrl.u32 %v2275, 7
        %v2277 = vsub.s32 %v2274, %v2276
        %v2278 = vrot.slane %v2264, %v2277
        %v2279 = vcombine.high %v2271, %v2271
        %v2280 = vcombine.high %v2278, %v2278
        %v2282 = vunpack.c.l.s4 1966171168
        %v2283 = vunpack.c.0.s8 %v2282
        %v2284 = vlaneseq
        %v2285 = vshrl.u32 %v2284, 7
        %v2286 = vsub.s32 %v2283, %v2285
        %v2287 = vrot.slane %v2271, %v2286
        %v2289 = vunpack.c.l.s4 1966171168
        %v2290 = vunpack.c.0.s8 %v2289
        %v2291 = vlaneseq
        %v2292 = vshrl.u32 %v2291, 7
        %v2293 = vsub.s32 %v2290, %v2292
        %v2294 = vrot.slane %v2278, %v2293
        %v2296 = vunpack.c.l.s4 1966171168
        %v2297 = vunpack.c.0.s8 %v2296
        %v2298 = vlaneseq
        %v2299 = vshrl.u32 %v2298, 7
        %v2300 = vsub.s32 %v2297, %v2299
        %v2301 = vrot.slane %v2279, %v2300
        %v2303 = vunpack.c.l.s4 1966171168
        %v2304 = vunpack.c.0.s8 %v2303
        %v2305 = vlaneseq
        %v2306 = vshrl.u32 %v2305, 7
        %v2307 = vsub.s32 %v2304, %v2306
        %v2308 = vrot.slane %v2280, %v2307
        %v2309 = vcombine.high %v2287, %v2287
        %v2310 = vcombine.high %v2294, %v2294
        %v2311 = vcombine.high %v2301, %v2301
        %v2312 = vcombine.high %v2308, %v2308
        %v2313 = vcombine.high %v1865, %v1865
        %v2315 = vunpack.c.l.s4 1966171168
        %v2316 = vunpack.c.0.s8 %v2315
        %v2317 = vlaneseq
        %v2318 = vshrl.u32 %v2317, 7
        %v2319 = vsub.s32 %v2316, %v2318
        %v2320 = vrot.slane %v1865, %v2319
        %v2322 = vunpack.c.l.s4 1966171168
        %v2323 = vunpack.c.0.s8 %v2322
        %v2324 = vlaneseq
        %v2325 = vshrl.u32 %v2324, 7
        %v2326 = vsub.s32 %v2323, %v2325
        %v2327 = vrot.slane %v2313, %v2326
        %v2328 = vcombine.high %v2320, %v2320
        %v2329 = vcombine.high %v2327, %v2327
        %v2331 = vunpack.c.l.s4 1966171168
        %v2332 = vunpack.c.0.s8 %v2331
        %v2333 = vlaneseq
        %v2334 = vshrl.u32 %v2333, 7
        %v2335 = vsub.s32 %v2332, %v2334
        %v2336 = vrot.slane %v2320, %v2335
        %v2338 = vunpack.c.l.s4 1966171168
        %v2339 = vunpack.c.0.s8 %v2338
        %v2340 = vlaneseq
        %v2341 = vshrl.u32 %v2340, 7
        %v2342 = vsub.s32 %v2339, %v2341
        %v2343 = vrot.slane %v2327, %v2342
        %v2345 = vunpack.c.l.s4 1966171168
        %v2346 = vunpack.c.0.s8 %v2345
        %v2347 = vlaneseq
        %v2348 = vshrl.u32 %v2347, 7
        %v2349 = vsub.s32 %v2346, %v2348
        %v2350 = vrot.slane %v2328, %v2349
        %v2352 = vunpack.c.l.s4 1966171168
        %v2353 = vunpack.c.0.s8 %v2352
        %v2354 = vlaneseq
        %v2355 = vshrl.u32 %v2354, 7
        %v2356 = vsub.s32 %v2353, %v2355
        %v2357 = vrot.slane %v2329, %v2356
        %v2358 = vcombine.high %v2336, %v2336
        %v2359 = vcombine.high %v2343, %v2343
        %v2360 = vcombine.high %v2350, %v2350
        %v2361 = vcombine.high %v2357, %v2357
        %v2362 = vcombine.high %v1866, %v1866
        %v2364 = vunpack.c.l.s4 1966171168
        %v2365 = vunpack.c.0.s8 %v2364
        %v2366 = vlaneseq
        %v2367 = vshrl.u32 %v2366, 7
        %v2368 = vsub.s32 %v2365, %v2367
        %v2369 = vrot.slane %v1866, %v2368
        %v2371 = vunpack.c.l.s4 1966171168
        %v2372 = vunpack.c.0.s8 %v2371
        %v2373 = vlaneseq
        %v2374 = vshrl.u32 %v2373, 7
        %v2375 = vsub.s32 %v2372, %v2374
        %v2376 = vrot.slane %v2362, %v2375
        %v2377 = vcombine.high %v2369, %v2369
        %v2378 = vcombine.high %v2376, %v2376
        %v2380 = vunpack.c.l.s4 1966171168
        %v2381 = vunpack.c.0.s8 %v2380
        %v2382 = vlaneseq
        %v2383 = vshrl.u32 %v2382, 7
        %v2384 = vsub.s32 %v2381, %v2383
        %v2385 = vrot.slane %v2369, %v2384
        %v2387 = vunpack.c.l.s4 1966171168
        %v2388 = vunpack.c.0.s8 %v2387
        %v2389 = vlaneseq
        %v2390 = vshrl.u32 %v2389, 7
        %v2391 = vsub.s32 %v2388, %v2390
        %v2392 = vrot.slane %v2376, %v2391
        %v2394 = vunpack.c.l.s4 1966171168
        %v2395 = vunpack.c.0.s8 %v2394
        %v2396 = vlaneseq
        %v2397 = vshrl.u32 %v2396, 7
        %v2398 = vsub.s32 %v2395, %v2397
        %v2399 = vrot.slane %v2377, %v2398
        %v2401 = vunpack.c.l.s4 1966171168
        %v2402 = vunpack.c.0.s8 %v2401
        %v2403 = vlaneseq
        %v2404 = vshrl.u32 %v2403, 7
        %v2405 = vsub.s32 %v2402, %v2404
        %v2406 = vrot.slane %v2378, %v2405
        %v2407 = vcombine.high %v2385, %v2385
        %v2408 = vcombine.high %v2392, %v2392
        %v2409 = vcombine.high %v2399, %v2399
        %v2410 = vcombine.high %v2406, %v2406
        %v2412 = vunpack.c.l.s4 1966171168
        %v2413 = vunpack.c.0.s8 %v2412
        %v2414 = vlaneseq
        %v2415 = vshrl.u32 %v2414, 7
        %v2416 = vsub.s32 %v2413, %v2415
        %v2417 = vrot.slane %v1867, %v2416
        %v2419 = vunpack.c.l.s4 1966171168
        %v2420 = vunpack.c.0.s8 %v2419
        %v2421 = vlaneseq
        %v2422 = vshrl.u32 %v2421, 7
        %v2423 = vsub.s32 %v2420, %v2422
        %v2424 = vrot.slane %v2417, %v2423
        %v2841 = vunpack.c.l.b16 %v1868
        %v2842 = vunpack.c.h.b16 %v1868
        %v2843 = vunpack.c.l.b16 %v1869
        %v2844 = vunpack.c.h.b16 %v1869
        %v2845 = vunpack.c.l.b16 %v1870
        %v2846 = vunpack.c.h.b16 %v1870
        %v2847 = vunpack.c.l.b16 %v1871
        %v2848 = vunpack.c.h.b16 %v1871
        %v2849 = vunpack.c.l.b16 %v1872
        %v2850 = vunpack.c.h.b16 %v1872
        %v2851 = vunpack.c.l.b16 %v1873
        %v2852 = vunpack.c.h.b16 %v1873
        %v2853 = vunpack.c.l.b16 %v1874
        %v2854 = vunpack.c.h.b16 %v1874
        %v2855 = vunpack.c.l.b16 %v1875
        %v2856 = vunpack.c.h.b16 %v1875
        %v2857 = vunpack.c.l.b16 %v1876
        %v2858 = vunpack.c.h.b16 %v1876
        %v2859 = vunpack.c.l.b16 %v1877
        %v2860 = vunpack.c.h.b16 %v1877
        %v2861 = vunpack.c.l.b16 %v1878
        %v2862 = vunpack.c.h.b16 %v1878
        %v2863 = vunpack.c.l.b16 %v1879
        %v2864 = vunpack.c.h.b16 %v1879
        %v2865 = vunpack.c.l.b16 %v1880
        %v2866 = vunpack.c.h.b16 %v1880
        %v2867 = vunpack.c.l.b16 %v1881
        %v2868 = vunpack.c.h.b16 %v1881
        %v2869 = vunpack.c.l.b16 %v1882
        %v2870 = vunpack.c.h.b16 %v1882
        %v2871 = vunpack.c.l.b16 %v1883
        %v2872 = vunpack.c.h.b16 %v1883
        %v2873 = vunpack.c.l.b16 %v1884
        %v2874 = vunpack.c.h.b16 %v1884
        %v2875 = vunpack.c.l.b16 %v1885
        %v2876 = vunpack.c.h.b16 %v1885
        %v2877 = vunpack.c.l.b16 %v1886
        %v2878 = vunpack.c.h.b16 %v1886
        %v2879 = vunpack.c.l.b16 %v1887
        %v2880 = vunpack.c.h.b16 %v1887
        %v2881 = vunpack.c.l.b16 %v1888
        %v2882 = vunpack.c.h.b16 %v1888
        %v2883 = vunpack.c.l.b16 %v1889
        %v2884 = vunpack.c.h.b16 %v1889
        %v2885 = vunpack.c.l.b16 %v1890
        %v2886 = vunpack.c.h.b16 %v1890
        %v2887 = vunpack.c.l.b16 %v1891
        %v2888 = vunpack.c.h.b16 %v1891
        %v2889 = vunpack.c.l.b16 %v1892
        %v2890 = vunpack.c.h.b16 %v1892
        %v2891 = vunpack.c.l.b16 %v1893
        %v2892 = vunpack.c.h.b16 %v1893
        %v2893 = vunpack.c.l.b16 %v1894
        %v2894 = vunpack.c.h.b16 %v1894
        %v2895 = vunpack.c.l.b16 %v1895
        %v2896 = vunpack.c.h.b16 %v1895
        %v2897 = vunpack.c.l.b16 %v1896
        %v2898 = vunpack.c.h.b16 %v1896
        %v2899 = vunpack.c.l.b16 %v1897
        %v2900 = vunpack.c.h.b16 %v1897
        %v2901 = vunpack.c.l.b16 %v1898
        %v2902 = vunpack.c.h.b16 %v1898
        %v2903 = vunpack.c.l.b16 %v1899
        %v2904 = vunpack.c.h.b16 %v1899
        %v2905 = vunpack.c.l.b16 %v1900
        %v2906 = vunpack.c.h.b16 %v1900
        %v2907 = vunpack.c.l.b16 %v1901
        %v2908 = vunpack.c.h.b16 %v1901
        %v2909 = vunpack.c.l.b16 %v1902
        %v2910 = vunpack.c.h.b16 %v1902
        %v2911 = vunpack.c.l.b16 %v1903
        %v2912 = vunpack.c.h.b16 %v1903
        %v2913 = vunpack.c.l.b16 %v1904
        %v2914 = vunpack.c.h.b16 %v1904
        %v2915 = vunpack.c.l.b16 %v1905
        %v2916 = vunpack.c.h.b16 %v1905
        %v2917 = vunpack.c.l.b16 %v1906
        %v2918 = vunpack.c.h.b16 %v1906
        %v2919 = vunpack.c.l.b16 %v1907
        %v2920 = vunpack.c.h.b16 %v1907
        %v2921 = vunpack.c.l.b16 %v1908
        %v2922 = vunpack.c.h.b16 %v1908
        %v2923 = vunpack.c.l.b16 %v1909
        %v2924 = vunpack.c.h.b16 %v1909
        %v2925 = vunpack.c.l.b16 %v1910
        %v2926 = vunpack.c.h.b16 %v1910
        %v2927 = vunpack.c.l.b16 %v1911
        %v2928 = vunpack.c.h.b16 %v1911
        %v2929 = vunpack.c.l.b16 %v1912
        %v2930 = vunpack.c.h.b16 %v1912
        %v2931 = vunpack.c.l.b16 %v1913
        %v2932 = vunpack.c.h.b16 %v1913
        %v2933 = vunpack.c.l.b16 %v1914
        %v2934 = vunpack.c.h.b16 %v1914
        %v2935 = vunpack.c.l.b16 %v1915
        %v2936 = vunpack.c.h.b16 %v1915
        %v2937 = vunpack.c.l.b16 %v1916
        %v2938 = vunpack.c.h.b16 %v1916
        %v2939 = vunpack.c.l.b16 %v1917
        %v2940 = vunpack.c.h.b16 %v1917
        %v2941 = vunpack.c.l.b16 %v1918
        %v2942 = vunpack.c.h.b16 %v1918
        %v2943 = vunpack.c.l.b16 %v1919
        %v2944 = vunpack.c.h.b16 %v1919
        %v2945 = vunpack.c.l.b16 %v1920
        %v2946 = vunpack.c.h.b16 %v1920
        %v2947 = vunpack.c.l.b16 %v1921
        %v2948 = vunpack.c.h.b16 %v1921
        %v2949 = vunpack.c.l.b16 %v1922
        %v2950 = vunpack.c.h.b16 %v1922
        %v2951 = vunpack.c.l.b16 %v1923
        %v2952 = vunpack.c.h.b16 %v1923
        %v2953 = vunpack.c.l.b16 %v1924
        %v2954 = vunpack.c.h.b16 %v1924
        %v2955 = vunpack.c.l.b16 %v1925
        %v2956 = vunpack.c.h.b16 %v1925
        %v2957 = vunpack.c.l.b16 %v1926
        %v2958 = vunpack.c.h.b16 %v1926
        %v2959 = vunpack.c.l.b16 %v1927
        %v2960 = vunpack.c.h.b16 %v1927
        %v2961 = vunpack.c.l.b16 %v1928
        %v2962 = vunpack.c.h.b16 %v1928
        %v2963 = vunpack.c.l.b16 %v1929
        %v2964 = vunpack.c.h.b16 %v1929
        %v2965 = vunpack.c.l.b16 %v1930
        %v2966 = vunpack.c.h.b16 %v1930
        %v2967 = vunpack.c.l.b16 %v1931
        %v2968 = vunpack.c.h.b16 %v1931
        %v2969 = vunpack.c.l.b16 %v1932
        %v2970 = vunpack.c.h.b16 %v1932
        %v2971 = vunpack.c.l.b16 %v1933
        %v2972 = vunpack.c.h.b16 %v1933
        %v2973 = vunpack.c.l.b16 %v1934
        %v2974 = vunpack.c.h.b16 %v1934
        %v2975 = vunpack.c.l.b16 %v1935
        %v2976 = vunpack.c.h.b16 %v1935
        %v2977 = vunpack.c.l.b16 %v1936
        %v2978 = vunpack.c.h.b16 %v1936
        %v2979 = vunpack.c.l.b16 %v1937
        %v2980 = vunpack.c.h.b16 %v1937
        %v2981 = vunpack.c.l.b16 %v1938
        %v2982 = vunpack.c.h.b16 %v1938
        %v2983 = vunpack.c.l.b16 %v1939
        %v2984 = vunpack.c.h.b16 %v1939
        %v2985 = vunpack.c.l.b16 %v1940
        %v2986 = vunpack.c.h.b16 %v1940
        %v2987 = vunpack.c.l.b16 %v1941
        %v2988 = vunpack.c.h.b16 %v1941
        %v2989 = vunpack.c.l.b16 %v1942
        %v2990 = vunpack.c.h.b16 %v1942
        %v2991 = vunpack.c.l.b16 %v1943
        %v2992 = vunpack.c.h.b16 %v1943
        %v2993 = vunpack.c.l.b16 %v1944
        %v2994 = vunpack.c.h.b16 %v1944
        %v2995 = vunpack.c.l.b16 %v1945
        %v2996 = vunpack.c.h.b16 %v1945
        %v2997 = vunpack.c.l.b16 %v1946
        %v2998 = vunpack.c.h.b16 %v1946
        %v2999 = vunpack.c.l.b16 %v1947
        %v3000 = vunpack.c.h.b16 %v1947
        %v3001 = vunpack.c.l.b16 %v1948
        %v3002 = vunpack.c.h.b16 %v1948
        %v3003 = vunpack.c.l.b16 %v1949
        %v3004 = vunpack.c.h.b16 %v1949
        %v3005 = vunpack.c.l.b16 %v1950
        %v3006 = vunpack.c.h.b16 %v1950
        %v3007 = vunpack.c.l.b16 %v1951
        %v3008 = vunpack.c.h.b16 %v1951
        %v3009 = vunpack.c.l.b16 %v1952
        %v3010 = vunpack.c.h.b16 %v1952
        %v3011 = vunpack.c.l.b16 %v1953
        %v3012 = vunpack.c.h.b16 %v1953
        %v3013 = vunpack.c.l.b16 %v1954
        %v3014 = vunpack.c.h.b16 %v1954
        %v3015 = vunpack.c.l.b16 %v1955
        %v3016 = vunpack.c.h.b16 %v1955
        %v3017 = vunpack.c.l.b16 %v1956
        %v3018 = vunpack.c.h.b16 %v1956
        %v3019 = vunpack.c.l.b16 %v1957
        %v3020 = vunpack.c.h.b16 %v1957
        %v3021 = vunpack.c.l.b16 %v1958
        %v3022 = vunpack.c.h.b16 %v1958
        %v3023 = vunpack.c.l.b16 %v1959
        %v3024 = vunpack.c.h.b16 %v1959
        %v3025 = vunpack.c.l.b16 %v1960
        %v3026 = vunpack.c.h.b16 %v1960
        %v3027 = vunpack.c.l.b16 %v1961
        %v3028 = vunpack.c.h.b16 %v1961
        %v3029 = vunpack.c.l.b16 %v1962
        %v3030 = vunpack.c.h.b16 %v1962
        %v3031 = vunpack.c.l.b16 %v1963
        %v3032 = vunpack.c.h.b16 %v1963
        %v3033 = vunpack.c.l.b16 %v1964
        %v3034 = vunpack.c.h.b16 %v1964
        %v3035 = vunpack.c.l.b16 %v1965
        %v3036 = vunpack.c.h.b16 %v1965
        %v3037 = vunpack.c.l.b16 %v1966
        %v3038 = vunpack.c.h.b16 %v1966
        %v3039 = vunpack.c.l.b16 %v1967
        %v3040 = vunpack.c.h.b16 %v1967
        %v3041 = vunpack.c.l.b16 %v1968
        %v3042 = vunpack.c.h.b16 %v1968
        %v3043 = vunpack.c.l.b16 %v1969
        %v3044 = vunpack.c.h.b16 %v1969
        %v3045 = vunpack.c.l.b16 %v1970
        %v3046 = vunpack.c.h.b16 %v1970
        %v3047 = vunpack.c.l.b16 %v1971
        %v3048 = vunpack.c.h.b16 %v1971
        %v3049 = vunpack.c.l.b16 %v1972
        %v3050 = vunpack.c.h.b16 %v1972
        %v3051 = vunpack.c.l.b16 %v1973
        %v3052 = vunpack.c.h.b16 %v1973
        %v3053 = vunpack.c.l.b16 %v1974
        %v3054 = vunpack.c.h.b16 %v1974
        %v3055 = vunpack.c.l.b16 %v1975
        %v3056 = vunpack.c.h.b16 %v1975
        %v3057 = vunpack.c.l.b16 %v1976
        %v3058 = vunpack.c.h.b16 %v1976
        %v3059 = vunpack.c.l.b16 %v1977
        %v3060 = vunpack.c.h.b16 %v1977
        %v3061 = vunpack.c.l.b16 %v1978
        %v3062 = vunpack.c.h.b16 %v1978
        %v3063 = vunpack.c.l.b16 %v1979
        %v3064 = vunpack.c.h.b16 %v1979
        %v3065 = vunpack.c.l.b16 %v1980
        %v3066 = vunpack.c.h.b16 %v1980
        %v3067 = vunpack.c.l.b16 %v1981
        %v3068 = vunpack.c.h.b16 %v1981
        %v3069 = vunpack.c.l.b16 %v1982
        %v3070 = vunpack.c.h.b16 %v1982
        %v3071 = vunpack.c.l.b16 %v1983
        %v3072 = vunpack.c.h.b16 %v1983
        %v3073 = vunpack.c.l.b16 %v1984
        %v3074 = vunpack.c.h.b16 %v1984
        %v3075 = vunpack.c.l.b16 %v1985
        %v3076 = vunpack.c.h.b16 %v1985
        %v3077 = vunpack.c.l.b16 %v1986
        %v3078 = vunpack.c.h.b16 %v1986
        %v3079 = vunpack.c.l.b16 %v1987
        %v3080 = vunpack.c.h.b16 %v1987
        %v3081 = vunpack.c.l.b16 %v1988
        %v3082 = vunpack.c.h.b16 %v1988
        %v3083 = vunpack.c.l.b16 %v1989
        %v3084 = vunpack.c.h.b16 %v1989
        %v3085 = vunpack.c.l.b16 %v1990
        %v3086 = vunpack.c.h.b16 %v1990
        %v3087 = vunpack.c.l.b16 %v1991
        %v3088 = vunpack.c.h.b16 %v1991
        %v3089 = vunpack.c.l.b16 %v1992
        %v3090 = vunpack.c.h.b16 %v1992
        %v3091 = vunpack.c.l.b16 %v1993
        %v3092 = vunpack.c.h.b16 %v1993
        %v3093 = vunpack.c.l.b16 %v1994
        %v3094 = vunpack.c.h.b16 %v1994
        %v3095 = vunpack.c.l.b16 %v1995
        %v3096 = vunpack.c.h.b16 %v1995
        %v3097 = vunpack.c.l.b16 %v1996
        %v3098 = vunpack.c.h.b16 %v1996
        %v3099 = vunpack.c.l.b16 %v1997
        %v3100 = vunpack.c.h.b16 %v1997
        %v3101 = vunpack.c.l.b16 %v1998
        %v3102 = vunpack.c.h.b16 %v1998
        %v3103 = vunpack.c.l.b16 %v1999
        %v3104 = vunpack.c.h.b16 %v1999
        %v3105 = vunpack.c.l.b16 %v2000
        %v3106 = vunpack.c.h.b16 %v2000
        %v3107 = vunpack.c.l.b16 %v2001
        %v3108 = vunpack.c.h.b16 %v2001
        %v3109 = vunpack.c.l.b16 %v2002
        %v3110 = vunpack.c.h.b16 %v2002
        %v3111 = vunpack.c.l.b16 %v2003
        %v3112 = vunpack.c.h.b16 %v2003
        %v3113 = vunpack.c.l.b16 %v2004
        %v3114 = vunpack.c.h.b16 %v2004
        %v3115 = vunpack.c.l.b16 %v2005
        %v3116 = vunpack.c.h.b16 %v2005
        %v3117 = vunpack.c.l.b16 %v2006
        %v3118 = vunpack.c.h.b16 %v2006
        %v3119 = vunpack.c.l.b16 %v2007
        %v3120 = vunpack.c.h.b16 %v2007
        %v3121 = vunpack.c.l.b16 %v2008
        %v3122 = vunpack.c.h.b16 %v2008
        %v3123 = vunpack.c.l.b16 %v2009
        %v3124 = vunpack.c.h.b16 %v2009
        %v3125 = vunpack.c.l.b16 %v2010
        %v3126 = vunpack.c.h.b16 %v2010
        %v3127 = vunpack.c.l.b16 %v2011
        %v3128 = vunpack.c.h.b16 %v2011
        %v3129 = vunpack.c.l.b16 %v2012
        %v3130 = vunpack.c.h.b16 %v2012
        %v3131 = vunpack.c.l.b16 %v2013
        %v3132 = vunpack.c.h.b16 %v2013
        %v3133 = vunpack.c.l.b16 %v2014
        %v3134 = vunpack.c.h.b16 %v2014
        %v3135 = vunpack.c.l.b16 %v2015
        %v3136 = vunpack.c.h.b16 %v2015
        %v3137 = vunpack.c.l.b16 %v2016
        %v3138 = vunpack.c.h.b16 %v2016
        %v3139 = vunpack.c.l.b16 %v2017
        %v3140 = vunpack.c.h.b16 %v2017
        %v3141 = vunpack.c.l.b16 %v2018
        %v3142 = vunpack.c.h.b16 %v2018
        %v3143 = vunpack.c.l.b16 %v2019
        %v3144 = vunpack.c.h.b16 %v2019
        %v3145 = vunpack.c.l.b16 %v2020
        %v3146 = vunpack.c.h.b16 %v2020
        %v3147 = vunpack.c.l.b16 %v2021
        %v3148 = vunpack.c.h.b16 %v2021
        %v3149 = vunpack.c.l.b16 %v2022
        %v3150 = vunpack.c.h.b16 %v2022
        %v3151 = vunpack.c.l.b16 %v2023
        %v3152 = vunpack.c.h.b16 %v2023
        %v3153 = vunpack.c.l.b16 %v2024
        %v3154 = vunpack.c.h.b16 %v2024
        %v3155 = vunpack.c.l.b16 %v2025
        %v3156 = vunpack.c.h.b16 %v2025
        %v3157 = vunpack.c.l.b16 %v2026
        %v3158 = vunpack.c.h.b16 %v2026
        %v3159 = vunpack.c.l.b16 %v2027
        %v3160 = vunpack.c.h.b16 %v2027
        %v3161 = vunpack.c.l.b16 %v2028
        %v3162 = vunpack.c.h.b16 %v2028
        %v3163 = vunpack.c.l.b16 %v2029
        %v3164 = vunpack.c.h.b16 %v2029
        %v3165 = vunpack.c.l.b16 %v2030
        %v3166 = vunpack.c.h.b16 %v2030
        %v3167 = vunpack.c.l.b16 %v2031
        %v3168 = vunpack.c.h.b16 %v2031
        %v3169 = vunpack.c.l.b16 %v2032
        %v3170 = vunpack.c.h.b16 %v2032
        %v3171 = vunpack.c.l.b16 %v2033
        %v3172 = vunpack.c.h.b16 %v2033
        %v3173 = vunpack.c.l.b16 %v2034
        %v3174 = vunpack.c.h.b16 %v2034
        %v3175 = vunpack.c.l.b16 %v2035
        %v3176 = vunpack.c.h.b16 %v2035
        %v3177 = vunpack.c.l.b16 %v2036
        %v3178 = vunpack.c.h.b16 %v2036
        %v3179 = vunpack.c.l.b16 %v2037
        %v3180 = vunpack.c.h.b16 %v2037
        %v3181 = vunpack.c.l.b16 %v2038
        %v3182 = vunpack.c.h.b16 %v2038
        %v3183 = vunpack.c.l.b16 %v2039
        %v3184 = vunpack.c.h.b16 %v2039
        %v3185 = vunpack.c.l.b16 %v2040
        %v3186 = vunpack.c.h.b16 %v2040
        %v3187 = vunpack.c.l.b16 %v2041
        %v3188 = vunpack.c.h.b16 %v2041
        %v3189 = vunpack.c.l.b16 %v2042
        %v3190 = vunpack.c.h.b16 %v2042
        %v3191 = vunpack.c.l.b16 %v2043
        %v3192 = vunpack.c.h.b16 %v2043
        %v3193 = vunpack.c.l.b16 %v2044
        %v3194 = vunpack.c.h.b16 %v2044
        %v3195 = vunpack.c.l.b16 %v2045
        %v3196 = vunpack.c.h.b16 %v2045
        %v3197 = vunpack.c.l.b16 %v2046
        %v3198 = vunpack.c.h.b16 %v2046
        %v3199 = vunpack.c.l.b16 %v2047
        %v3200 = vunpack.c.h.b16 %v2047
        %v3201 = vunpack.c.l.b16 %v2048
        %v3202 = vunpack.c.h.b16 %v2048
        %v3203 = vunpack.c.l.b16 %v2049
        %v3204 = vunpack.c.h.b16 %v2049
        %v3205 = vunpack.c.l.b16 %v2050
        %v3206 = vunpack.c.h.b16 %v2050
        %v3207 = vunpack.c.l.b16 %v2051
        %v3208 = vunpack.c.h.b16 %v2051
        %v3209 = vunpack.c.l.b16 %v2052
        %v3210 = vunpack.c.h.b16 %v2052
        %v3211 = vunpack.c.l.b16 %v2053
        %v3212 = vunpack.c.h.b16 %v2053
        %v3213 = vunpack.c.l.b16 %v2054
        %v3214 = vunpack.c.h.b16 %v2054
        %v3215 = vunpack.c.l.b16 %v2055
        %v3216 = vunpack.c.h.b16 %v2055
        %v3217 = vunpack.c.l.b16 %v2056
        %v3218 = vunpack.c.h.b16 %v2056
        %v3219 = vunpack.c.l.b16 %v2057
        %v3220 = vunpack.c.h.b16 %v2057
        %v3221 = vunpack.c.l.b16 %v2058
        %v3222 = vunpack.c.h.b16 %v2058
        %v3223 = vunpack.c.l.b16 %v2059
        %v3224 = vunpack.c.h.b16 %v2059
        %v3225 = vunpack.c.l.b16 %v2060
        %v3226 = vunpack.c.h.b16 %v2060
        %v3227 = vunpack.c.l.b16 %v2061
        %v3228 = vunpack.c.h.b16 %v2061
        %v3229 = vunpack.c.l.b16 %v2062
        %v3230 = vunpack.c.h.b16 %v2062
        %v3231 = vunpack.c.l.b16 %v2063
        %v3232 = vunpack.c.h.b16 %v2063
        %v3233 = vunpack.c.l.b16 %v2064
        %v3234 = vunpack.c.h.b16 %v2064
        %v3235 = vunpack.c.l.b16 %v2065
        %v3236 = vunpack.c.h.b16 %v2065
        %v3237 = vunpack.c.l.b16 %v2066
        %v3238 = vunpack.c.h.b16 %v2066
        %v3239 = vunpack.c.l.b16 %v2067
        %v3240 = vunpack.c.h.b16 %v2067
        %v3241 = vunpack.c.l.b16 %v2068
        %v3242 = vunpack.c.h.b16 %v2068
        %v3243 = vunpack.c.l.b16 %v2069
        %v3244 = vunpack.c.h.b16 %v2069
        %v3245 = vunpack.c.l.b16 %v2070
        %v3246 = vunpack.c.h.b16 %v2070
        %v3247 = vunpack.c.l.b16 %v2071
        %v3248 = vunpack.c.h.b16 %v2071
        %v3249 = vunpack.c.l.b16 %v2072
        %v3250 = vunpack.c.h.b16 %v2072
        %v3251 = vunpack.c.l.b16 %v2073
        %v3252 = vunpack.c.h.b16 %v2073
        %v3253 = vunpack.c.l.b16 %v2074
        %v3254 = vunpack.c.h.b16 %v2074
        %v3255 = vunpack.c.l.b16 %v2075
        %v3256 = vunpack.c.h.b16 %v2075
        %v3257 = vunpack.c.l.b16 %v2076
        %v3258 = vunpack.c.h.b16 %v2076
        %v3259 = vunpack.c.l.b16 %v2077
        %v3260 = vunpack.c.h.b16 %v2077
        %v3261 = vunpack.c.l.b16 %v2078
        %v3262 = vunpack.c.h.b16 %v2078
        %v3263 = vunpack.c.l.b16 %v2079
        %v3264 = vunpack.c.h.b16 %v2079
        %v3265 = vunpack.c.l.b16 %v2080
        %v3266 = vunpack.c.h.b16 %v2080
        %v3267 = vunpack.c.l.b16 %v2081
        %v3268 = vunpack.c.h.b16 %v2081
        %v3269 = vunpack.c.l.b16 %v2082
        %v3270 = vunpack.c.h.b16 %v2082
        %v3271 = vunpack.c.l.b16 %v2083
        %v3272 = vunpack.c.h.b16 %v2083
        %v3273 = vunpack.c.l.b16 %v2084
        %v3274 = vunpack.c.h.b16 %v2084
        %v3275 = vunpack.c.l.b16 %v2085
        %v3276 = vunpack.c.h.b16 %v2085
        %v3277 = vunpack.c.l.b16 %v2086
        %v3278 = vunpack.c.h.b16 %v2086
        %v3279 = vunpack.c.l.b16 %v2087
        %v3280 = vunpack.c.h.b16 %v2087
        %v3281 = vunpack.c.l.b16 %v2088
        %v3282 = vunpack.c.h.b16 %v2088
        %v3283 = vunpack.c.l.b16 %v2089
        %v3284 = vunpack.c.h.b16 %v2089
        %v3285 = vunpack.c.l.b16 %v2090
        %v3286 = vunpack.c.h.b16 %v2090
        %v3287 = vunpack.c.l.b16 %v2091
        %v3288 = vunpack.c.h.b16 %v2091
        %v3289 = vunpack.c.l.b16 %v2092
        %v3290 = vunpack.c.h.b16 %v2092
        %v3291 = vunpack.c.l.b16 %v2093
        %v3292 = vunpack.c.h.b16 %v2093
        %v3293 = vunpack.c.l.b16 %v2094
        %v3294 = vunpack.c.h.b16 %v2094
        %v3295 = vunpack.c.l.b16 %v2095
        %v3296 = vunpack.c.h.b16 %v2095
        %v3297 = vunpack.c.l.b16 %v2096
        %v3298 = vunpack.c.h.b16 %v2096
        %v3299 = vunpack.c.l.b16 %v2097
        %v3300 = vunpack.c.h.b16 %v2097
        %v3301 = vunpack.c.l.b16 %v2098
        %v3302 = vunpack.c.h.b16 %v2098
        %v3303 = vunpack.c.l.b16 %v2099
        %v3304 = vunpack.c.h.b16 %v2099
        %v3305 = vunpack.c.l.b16 %v2100
        %v3306 = vunpack.c.h.b16 %v2100
        %v3307 = vunpack.c.l.b16 %v2101
        %v3308 = vunpack.c.h.b16 %v2101
        %v3309 = vunpack.c.l.b16 %v2102
        %v3310 = vunpack.c.h.b16 %v2102
        %v3311 = vunpack.c.l.b16 %v2103
        %v3312 = vunpack.c.h.b16 %v2103
        %v3313 = vunpack.c.l.b16 %v2104
        %v3314 = vunpack.c.h.b16 %v2104
        %v3315 = vunpack.c.l.b16 %v2105
        %v3316 = vunpack.c.h.b16 %v2105
        %v3317 = vunpack.c.l.b16 %v2106
        %v3318 = vunpack.c.h.b16 %v2106
        %v3319 = vunpack.c.l.b16 %v2107
        %v3320 = vunpack.c.h.b16 %v2107
        %v3321 = vunpack.c.l.b16 %v2108
        %v3322 = vunpack.c.h.b16 %v2108
        %v3323 = vunpack.c.l.b16 %v2109
        %v3324 = vunpack.c.h.b16 %v2109
        %v3325 = vunpack.c.l.b16 %v2110
        %v3326 = vunpack.c.h.b16 %v2110
        %v3327 = vunpack.c.l.b16 %v2111
        %v3328 = vunpack.c.h.b16 %v2111
        %v3329 = vunpack.c.l.b16 %v2112
        %v3330 = vunpack.c.h.b16 %v2112
        %v3331 = vunpack.c.l.b16 %v2113
        %v3332 = vunpack.c.h.b16 %v2113
        %v3333 = vunpack.c.l.b16 %v2114
        %v3334 = vunpack.c.h.b16 %v2114
        %v3335 = vunpack.c.l.b16 %v2115
        %v3336 = vunpack.c.h.b16 %v2115
        %v3337 = vunpack.c.l.b16 %v2116
        %v3338 = vunpack.c.h.b16 %v2116
        %v3339 = vunpack.c.l.b16 %v2117
        %v3340 = vunpack.c.h.b16 %v2117
        %v3341 = vunpack.c.l.b16 %v2118
        %v3342 = vunpack.c.h.b16 %v2118
        %v3343 = vunpack.c.l.b16 %v2119
        %v3344 = vunpack.c.h.b16 %v2119
        %v3345 = vunpack.c.l.b16 %v2120
        %v3346 = vunpack.c.h.b16 %v2120
        %v3347 = vunpack.c.l.b16 %v2121
        %v3348 = vunpack.c.h.b16 %v2121
        %v3349 = vunpack.c.l.b16 %v2122
        %v3350 = vunpack.c.h.b16 %v2122
        %v3351 = vunpack.c.l.b16 %v2123
        %v3352 = vunpack.c.h.b16 %v2123
        %v3353 = vunpack.c.l.b16 %v2124
        %v3354 = vunpack.c.h.b16 %v2124
        %v3355 = vunpack.c.l.b16 %v2125
        %v3356 = vunpack.c.h.b16 %v2125
        %v3357 = vunpack.c.l.b16 %v2126
        %v3358 = vunpack.c.h.b16 %v2126
        %v3359 = vunpack.c.l.b16 %v2127
        %v3360 = vunpack.c.h.b16 %v2127
        %v3361 = vunpack.c.l.b16 %v2128
        %v3362 = vunpack.c.h.b16 %v2128
        %v3363 = vunpack.c.l.b16 %v2129
        %v3364 = vunpack.c.h.b16 %v2129
        %v3365 = vunpack.c.l.b16 %v2130
        %v3366 = vunpack.c.h.b16 %v2130
        %v3367 = vunpack.c.l.b16 %v2131
        %v3368 = vunpack.c.h.b16 %v2131
        %v3369 = vunpack.c.l.b16 %v2132
        %v3370 = vunpack.c.h.b16 %v2132
        %v3371 = vunpack.c.l.b16 %v2133
        %v3372 = vunpack.c.h.b16 %v2133
        %v3373 = vunpack.c.l.b16 %v2134
        %v3374 = vunpack.c.h.b16 %v2134
        %v3375 = vunpack.c.l.b16 %v2135
        %v3376 = vunpack.c.h.b16 %v2135
        %v3377 = vunpack.c.l.b16 %v2136
        %v3378 = vunpack.c.h.b16 %v2136
        %v3379 = vunpack.c.l.b16 %v2137
        %v3380 = vunpack.c.h.b16 %v2137
        %v3381 = vunpack.c.l.b16 %v2138
        %v3382 = vunpack.c.h.b16 %v2138
        %v3383 = vunpack.c.l.b16 %v2139
        %v3384 = vunpack.c.h.b16 %v2139
        %v3385 = vunpack.c.l.b16 %v2140
        %v3386 = vunpack.c.h.b16 %v2140
        %v3387 = vunpack.c.l.b16 %v2141
        %v3388 = vunpack.c.h.b16 %v2141
        %v3389 = vunpack.c.l.b16 %v2142
        %v3390 = vunpack.c.h.b16 %v2142
        %v3391 = vunpack.c.l.b16 %v2143
        %v3392 = vunpack.c.h.b16 %v2143
        %v3393 = vunpack.c.l.b16 %v2144
        %v3394 = vunpack.c.h.b16 %v2144
        %v3395 = vunpack.c.l.b16 %v2145
        %v3396 = vunpack.c.h.b16 %v2145
        %v3397 = vunpack.c.l.b16 %v2146
        %v3398 = vunpack.c.h.b16 %v2146
        %v3399 = vunpack.c.l.b16 %v2147
        %v3400 = vunpack.c.h.b16 %v2147
        %v3401 = vunpack.c.l.b16 %v2148
        %v3402 = vunpack.c.h.b16 %v2148
        %v3403 = vunpack.c.l.b16 %v2149
        %v3404 = vunpack.c.h.b16 %v2149
        %v3405 = vunpack.c.l.b16 %v2150
        %v3406 = vunpack.c.h.b16 %v2150
        %v3407 = vunpack.c.l.b16 %v2151
        %v3408 = vunpack.c.h.b16 %v2151
        %v3409 = vunpack.c.l.b16 %v2152
        %v3410 = vunpack.c.h.b16 %v2152
        %v3411 = vunpack.c.l.b16 %v2153
        %v3412 = vunpack.c.h.b16 %v2153
        %v3413 = vunpack.c.l.b16 %v2154
        %v3414 = vunpack.c.h.b16 %v2154
        %v3415 = vunpack.c.l.b16 %v2155
        %v3416 = vunpack.c.h.b16 %v2155
        %v3417 = vunpack.c.l.b16 %v2156
        %v3418 = vunpack.c.h.b16 %v2156
        %v3419 = vunpack.c.l.b16 %v2157
        %v3420 = vunpack.c.h.b16 %v2157
        %v3421 = vunpack.c.l.b16 %v2158
        %v3422 = vunpack.c.h.b16 %v2158
        %v3423 = vunpack.c.l.b16 %v2159
        %v3424 = vunpack.c.h.b16 %v2159
        %v3425 = vunpack.c.l.b16 %v2160
        %v3426 = vunpack.c.h.b16 %v2160
        %v3427 = vunpack.c.l.b16 %v2161
        %v3428 = vunpack.c.h.b16 %v2161
        %v3429 = vunpack.c.l.b16 %v2162
        %v3430 = vunpack.c.h.b16 %v2162
        %v3431 = vunpack.c.l.b16 %v2163
        %v3432 = vunpack.c.h.b16 %v2163
        %v3433 = vunpack.c.l.b16 %v2164
        %v3434 = vunpack.c.h.b16 %v2164
        %v3435 = vunpack.c.l.b16 %v2165
        %v3436 = vunpack.c.h.b16 %v2165
        %v3437 = vunpack.c.l.b16 %v2166
        %v3438 = vunpack.c.h.b16 %v2166
        %v3439 = vunpack.c.l.b16 %v2167
        %v3440 = vunpack.c.h.b16 %v2167
        %v3441 = vunpack.c.l.b16 %v2168
        %v3442 = vunpack.c.h.b16 %v2168
        %v3443 = vunpack.c.l.b16 %v2169
        %v3444 = vunpack.c.h.b16 %v2169
        %v3445 = vunpack.c.l.b16 %v2170
        %v3446 = vunpack.c.h.b16 %v2170
        %v3447 = vunpack.c.l.b16 %v2171
        %v3448 = vunpack.c.h.b16 %v2171
        %v3449 = vunpack.c.l.b16 %v2172
        %v3450 = vunpack.c.h.b16 %v2172
        %v3451 = vunpack.c.l.b16 %v2173
        %v3452 = vunpack.c.h.b16 %v2173
        %v3453 = vunpack.c.l.b16 %v2174
        %v3454 = vunpack.c.h.b16 %v2174
        %v3455 = vunpack.c.l.b16 %v2175
        %v3456 = vunpack.c.h.b16 %v2175
        %v3457 = vunpack.c.l.b16 %v2176
        %v3458 = vunpack.c.h.b16 %v2176
        %v3459 = vunpack.c.l.b16 %v2177
        %v3460 = vunpack.c.h.b16 %v2177
        %v3461 = vunpack.c.l.b16 %v2178
        %v3462 = vunpack.c.h.b16 %v2178
        %v3463 = vunpack.c.l.b16 %v2179
        %v3464 = vunpack.c.h.b16 %v2179
        %v3465 = vunpack.c.l.b16 %v2180
        %v3466 = vunpack.c.h.b16 %v2180
        %v3467 = vunpack.c.l.b16 %v2181
        %v3468 = vunpack.c.h.b16 %v2181
        %v3469 = vunpack.c.l.b16 %v2182
        %v3470 = vunpack.c.h.b16 %v2182
        %v3471 = vunpack.c.l.b16 %v2183
        %v3472 = vunpack.c.h.b16 %v2183
        %v3473 = vunpack.c.l.b16 %v2184
        %v3474 = vunpack.c.h.b16 %v2184
        %v3475 = vunpack.c.l.b16 %v2185
        %v3476 = vunpack.c.h.b16 %v2185
        %v3477 = vunpack.c.l.b16 %v2186
        %v3478 = vunpack.c.h.b16 %v2186
        %v3479 = vunpack.c.l.b16 %v2187
        %v3480 = vunpack.c.h.b16 %v2187
        %v3481 = vunpack.c.l.b16 %v2188
        %v3482 = vunpack.c.h.b16 %v2188
        %v3483 = vunpack.c.l.b16 %v2189
        %v3484 = vunpack.c.h.b16 %v2189
        %v3485 = vunpack.c.l.b16 %v2190
        %v3486 = vunpack.c.h.b16 %v2190
        %v3487 = vunpack.c.l.b16 %v2191
        %v3488 = vunpack.c.h.b16 %v2191
        %v3489 = vunpack.c.l.b16 %v2192
        %v3490 = vunpack.c.h.b16 %v2192
        %v3491 = vunpack.c.l.b16 %v2193
        %v3492 = vunpack.c.h.b16 %v2193
        %v3493 = vunpack.c.l.b16 %v2194
        %v3494 = vunpack.c.h.b16 %v2194
        %v3495 = vunpack.c.l.b16 %v2195
        %v3496 = vunpack.c.h.b16 %v2195
        %v3497 = vunpack.c.l.b16 %v2196
        %v3498 = vunpack.c.h.b16 %v2196
        %v3499 = vunpack.c.l.b16 %v2197
        %v3500 = vunpack.c.h.b16 %v2197
        %v3501 = vunpack.c.l.b16 %v2198
        %v3502 = vunpack.c.h.b16 %v2198
        %v3503 = vunpack.c.l.b16 %v2199
        %v3504 = vunpack.c.h.b16 %v2199
        %v3505 = vunpack.c.l.b16 %v2200
        %v3506 = vunpack.c.h.b16 %v2200
        %v3507 = vunpack.c.l.b16 %v2201
        %v3508 = vunpack.c.h.b16 %v2201
        %v3509 = vunpack.c.l.b16 %v2202
        %v3510 = vunpack.c.h.b16 %v2202
        %v3511 = vunpack.c.l.b16 %v2203
        %v3512 = vunpack.c.h.b16 %v2203
        %v3513 = vunpack.c.l.b16 %v2204
        %v3514 = vunpack.c.h.b16 %v2204
        %v3515 = vunpack.c.l.b16 %v2205
        %v3516 = vunpack.c.h.b16 %v2205
        %v3517 = vunpack.c.l.b16 %v2206
        %v3518 = vunpack.c.h.b16 %v2206
        %v3519 = vunpack.c.l.b16 %v2207
        %v3520 = vunpack.c.h.b16 %v2207
        %v3521 = vunpack.c.l.b16 %v2208
        %v3522 = vunpack.c.h.b16 %v2208
        %v3523 = vunpack.c.l.b16 %v2209
        %v3524 = vunpack.c.h.b16 %v2209
        %v3525 = vunpack.c.l.b16 %v2210
        %v3526 = vunpack.c.h.b16 %v2210
        %v3527 = vunpack.c.l.b16 %v2211
        %v3528 = vunpack.c.h.b16 %v2211
        %v3529 = vunpack.c.l.b16 %v2212
        %v3530 = vunpack.c.h.b16 %v2212
        %v3531 = vunpack.c.l.b16 %v2213
        %v3532 = vunpack.c.h.b16 %v2213
        %v3533 = vunpack.c.l.b16 %v2214
        %v3534 = vunpack.c.h.b16 %v2214
        %v3535 = vunpack.c.l.b16 %v2215
        %v3536 = vunpack.c.h.b16 %v2215
        %v3537 = vunpack.c.l.b16 %v2216
        %v3538 = vunpack.c.h.b16 %v2216
        %v3539 = vunpack.c.l.b16 %v2217
        %v3540 = vunpack.c.h.b16 %v2217
        %v3541 = vunpack.c.l.b16 %v2218
        %v3542 = vunpack.c.h.b16 %v2218
        %v3543 = vunpack.c.l.b16 %v2219
        %v3544 = vunpack.c.h.b16 %v2219
        %v3545 = vunpack.c.l.b16 %v2220
        %v3546 = vunpack.c.h.b16 %v2220
        %v3547 = vunpack.c.l.b16 %v2221
        %v3548 = vunpack.c.h.b16 %v2221
        %v3549 = vunpack.c.l.b16 %v2222
        %v3550 = vunpack.c.h.b16 %v2222
        %v3551 = vunpack.c.l.b16 %v2223
        %v3552 = vunpack.c.h.b16 %v2223
        %v3553 = vunpack.c.l.b16 %v2224
        %v3554 = vunpack.c.h.b16 %v2224
        %v3555 = vunpack.c.l.b16 %v2225
        %v3556 = vunpack.c.h.b16 %v2225
        %v3557 = vunpack.c.l.b16 %v2226
        %v3558 = vunpack.c.h.b16 %v2226
        %v3559 = vunpack.c.l.b16 %v2227
        %v3560 = vunpack.c.h.b16 %v2227
        %v3561 = vunpack.c.l.b16 %v2228
        %v3562 = vunpack.c.h.b16 %v2228
        %v3563 = vunpack.c.l.b16 %v2229
        %v3564 = vunpack.c.h.b16 %v2229
        %v3565 = vunpack.c.l.b16 %v2230
        %v3566 = vunpack.c.h.b16 %v2230
        %v3567 = vunpack.c.l.b16 %v2231
        %v3568 = vunpack.c.h.b16 %v2231
        %v3569 = vunpack.c.l.b16 %v2232
        %v3570 = vunpack.c.h.b16 %v2232
        %v3571 = vunpack.c.l.b16 %v2233
        %v3572 = vunpack.c.h.b16 %v2233
        %v3573 = vunpack.c.l.b16 %v2234
        %v3574 = vunpack.c.h.b16 %v2234
        %v3575 = vunpack.c.l.b16 %v2235
        %v3576 = vunpack.c.h.b16 %v2235
        %v3577 = vunpack.c.l.b16 %v2236
        %v3578 = vunpack.c.h.b16 %v2236
        %v3579 = vunpack.c.l.b16 %v2237
        %v3580 = vunpack.c.h.b16 %v2237
        %v3581 = vunpack.c.l.b16 %v2238
        %v3582 = vunpack.c.h.b16 %v2238
        %v3583 = vunpack.c.l.b16 %v2239
        %v3584 = vunpack.c.h.b16 %v2239
        %v3585 = vunpack.c.l.b16 %v2240
        %v3586 = vunpack.c.h.b16 %v2240
        %v3587 = vunpack.c.l.b16 %v2241
        %v3588 = vunpack.c.h.b16 %v2241
        %v3589 = vunpack.c.l.b16 %v2242
        %v3590 = vunpack.c.h.b16 %v2242
        %v3591 = vunpack.c.l.b16 %v2243
        %v3592 = vunpack.c.h.b16 %v2243
        %v3593 = vunpack.c.l.b16 %v2244
        %v3594 = vunpack.c.h.b16 %v2244
        %v3595 = vunpack.c.l.b16 %v2245
        %v3596 = vunpack.c.h.b16 %v2245
        %v3597 = vunpack.c.l.b16 %v2246
        %v3598 = vunpack.c.h.b16 %v2246
        %v3599 = vunpack.c.l.b16 %v2247
        %v3600 = vunpack.c.h.b16 %v2247
        %v3601 = vunpack.c.l.b16 %v2248
        %v3602 = vunpack.c.h.b16 %v2248
        %v3603 = vunpack.c.l.b16 %v2249
        %v3604 = vunpack.c.h.b16 %v2249
        %v3605 = vunpack.c.l.b16 %v2250
        %v3606 = vunpack.c.h.b16 %v2250
        %v3607 = vunpack.c.l.b16 %v2251
        %v3608 = vunpack.c.h.b16 %v2251
        %v3609 = vunpack.c.l.b16 %v2252
        %v3610 = vunpack.c.h.b16 %v2252
        %v3611 = vunpack.c.l.b16 %v2253
        %v3612 = vunpack.c.h.b16 %v2253
        %v3613 = vunpack.c.l.b16 %v2254
        %v3614 = vunpack.c.h.b16 %v2254
        %v3615 = vunpack.c.l.b16 %v2255
        %v3616 = vunpack.c.h.b16 %v2255
        %v3617 = vunpack.c.l.b16 %v2256
        %v3618 = vunpack.c.h.b16 %v2256
        %v3619 = vunpack.c.l.b16 %v2257
        %v3620 = vunpack.c.h.b16 %v2257
        %v3621 = vunpack.c.l.b16 %v2258
        %v3622 = vunpack.c.h.b16 %v2258
        %v3623 = vunpack.c.l.b16 %v2259
        %v3624 = vunpack.c.h.b16 %v2259
        %v3625 = vpack.c.b16 %v2843, %v2841
        %v3626 = vpack.c.b16 %v2844, %v2842
        %v3627 = vpack.c.b16 %v2847, %v2845
        %v3628 = vpack.c.b16 %v2848, %v2846
        %v3629 = vpack.c.b16 %v2851, %v2849
        %v3630 = vpack.c.b16 %v2852, %v2850
        %v3631 = vpack.c.b16 %v2855, %v2853
        %v3632 = vpack.c.b16 %v2856, %v2854
        %v3633 = vpack.c.b16 %v2859, %v2857
        %v3634 = vpack.c.b16 %v2860, %v2858
        %v3635 = vpack.c.b16 %v2863, %v2861
        %v3636 = vpack.c.b16 %v2864, %v2862
        %v3637 = vpack.c.b16 %v2867, %v2865
        %v3638 = vpack.c.b16 %v2868, %v2866
        %v3639 = vpack.c.b16 %v2871, %v2869
        %v3640 = vpack.c.b16 %v2872, %v2870
        %v3641 = vpack.c.b16 %v2875, %v2873
        %v3642 = vpack.c.b16 %v2876, %v2874
        %v3643 = vpack.c.b16 %v2879, %v2877
        %v3644 = vpack.c.b16 %v2880, %v2878
        %v3645 = vpack.c.b16 %v2883, %v2881
        %v3646 = vpack.c.b16 %v2884, %v2882
        %v3647 = vpack.c.b16 %v2887, %v2885
        %v3648 = vpack.c.b16 %v2888, %v2886
        %v3649 = vpack.c.b16 %v2891, %v2889
        %v3650 = vpack.c.b16 %v2892, %v2890
        %v3651 = vpack.c.b16 %v2895, %v2893
        %v3652 = vpack.c.b16 %v2896, %v2894
        %v3653 = vpack.c.b16 %v2899, %v2897
        %v3654 = vpack.c.b16 %v2900, %v2898
        %v3655 = vpack.c.b16 %v2903, %v2901
        %v3656 = vpack.c.b16 %v2904, %v2902
        %v3657 = vpack.c.b16 %v2907, %v2905
        %v3658 = vpack.c.b16 %v2908, %v2906
        %v3659 = vpack.c.b16 %v2911, %v2909
        %v3660 = vpack.c.b16 %v2912, %v2910
        %v3661 = vpack.c.b16 %v2915, %v2913
        %v3662 = vpack.c.b16 %v2916, %v2914
        %v3663 = vpack.c.b16 %v2919, %v2917
        %v3664 = vpack.c.b16 %v2920, %v2918
        %v3665 = vpack.c.b16 %v2923, %v2921
        %v3666 = vpack.c.b16 %v2924, %v2922
        %v3667 = vpack.c.b16 %v2927, %v2925
        %v3668 = vpack.c.b16 %v2928, %v2926
        %v3669 = vpack.c.b16 %v2931, %v2929
        %v3670 = vpack.c.b16 %v2932, %v2930
        %v3671 = vpack.c.b16 %v2935, %v2933
        %v3672 = vpack.c.b16 %v2936, %v2934
        %v3673 = vpack.c.b16 %v2939, %v2937
        %v3674 = vpack.c.b16 %v2940, %v2938
        %v3675 = vpack.c.b16 %v2943, %v2941
        %v3676 = vpack.c.b16 %v2944, %v2942
        %v3677 = vpack.c.b16 %v2947, %v2945
        %v3678 = vpack.c.b16 %v2948, %v2946
        %v3679 = vpack.c.b16 %v2951, %v2949
        %v3680 = vpack.c.b16 %v2952, %v2950
        %v3681 = vpack.c.b16 %v2955, %v2953
        %v3682 = vpack.c.b16 %v2956, %v2954
        %v3683 = vpack.c.b16 %v2959, %v2957
        %v3684 = vpack.c.b16 %v2960, %v2958
        %v3685 = vpack.c.b16 %v2963, %v2961
        %v3686 = vpack.c.b16 %v2964, %v2962
        %v3687 = vpack.c.b16 %v2967, %v2965
        %v3688 = vpack.c.b16 %v2968, %v2966
        %v3689 = vpack.c.b16 %v2971, %v2969
        %v3690 = vpack.c.b16 %v2972, %v2970
        %v3691 = vpack.c.b16 %v2975, %v2973
        %v3692 = vpack.c.b16 %v2976, %v2974
        %v3693 = vpack.c.b16 %v2979, %v2977
        %v3694 = vpack.c.b16 %v2980, %v2978
        %v3695 = vpack.c.b16 %v2983, %v2981
        %v3696 = vpack.c.b16 %v2984, %v2982
        %v3697 = vpack.c.b16 %v2987, %v2985
        %v3698 = vpack.c.b16 %v2988, %v2986
        %v3699 = vpack.c.b16 %v2991, %v2989
        %v3700 = vpack.c.b16 %v2992, %v2990
        %v3701 = vpack.c.b16 %v2995, %v2993
        %v3702 = vpack.c.b16 %v2996, %v2994
        %v3703 = vpack.c.b16 %v2999, %v2997
        %v3704 = vpack.c.b16 %v3000, %v2998
        %v3705 = vpack.c.b16 %v3003, %v3001
        %v3706 = vpack.c.b16 %v3004, %v3002
        %v3707 = vpack.c.b16 %v3007, %v3005
        %v3708 = vpack.c.b16 %v3008, %v3006
        %v3709 = vpack.c.b16 %v3011, %v3009
        %v3710 = vpack.c.b16 %v3012, %v3010
        %v3711 = vpack.c.b16 %v3015, %v3013
        %v3712 = vpack.c.b16 %v3016, %v3014
        %v3713 = vpack.c.b16 %v3019, %v3017
        %v3714 = vpack.c.b16 %v3020, %v3018
        %v3715 = vpack.c.b16 %v3023, %v3021
        %v3716 = vpack.c.b16 %v3024, %v3022
        %v3717 = vpack.c.b16 %v3027, %v3025
        %v3718 = vpack.c.b16 %v3028, %v3026
        %v3719 = vpack.c.b16 %v3031, %v3029
        %v3720 = vpack.c.b16 %v3032, %v3030
        %v3721 = vpack.c.b16 %v3035, %v3033
        %v3722 = vpack.c.b16 %v3036, %v3034
        %v3723 = vpack.c.b16 %v3039, %v3037
        %v3724 = vpack.c.b16 %v3040, %v3038
        %v3725 = vpack.c.b16 %v3043, %v3041
        %v3726 = vpack.c.b16 %v3044, %v3042
        %v3727 = vpack.c.b16 %v3047, %v3045
        %v3728 = vpack.c.b16 %v3048, %v3046
        %v3729 = vpack.c.b16 %v3051, %v3049
        %v3730 = vpack.c.b16 %v3052, %v3050
        %v3731 = vpack.c.b16 %v3055, %v3053
        %v3732 = vpack.c.b16 %v3056, %v3054
        %v3733 = vpack.c.b16 %v3059, %v3057
        %v3734 = vpack.c.b16 %v3060, %v3058
        %v3735 = vpack.c.b16 %v3063, %v3061
        %v3736 = vpack.c.b16 %v3064, %v3062
        %v3737 = vpack.c.b16 %v3067, %v3065
        %v3738 = vpack.c.b16 %v3068, %v3066
        %v3739 = vpack.c.b16 %v3071, %v3069
        %v3740 = vpack.c.b16 %v3072, %v3070
        %v3741 = vpack.c.b16 %v3075, %v3073
        %v3742 = vpack.c.b16 %v3076, %v3074
        %v3743 = vpack.c.b16 %v3079, %v3077
        %v3744 = vpack.c.b16 %v3080, %v3078
        %v3745 = vpack.c.b16 %v3083, %v3081
        %v3746 = vpack.c.b16 %v3084, %v3082
        %v3747 = vpack.c.b16 %v3087, %v3085
        %v3748 = vpack.c.b16 %v3088, %v3086
        %v3749 = vpack.c.b16 %v3091, %v3089
        %v3750 = vpack.c.b16 %v3092, %v3090
        %v3751 = vpack.c.b16 %v3095, %v3093
        %v3752 = vpack.c.b16 %v3096, %v3094
        %v3753 = vpack.c.b16 %v3099, %v3097
        %v3754 = vpack.c.b16 %v3100, %v3098
        %v3755 = vpack.c.b16 %v3103, %v3101
        %v3756 = vpack.c.b16 %v3104, %v3102
        %v3757 = vpack.c.b16 %v3107, %v3105
        %v3758 = vpack.c.b16 %v3108, %v3106
        %v3759 = vpack.c.b16 %v3111, %v3109
        %v3760 = vpack.c.b16 %v3112, %v3110
        %v3761 = vpack.c.b16 %v3115, %v3113
        %v3762 = vpack.c.b16 %v3116, %v3114
        %v3763 = vpack.c.b16 %v3119, %v3117
        %v3764 = vpack.c.b16 %v3120, %v3118
        %v3765 = vpack.c.b16 %v3123, %v3121
        %v3766 = vpack.c.b16 %v3124, %v3122
        %v3767 = vpack.c.b16 %v3127, %v3125
        %v3768 = vpack.c.b16 %v3128, %v3126
        %v3769 = vpack.c.b16 %v3131, %v3129
        %v3770 = vpack.c.b16 %v3132, %v3130
        %v3771 = vpack.c.b16 %v3135, %v3133
        %v3772 = vpack.c.b16 %v3136, %v3134
        %v3773 = vpack.c.b16 %v3139, %v3137
        %v3774 = vpack.c.b16 %v3140, %v3138
        %v3775 = vpack.c.b16 %v3143, %v3141
        %v3776 = vpack.c.b16 %v3144, %v3142
        %v3777 = vpack.c.b16 %v3147, %v3145
        %v3778 = vpack.c.b16 %v3148, %v3146
        %v3779 = vpack.c.b16 %v3151, %v3149
        %v3780 = vpack.c.b16 %v3152, %v3150
        %v3781 = vpack.c.b16 %v3155, %v3153
        %v3782 = vpack.c.b16 %v3156, %v3154
        %v3783 = vpack.c.b16 %v3159, %v3157
        %v3784 = vpack.c.b16 %v3160, %v3158
        %v3785 = vpack.c.b16 %v3163, %v3161
        %v3786 = vpack.c.b16 %v3164, %v3162
        %v3787 = vpack.c.b16 %v3167, %v3165
        %v3788 = vpack.c.b16 %v3168, %v3166
        %v3789 = vpack.c.b16 %v3171, %v3169
        %v3790 = vpack.c.b16 %v3172, %v3170
        %v3791 = vpack.c.b16 %v3175, %v3173
        %v3792 = vpack.c.b16 %v3176, %v3174
        %v3793 = vpack.c.b16 %v3179, %v3177
        %v3794 = vpack.c.b16 %v3180, %v3178
        %v3795 = vpack.c.b16 %v3183, %v3181
        %v3796 = vpack.c.b16 %v3184, %v3182
        %v3797 = vpack.c.b16 %v3187, %v3185
        %v3798 = vpack.c.b16 %v3188, %v3186
        %v3799 = vpack.c.b16 %v3191, %v3189
        %v3800 = vpack.c.b16 %v3192, %v3190
        %v3801 = vpack.c.b16 %v3195, %v3193
        %v3802 = vpack.c.b16 %v3196, %v3194
        %v3803 = vpack.c.b16 %v3199, %v3197
        %v3804 = vpack.c.b16 %v3200, %v3198
        %v3805 = vpack.c.b16 %v3203, %v3201
        %v3806 = vpack.c.b16 %v3204, %v3202
        %v3807 = vpack.c.b16 %v3207, %v3205
        %v3808 = vpack.c.b16 %v3208, %v3206
        %v3809 = vpack.c.b16 %v3211, %v3209
        %v3810 = vpack.c.b16 %v3212, %v3210
        %v3811 = vpack.c.b16 %v3215, %v3213
        %v3812 = vpack.c.b16 %v3216, %v3214
        %v3813 = vpack.c.b16 %v3219, %v3217
        %v3814 = vpack.c.b16 %v3220, %v3218
        %v3815 = vpack.c.b16 %v3223, %v3221
        %v3816 = vpack.c.b16 %v3224, %v3222
        %v3817 = vpack.c.b16 %v3227, %v3225
        %v3818 = vpack.c.b16 %v3228, %v3226
        %v3819 = vpack.c.b16 %v3231, %v3229
        %v3820 = vpack.c.b16 %v3232, %v3230
        %v3821 = vpack.c.b16 %v3235, %v3233
        %v3822 = vpack.c.b16 %v3236, %v3234
        %v3823 = vpack.c.b16 %v3239, %v3237
        %v3824 = vpack.c.b16 %v3240, %v3238
        %v3825 = vpack.c.b16 %v3243, %v3241
        %v3826 = vpack.c.b16 %v3244, %v3242
        %v3827 = vpack.c.b16 %v3247, %v3245
        %v3828 = vpack.c.b16 %v3248, %v3246
        %v3829 = vpack.c.b16 %v3251, %v3249
        %v3830 = vpack.c.b16 %v3252, %v3250
        %v3831 = vpack.c.b16 %v3255, %v3253
        %v3832 = vpack.c.b16 %v3256, %v3254
        %v3833 = vpack.c.b16 %v3259, %v3257
        %v3834 = vpack.c.b16 %v3260, %v3258
        %v3835 = vpack.c.b16 %v3263, %v3261
        %v3836 = vpack.c.b16 %v3264, %v3262
        %v3837 = vpack.c.b16 %v3267, %v3265
        %v3838 = vpack.c.b16 %v3268, %v3266
        %v3839 = vpack.c.b16 %v3271, %v3269
        %v3840 = vpack.c.b16 %v3272, %v3270
        %v3841 = vpack.c.b16 %v3275, %v3273
        %v3842 = vpack.c.b16 %v3276, %v3274
        %v3843 = vpack.c.b16 %v3279, %v3277
        %v3844 = vpack.c.b16 %v3280, %v3278
        %v3845 = vpack.c.b16 %v3283, %v3281
        %v3846 = vpack.c.b16 %v3284, %v3282
        %v3847 = vpack.c.b16 %v3287, %v3285
        %v3848 = vpack.c.b16 %v3288, %v3286
        %v3849 = vpack.c.b16 %v3291, %v3289
        %v3850 = vpack.c.b16 %v3292, %v3290
        %v3851 = vpack.c.b16 %v3295, %v3293
        %v3852 = vpack.c.b16 %v3296, %v3294
        %v3853 = vpack.c.b16 %v3299, %v3297
        %v3854 = vpack.c.b16 %v3300, %v3298
        %v3855 = vpack.c.b16 %v3303, %v3301
        %v3856 = vpack.c.b16 %v3304, %v3302
        %v3857 = vpack.c.b16 %v3307, %v3305
        %v3858 = vpack.c.b16 %v3308, %v3306
        %v3859 = vpack.c.b16 %v3311, %v3309
        %v3860 = vpack.c.b16 %v3312, %v3310
        %v3861 = vpack.c.b16 %v3315, %v3313
        %v3862 = vpack.c.b16 %v3316, %v3314
        %v3863 = vpack.c.b16 %v3319, %v3317
        %v3864 = vpack.c.b16 %v3320, %v3318
        %v3865 = vpack.c.b16 %v3323, %v3321
        %v3866 = vpack.c.b16 %v3324, %v3322
        %v3867 = vpack.c.b16 %v3327, %v3325
        %v3868 = vpack.c.b16 %v3328, %v3326
        %v3869 = vpack.c.b16 %v3331, %v3329
        %v3870 = vpack.c.b16 %v3332, %v3330
        %v3871 = vpack.c.b16 %v3335, %v3333
        %v3872 = vpack.c.b16 %v3336, %v3334
        %v3873 = vpack.c.b16 %v3339, %v3337
        %v3874 = vpack.c.b16 %v3340, %v3338
        %v3875 = vpack.c.b16 %v3343, %v3341
        %v3876 = vpack.c.b16 %v3344, %v3342
        %v3877 = vpack.c.b16 %v3347, %v3345
        %v3878 = vpack.c.b16 %v3348, %v3346
        %v3879 = vpack.c.b16 %v3351, %v3349
        %v3880 = vpack.c.b16 %v3352, %v3350
        %v3881 = vpack.c.b16 %v3355, %v3353
        %v3882 = vpack.c.b16 %v3356, %v3354
        %v3883 = vpack.c.b16 %v3359, %v3357
        %v3884 = vpack.c.b16 %v3360, %v3358
        %v3885 = vpack.c.b16 %v3363, %v3361
        %v3886 = vpack.c.b16 %v3364, %v3362
        %v3887 = vpack.c.b16 %v3367, %v3365
        %v3888 = vpack.c.b16 %v3368, %v3366
        %v3889 = vpack.c.b16 %v3371, %v3369
        %v3890 = vpack.c.b16 %v3372, %v3370
        %v3891 = vpack.c.b16 %v3375, %v3373
        %v3892 = vpack.c.b16 %v3376, %v3374
        %v3893 = vpack.c.b16 %v3379, %v3377
        %v3894 = vpack.c.b16 %v3380, %v3378
        %v3895 = vpack.c.b16 %v3383, %v3381
        %v3896 = vpack.c.b16 %v3384, %v3382
        %v3897 = vpack.c.b16 %v3387, %v3385
        %v3898 = vpack.c.b16 %v3388, %v3386
        %v3899 = vpack.c.b16 %v3391, %v3389
        %v3900 = vpack.c.b16 %v3392, %v3390
        %v3901 = vpack.c.b16 %v3395, %v3393
        %v3902 = vpack.c.b16 %v3396, %v3394
        %v3903 = vpack.c.b16 %v3399, %v3397
        %v3904 = vpack.c.b16 %v3400, %v3398
        %v3905 = vpack.c.b16 %v3403, %v3401
        %v3906 = vpack.c.b16 %v3404, %v3402
        %v3907 = vpack.c.b16 %v3407, %v3405
        %v3908 = vpack.c.b16 %v3408, %v3406
        %v3909 = vpack.c.b16 %v3411, %v3409
        %v3910 = vpack.c.b16 %v3412, %v3410
        %v3911 = vpack.c.b16 %v3415, %v3413
        %v3912 = vpack.c.b16 %v3416, %v3414
        %v3913 = vpack.c.b16 %v3419, %v3417
        %v3914 = vpack.c.b16 %v3420, %v3418
        %v3915 = vpack.c.b16 %v3423, %v3421
        %v3916 = vpack.c.b16 %v3424, %v3422
        %v3917 = vpack.c.b16 %v3427, %v3425
        %v3918 = vpack.c.b16 %v3428, %v3426
        %v3919 = vpack.c.b16 %v3431, %v3429
        %v3920 = vpack.c.b16 %v3432, %v3430
        %v3921 = vpack.c.b16 %v3435, %v3433
        %v3922 = vpack.c.b16 %v3436, %v3434
        %v3923 = vpack.c.b16 %v3439, %v3437
        %v3924 = vpack.c.b16 %v3440, %v3438
        %v3925 = vpack.c.b16 %v3443, %v3441
        %v3926 = vpack.c.b16 %v3444, %v3442
        %v3927 = vpack.c.b16 %v3447, %v3445
        %v3928 = vpack.c.b16 %v3448, %v3446
        %v3929 = vpack.c.b16 %v3451, %v3449
        %v3930 = vpack.c.b16 %v3452, %v3450
        %v3931 = vpack.c.b16 %v3455, %v3453
        %v3932 = vpack.c.b16 %v3456, %v3454
        %v3933 = vpack.c.b16 %v3459, %v3457
        %v3934 = vpack.c.b16 %v3460, %v3458
        %v3935 = vpack.c.b16 %v3463, %v3461
        %v3936 = vpack.c.b16 %v3464, %v3462
        %v3937 = vpack.c.b16 %v3467, %v3465
        %v3938 = vpack.c.b16 %v3468, %v3466
        %v3939 = vpack.c.b16 %v3471, %v3469
        %v3940 = vpack.c.b16 %v3472, %v3470
        %v3941 = vpack.c.b16 %v3475, %v3473
        %v3942 = vpack.c.b16 %v3476, %v3474
        %v3943 = vpack.c.b16 %v3479, %v3477
        %v3944 = vpack.c.b16 %v3480, %v3478
        %v3945 = vpack.c.b16 %v3483, %v3481
        %v3946 = vpack.c.b16 %v3484, %v3482
        %v3947 = vpack.c.b16 %v3487, %v3485
        %v3948 = vpack.c.b16 %v3488, %v3486
        %v3949 = vpack.c.b16 %v3491, %v3489
        %v3950 = vpack.c.b16 %v3492, %v3490
        %v3951 = vpack.c.b16 %v3495, %v3493
        %v3952 = vpack.c.b16 %v3496, %v3494
        %v3953 = vpack.c.b16 %v3499, %v3497
        %v3954 = vpack.c.b16 %v3500, %v3498
        %v3955 = vpack.c.b16 %v3503, %v3501
        %v3956 = vpack.c.b16 %v3504, %v3502
        %v3957 = vpack.c.b16 %v3507, %v3505
        %v3958 = vpack.c.b16 %v3508, %v3506
        %v3959 = vpack.c.b16 %v3511, %v3509
        %v3960 = vpack.c.b16 %v3512, %v3510
        %v3961 = vpack.c.b16 %v3515, %v3513
        %v3962 = vpack.c.b16 %v3516, %v3514
        %v3963 = vpack.c.b16 %v3519, %v3517
        %v3964 = vpack.c.b16 %v3520, %v3518
        %v3965 = vpack.c.b16 %v3523, %v3521
        %v3966 = vpack.c.b16 %v3524, %v3522
        %v3967 = vpack.c.b16 %v3527, %v3525
        %v3968 = vpack.c.b16 %v3528, %v3526
        %v3969 = vpack.c.b16 %v3531, %v3529
        %v3970 = vpack.c.b16 %v3532, %v3530
        %v3971 = vpack.c.b16 %v3535, %v3533
        %v3972 = vpack.c.b16 %v3536, %v3534
        %v3973 = vpack.c.b16 %v3539, %v3537
        %v3974 = vpack.c.b16 %v3540, %v3538
        %v3975 = vpack.c.b16 %v3543, %v3541
        %v3976 = vpack.c.b16 %v3544, %v3542
        %v3977 = vpack.c.b16 %v3547, %v3545
        %v3978 = vpack.c.b16 %v3548, %v3546
        %v3979 = vpack.c.b16 %v3551, %v3549
        %v3980 = vpack.c.b16 %v3552, %v3550
        %v3981 = vpack.c.b16 %v3555, %v3553
        %v3982 = vpack.c.b16 %v3556, %v3554
        %v3983 = vpack.c.b16 %v3559, %v3557
        %v3984 = vpack.c.b16 %v3560, %v3558
        %v3985 = vpack.c.b16 %v3563, %v3561
        %v3986 = vpack.c.b16 %v3564, %v3562
        %v3987 = vpack.c.b16 %v3567, %v3565
        %v3988 = vpack.c.b16 %v3568, %v3566
        %v3989 = vpack.c.b16 %v3571, %v3569
        %v3990 = vpack.c.b16 %v3572, %v3570
        %v3991 = vpack.c.b16 %v3575, %v3573
        %v3992 = vpack.c.b16 %v3576, %v3574
        %v3993 = vpack.c.b16 %v3579, %v3577
        %v3994 = vpack.c.b16 %v3580, %v3578
        %v3995 = vpack.c.b16 %v3583, %v3581
        %v3996 = vpack.c.b16 %v3584, %v3582
        %v3997 = vpack.c.b16 %v3587, %v3585
        %v3998 = vpack.c.b16 %v3588, %v3586
        %v3999 = vpack.c.b16 %v3591, %v3589
        %v4000 = vpack.c.b16 %v3592, %v3590
        %v4001 = vpack.c.b16 %v3595, %v3593
        %v4002 = vpack.c.b16 %v3596, %v3594
        %v4003 = vpack.c.b16 %v3599, %v3597
        %v4004 = vpack.c.b16 %v3600, %v3598
        %v4005 = vpack.c.b16 %v3603, %v3601
        %v4006 = vpack.c.b16 %v3604, %v3602
        %v4007 = vpack.c.b16 %v3607, %v3605
        %v4008 = vpack.c.b16 %v3608, %v3606
        %v4009 = vpack.c.b16 %v3611, %v3609
        %v4010 = vpack.c.b16 %v3612, %v3610
        %v4011 = vpack.c.b16 %v3615, %v3613
        %v4012 = vpack.c.b16 %v3616, %v3614
        %v4013 = vpack.c.b16 %v3619, %v3617
        %v4014 = vpack.c.b16 %v3620, %v3618
        %v4015 = vpack.c.b16 %v3623, %v3621
        %v4016 = vpack.c.b16 %v3624, %v3622
        %vm4409 = vcmask 523264
        %v4411 = vsel %vm4409, %v2424, 0
        %4413 = vmatprep.subr.bf16.mxu0 %v3626
        %4414 = vmatpush1.bf16.msra.mxu0 %v3625
        %4415 = vmatprep.subr.bf16.mxu0 %v3628
        %4416 = vmatpush1.bf16.msra.mxu0 %v3627
        %4417 = vmatprep.subr.bf16.mxu0 %v3630
        %4418 = vmatpush1.bf16.msra.mxu0 %v3629
        %4419 = vmatprep.subr.bf16.mxu0 %v3632
        %4420 = vmatpush1.bf16.msra.mxu0 %v3631
        %4421 = vmatprep.subr.bf16.mxu0 %v3634
        %4422 = vmatpush1.bf16.msra.mxu0 %v3633
        %4423 = vmatprep.subr.bf16.mxu0 %v3636
        %4424 = vmatpush1.bf16.msra.mxu0 %v3635
        %4425 = vmatprep.subr.bf16.mxu0 %v3638
        %4426 = vmatpush1.bf16.msra.mxu0 %v3637
        %4427 = vmatprep.subr.bf16.mxu0 %v3640
        %4428 = vmatpush1.bf16.msra.mxu0 %v3639
        %4429 = vmatprep.subr.bf16.mxu0 %v3642
        %4430 = vmatpush1.bf16.msra.mxu0 %v3641
        %4431 = vmatprep.subr.bf16.mxu0 %v3644
        %4432 = vmatpush1.bf16.msra.mxu0 %v3643
        %4433 = vmatprep.subr.bf16.mxu0 %v3646
        %4434 = vmatpush1.bf16.msra.mxu0 %v3645
        %4435 = vmatprep.subr.bf16.mxu0 %v3648
        %4436 = vmatpush1.bf16.msra.mxu0 %v3647
        %4437 = vmatprep.subr.bf16.mxu0 %v3650
        %4438 = vmatpush1.bf16.msra.mxu0 %v3649
        %4439 = vmatprep.subr.bf16.mxu0 %v3652
        %4440 = vmatpush1.bf16.msra.mxu0 %v3651
        %4441 = vmatprep.subr.bf16.mxu0 %v3654
        %4442 = vmatpush1.bf16.msra.mxu0 %v3653
        %4443 = vmatprep.subr.bf16.mxu0 %v3656
        %4444 = vmatpush1.bf16.msra.mxu0 %v3655
        %4445 = vmatprep.mubr.bf16.mxu0 %v2301
        %4446 = vmatmul.mubr.bf16.gmra.mrb[0].mxu0 %v2287
        %v4447 = vpop.f32.mrb[0].mxu0
        %v4448 = vadd.f32 0.0, %v4447
        %v4449 = vpop.f32.mrb[0].mxu0
        %v4450 = vadd.f32 0.0, %v4449
        %v4451 = vpop.f32.mrb[0].mxu0
        %v4452 = vpop.f32.mrb[0].mxu0
        %4453 = vdwg.mxu0
        %4454 = vmatprep.subr.bf16.mxu0 %v3658
        %4455 = vmatpush1.bf16.msra.mxu0 %v3657
        %4456 = vmatprep.subr.bf16.mxu0 %v3660
        %4457 = vmatpush1.bf16.msra.mxu0 %v3659
        %4458 = vmatprep.subr.bf16.mxu0 %v3662
        %4459 = vmatpush1.bf16.msra.mxu0 %v3661
        %4460 = vmatprep.subr.bf16.mxu0 %v3664
        %4461 = vmatpush1.bf16.msra.mxu0 %v3663
        %4462 = vmatprep.subr.bf16.mxu0 %v3666
        %4463 = vmatpush1.bf16.msra.mxu0 %v3665
        %4464 = vmatprep.subr.bf16.mxu0 %v3668
        %4465 = vmatpush1.bf16.msra.mxu0 %v3667
        %4466 = vmatprep.subr.bf16.mxu0 %v3670
        %4467 = vmatpush1.bf16.msra.mxu0 %v3669
        %4468 = vmatprep.subr.bf16.mxu0 %v3672
        %4469 = vmatpush1.bf16.msra.mxu0 %v3671
        %4470 = vmatprep.subr.bf16.mxu0 %v3674
        %4471 = vmatpush1.bf16.msra.mxu0 %v3673
        %4472 = vmatprep.subr.bf16.mxu0 %v3676
        %4473 = vmatpush1.bf16.msra.mxu0 %v3675
        %4474 = vmatprep.subr.bf16.mxu0 %v3678
        %4475 = vmatpush1.bf16.msra.mxu0 %v3677
        %4476 = vmatprep.subr.bf16.mxu0 %v3680
        %4477 = vmatpush1.bf16.msra.mxu0 %v3679
        %4478 = vmatprep.subr.bf16.mxu0 %v3682
        %4479 = vmatpush1.bf16.msra.mxu0 %v3681
        %4480 = vmatprep.subr.bf16.mxu0 %v3684
        %4481 = vmatpush1.bf16.msra.mxu0 %v3683
        %4482 = vmatprep.subr.bf16.mxu0 %v3686
        %4483 = vmatpush1.bf16.msra.mxu0 %v3685
        %4484 = vmatprep.subr.bf16.mxu0 %v3688
        %4485 = vmatpush1.bf16.msra.mxu0 %v3687
        %4486 = vmatprep.mubr.bf16.mxu0 %v2311
        %4487 = vmatmul.mubr.bf16.gmra.mrb[0].mxu0 %v2309
        %v4488 = vpop.f32.mrb[0].mxu0
        %v4489 = vadd.f32 %v4448, %v4488
        %v4490 = vpop.f32.mrb[0].mxu0
        %v4491 = vadd.f32 %v4450, %v4490
        %v4492 = vpop.f32.mrb[0].mxu0
        %v4493 = vpop.f32.mrb[0].mxu0
        %4494 = vdwg.mxu0
        %4495 = vmatprep.subr.bf16.mxu0 %v3690
        %4496 = vmatpush1.bf16.msra.mxu0 %v3689
        %4497 = vmatprep.subr.bf16.mxu0 %v3692
        %4498 = vmatpush1.bf16.msra.mxu0 %v3691
        %4499 = vmatprep.subr.bf16.mxu0 %v3694
        %4500 = vmatpush1.bf16.msra.mxu0 %v3693
        %4501 = vmatprep.subr.bf16.mxu0 %v3696
        %4502 = vmatpush1.bf16.msra.mxu0 %v3695
        %4503 = vmatprep.subr.bf16.mxu0 %v3698
        %4504 = vmatpush1.bf16.msra.mxu0 %v3697
        %4505 = vmatprep.subr.bf16.mxu0 %v3700
        %4506 = vmatpush1.bf16.msra.mxu0 %v3699
        %4507 = vmatprep.subr.bf16.mxu0 %v3702
        %4508 = vmatpush1.bf16.msra.mxu0 %v3701
        %4509 = vmatprep.subr.bf16.mxu0 %v3704
        %4510 = vmatpush1.bf16.msra.mxu0 %v3703
        %4511 = vmatprep.subr.bf16.mxu0 %v3706
        %4512 = vmatpush1.bf16.msra.mxu0 %v3705
        %4513 = vmatprep.subr.bf16.mxu0 %v3708
        %4514 = vmatpush1.bf16.msra.mxu0 %v3707
        %4515 = vmatprep.subr.bf16.mxu0 %v3710
        %4516 = vmatpush1.bf16.msra.mxu0 %v3709
        %4517 = vmatprep.subr.bf16.mxu0 %v3712
        %4518 = vmatpush1.bf16.msra.mxu0 %v3711
        %4519 = vmatprep.subr.bf16.mxu0 %v3714
        %4520 = vmatpush1.bf16.msra.mxu0 %v3713
        %4521 = vmatprep.subr.bf16.mxu0 %v3716
        %4522 = vmatpush1.bf16.msra.mxu0 %v3715
        %4523 = vmatprep.subr.bf16.mxu0 %v3718
        %4524 = vmatpush1.bf16.msra.mxu0 %v3717
        %4525 = vmatprep.subr.bf16.mxu0 %v3720
        %4526 = vmatpush1.bf16.msra.mxu0 %v3719
        %4527 = vmatprep.mubr.bf16.mxu0 %v2308
        %4528 = vmatmul.mubr.bf16.gmra.mrb[0].mxu0 %v2294
        %v4529 = vpop.f32.mrb[0].mxu0
        %v4530 = vadd.f32 %v4489, %v4529
        %v4531 = vpop.f32.mrb[0].mxu0
        %v4532 = vadd.f32 %v4491, %v4531
        %v4533 = vpop.f32.mrb[0].mxu0
        %v4534 = vpop.f32.mrb[0].mxu0
        %4535 = vdwg.mxu0
        %4536 = vmatprep.subr.bf16.mxu0 %v3722
        %4537 = vmatpush1.bf16.msra.mxu0 %v3721
        %4538 = vmatprep.subr.bf16.mxu0 %v3724
        %4539 = vmatpush1.bf16.msra.mxu0 %v3723
        %4540 = vmatprep.subr.bf16.mxu0 %v3726
        %4541 = vmatpush1.bf16.msra.mxu0 %v3725
        %4542 = vmatprep.subr.bf16.mxu0 %v3728
        %4543 = vmatpush1.bf16.msra.mxu0 %v3727
        %4544 = vmatprep.subr.bf16.mxu0 %v3730
        %4545 = vmatpush1.bf16.msra.mxu0 %v3729
        %4546 = vmatprep.subr.bf16.mxu0 %v3732
        %4547 = vmatpush1.bf16.msra.mxu0 %v3731
        %4548 = vmatprep.subr.bf16.mxu0 %v3734
        %4549 = vmatpush1.bf16.msra.mxu0 %v3733
        %4550 = vmatprep.subr.bf16.mxu0 %v3736
        %4551 = vmatpush1.bf16.msra.mxu0 %v3735
        %4552 = vmatprep.subr.bf16.mxu0 %v3738
        %4553 = vmatpush1.bf16.msra.mxu0 %v3737
        %4554 = vmatprep.subr.bf16.mxu0 %v3740
        %4555 = vmatpush1.bf16.msra.mxu0 %v3739
        %4556 = vmatprep.subr.bf16.mxu0 %v3742
        %4557 = vmatpush1.bf16.msra.mxu0 %v3741
        %4558 = vmatprep.subr.bf16.mxu0 %v3744
        %4559 = vmatpush1.bf16.msra.mxu0 %v3743
        %4560 = vmatprep.subr.bf16.mxu0 %v3746
        %4561 = vmatpush1.bf16.msra.mxu0 %v3745
        %4562 = vmatprep.subr.bf16.mxu0 %v3748
        %4563 = vmatpush1.bf16.msra.mxu0 %v3747
        %4564 = vmatprep.subr.bf16.mxu0 %v3750
        %4565 = vmatpush1.bf16.msra.mxu0 %v3749
        %4566 = vmatprep.subr.bf16.mxu0 %v3752
        %4567 = vmatpush1.bf16.msra.mxu0 %v3751
        %4568 = vmatprep.mubr.bf16.mxu0 %v2312
        %4569 = vmatmul.mubr.bf16.gmra.mrb[0].mxu0 %v2310
        %v4570 = vpop.f32.mrb[0].mxu0
        %v4571 = vadd.f32 %v4530, %v4570
        %v4572 = vpop.f32.mrb[0].mxu0
        %v4573 = vadd.f32 %v4532, %v4572
        %v4574 = vpop.f32.mrb[0].mxu0
        %v4575 = vpop.f32.mrb[0].mxu0
        %4576 = vdwg.mxu0
        %4577 = vmatprep.subr.bf16.mxu0 %v3754
        %4578 = vmatpush1.bf16.msra.mxu0 %v3753
        %4579 = vmatprep.subr.bf16.mxu0 %v3756
        %4580 = vmatpush1.bf16.msra.mxu0 %v3755
        %4581 = vmatprep.subr.bf16.mxu0 %v3758
        %4582 = vmatpush1.bf16.msra.mxu0 %v3757
        %4583 = vmatprep.subr.bf16.mxu0 %v3760
        %4584 = vmatpush1.bf16.msra.mxu0 %v3759
        %4585 = vmatprep.subr.bf16.mxu0 %v3762
        %4586 = vmatpush1.bf16.msra.mxu0 %v3761
        %4587 = vmatprep.subr.bf16.mxu0 %v3764
        %4588 = vmatpush1.bf16.msra.mxu0 %v3763
        %4589 = vmatprep.subr.bf16.mxu0 %v3766
        %4590 = vmatpush1.bf16.msra.mxu0 %v3765
        %4591 = vmatprep.subr.bf16.mxu0 %v3768
        %4592 = vmatpush1.bf16.msra.mxu0 %v3767
        %4593 = vmatprep.subr.bf16.mxu0 %v3770
        %4594 = vmatpush1.bf16.msra.mxu0 %v3769
        %4595 = vmatprep.subr.bf16.mxu0 %v3772
        %4596 = vmatpush1.bf16.msra.mxu0 %v3771
        %4597 = vmatprep.subr.bf16.mxu0 %v3774
        %4598 = vmatpush1.bf16.msra.mxu0 %v3773
        %4599 = vmatprep.subr.bf16.mxu0 %v3776
        %4600 = vmatpush1.bf16.msra.mxu0 %v3775
        %4601 = vmatprep.subr.bf16.mxu0 %v3778
        %4602 = vmatpush1.bf16.msra.mxu0 %v3777
        %4603 = vmatprep.subr.bf16.mxu0 %v3780
        %4604 = vmatpush1.bf16.msra.mxu0 %v3779
        %4605 = vmatprep.subr.bf16.mxu0 %v3782
        %4606 = vmatpush1.bf16.msra.mxu0 %v3781
        %4607 = vmatprep.subr.bf16.mxu0 %v3784
        %4608 = vmatpush1.bf16.msra.mxu0 %v3783
        %4609 = vmatprep.mubr.bf16.mxu0 %v2350
        %4610 = vmatmul.mubr.bf16.gmra.mrb[0].mxu0 %v2336
        %v4611 = vpop.f32.mrb[0].mxu0
        %v4612 = vadd.f32 %v4571, %v4611
        %v4613 = vpop.f32.mrb[0].mxu0
        %v4614 = vadd.f32 %v4573, %v4613
        %v4615 = vpop.f32.mrb[0].mxu0
        %v4616 = vpop.f32.mrb[0].mxu0
        %4617 = vdwg.mxu0
        %4618 = vmatprep.subr.bf16.mxu0 %v3786
        %4619 = vmatpush1.bf16.msra.mxu0 %v3785
        %4620 = vmatprep.subr.bf16.mxu0 %v3788
        %4621 = vmatpush1.bf16.msra.mxu0 %v3787
        %4622 = vmatprep.subr.bf16.mxu0 %v3790
        %4623 = vmatpush1.bf16.msra.mxu0 %v3789
        %4624 = vmatprep.subr.bf16.mxu0 %v3792
        %4625 = vmatpush1.bf16.msra.mxu0 %v3791
        %4626 = vmatprep.subr.bf16.mxu0 %v3794
        %4627 = vmatpush1.bf16.msra.mxu0 %v3793
        %4628 = vmatprep.subr.bf16.mxu0 %v3796
        %4629 = vmatpush1.bf16.msra.mxu0 %v3795
        %4630 = vmatprep.subr.bf16.mxu0 %v3798
        %4631 = vmatpush1.bf16.msra.mxu0 %v3797
        %4632 = vmatprep.subr.bf16.mxu0 %v3800
        %4633 = vmatpush1.bf16.msra.mxu0 %v3799
        %4634 = vmatprep.subr.bf16.mxu0 %v3802
        %4635 = vmatpush1.bf16.msra.mxu0 %v3801
        %4636 = vmatprep.subr.bf16.mxu0 %v3804
        %4637 = vmatpush1.bf16.msra.mxu0 %v3803
        %4638 = vmatprep.subr.bf16.mxu0 %v3806
        %4639 = vmatpush1.bf16.msra.mxu0 %v3805
        %4640 = vmatprep.subr.bf16.mxu0 %v3808
        %4641 = vmatpush1.bf16.msra.mxu0 %v3807
        %4642 = vmatprep.subr.bf16.mxu0 %v3810
        %4643 = vmatpush1.bf16.msra.mxu0 %v3809
        %4644 = vmatprep.subr.bf16.mxu0 %v3812
        %4645 = vmatpush1.bf16.msra.mxu0 %v3811
        %4646 = vmatprep.subr.bf16.mxu0 %v3814
        %4647 = vmatpush1.bf16.msra.mxu0 %v3813
        %4648 = vmatprep.subr.bf16.mxu0 %v3816
        %4649 = vmatpush1.bf16.msra.mxu0 %v3815
        %4650 = vmatprep.mubr.bf16.mxu0 %v2360
        %4651 = vmatmul.mubr.bf16.gmra.mrb[0].mxu0 %v2358
        %v4652 = vpop.f32.mrb[0].mxu0
        %v4653 = vadd.f32 %v4612, %v4652
        %v4654 = vpop.f32.mrb[0].mxu0
        %v4655 = vadd.f32 %v4614, %v4654
        %v4656 = vpop.f32.mrb[0].mxu0
        %v4657 = vpop.f32.mrb[0].mxu0
        %4658 = vdwg.mxu0
        %4659 = vmatprep.subr.bf16.mxu0 %v3818
        %4660 = vmatpush1.bf16.msra.mxu0 %v3817
        %4661 = vmatprep.subr.bf16.mxu0 %v3820
        %4662 = vmatpush1.bf16.msra.mxu0 %v3819
        %4663 = vmatprep.subr.bf16.mxu0 %v3822
        %4664 = vmatpush1.bf16.msra.mxu0 %v3821
        %4665 = vmatprep.subr.bf16.mxu0 %v3824
        %4666 = vmatpush1.bf16.msra.mxu0 %v3823
        %4667 = vmatprep.subr.bf16.mxu0 %v3826
        %4668 = vmatpush1.bf16.msra.mxu0 %v3825
        %4669 = vmatprep.subr.bf16.mxu0 %v3828
        %4670 = vmatpush1.bf16.msra.mxu0 %v3827
        %4671 = vmatprep.subr.bf16.mxu0 %v3830
        %4672 = vmatpush1.bf16.msra.mxu0 %v3829
        %4673 = vmatprep.subr.bf16.mxu0 %v3832
        %4674 = vmatpush1.bf16.msra.mxu0 %v3831
        %4675 = vmatprep.subr.bf16.mxu0 %v3834
        %4676 = vmatpush1.bf16.msra.mxu0 %v3833
        %4677 = vmatprep.subr.bf16.mxu0 %v3836
        %4678 = vmatpush1.bf16.msra.mxu0 %v3835
        %4679 = vmatprep.subr.bf16.mxu0 %v3838
        %4680 = vmatpush1.bf16.msra.mxu0 %v3837
        %4681 = vmatprep.subr.bf16.mxu0 %v3840
        %4682 = vmatpush1.bf16.msra.mxu0 %v3839
        %4683 = vmatprep.subr.bf16.mxu0 %v3842
        %4684 = vmatpush1.bf16.msra.mxu0 %v3841
        %4685 = vmatprep.subr.bf16.mxu0 %v3844
        %4686 = vmatpush1.bf16.msra.mxu0 %v3843
        %4687 = vmatprep.subr.bf16.mxu0 %v3846
        %4688 = vmatpush1.bf16.msra.mxu0 %v3845
        %4689 = vmatprep.subr.bf16.mxu0 %v3848
        %4690 = vmatpush1.bf16.msra.mxu0 %v3847
        %4691 = vmatprep.mubr.bf16.mxu0 %v2357
        %4692 = vmatmul.mubr.bf16.gmra.mrb[0].mxu0 %v2343
        %v4693 = vpop.f32.mrb[0].mxu0
        %v4694 = vadd.f32 %v4653, %v4693
        %v4695 = vpop.f32.mrb[0].mxu0
        %v4696 = vadd.f32 %v4655, %v4695
        %v4697 = vpop.f32.mrb[0].mxu0
        %v4698 = vpop.f32.mrb[0].mxu0
        %4699 = vdwg.mxu0
        %4700 = vmatprep.subr.bf16.mxu0 %v3850
        %4701 = vmatpush1.bf16.msra.mxu0 %v3849
        %4702 = vmatprep.subr.bf16.mxu0 %v3852
        %4703 = vmatpush1.bf16.msra.mxu0 %v3851
        %4704 = vmatprep.subr.bf16.mxu0 %v3854
        %4705 = vmatpush1.bf16.msra.mxu0 %v3853
        %4706 = vmatprep.subr.bf16.mxu0 %v3856
        %4707 = vmatpush1.bf16.msra.mxu0 %v3855
        %4708 = vmatprep.subr.bf16.mxu0 %v3858
        %4709 = vmatpush1.bf16.msra.mxu0 %v3857
        %4710 = vmatprep.subr.bf16.mxu0 %v3860
        %4711 = vmatpush1.bf16.msra.mxu0 %v3859
        %4712 = vmatprep.subr.bf16.mxu0 %v3862
        %4713 = vmatpush1.bf16.msra.mxu0 %v3861
        %4714 = vmatprep.subr.bf16.mxu0 %v3864
        %4715 = vmatpush1.bf16.msra.mxu0 %v3863
        %4716 = vmatprep.subr.bf16.mxu0 %v3866
        %4717 = vmatpush1.bf16.msra.mxu0 %v3865
        %4718 = vmatprep.subr.bf16.mxu0 %v3868
        %4719 = vmatpush1.bf16.msra.mxu0 %v3867
        %4720 = vmatprep.subr.bf16.mxu0 %v3870
        %4721 = vmatpush1.bf16.msra.mxu0 %v3869
        %4722 = vmatprep.subr.bf16.mxu0 %v3872
        %4723 = vmatpush1.bf16.msra.mxu0 %v3871
        %4724 = vmatprep.subr.bf16.mxu0 %v3874
        %4725 = vmatpush1.bf16.msra.mxu0 %v3873
        %4726 = vmatprep.subr.bf16.mxu0 %v3876
        %4727 = vmatpush1.bf16.msra.mxu0 %v3875
        %4728 = vmatprep.subr.bf16.mxu0 %v3878
        %4729 = vmatpush1.bf16.msra.mxu0 %v3877
        %4730 = vmatprep.subr.bf16.mxu0 %v3880
        %4731 = vmatpush1.bf16.msra.mxu0 %v3879
        %4732 = vmatprep.mubr.bf16.mxu0 %v2361
        %4733 = vmatmul.mubr.bf16.gmra.mrb[0].mxu0 %v2359
        %v4734 = vpop.f32.mrb[0].mxu0
        %v4735 = vadd.f32 %v4694, %v4734
        %v4736 = vpop.f32.mrb[0].mxu0
        %v4737 = vadd.f32 %v4696, %v4736
        %v4738 = vpop.f32.mrb[0].mxu0
        %v4739 = vpop.f32.mrb[0].mxu0
        %4740 = vdwg.mxu0
        %4741 = vmatprep.subr.bf16.mxu0 %v3882
        %4742 = vmatpush1.bf16.msra.mxu0 %v3881
        %4743 = vmatprep.subr.bf16.mxu0 %v3884
        %4744 = vmatpush1.bf16.msra.mxu0 %v3883
        %4745 = vmatprep.subr.bf16.mxu0 %v3886
        %4746 = vmatpush1.bf16.msra.mxu0 %v3885
        %4747 = vmatprep.subr.bf16.mxu0 %v3888
        %4748 = vmatpush1.bf16.msra.mxu0 %v3887
        %4749 = vmatprep.subr.bf16.mxu0 %v3890
        %4750 = vmatpush1.bf16.msra.mxu0 %v3889
        %4751 = vmatprep.subr.bf16.mxu0 %v3892
        %4752 = vmatpush1.bf16.msra.mxu0 %v3891
        %4753 = vmatprep.subr.bf16.mxu0 %v3894
        %4754 = vmatpush1.bf16.msra.mxu0 %v3893
        %4755 = vmatprep.subr.bf16.mxu0 %v3896
        %4756 = vmatpush1.bf16.msra.mxu0 %v3895
        %4757 = vmatprep.subr.bf16.mxu0 %v3898
        %4758 = vmatpush1.bf16.msra.mxu0 %v3897
        %4759 = vmatprep.subr.bf16.mxu0 %v3900
        %4760 = vmatpush1.bf16.msra.mxu0 %v3899
        %4761 = vmatprep.subr.bf16.mxu0 %v3902
        %4762 = vmatpush1.bf16.msra.mxu0 %v3901
        %4763 = vmatprep.subr.bf16.mxu0 %v3904
        %4764 = vmatpush1.bf16.msra.mxu0 %v3903
        %4765 = vmatprep.subr.bf16.mxu0 %v3906
        %4766 = vmatpush1.bf16.msra.mxu0 %v3905
        %4767 = vmatprep.subr.bf16.mxu0 %v3908
        %4768 = vmatpush1.bf16.msra.mxu0 %v3907
        %4769 = vmatprep.subr.bf16.mxu0 %v3910
        %4770 = vmatpush1.bf16.msra.mxu0 %v3909
        %4771 = vmatprep.subr.bf16.mxu0 %v3912
        %4772 = vmatpush1.bf16.msra.mxu0 %v3911
        %4773 = vmatprep.mubr.bf16.mxu0 %v2399
        %4774 = vmatmul.mubr.bf16.gmra.mrb[0].mxu0 %v2385
        %v4775 = vpop.f32.mrb[0].mxu0
        %v4776 = vadd.f32 %v4735, %v4775
        %v4777 = vpop.f32.mrb[0].mxu0
        %v4778 = vadd.f32 %v4737, %v4777
        %v4779 = vpop.f32.mrb[0].mxu0
        %v4780 = vpop.f32.mrb[0].mxu0
        %4781 = vdwg.mxu0
        %4782 = vmatprep.subr.bf16.mxu0 %v3914
        %4783 = vmatpush1.bf16.msra.mxu0 %v3913
        %4784 = vmatprep.subr.bf16.mxu0 %v3916
        %4785 = vmatpush1.bf16.msra.mxu0 %v3915
        %4786 = vmatprep.subr.bf16.mxu0 %v3918
        %4787 = vmatpush1.bf16.msra.mxu0 %v3917
        %4788 = vmatprep.subr.bf16.mxu0 %v3920
        %4789 = vmatpush1.bf16.msra.mxu0 %v3919
        %4790 = vmatprep.subr.bf16.mxu0 %v3922
        %4791 = vmatpush1.bf16.msra.mxu0 %v3921
        %4792 = vmatprep.subr.bf16.mxu0 %v3924
        %4793 = vmatpush1.bf16.msra.mxu0 %v3923
        %4794 = vmatprep.subr.bf16.mxu0 %v3926
        %4795 = vmatpush1.bf16.msra.mxu0 %v3925
        %4796 = vmatprep.subr.bf16.mxu0 %v3928
        %4797 = vmatpush1.bf16.msra.mxu0 %v3927
        %4798 = vmatprep.subr.bf16.mxu0 %v3930
        %4799 = vmatpush1.bf16.msra.mxu0 %v3929
        %4800 = vmatprep.subr.bf16.mxu0 %v3932
        %4801 = vmatpush1.bf16.msra.mxu0 %v3931
        %4802 = vmatprep.subr.bf16.mxu0 %v3934
        %4803 = vmatpush1.bf16.msra.mxu0 %v3933
        %4804 = vmatprep.subr.bf16.mxu0 %v3936
        %4805 = vmatpush1.bf16.msra.mxu0 %v3935
        %4806 = vmatprep.subr.bf16.mxu0 %v3938
        %4807 = vmatpush1.bf16.msra.mxu0 %v3937
        %4808 = vmatprep.subr.bf16.mxu0 %v3940
        %4809 = vmatpush1.bf16.msra.mxu0 %v3939
        %4810 = vmatprep.subr.bf16.mxu0 %v3942
        %4811 = vmatpush1.bf16.msra.mxu0 %v3941
        %4812 = vmatprep.subr.bf16.mxu0 %v3944
        %4813 = vmatpush1.bf16.msra.mxu0 %v3943
        %4814 = vmatprep.mubr.bf16.mxu0 %v2409
        %4815 = vmatmul.mubr.bf16.gmra.mrb[0].mxu0 %v2407
        %v4816 = vpop.f32.mrb[0].mxu0
        %v4817 = vadd.f32 %v4776, %v4816
        %v4818 = vpop.f32.mrb[0].mxu0
        %v4819 = vadd.f32 %v4778, %v4818
        %v4820 = vpop.f32.mrb[0].mxu0
        %v4821 = vpop.f32.mrb[0].mxu0
        %4822 = vdwg.mxu0
        %4823 = vmatprep.subr.bf16.mxu0 %v3946
        %4824 = vmatpush1.bf16.msra.mxu0 %v3945
        %4825 = vmatprep.subr.bf16.mxu0 %v3948
        %4826 = vmatpush1.bf16.msra.mxu0 %v3947
        %4827 = vmatprep.subr.bf16.mxu0 %v3950
        %4828 = vmatpush1.bf16.msra.mxu0 %v3949
        %4829 = vmatprep.subr.bf16.mxu0 %v3952
        %4830 = vmatpush1.bf16.msra.mxu0 %v3951
        %4831 = vmatprep.subr.bf16.mxu0 %v3954
        %4832 = vmatpush1.bf16.msra.mxu0 %v3953
        %4833 = vmatprep.subr.bf16.mxu0 %v3956
        %4834 = vmatpush1.bf16.msra.mxu0 %v3955
        %4835 = vmatprep.subr.bf16.mxu0 %v3958
        %4836 = vmatpush1.bf16.msra.mxu0 %v3957
        %4837 = vmatprep.subr.bf16.mxu0 %v3960
        %4838 = vmatpush1.bf16.msra.mxu0 %v3959
        %4839 = vmatprep.subr.bf16.mxu0 %v3962
        %4840 = vmatpush1.bf16.msra.mxu0 %v3961
        %4841 = vmatprep.subr.bf16.mxu0 %v3964
        %4842 = vmatpush1.bf16.msra.mxu0 %v3963
        %4843 = vmatprep.subr.bf16.mxu0 %v3966
        %4844 = vmatpush1.bf16.msra.mxu0 %v3965
        %4845 = vmatprep.subr.bf16.mxu0 %v3968
        %4846 = vmatpush1.bf16.msra.mxu0 %v3967
        %4847 = vmatprep.subr.bf16.mxu0 %v3970
        %4848 = vmatpush1.bf16.msra.mxu0 %v3969
        %4849 = vmatprep.subr.bf16.mxu0 %v3972
        %4850 = vmatpush1.bf16.msra.mxu0 %v3971
        %4851 = vmatprep.subr.bf16.mxu0 %v3974
        %4852 = vmatpush1.bf16.msra.mxu0 %v3973
        %4853 = vmatprep.subr.bf16.mxu0 %v3976
        %4854 = vmatpush1.bf16.msra.mxu0 %v3975
        %4855 = vmatprep.mubr.bf16.mxu0 %v2406
        %4856 = vmatmul.mubr.bf16.gmra.mrb[0].mxu0 %v2392
        %v4857 = vpop.f32.mrb[0].mxu0
        %v4858 = vadd.f32 %v4817, %v4857
        %v4859 = vpop.f32.mrb[0].mxu0
        %v4860 = vadd.f32 %v4819, %v4859
        %v4861 = vpop.f32.mrb[0].mxu0
        %v4862 = vpop.f32.mrb[0].mxu0
        %4863 = vdwg.mxu0
        %4864 = vmatprep.subr.bf16.mxu0 %v3978
        %4865 = vmatpush1.bf16.msra.mxu0 %v3977
        %4866 = vmatprep.subr.bf16.mxu0 %v3980
        %4867 = vmatpush1.bf16.msra.mxu0 %v3979
        %4868 = vmatprep.subr.bf16.mxu0 %v3982
        %4869 = vmatpush1.bf16.msra.mxu0 %v3981
        %4870 = vmatprep.subr.bf16.mxu0 %v3984
        %4871 = vmatpush1.bf16.msra.mxu0 %v3983
        %4872 = vmatprep.subr.bf16.mxu0 %v3986
        %4873 = vmatpush1.bf16.msra.mxu0 %v3985
        %4874 = vmatprep.subr.bf16.mxu0 %v3988
        %4875 = vmatpush1.bf16.msra.mxu0 %v3987
        %4876 = vmatprep.subr.bf16.mxu0 %v3990
        %4877 = vmatpush1.bf16.msra.mxu0 %v3989
        %4878 = vmatprep.subr.bf16.mxu0 %v3992
        %4879 = vmatpush1.bf16.msra.mxu0 %v3991
        %4880 = vmatprep.subr.bf16.mxu0 %v3994
        %4881 = vmatpush1.bf16.msra.mxu0 %v3993
        %4882 = vmatprep.subr.bf16.mxu0 %v3996
        %4883 = vmatpush1.bf16.msra.mxu0 %v3995
        %4884 = vmatprep.subr.bf16.mxu0 %v3998
        %4885 = vmatpush1.bf16.msra.mxu0 %v3997
        %4886 = vmatprep.subr.bf16.mxu0 %v4000
        %4887 = vmatpush1.bf16.msra.mxu0 %v3999
        %4888 = vmatprep.subr.bf16.mxu0 %v4002
        %4889 = vmatpush1.bf16.msra.mxu0 %v4001
        %4890 = vmatprep.subr.bf16.mxu0 %v4004
        %4891 = vmatpush1.bf16.msra.mxu0 %v4003
        %4892 = vmatprep.subr.bf16.mxu0 %v4006
        %4893 = vmatpush1.bf16.msra.mxu0 %v4005
        %4894 = vmatprep.subr.bf16.mxu0 %v4008
        %4895 = vmatpush1.bf16.msra.mxu0 %v4007
        %4896 = vmatprep.mubr.bf16.mxu0 %v2410
        %4897 = vmatmul.mubr.bf16.gmra.mrb[0].mxu0 %v2408
        %v4898 = vpop.f32.mrb[0].mxu0
        %v4899 = vadd.f32 %v4858, %v4898
        %v4900 = vpop.f32.mrb[0].mxu0
        %v4901 = vadd.f32 %v4860, %v4900
        %v4902 = vpop.f32.mrb[0].mxu0
        %v4903 = vpop.f32.mrb[0].mxu0
        %4904 = vdwg.mxu0
        %4905 = vmatprep.subr.bf16.mxu0 %v4010
        %4906 = vmatpush1.bf16.msra.mxu0 %v4009
        %4907 = vmatprep.subr.bf16.mxu0 %v4012
        %4908 = vmatpush1.bf16.msra.mxu0 %v4011
        %4909 = vmatprep.subr.bf16.mxu0 %v4014
        %4910 = vmatpush1.bf16.msra.mxu0 %v4013
        %4911 = vmatprep.subr.bf16.mxu0 %v4016
        %4912 = vmatpush1.bf16.msra.mxu0 %v4015
        %4913 = vmatprep.subr.bf16.mxu0 0
        %4914 = vmatpush1.bf16.msra.mxu0 0
        %4915 = vmatprep.subr.bf16.mxu0 0
        %4916 = vmatpush1.bf16.msra.mxu0 0
        %4917 = vmatprep.subr.bf16.mxu0 0
        %4918 = vmatpush1.bf16.msra.mxu0 0
        %4919 = vmatprep.subr.bf16.mxu0 0
        %4920 = vmatpush1.bf16.msra.mxu0 0
        %4921 = vmatprep.subr.bf16.mxu0 0
        %4922 = vmatpush1.bf16.msra.mxu0 0
        %4923 = vmatprep.subr.bf16.mxu0 0
        %4924 = vmatpush1.bf16.msra.mxu0 0
        %4925 = vmatprep.subr.bf16.mxu0 0
        %4926 = vmatpush1.bf16.msra.mxu0 0
        %4927 = vmatprep.subr.bf16.mxu0 0
        %4928 = vmatpush1.bf16.msra.mxu0 0
        %4929 = vmatprep.subr.bf16.mxu0 0
        %4930 = vmatpush1.bf16.msra.mxu0 0
        %4931 = vmatprep.subr.bf16.mxu0 0
        %4932 = vmatpush1.bf16.msra.mxu0 0
        %4933 = vmatprep.subr.bf16.mxu0 0
        %4934 = vmatpush1.bf16.msra.mxu0 0
        %4935 = vmatprep.subr.bf16.mxu0 0
        %4936 = vmatpush1.bf16.msra.mxu0 0
        %4937 = vmatprep.mubr.bf16.mxu0 0
        %4938 = vmatmul.mubr.bf16.gmra.mrb[0].mxu0 %v4411
        %v4939 = vpop.f32.mrb[0].mxu0
        %v4940 = vadd.f32 %v4899, %v4939
        %v4941 = vpop.f32.mrb[0].mxu0
        %v4942 = vadd.f32 %v4901, %v4941
        %v4943 = vpop.f32.mrb[0].mxu0
        %v4944 = vpop.f32.mrb[0].mxu0
        %4945 = vdwg.mxu0
        %v4948 = vcombine.low %v4940, %v4942
        %v4950 = vunpack.c.l.s4 1983009808
        %v4951 = vunpack.c.0.s8 %v4950
        %v4952 = vlaneseq
        %v4953 = vshrl.u32 %v4952, 7
        %v4954 = vsub.s32 %v4951, %v4953
        %v4955 = vrot.slane %v4948, %v4954
        %v4957 = vadd.f32 %v1863, %v4955
        %4958 = vst [vmem:[#allocation2] sm:$0xf] %v4957
        // Predicated region
        $region75: #{qnet_forward.8} parent=65 // pred_check
          %p4959 = pneg %p1858
        $region76: #{qnet_forward.8} parent=65 // pred_check_branch
          %4961 = sbr.rel (%p4959) target = $region78
        $region77: #{qnet_forward.8} parent=65 // pred_region
          %v4962 = vld [vmem:[#allocation2] sm:$0xf]
          %v4963 = vld [vmem:[%s1846] sm:$0x3]
          %v4965 = vlaneseq
          %v4966 = vshrl.u32 %v4965, 7
          %v4967 = vsub.s32 0, %v4966
          %v4968 = vrot.slane %v4963, %v4967
          %v4969 = vlaneseq
          %v4970 = vshrl.u32 %v4969, 7
          %v4971 = vsub.s32 1, %v4970
          %v4972 = vrot.slane %v4963, %v4971
          %v4973 = vcombine.low %v4968, %v4972
          %v4975 = vunpack.c.l.s4 1983009808
          %v4976 = vunpack.c.0.s8 %v4975
          %v4977 = vlaneseq
          %v4978 = vshrl.u32 %v4977, 7
          %v4979 = vsub.s32 %v4976, %v4978
          %v4980 = vrot.slane %v4973, %v4979
          %v4982 = vadd.f32 %v4962, %v4980
          %v4983 = vmax.f32 %v4982, 0.0
          %v4986 = vunpack.c.l.s4 1983009808
          %v4987 = vunpack.c.0.s8 %v4986
          %v4988 = vlaneseq
          %v4989 = vshrl.u32 %v4988, 7
          %v4990 = vsub.s32 %v4987, %v4989
          %v4991 = vrot.slane %v4983, %v4990
          %v4992 = vcombine.high %v4991, %v4991
          %v4995 = vpack.c.bf16 %v4991, %v4991
          %v4996 = vpack.c.bf16 %v4992, %v4992
          %v4999 = vcombine.low %v4995, %v4996
          %v5001 = vunpack.c.l.s4 1966171168
          %v5002 = vunpack.c.0.s8 %v5001
          %v5003 = vlaneseq
          %v5004 = vshrl.u32 %v5003, 7
          %v5005 = vsub.s32 %v5002, %v5004
          %v5006 = vrot.slane %v4999, %v5005
          %v5008 = vunpack.c.l.s4 1966171168
          %v5009 = vunpack.c.0.s8 %v5008
          %v5010 = vlaneseq
          %v5011 = vshrl.u32 %v5010, 7
          %v5012 = vsub.s32 %v5009, %v5011
          %v5013 = vrot.slane %v5006, %v5012
          %5015 = vst [vmem:[%s1855] sm:$0x3] %v5013
        $region78: #{qnet_forward.8} parent=65 // pred_fallthru
          _
        %s5016 = smul.u32 2, %s20
        %p5017 = scmp.lt.s32.totalorder %s19, 0
        %s5018 = scalar_select %p5017, %s19, 0
        %p5019 = scmp.lt.s32.totalorder %s5016, 3
        %s5020 = scalar_select %p5019, %s5016, 3
        %s5021 = smul.addr %s5018, 4
        %s5022 = sadd.s32 %s5020, %s5021
        %s5023 = scalar_lea.vmem %s3, %s5022
        // Predicated region
        $region79: #{qnet_forward.8} parent=65 // pred_check
          %p5024 = pneg %p135
        $region80: #{qnet_forward.8} parent=65 // pred_check_branch
          %5026 = sbr.rel (%p5024) target = $region82
        $region81: #{qnet_forward.8} parent=65 // pred_region
          %s5027 = smul.u32 2, %s20
        $region82: #{qnet_forward.8} parent=65 // pred_fallthru
          _
      $region66: #{qnet_forward.8} parent=5 // pred_fallthru
        _
      %p5028 = scmp.le.s32.totalorder 2, %s9
      // Predicated region
      $region83: #{qnet_forward.8} parent=5 // pred_check
        %p5029 = pneg %p5028
      $region84: #{qnet_forward.8} parent=5 // pred_check_branch
        %5031 = sbr.rel (%p5029) target = $region86
      $region85: #{qnet_forward.8} parent=5 // pred_region
        %s5032 = ssub.s32 %s9, 2
        // Predicated region
        $region87: #{qnet_forward.8} parent=85 // pred_check
          %p5033 = pneg %p141
        $region88: #{qnet_forward.8} parent=85 // pred_check_branch
          %5035 = sbr.rel (%p5033) target = $region90
        $region89: #{qnet_forward.8} parent=85 // pred_region
          %s5036 = smul.u32 2, %s23
          %p5037 = scmp.lt.s32.totalorder %s22, 0
          %s5038 = scalar_select %p5037, %s22, 0
          %p5039 = scmp.lt.s32.totalorder %s5036, 3
          %s5040 = scalar_select %p5039, %s5036, 3
          %s5041 = smul.addr %s5038, 4
          %s5042 = sadd.s32 %s5040, %s5041
          %s5043 = scalar_lea.vmem %s3, %s5042
        $region90: #{qnet_forward.8} parent=85 // pred_fallthru
          _
      $region86: #{qnet_forward.8} parent=5 // pred_fallthru
        _
    $region6: #{qnet_forward.8} parent=1 // loop_footer
      %s13 = sadd.s32 1, %s9
    $region7: #{qnet_forward.8} parent=1 // loop_footer_branch
      %8 = sbr.rel target = $region3
    $region8: #{qnet_forward.8} parent=1 // loop_exit
      _

</llo_original>
